<compile_context>
chip_gen: v6e
topology: v6e:2x2x1
jax: 0.10.0
libtpu: 0.0.40
codegen_flags: <defaults>
</compile_context>

<pallas_src>
import functools

import jax
import jax.numpy as jnp
from jax.experimental import pallas as pl
from jax.experimental.pallas import tpu as pltpu


def _layernorm(x, gamma, beta, eps=1e-5):
    mean = jnp.mean(x, axis=-1, keepdims=True)
    var = jnp.mean((x - mean) ** 2, axis=-1, keepdims=True)
    return (x - mean) * jax.lax.rsqrt(var + eps) * gamma + beta


def _attention(q, k, v, w_o_ref, b_o_ref, ctx_ref, num_heads, causal, need_probs):
    """Multi-head attention on 2-D (rows, E) operands; static per-head loop.

    q/k/v are f32 activations (the 1/sqrt(Dh) scale is already folded into the Q
    projection). Per-head contexts are written straight into ctx_ref, a (T, E) bf16
    VMEM scratch, so there is no concatenate and the out-projection gets a bf16 LHS.
    Returns (out (T, E) f32, head-averaged probs (T, S) f32 or None)."""
    T, E = q.shape
    S = k.shape[0]
    Dh = E // num_heads

    q_bf = q.astype(jnp.bfloat16)
    k_bf = k.astype(jnp.bfloat16)
    v_bf = v.astype(jnp.bfloat16)

    if causal:
        row = jax.lax.broadcasted_iota(jnp.int32, (T, S), 0)
        col = jax.lax.broadcasted_iota(jnp.int32, (T, S), 1)
        bias = jnp.where(col > row, -1e30, 0.0).astype(jnp.float32)

    p_sum = jnp.zeros((T, S), jnp.float32) if need_probs else None
    for h in range(num_heads):  # static unrolled loop; H is small
        sl = slice(h * Dh, (h + 1) * Dh)
        s = jax.lax.dot_general(q_bf[:, sl], k_bf[:, sl],
                                (((1,), (1,)), ((), ())),
                                preferred_element_type=jnp.float32)     # (T, S) f32
        if causal:
            s = s + bias
        s = s - jnp.max(s, axis=-1, keepdims=True)
        p = jnp.exp(s)
        p = p * pl.reciprocal(jnp.sum(p, axis=-1, keepdims=True), approx=True)
        if need_probs:
            p_sum = p_sum + p
        ctx_h = jnp.dot(p.astype(jnp.bfloat16), v_bf[:, sl],
                        preferred_element_type=jnp.float32)             # (T, Dh)
        ctx_ref[:, sl] = ctx_h.astype(ctx_ref.dtype)

    out = jnp.dot(ctx_ref[...], w_o_ref[...],
                  preferred_element_type=jnp.float32) + b_o_ref[...]
    probs = p_sum * (1.0 / num_heads) if need_probs else None
    return out, probs


def decoder_layer_kernel(x_ref, enc_ref,
                         w_qkv_ref, b_qkv_ref, w_so_ref, b_so_ref,
                         sa_g_ref, sa_b_ref,
                         w_eq_ref, b_eq_ref, w_ekv_ref, b_ekv_ref,
                         w_eo_ref, b_eo_ref, ea_g_ref, ea_b_ref,
                         w1_ref, b1_ref, w2_ref, b2_ref, f_g_ref, f_b_ref,
                         out_ref, attn_ref, ctx_ref, *, num_heads, causal):
    E = x_ref.shape[-1]

    x = x_ref[0].astype(jnp.float32)              # (T, E) f32 for LN / residuals
    enc_bf = enc_ref[0].astype(jnp.bfloat16)      # encoder states only feed a matmul

    # ---- self-attention (post-norm), fused QKV projection (scale pre-folded) ----
    residual = x
    qkv = jnp.dot(x.astype(jnp.bfloat16), w_qkv_ref[...],
                  preferred_element_type=jnp.float32) + b_qkv_ref[...]
    sa, _ = _attention(qkv[:, :E], qkv[:, E:2 * E], qkv[:, 2 * E:],
                       w_so_ref, b_so_ref, ctx_ref, num_heads, causal,
                       need_probs=False)
    x = _layernorm(sa + residual, sa_g_ref[...], sa_b_ref[...])

    # ---- encoder-decoder attention, fused KV projection ----
    residual = x
    q = jnp.dot(x.astype(jnp.bfloat16), w_eq_ref[...],
                preferred_element_type=jnp.float32) + b_eq_ref[...]
    kv = jnp.dot(enc_bf, w_ekv_ref[...],
                 preferred_element_type=jnp.float32) + b_ekv_ref[...]
    ea, attn_avg = _attention(q, kv[:, :E], kv[:, E:],
                              w_eo_ref, b_eo_ref, ctx_ref, num_heads, False,
                              need_probs=True)
    x = _layernorm(ea + residual, ea_g_ref[...], ea_b_ref[...])

    # ---- FFN: fc1 -> relu -> fc2 -> residual -> final LayerNorm ----
    residual = x
    y = jnp.dot(x.astype(jnp.bfloat16), w1_ref[...],
                preferred_element_type=jnp.float32) + b1_ref[...]
    y = jnp.maximum(y, 0.0)
    y = jnp.dot(y.astype(jnp.bfloat16), w2_ref[...],
                preferred_element_type=jnp.float32) + b2_ref[...]
    x = _layernorm(y + residual, f_g_ref[...], f_b_ref[...])

    out_ref[0] = x.astype(out_ref.dtype)
    attn_ref[0] = attn_avg.astype(attn_ref.dtype)


_WEIGHT_NAMES = ["w_qkv", "b_qkv", "w_so", "b_so", "sa_gamma", "sa_beta",
                 "w_eq", "b_eq", "w_ekv", "b_ekv", "w_eo", "b_eo",
                 "ea_gamma", "ea_beta",
                 "w1", "b1", "w2", "b2", "f_gamma", "f_beta"]
_BF16_WEIGHTS = {"w_qkv", "w_so", "w_eq", "w_ekv", "w_eo", "w1", "w2"}


def export_params(params, num_heads):
    """Export-time transform: fold the 1/sqrt(Dh) attention scale into the Q
    projections (weights and biases, matching fairseq's `q *= scaling` after q_proj)
    and cast matmul weights to bf16. Biases and LayerNorm params stay f32."""
    E = params["w_qkv"].shape[0]
    scale = (E // num_heads) ** -0.5
    ep = {k: jnp.asarray(v, jnp.float32) for k, v in params.items()}
    ep["w_qkv"] = ep["w_qkv"].at[:, :E].multiply(scale)
    ep["b_qkv"] = ep["b_qkv"].at[:, :E].multiply(scale)
    ep["w_eq"] = ep["w_eq"] * scale
    ep["b_eq"] = ep["b_eq"] * scale
    for name in _BF16_WEIGHTS:
        ep[name] = ep[name].astype(jnp.bfloat16)
    return ep


def _vmem_limit_bytes(weights, T, S, E, F, in_itemsize, out_itemsize):
    weight_bytes = sum(int(w.size) * w.dtype.itemsize for w in weights)
    act_bytes = (
        2 * (T * E + S * E) * in_itemsize             # double-buffered x / enc tiles
        + 2 * (T * E * out_itemsize + T * S * 2)      # double-buffered out / attn(bf16)
        + 4 * (3 * T * E + 2 * S * E + 3 * T * S + 2 * T * F + 6 * T * E)  # f32 temps
        + 2 * (3 * T * E + 2 * S * E + T * E)         # bf16 matmul copies + ctx scratch
    )
    need = int(1.25 * (weight_bytes + act_bytes)) + (4 << 20)
    try:
        cap = int(pltpu.get_tpu_info().vmem_capacity_bytes)
    except Exception:
        cap = 64 << 20                                # conservative (v7x) fallback
    return int(min(max(need, 16 << 20), cap - (8 << 20)))


def transformer_decoder_layer(x_tbe, encoder_out_sbe, exported_params, *,
                              num_heads, causal=True):
    """x: (T, B, E), encoder_out: (S, B, E) -> (out (T, B, E), attn (B, T, S) bf16).

    `exported_params` must come from export_params() (bf16 weights, scale folded)."""
    T, B, E = x_tbe.shape
    S = encoder_out_sbe.shape[0]
    F = exported_params["w1"].shape[1]

    # Layout plumbing (outside the kernel): batch-major so the grid tiles the batch axis.
    x = jnp.transpose(x_tbe, (1, 0, 2))               # (B, T, E)
    enc = jnp.transpose(encoder_out_sbe, (1, 0, 2))   # (B, S, E)

    weights = [exported_params[name] for name in _WEIGHT_NAMES]
    vmem_limit = _vmem_limit_bytes(weights, T, S, E, F,
                                   x.dtype.itemsize, x_tbe.dtype.itemsize)
    kernel = functools.partial(decoder_layer_kernel, num_heads=num_heads, causal=causal)

    def run(single_buffer_weights):
        def weight_spec(arr):
            idx = lambda b, _n=arr.ndim: (0,) * _n
            if single_buffer_weights:
                # Constant index_map across the grid -> double-buffering is pure waste.
                return pl.BlockSpec(arr.shape, idx, pipeline_mode=pl.Buffered(1))
            return pl.BlockSpec(arr.shape, idx)

        in_specs = ([pl.BlockSpec((1, T, E), lambda b: (b, 0, 0)),
                     pl.BlockSpec((1, S, E), lambda b: (b, 0, 0))]
                    + [weight_spec(w) for w in weights])
        out_specs = (pl.BlockSpec((1, T, E), lambda b: (b, 0, 0)),
                     pl.BlockSpec((1, T, S), lambda b: (b, 0, 0)))
        return pl.pallas_call(
            kernel,
            out_shape=(jax.ShapeDtypeStruct((B, T, E), x_tbe.dtype),
                       jax.ShapeDtypeStruct((B, T, S), jnp.bfloat16)),
            grid=(B,),
            in_specs=in_specs,
            out_specs=out_specs,
            scratch_shapes=[pltpu.VMEM((T, E), jnp.bfloat16)],
            compiler_params=pltpu.CompilerParams(
                dimension_semantics=("parallel",),
                vmem_limit_bytes=vmem_limit),
        )(x, enc, *weights)

    try:
        out, attn = run(single_buffer_weights=True)
    except Exception:
        # Fallback for jax versions without BlockSpec(pipeline_mode=pl.Buffered(1)).
        out, attn = run(single_buffer_weights=False)

    return jnp.transpose(out, (1, 0, 2)), attn


def reference_forward(x_tbe, enc_sbe, ep, *, num_heads, causal=True):
    """Pure-JAX reference mirroring the PyTorch forward (eval mode, post-norm) at the
    kernel's numerical precision: bf16 operands at every matmul with f32 accumulation,
    f32 LayerNorm / softmax. Takes the same exported params as the kernel."""
    bf16 = jnp.bfloat16
    E = x_tbe.shape[-1]
    x = jnp.transpose(x_tbe, (1, 0, 2)).astype(jnp.float32)       # (B, T, E)
    enc = jnp.transpose(enc_sbe, (1, 0, 2)).astype(jnp.float32)   # (B, S, E)
    B, T, _ = x.shape
    S = enc.shape[1]
    Dh = E // num_heads

    def mm(a, w):
        return jnp.dot(a.astype(bf16), jnp.asarray(w, bf16),
                       preferred_element_type=jnp.float32)

    def attend(q, k, v, w_o, b_o, mask, need_probs):
        Lq, Lk = q.shape[1], k.shape[1]
        qh = q.reshape(B, Lq, num_heads, Dh).transpose(0, 2, 1, 3).astype(bf16)
        kh = k.reshape(B, Lk, num_heads, Dh).transpose(0, 2, 1, 3).astype(bf16)
        vh = v.reshape(B, Lk, num_heads, Dh).transpose(0, 2, 1, 3).astype(bf16)
        s = jnp.einsum('bhqd,bhkd->bhqk', qh, kh, preferred_element_type=jnp.float32)
        if mask is not None:
            s = s + mask
        p = jax.nn.softmax(s, axis=-1)
        ctx = jnp.einsum('bhqk,bhkd->bhqd', p.astype(bf16), vh,
                         preferred_element_type=jnp.float32)
        ctx = ctx.transpose(0, 2, 1, 3).reshape(B, Lq, E).astype(bf16)
        out = jnp.dot(ctx, jnp.asarray(w_o, bf16),
                      preferred_element_type=jnp.float32) + b_o
        return out, (p.mean(axis=1) if need_probs else None)

    # self-attention (scale already folded into w_qkv / b_qkv)
    residual = x
    qkv = mm(x, ep["w_qkv"]) + ep["b_qkv"]
    mask = None
    if causal:
        row = jnp.arange(T)[:, None]
        col = jnp.arange(T)[None, :]
        mask = jnp.where(col > row, -1e30, 0.0).astype(jnp.float32)
    sa, _ = attend(qkv[..., :E], qkv[..., E:2 * E], qkv[..., 2 * E:],
                   ep["w_so"], ep["b_so"], mask, False)
    x = _layernorm(sa + residual, ep["sa_gamma"], ep["sa_beta"])

    # encoder-decoder attention
    residual = x
    q = mm(x, ep["w_eq"]) + ep["b_eq"]
    kv = mm(enc, ep["w_ekv"]) + ep["b_ekv"]
    ea, attn = attend(q, kv[..., :E], kv[..., E:], ep["w_eo"], ep["b_eo"], None, True)
    x = _layernorm(ea + residual, ep["ea_gamma"], ep["ea_beta"])

    # FFN
    residual = x
    y = jnp.maximum(mm(x, ep["w1"]) + ep["b1"], 0.0)
    y = mm(y, ep["w2"]) + ep["b2"]
    x = _layernorm(y + residual, ep["f_gamma"], ep["f_beta"])

    return jnp.transpose(x, (1, 0, 2)), attn


if __name__ == "__main__":
    # T = tgt seq, S = src seq, B = batch, E = decoder_embed_dim, H = heads, F = ffn dim
    T, S, B, E, H, F = 8, 16, 2, 32, 4, 64

    key = jax.random.PRNGKey(0)
    ks = iter(jax.random.split(key, 32))

    def nrm(shape, scale=1.0):
        return scale * jax.random.normal(next(ks), shape, jnp.float32)

    x = nrm((T, B, E))
    enc = nrm((S, B, E))

    params = {
        "w_qkv": nrm((E, 3 * E), E ** -0.5),   # fused q/k/v in-proj (self-attn), (in, out)
        "b_qkv": nrm((1, 3 * E), 0.02),
        "w_so": nrm((E, E), E ** -0.5),        # self-attn out-proj
        "b_so": nrm((1, E), 0.02),
        "sa_gamma": 1.0 + 0.1 * nrm((1, E)),
        "sa_beta": 0.1 * nrm((1, E)),
        "w_eq": nrm((E, E), E ** -0.5),        # encoder-attn q proj
        "b_eq": nrm((1, E), 0.02),
        "w_ekv": nrm((E, 2 * E), E ** -0.5),   # fused k/v proj (encoder-attn)
        "b_ekv": nrm((1, 2 * E), 0.02),
        "w_eo": nrm((E, E), E ** -0.5),        # encoder-attn out-proj
        "b_eo": nrm((1, E), 0.02),
        "ea_gamma": 1.0 + 0.1 * nrm((1, E)),
        "ea_beta": 0.1 * nrm((1, E)),
        "w1": nrm((E, F), E ** -0.5),          # fc1
        "b1": nrm((1, F), 0.02),
        "w2": nrm((F, E), F ** -0.5),          # fc2
        "b2": nrm((1, E), 0.02),
        "f_gamma": 1.0 + 0.1 * nrm((1, E)),
        "f_beta": 0.1 * nrm((1, E)),
    }
    # TODO(synk): incremental_state / prev_*_state KV caching, key-padding masks,
    # need_head_weights, dropout (eval-mode identity here) and the onnx_trace path
    # are not implemented in the kernel.
    # TODO(synk): for production T/S (e.g. 2048) add a T-tile grid axis plus
    # flash-style KV tiling for self-attention instead of materializing the full
    # (T,3E) qkv and per-head (T,S) score temporaries.

    ep = export_params(params, num_heads=H)

    out, attn = transformer_decoder_layer(x, enc, ep, num_heads=H, causal=True)
    out = jax.block_until_ready(out)

    ref_out, ref_attn = reference_forward(x, enc, ep, num_heads=H, causal=True)
    assert out.shape == (T, B, E) and attn.shape == (B, T, S)

    attn_f32 = attn.astype(jnp.float32)
    err_out = float(jnp.max(jnp.abs(out - ref_out)))
    err_att = float(jnp.max(jnp.abs(attn_f32 - ref_attn)))
    assert jnp.allclose(out, ref_out, atol=3e-2, rtol=3e-2), err_out
    assert jnp.allclose(attn_f32, ref_attn, atol=3e-2, rtol=3e-2), err_att

    print("KERNEL_OK")
</pallas_src>

<mosaic_0001>
module attributes {stable_mosaic.version = 11 : i64} {
  func.func @decoder_layer_kernel(%arg0: i32, %arg1: memref<1x8x32xf32, #tpu.memory_space<vmem>>, %arg2: memref<1x16x32xf32, #tpu.memory_space<vmem>>, %arg3: memref<32x96xbf16, #tpu.memory_space<vmem>>, %arg4: memref<1x96xf32, #tpu.memory_space<vmem>>, %arg5: memref<32x32xbf16, #tpu.memory_space<vmem>>, %arg6: memref<1x32xf32, #tpu.memory_space<vmem>>, %arg7: memref<1x32xf32, #tpu.memory_space<vmem>>, %arg8: memref<1x32xf32, #tpu.memory_space<vmem>>, %arg9: memref<32x32xbf16, #tpu.memory_space<vmem>>, %arg10: memref<1x32xf32, #tpu.memory_space<vmem>>, %arg11: memref<32x64xbf16, #tpu.memory_space<vmem>>, %arg12: memref<1x64xf32, #tpu.memory_space<vmem>>, %arg13: memref<32x32xbf16, #tpu.memory_space<vmem>>, %arg14: memref<1x32xf32, #tpu.memory_space<vmem>>, %arg15: memref<1x32xf32, #tpu.memory_space<vmem>>, %arg16: memref<1x32xf32, #tpu.memory_space<vmem>>, %arg17: memref<32x64xbf16, #tpu.memory_space<vmem>>, %arg18: memref<1x64xf32, #tpu.memory_space<vmem>>, %arg19: memref<64x32xbf16, #tpu.memory_space<vmem>>, %arg20: memref<1x32xf32, #tpu.memory_space<vmem>>, %arg21: memref<1x32xf32, #tpu.memory_space<vmem>>, %arg22: memref<1x32xf32, #tpu.memory_space<vmem>>, %arg23: memref<1x8x32xf32, #tpu.memory_space<vmem>>, %arg24: memref<1x8x16xbf16, #tpu.memory_space<vmem>>, %arg25: memref<8x32xbf16, #tpu.memory_space<vmem>>) attributes {dimension_semantics = [#tpu.dimension_semantics<parallel>], iteration_bounds = array<i64: 2>, scalar_prefetch = 0 : i64, scratch_operands = 1 : i64, tpu.core_type = #tpu.core_type<tc>, window_params = [{transform_indices = @transform_0, window_bounds = array<i64: 1, 8, 32>}, {transform_indices = @transform_1, window_bounds = array<i64: 1, 16, 32>}, {pipeline_mode = #tpu.pipeline_mode<synchronous>, transform_indices = @transform_2, window_bounds = array<i64: 32, 96>}, {pipeline_mode = #tpu.pipeline_mode<synchronous>, transform_indices = @transform_3, window_bounds = array<i64: 1, 96>}, {pipeline_mode = #tpu.pipeline_mode<synchronous>, transform_indices = @transform_4, window_bounds = array<i64: 32, 32>}, {pipeline_mode = #tpu.pipeline_mode<synchronous>, transform_indices = @transform_5, window_bounds = array<i64: 1, 32>}, {pipeline_mode = #tpu.pipeline_mode<synchronous>, transform_indices = @transform_6, window_bounds = array<i64: 1, 32>}, {pipeline_mode = #tpu.pipeline_mode<synchronous>, transform_indices = @transform_7, window_bounds = array<i64: 1, 32>}, {pipeline_mode = #tpu.pipeline_mode<synchronous>, transform_indices = @transform_8, window_bounds = array<i64: 32, 32>}, {pipeline_mode = #tpu.pipeline_mode<synchronous>, transform_indices = @transform_9, window_bounds = array<i64: 1, 32>}, {pipeline_mode = #tpu.pipeline_mode<synchronous>, transform_indices = @transform_10, window_bounds = array<i64: 32, 64>}, {pipeline_mode = #tpu.pipeline_mode<synchronous>, transform_indices = @transform_11, window_bounds = array<i64: 1, 64>}, {pipeline_mode = #tpu.pipeline_mode<synchronous>, transform_indices = @transform_12, window_bounds = array<i64: 32, 32>}, {pipeline_mode = #tpu.pipeline_mode<synchronous>, transform_indices = @transform_13, window_bounds = array<i64: 1, 32>}, {pipeline_mode = #tpu.pipeline_mode<synchronous>, transform_indices = @transform_14, window_bounds = array<i64: 1, 32>}, {pipeline_mode = #tpu.pipeline_mode<synchronous>, transform_indices = @transform_15, window_bounds = array<i64: 1, 32>}, {pipeline_mode = #tpu.pipeline_mode<synchronous>, transform_indices = @transform_16, window_bounds = array<i64: 32, 64>}, {pipeline_mode = #tpu.pipeline_mode<synchronous>, transform_indices = @transform_17, window_bounds = array<i64: 1, 64>}, {pipeline_mode = #tpu.pipeline_mode<synchronous>, transform_indices = @transform_18, window_bounds = array<i64: 64, 32>}, {pipeline_mode = #tpu.pipeline_mode<synchronous>, transform_indices = @transform_19, window_bounds = array<i64: 1, 32>}, {pipeline_mode = #tpu.pipeline_mode<synchronous>, transform_indices = @transform_20, window_bounds = array<i64: 1, 32>}, {pipeline_mode = #tpu.pipeline_mode<synchronous>, transform_indices = @transform_21, window_bounds = array<i64: 1, 32>}, {transform_indices = @transform_22, window_bounds = array<i64: 1, 8, 32>}, {transform_indices = @transform_23, window_bounds = array<i64: 1, 8, 16>}]} {
    %c0 = arith.constant 0 : index
    %c0_0 = arith.constant 0 : index
    %c0_1 = arith.constant 0 : index
    %0 = vector.load %arg1[%c0, %c0_0, %c0_1] : memref<1x8x32xf32, #tpu.memory_space<vmem>>, vector<1x8x32xf32>
    %1 = vector.shape_cast %0 : vector<1x8x32xf32> to vector<8x32xf32>
    %c0_2 = arith.constant 0 : index
    %c0_3 = arith.constant 0 : index
    %c0_4 = arith.constant 0 : index
    %2 = vector.load %arg2[%c0_2, %c0_3, %c0_4] : memref<1x16x32xf32, #tpu.memory_space<vmem>>, vector<1x16x32xf32>
    %3 = vector.shape_cast %2 : vector<1x16x32xf32> to vector<16x32xf32>
    %4 = arith.truncf %3 : vector<16x32xf32> to vector<16x32xbf16>
    %5 = arith.truncf %1 : vector<8x32xf32> to vector<8x32xbf16>
    %c0_5 = arith.constant 0 : index
    %c0_6 = arith.constant 0 : index
    %6 = vector.load %arg3[%c0_5, %c0_6] : memref<32x96xbf16, #tpu.memory_space<vmem>>, vector<32x96xbf16>
    %cst = arith.constant dense<0.000000e+00> : vector<8x96xf32>
    %7 = tpu.matmul %5, %6, %cst {dimension_numbers = #tpu.dot_dimension_numbers<[1], [0], [0], [1], [0, 0, 1, 1], [], []>} : vector<8x32xbf16>, vector<32x96xbf16>, vector<8x96xf32> -> vector<8x96xf32>
    %c0_7 = arith.constant 0 : index
    %c0_8 = arith.constant 0 : index
    %8 = vector.load %arg4[%c0_7, %c0_8] : memref<1x96xf32, #tpu.memory_space<vmem>>, vector<1x96xf32>
    %9 = vector.broadcast %8 : vector<1x96xf32> to vector<8x96xf32>
    %10 = arith.addf %7, %9 : vector<8x96xf32>
    %11 = vector.extract_strided_slice %10 {offsets = [0, 0], sizes = [8, 32], strides = [1, 1]} : vector<8x96xf32> to vector<8x32xf32>
    %12 = vector.extract_strided_slice %10 {offsets = [0, 32], sizes = [8, 32], strides = [1, 1]} : vector<8x96xf32> to vector<8x32xf32>
    %13 = vector.extract_strided_slice %10 {offsets = [0, 64], sizes = [8, 32], strides = [1, 1]} : vector<8x96xf32> to vector<8x32xf32>
    %14 = arith.truncf %11 : vector<8x32xf32> to vector<8x32xbf16>
    %15 = arith.truncf %12 : vector<8x32xf32> to vector<8x32xbf16>
    %16 = arith.truncf %13 : vector<8x32xf32> to vector<8x32xbf16>
    %17 = tpu.iota {dimensions = array<i32: 0>} : vector<8x8xi32>
    %18 = tpu.iota {dimensions = array<i32: 1>} : vector<8x8xi32>
    %19 = arith.cmpi sgt, %18, %17 : vector<8x8xi32>
    %cst_9 = arith.constant -1.000000e+30 : f32
    %cst_10 = arith.constant 0.000000e+00 : f32
    %20 = vector.broadcast %cst_9 : f32 to vector<8x8xf32>
    %21 = vector.broadcast %cst_10 : f32 to vector<8x8xf32>
    %22 = arith.select %19, %20, %21 : vector<8x8xi1>, vector<8x8xf32>
    %23 = vector.extract_strided_slice %14 {offsets = [0, 0], sizes = [8, 8], strides = [1, 1]} : vector<8x32xbf16> to vector<8x8xbf16>
    %24 = vector.extract_strided_slice %15 {offsets = [0, 0], sizes = [8, 8], strides = [1, 1]} : vector<8x32xbf16> to vector<8x8xbf16>
    %cst_11 = arith.constant dense<0.000000e+00> : vector<8x8xf32>
    %25 = tpu.matmul %23, %24, %cst_11 {dimension_numbers = #tpu.dot_dimension_numbers<[1], [1], [0], [0], [0, 0, 1, 0], [], []>} : vector<8x8xbf16>, vector<8x8xbf16>, vector<8x8xf32> -> vector<8x8xf32>
    %26 = arith.addf %25, %22 : vector<8x8xf32>
    %cst_12 = arith.constant dense<0xFF800000> : vector<8xf32>
    %27 = vector.multi_reduction <maximumf>, %26, %cst_12 [1] : vector<8x8xf32> to vector<8xf32>
    %28 = vector.shape_cast %27 : vector<8xf32> to vector<8x1xf32>
    %29 = vector.broadcast %28 : vector<8x1xf32> to vector<8x8xf32>
    %30 = arith.subf %26, %29 : vector<8x8xf32>
    %31 = math.exp %30 : vector<8x8xf32>
    %cst_13 = arith.constant dense<0.000000e+00> : vector<8xf32>
    %32 = vector.multi_reduction <add>, %31, %cst_13 [1] : vector<8x8xf32> to vector<8xf32>
    %33 = vector.shape_cast %32 : vector<8xf32> to vector<8x1xf32>
    %34 = tpu.reciprocal %33 {approx = true} : vector<8x1xf32> -> vector<8x1xf32>
    %35 = vector.broadcast %34 : vector<8x1xf32> to vector<8x8xf32>
    %36 = arith.mulf %31, %35 : vector<8x8xf32>
    %37 = arith.truncf %36 : vector<8x8xf32> to vector<8x8xbf16>
    %38 = vector.extract_strided_slice %16 {offsets = [0, 0], sizes = [8, 8], strides = [1, 1]} : vector<8x32xbf16> to vector<8x8xbf16>
    %cst_14 = arith.constant dense<0.000000e+00> : vector<8x8xf32>
    %39 = tpu.matmul %37, %38, %cst_14 {dimension_numbers = #tpu.dot_dimension_numbers<[1], [0], [0], [1], [0, 0, 1, 1], [], []>} : vector<8x8xbf16>, vector<8x8xbf16>, vector<8x8xf32> -> vector<8x8xf32>
    %40 = arith.truncf %39 : vector<8x8xf32> to vector<8x8xbf16>
    %c0_15 = arith.constant 0 : index
    %c0_16 = arith.constant 0 : index
    %41 = vector.load %arg25[%c0_15, %c0_16] : memref<8x32xbf16, #tpu.memory_space<vmem>>, vector<8x8xbf16>
    tpu.vector_store %arg25[%c0_15, %c0_16], %40 {strides = array<i32>} : memref<8x32xbf16, #tpu.memory_space<vmem>>, vector<8x8xbf16>,
    %42 = vector.extract_strided_slice %14 {offsets = [0, 8], sizes = [8, 8], strides = [1, 1]} : vector<8x32xbf16> to vector<8x8xbf16>
    %43 = vector.extract_strided_slice %15 {offsets = [0, 8], sizes = [8, 8], strides = [1, 1]} : vector<8x32xbf16> to vector<8x8xbf16>
    %cst_17 = arith.constant dense<0.000000e+00> : vector<8x8xf32>
    %44 = tpu.matmul %42, %43, %cst_17 {dimension_numbers = #tpu.dot_dimension_numbers<[1], [1], [0], [0], [0, 0, 1, 0], [], []>} : vector<8x8xbf16>, vector<8x8xbf16>, vector<8x8xf32> -> vector<8x8xf32>
    %45 = arith.addf %44, %22 : vector<8x8xf32>
    %cst_18 = arith.constant dense<0xFF800000> : vector<8xf32>
    %46 = vector.multi_reduction <maximumf>, %45, %cst_18 [1] : vector<8x8xf32> to vector<8xf32>
    %47 = vector.shape_cast %46 : vector<8xf32> to vector<8x1xf32>
    %48 = vector.broadcast %47 : vector<8x1xf32> to vector<8x8xf32>
    %49 = arith.subf %45, %48 : vector<8x8xf32>
    %50 = math.exp %49 : vector<8x8xf32>
    %cst_19 = arith.constant dense<0.000000e+00> : vector<8xf32>
    %51 = vector.multi_reduction <add>, %50, %cst_19 [1] : vector<8x8xf32> to vector<8xf32>
    %52 = vector.shape_cast %51 : vector<8xf32> to vector<8x1xf32>
    %53 = tpu.reciprocal %52 {approx = true} : vector<8x1xf32> -> vector<8x1xf32>
    %54 = vector.broadcast %53 : vector<8x1xf32> to vector<8x8xf32>
    %55 = arith.mulf %50, %54 : vector<8x8xf32>
    %56 = arith.truncf %55 : vector<8x8xf32> to vector<8x8xbf16>
    %57 = vector.extract_strided_slice %16 {offsets = [0, 8], sizes = [8, 8], strides = [1, 1]} : vector<8x32xbf16> to vector<8x8xbf16>
    %cst_20 = arith.constant dense<0.000000e+00> : vector<8x8xf32>
    %58 = tpu.matmul %56, %57, %cst_20 {dimension_numbers = #tpu.dot_dimension_numbers<[1], [0], [0], [1], [0, 0, 1, 1], [], []>} : vector<8x8xbf16>, vector<8x8xbf16>, vector<8x8xf32> -> vector<8x8xf32>
    %59 = arith.truncf %58 : vector<8x8xf32> to vector<8x8xbf16>
    %c0_21 = arith.constant 0 : index
    %c8 = arith.constant 8 : index
    %60 = vector.load %arg25[%c0_21, %c8] : memref<8x32xbf16, #tpu.memory_space<vmem>>, vector<8x8xbf16>
    tpu.vector_store %arg25[%c0_21, %c8], %59 {strides = array<i32>} : memref<8x32xbf16, #tpu.memory_space<vmem>>, vector<8x8xbf16>,
    %61 = vector.extract_strided_slice %14 {offsets = [0, 16], sizes = [8, 8], strides = [1, 1]} : vector<8x32xbf16> to vector<8x8xbf16>
    %62 = vector.extract_strided_slice %15 {offsets = [0, 16], sizes = [8, 8], strides = [1, 1]} : vector<8x32xbf16> to vector<8x8xbf16>
    %cst_22 = arith.constant dense<0.000000e+00> : vector<8x8xf32>
    %63 = tpu.matmul %61, %62, %cst_22 {dimension_numbers = #tpu.dot_dimension_numbers<[1], [1], [0], [0], [0, 0, 1, 0], [], []>} : vector<8x8xbf16>, vector<8x8xbf16>, vector<8x8xf32> -> vector<8x8xf32>
    %64 = arith.addf %63, %22 : vector<8x8xf32>
    %cst_23 = arith.constant dense<0xFF800000> : vector<8xf32>
    %65 = vector.multi_reduction <maximumf>, %64, %cst_23 [1] : vector<8x8xf32> to vector<8xf32>
    %66 = vector.shape_cast %65 : vector<8xf32> to vector<8x1xf32>
    %67 = vector.broadcast %66 : vector<8x1xf32> to vector<8x8xf32>
    %68 = arith.subf %64, %67 : vector<8x8xf32>
    %69 = math.exp %68 : vector<8x8xf32>
    %cst_24 = arith.constant dense<0.000000e+00> : vector<8xf32>
    %70 = vector.multi_reduction <add>, %69, %cst_24 [1] : vector<8x8xf32> to vector<8xf32>
    %71 = vector.shape_cast %70 : vector<8xf32> to vector<8x1xf32>
    %72 = tpu.reciprocal %71 {approx = true} : vector<8x1xf32> -> vector<8x1xf32>
    %73 = vector.broadcast %72 : vector<8x1xf32> to vector<8x8xf32>
    %74 = arith.mulf %69, %73 : vector<8x8xf32>
    %75 = arith.truncf %74 : vector<8x8xf32> to vector<8x8xbf16>
    %76 = vector.extract_strided_slice %16 {offsets = [0, 16], sizes = [8, 8], strides = [1, 1]} : vector<8x32xbf16> to vector<8x8xbf16>
    %cst_25 = arith.constant dense<0.000000e+00> : vector<8x8xf32>
    %77 = tpu.matmul %75, %76, %cst_25 {dimension_numbers = #tpu.dot_dimension_numbers<[1], [0], [0], [1], [0, 0, 1, 1], [], []>} : vector<8x8xbf16>, vector<8x8xbf16>, vector<8x8xf32> -> vector<8x8xf32>
    %78 = arith.truncf %77 : vector<8x8xf32> to vector<8x8xbf16>
    %c0_26 = arith.constant 0 : index
    %c16 = arith.constant 16 : index
    %79 = vector.load %arg25[%c0_26, %c16] : memref<8x32xbf16, #tpu.memory_space<vmem>>, vector<8x8xbf16>
    tpu.vector_store %arg25[%c0_26, %c16], %78 {strides = array<i32>} : memref<8x32xbf16, #tpu.memory_space<vmem>>, vector<8x8xbf16>,
    %80 = vector.extract_strided_slice %14 {offsets = [0, 24], sizes = [8, 8], strides = [1, 1]} : vector<8x32xbf16> to vector<8x8xbf16>
    %81 = vector.extract_strided_slice %15 {offsets = [0, 24], sizes = [8, 8], strides = [1, 1]} : vector<8x32xbf16> to vector<8x8xbf16>
    %cst_27 = arith.constant dense<0.000000e+00> : vector<8x8xf32>
    %82 = tpu.matmul %80, %81, %cst_27 {dimension_numbers = #tpu.dot_dimension_numbers<[1], [1], [0], [0], [0, 0, 1, 0], [], []>} : vector<8x8xbf16>, vector<8x8xbf16>, vector<8x8xf32> -> vector<8x8xf32>
    %83 = arith.addf %82, %22 : vector<8x8xf32>
    %cst_28 = arith.constant dense<0xFF800000> : vector<8xf32>
    %84 = vector.multi_reduction <maximumf>, %83, %cst_28 [1] : vector<8x8xf32> to vector<8xf32>
    %85 = vector.shape_cast %84 : vector<8xf32> to vector<8x1xf32>
    %86 = vector.broadcast %85 : vector<8x1xf32> to vector<8x8xf32>
    %87 = arith.subf %83, %86 : vector<8x8xf32>
    %88 = math.exp %87 : vector<8x8xf32>
    %cst_29 = arith.constant dense<0.000000e+00> : vector<8xf32>
    %89 = vector.multi_reduction <add>, %88, %cst_29 [1] : vector<8x8xf32> to vector<8xf32>
    %90 = vector.shape_cast %89 : vector<8xf32> to vector<8x1xf32>
    %91 = tpu.reciprocal %90 {approx = true} : vector<8x1xf32> -> vector<8x1xf32>
    %92 = vector.broadcast %91 : vector<8x1xf32> to vector<8x8xf32>
    %93 = arith.mulf %88, %92 : vector<8x8xf32>
    %94 = arith.truncf %93 : vector<8x8xf32> to vector<8x8xbf16>
    %95 = vector.extract_strided_slice %16 {offsets = [0, 24], sizes = [8, 8], strides = [1, 1]} : vector<8x32xbf16> to vector<8x8xbf16>
    %cst_30 = arith.constant dense<0.000000e+00> : vector<8x8xf32>
    %96 = tpu.matmul %94, %95, %cst_30 {dimension_numbers = #tpu.dot_dimension_numbers<[1], [0], [0], [1], [0, 0, 1, 1], [], []>} : vector<8x8xbf16>, vector<8x8xbf16>, vector<8x8xf32> -> vector<8x8xf32>
    %97 = arith.truncf %96 : vector<8x8xf32> to vector<8x8xbf16>
    %c0_31 = arith.constant 0 : index
    %c24 = arith.constant 24 : index
    %98 = vector.load %arg25[%c0_31, %c24] : memref<8x32xbf16, #tpu.memory_space<vmem>>, vector<8x8xbf16>
    tpu.vector_store %arg25[%c0_31, %c24], %97 {strides = array<i32>} : memref<8x32xbf16, #tpu.memory_space<vmem>>, vector<8x8xbf16>,
    %c0_32 = arith.constant 0 : index
    %c0_33 = arith.constant 0 : index
    %99 = vector.load %arg25[%c0_32, %c0_33] : memref<8x32xbf16, #tpu.memory_space<vmem>>, vector<8x32xbf16>
    %c0_34 = arith.constant 0 : index
    %c0_35 = arith.constant 0 : index
    %100 = vector.load %arg5[%c0_34, %c0_35] : memref<32x32xbf16, #tpu.memory_space<vmem>>, vector<32x32xbf16>
    %cst_36 = arith.constant dense<0.000000e+00> : vector<8x32xf32>
    %101 = tpu.matmul %99, %100, %cst_36 {dimension_numbers = #tpu.dot_dimension_numbers<[1], [0], [0], [1], [0, 0, 1, 1], [], []>} : vector<8x32xbf16>, vector<32x32xbf16>, vector<8x32xf32> -> vector<8x32xf32>
    %c0_37 = arith.constant 0 : index
    %c0_38 = arith.constant 0 : index
    %102 = vector.load %arg6[%c0_37, %c0_38] : memref<1x32xf32, #tpu.memory_space<vmem>>, vector<1x32xf32>
    %103 = vector.broadcast %102 : vector<1x32xf32> to vector<8x32xf32>
    %104 = arith.addf %101, %103 : vector<8x32xf32>
    %105 = arith.addf %104, %1 : vector<8x32xf32>
    %c0_39 = arith.constant 0 : index
    %c0_40 = arith.constant 0 : index
    %106 = vector.load %arg7[%c0_39, %c0_40] : memref<1x32xf32, #tpu.memory_space<vmem>>, vector<1x32xf32>
    %c0_41 = arith.constant 0 : index
    %c0_42 = arith.constant 0 : index
    %107 = vector.load %arg8[%c0_41, %c0_42] : memref<1x32xf32, #tpu.memory_space<vmem>>, vector<1x32xf32>
    %cst_43 = arith.constant dense<0.000000e+00> : vector<8xf32>
    %108 = vector.multi_reduction <add>, %105, %cst_43 [1] : vector<8x32xf32> to vector<8xf32>
    %109 = vector.shape_cast %108 : vector<8xf32> to vector<8x1xf32>
    %cst_44 = arith.constant 3.200000e+01 : f32
    %110 = vector.broadcast %cst_44 : f32 to vector<8x1xf32>
    %111 = arith.divf %109, %110 : vector<8x1xf32>
    %112 = vector.broadcast %111 : vector<8x1xf32> to vector<8x32xf32>
    %113 = arith.subf %105, %112 : vector<8x32xf32>
    %114 = arith.mulf %113, %113 : vector<8x32xf32>
    %cst_45 = arith.constant dense<0.000000e+00> : vector<8xf32>
    %115 = vector.multi_reduction <add>, %114, %cst_45 [1] : vector<8x32xf32> to vector<8xf32>
    %116 = vector.shape_cast %115 : vector<8xf32> to vector<8x1xf32>
    %cst_46 = arith.constant 3.200000e+01 : f32
    %117 = vector.broadcast %cst_46 : f32 to vector<8x1xf32>
    %118 = arith.divf %116, %117 : vector<8x1xf32>
    %119 = vector.broadcast %111 : vector<8x1xf32> to vector<8x32xf32>
    %120 = arith.subf %105, %119 : vector<8x32xf32>
    %cst_47 = arith.constant 9.99999974E-6 : f32
    %121 = vector.broadcast %cst_47 : f32 to vector<8x1xf32>
    %122 = arith.addf %118, %121 : vector<8x1xf32>
    %123 = math.rsqrt %122 : vector<8x1xf32>
    %124 = vector.broadcast %123 : vector<8x1xf32> to vector<8x32xf32>
    %125 = arith.mulf %120, %124 : vector<8x32xf32>
    %126 = vector.broadcast %106 : vector<1x32xf32> to vector<8x32xf32>
    %127 = arith.mulf %125, %126 : vector<8x32xf32>
    %128 = vector.broadcast %107 : vector<1x32xf32> to vector<8x32xf32>
    %129 = arith.addf %127, %128 : vector<8x32xf32>
    %130 = arith.truncf %129 : vector<8x32xf32> to vector<8x32xbf16>
    %c0_48 = arith.constant 0 : index
    %c0_49 = arith.constant 0 : index
    %131 = vector.load %arg9[%c0_48, %c0_49] : memref<32x32xbf16, #tpu.memory_space<vmem>>, vector<32x32xbf16>
    %cst_50 = arith.constant dense<0.000000e+00> : vector<8x32xf32>
    %132 = tpu.matmul %130, %131, %cst_50 {dimension_numbers = #tpu.dot_dimension_numbers<[1], [0], [0], [1], [0, 0, 1, 1], [], []>} : vector<8x32xbf16>, vector<32x32xbf16>, vector<8x32xf32> -> vector<8x32xf32>
    %c0_51 = arith.constant 0 : index
    %c0_52 = arith.constant 0 : index
    %133 = vector.load %arg10[%c0_51, %c0_52] : memref<1x32xf32, #tpu.memory_space<vmem>>, vector<1x32xf32>
    %134 = vector.broadcast %133 : vector<1x32xf32> to vector<8x32xf32>
    %135 = arith.addf %132, %134 : vector<8x32xf32>
    %c0_53 = arith.constant 0 : index
    %c0_54 = arith.constant 0 : index
    %136 = vector.load %arg11[%c0_53, %c0_54] : memref<32x64xbf16, #tpu.memory_space<vmem>>, vector<32x64xbf16>
    %cst_55 = arith.constant dense<0.000000e+00> : vector<16x64xf32>
    %137 = tpu.matmul %4, %136, %cst_55 {dimension_numbers = #tpu.dot_dimension_numbers<[1], [0], [0], [1], [0, 0, 1, 1], [], []>} : vector<16x32xbf16>, vector<32x64xbf16>, vector<16x64xf32> -> vector<16x64xf32>
    %c0_56 = arith.constant 0 : index
    %c0_57 = arith.constant 0 : index
    %138 = vector.load %arg12[%c0_56, %c0_57] : memref<1x64xf32, #tpu.memory_space<vmem>>, vector<1x64xf32>
    %139 = vector.broadcast %138 : vector<1x64xf32> to vector<16x64xf32>
    %140 = arith.addf %137, %139 : vector<16x64xf32>
    %141 = vector.extract_strided_slice %140 {offsets = [0, 0], sizes = [16, 32], strides = [1, 1]} : vector<16x64xf32> to vector<16x32xf32>
    %142 = vector.extract_strided_slice %140 {offsets = [0, 32], sizes = [16, 32], strides = [1, 1]} : vector<16x64xf32> to vector<16x32xf32>
    %143 = arith.truncf %135 : vector<8x32xf32> to vector<8x32xbf16>
    %144 = arith.truncf %141 : vector<16x32xf32> to vector<16x32xbf16>
    %145 = arith.truncf %142 : vector<16x32xf32> to vector<16x32xbf16>
    %cst_58 = arith.constant 0.000000e+00 : f32
    %146 = vector.broadcast %cst_58 : f32 to vector<8x16xf32>
    %147 = vector.extract_strided_slice %143 {offsets = [0, 0], sizes = [8, 8], strides = [1, 1]} : vector<8x32xbf16> to vector<8x8xbf16>
    %148 = vector.extract_strided_slice %144 {offsets = [0, 0], sizes = [16, 8], strides = [1, 1]} : vector<16x32xbf16> to vector<16x8xbf16>
    %cst_59 = arith.constant dense<0.000000e+00> : vector<8x16xf32>
    %149 = tpu.matmul %147, %148, %cst_59 {dimension_numbers = #tpu.dot_dimension_numbers<[1], [1], [0], [0], [0, 0, 1, 0], [], []>} : vector<8x8xbf16>, vector<16x8xbf16>, vector<8x16xf32> -> vector<8x16xf32>
    %cst_60 = arith.constant dense<0xFF800000> : vector<8xf32>
    %150 = vector.multi_reduction <maximumf>, %149, %cst_60 [1] : vector<8x16xf32> to vector<8xf32>
    %151 = vector.shape_cast %150 : vector<8xf32> to vector<8x1xf32>
    %152 = vector.broadcast %151 : vector<8x1xf32> to vector<8x16xf32>
    %153 = arith.subf %149, %152 : vector<8x16xf32>
    %154 = math.exp %153 : vector<8x16xf32>
    %cst_61 = arith.constant dense<0.000000e+00> : vector<8xf32>
    %155 = vector.multi_reduction <add>, %154, %cst_61 [1] : vector<8x16xf32> to vector<8xf32>
    %156 = vector.shape_cast %155 : vector<8xf32> to vector<8x1xf32>
    %157 = tpu.reciprocal %156 {approx = true} : vector<8x1xf32> -> vector<8x1xf32>
    %158 = vector.broadcast %157 : vector<8x1xf32> to vector<8x16xf32>
    %159 = arith.mulf %154, %158 : vector<8x16xf32>
    %160 = arith.addf %146, %159 : vector<8x16xf32>
    %161 = arith.truncf %159 : vector<8x16xf32> to vector<8x16xbf16>
    %162 = vector.extract_strided_slice %145 {offsets = [0, 0], sizes = [16, 8], strides = [1, 1]} : vector<16x32xbf16> to vector<16x8xbf16>
    %cst_62 = arith.constant dense<0.000000e+00> : vector<8x8xf32>
    %163 = tpu.matmul %161, %162, %cst_62 {dimension_numbers = #tpu.dot_dimension_numbers<[1], [0], [0], [1], [0, 0, 1, 1], [], []>} : vector<8x16xbf16>, vector<16x8xbf16>, vector<8x8xf32> -> vector<8x8xf32>
    %164 = arith.truncf %163 : vector<8x8xf32> to vector<8x8xbf16>
    %c0_63 = arith.constant 0 : index
    %c0_64 = arith.constant 0 : index
    %165 = vector.load %arg25[%c0_63, %c0_64] : memref<8x32xbf16, #tpu.memory_space<vmem>>, vector<8x8xbf16>
    tpu.vector_store %arg25[%c0_63, %c0_64], %164 {strides = array<i32>} : memref<8x32xbf16, #tpu.memory_space<vmem>>, vector<8x8xbf16>,
    %166 = vector.extract_strided_slice %143 {offsets = [0, 8], sizes = [8, 8], strides = [1, 1]} : vector<8x32xbf16> to vector<8x8xbf16>
    %167 = vector.extract_strided_slice %144 {offsets = [0, 8], sizes = [16, 8], strides = [1, 1]} : vector<16x32xbf16> to vector<16x8xbf16>
    %cst_65 = arith.constant dense<0.000000e+00> : vector<8x16xf32>
    %168 = tpu.matmul %166, %167, %cst_65 {dimension_numbers = #tpu.dot_dimension_numbers<[1], [1], [0], [0], [0, 0, 1, 0], [], []>} : vector<8x8xbf16>, vector<16x8xbf16>, vector<8x16xf32> -> vector<8x16xf32>
    %cst_66 = arith.constant dense<0xFF800000> : vector<8xf32>
    %169 = vector.multi_reduction <maximumf>, %168, %cst_66 [1] : vector<8x16xf32> to vector<8xf32>
    %170 = vector.shape_cast %169 : vector<8xf32> to vector<8x1xf32>
    %171 = vector.broadcast %170 : vector<8x1xf32> to vector<8x16xf32>
    %172 = arith.subf %168, %171 : vector<8x16xf32>
    %173 = math.exp %172 : vector<8x16xf32>
    %cst_67 = arith.constant dense<0.000000e+00> : vector<8xf32>
    %174 = vector.multi_reduction <add>, %173, %cst_67 [1] : vector<8x16xf32> to vector<8xf32>
    %175 = vector.shape_cast %174 : vector<8xf32> to vector<8x1xf32>
    %176 = tpu.reciprocal %175 {approx = true} : vector<8x1xf32> -> vector<8x1xf32>
    %177 = vector.broadcast %176 : vector<8x1xf32> to vector<8x16xf32>
    %178 = arith.mulf %173, %177 : vector<8x16xf32>
    %179 = arith.addf %160, %178 : vector<8x16xf32>
    %180 = arith.truncf %178 : vector<8x16xf32> to vector<8x16xbf16>
    %181 = vector.extract_strided_slice %145 {offsets = [0, 8], sizes = [16, 8], strides = [1, 1]} : vector<16x32xbf16> to vector<16x8xbf16>
    %cst_68 = arith.constant dense<0.000000e+00> : vector<8x8xf32>
    %182 = tpu.matmul %180, %181, %cst_68 {dimension_numbers = #tpu.dot_dimension_numbers<[1], [0], [0], [1], [0, 0, 1, 1], [], []>} : vector<8x16xbf16>, vector<16x8xbf16>, vector<8x8xf32> -> vector<8x8xf32>
    %183 = arith.truncf %182 : vector<8x8xf32> to vector<8x8xbf16>
    %c0_69 = arith.constant 0 : index
    %c8_70 = arith.constant 8 : index
    %184 = vector.load %arg25[%c0_69, %c8_70] : memref<8x32xbf16, #tpu.memory_space<vmem>>, vector<8x8xbf16>
    tpu.vector_store %arg25[%c0_69, %c8_70], %183 {strides = array<i32>} : memref<8x32xbf16, #tpu.memory_space<vmem>>, vector<8x8xbf16>,
    %185 = vector.extract_strided_slice %143 {offsets = [0, 16], sizes = [8, 8], strides = [1, 1]} : vector<8x32xbf16> to vector<8x8xbf16>
    %186 = vector.extract_strided_slice %144 {offsets = [0, 16], sizes = [16, 8], strides = [1, 1]} : vector<16x32xbf16> to vector<16x8xbf16>
    %cst_71 = arith.constant dense<0.000000e+00> : vector<8x16xf32>
    %187 = tpu.matmul %185, %186, %cst_71 {dimension_numbers = #tpu.dot_dimension_numbers<[1], [1], [0], [0], [0, 0, 1, 0], [], []>} : vector<8x8xbf16>, vector<16x8xbf16>, vector<8x16xf32> -> vector<8x16xf32>
    %cst_72 = arith.constant dense<0xFF800000> : vector<8xf32>
    %188 = vector.multi_reduction <maximumf>, %187, %cst_72 [1] : vector<8x16xf32> to vector<8xf32>
    %189 = vector.shape_cast %188 : vector<8xf32> to vector<8x1xf32>
    %190 = vector.broadcast %189 : vector<8x1xf32> to vector<8x16xf32>
    %191 = arith.subf %187, %190 : vector<8x16xf32>
    %192 = math.exp %191 : vector<8x16xf32>
    %cst_73 = arith.constant dense<0.000000e+00> : vector<8xf32>
    %193 = vector.multi_reduction <add>, %192, %cst_73 [1] : vector<8x16xf32> to vector<8xf32>
    %194 = vector.shape_cast %193 : vector<8xf32> to vector<8x1xf32>
    %195 = tpu.reciprocal %194 {approx = true} : vector<8x1xf32> -> vector<8x1xf32>
    %196 = vector.broadcast %195 : vector<8x1xf32> to vector<8x16xf32>
    %197 = arith.mulf %192, %196 : vector<8x16xf32>
    %198 = arith.addf %179, %197 : vector<8x16xf32>
    %199 = arith.truncf %197 : vector<8x16xf32> to vector<8x16xbf16>
    %200 = vector.extract_strided_slice %145 {offsets = [0, 16], sizes = [16, 8], strides = [1, 1]} : vector<16x32xbf16> to vector<16x8xbf16>
    %cst_74 = arith.constant dense<0.000000e+00> : vector<8x8xf32>
    %201 = tpu.matmul %199, %200, %cst_74 {dimension_numbers = #tpu.dot_dimension_numbers<[1], [0], [0], [1], [0, 0, 1, 1], [], []>} : vector<8x16xbf16>, vector<16x8xbf16>, vector<8x8xf32> -> vector<8x8xf32>
    %202 = arith.truncf %201 : vector<8x8xf32> to vector<8x8xbf16>
    %c0_75 = arith.constant 0 : index
    %c16_76 = arith.constant 16 : index
    %203 = vector.load %arg25[%c0_75, %c16_76] : memref<8x32xbf16, #tpu.memory_space<vmem>>, vector<8x8xbf16>
    tpu.vector_store %arg25[%c0_75, %c16_76], %202 {strides = array<i32>} : memref<8x32xbf16, #tpu.memory_space<vmem>>, vector<8x8xbf16>,
    %204 = vector.extract_strided_slice %143 {offsets = [0, 24], sizes = [8, 8], strides = [1, 1]} : vector<8x32xbf16> to vector<8x8xbf16>
    %205 = vector.extract_strided_slice %144 {offsets = [0, 24], sizes = [16, 8], strides = [1, 1]} : vector<16x32xbf16> to vector<16x8xbf16>
    %cst_77 = arith.constant dense<0.000000e+00> : vector<8x16xf32>
    %206 = tpu.matmul %204, %205, %cst_77 {dimension_numbers = #tpu.dot_dimension_numbers<[1], [1], [0], [0], [0, 0, 1, 0], [], []>} : vector<8x8xbf16>, vector<16x8xbf16>, vector<8x16xf32> -> vector<8x16xf32>
    %cst_78 = arith.constant dense<0xFF800000> : vector<8xf32>
    %207 = vector.multi_reduction <maximumf>, %206, %cst_78 [1] : vector<8x16xf32> to vector<8xf32>
    %208 = vector.shape_cast %207 : vector<8xf32> to vector<8x1xf32>
    %209 = vector.broadcast %208 : vector<8x1xf32> to vector<8x16xf32>
    %210 = arith.subf %206, %209 : vector<8x16xf32>
    %211 = math.exp %210 : vector<8x16xf32>
    %cst_79 = arith.constant dense<0.000000e+00> : vector<8xf32>
    %212 = vector.multi_reduction <add>, %211, %cst_79 [1] : vector<8x16xf32> to vector<8xf32>
    %213 = vector.shape_cast %212 : vector<8xf32> to vector<8x1xf32>
    %214 = tpu.reciprocal %213 {approx = true} : vector<8x1xf32> -> vector<8x1xf32>
    %215 = vector.broadcast %214 : vector<8x1xf32> to vector<8x16xf32>
    %216 = arith.mulf %211, %215 : vector<8x16xf32>
    %217 = arith.addf %198, %216 : vector<8x16xf32>
    %218 = arith.truncf %216 : vector<8x16xf32> to vector<8x16xbf16>
    %219 = vector.extract_strided_slice %145 {offsets = [0, 24], sizes = [16, 8], strides = [1, 1]} : vector<16x32xbf16> to vector<16x8xbf16>
    %cst_80 = arith.constant dense<0.000000e+00> : vector<8x8xf32>
    %220 = tpu.matmul %218, %219, %cst_80 {dimension_numbers = #tpu.dot_dimension_numbers<[1], [0], [0], [1], [0, 0, 1, 1], [], []>} : vector<8x16xbf16>, vector<16x8xbf16>, vector<8x8xf32> -> vector<8x8xf32>
    %221 = arith.truncf %220 : vector<8x8xf32> to vector<8x8xbf16>
    %c0_81 = arith.constant 0 : index
    %c24_82 = arith.constant 24 : index
    %222 = vector.load %arg25[%c0_81, %c24_82] : memref<8x32xbf16, #tpu.memory_space<vmem>>, vector<8x8xbf16>
    tpu.vector_store %arg25[%c0_81, %c24_82], %221 {strides = array<i32>} : memref<8x32xbf16, #tpu.memory_space<vmem>>, vector<8x8xbf16>,
    %c0_83 = arith.constant 0 : index
    %c0_84 = arith.constant 0 : index
    %223 = vector.load %arg25[%c0_83, %c0_84] : memref<8x32xbf16, #tpu.memory_space<vmem>>, vector<8x32xbf16>
    %c0_85 = arith.constant 0 : index
    %c0_86 = arith.constant 0 : index
    %224 = vector.load %arg13[%c0_85, %c0_86] : memref<32x32xbf16, #tpu.memory_space<vmem>>, vector<32x32xbf16>
    %cst_87 = arith.constant dense<0.000000e+00> : vector<8x32xf32>
    %225 = tpu.matmul %223, %224, %cst_87 {dimension_numbers = #tpu.dot_dimension_numbers<[1], [0], [0], [1], [0, 0, 1, 1], [], []>} : vector<8x32xbf16>, vector<32x32xbf16>, vector<8x32xf32> -> vector<8x32xf32>
    %c0_88 = arith.constant 0 : index
    %c0_89 = arith.constant 0 : index
    %226 = vector.load %arg14[%c0_88, %c0_89] : memref<1x32xf32, #tpu.memory_space<vmem>>, vector<1x32xf32>
    %227 = vector.broadcast %226 : vector<1x32xf32> to vector<8x32xf32>
    %228 = arith.addf %225, %227 : vector<8x32xf32>
    %cst_90 = arith.constant 2.500000e-01 : f32
    %229 = vector.broadcast %cst_90 : f32 to vector<8x16xf32>
    %230 = arith.mulf %217, %229 : vector<8x16xf32>
    %231 = arith.addf %228, %129 : vector<8x32xf32>
    %c0_91 = arith.constant 0 : index
    %c0_92 = arith.constant 0 : index
    %232 = vector.load %arg15[%c0_91, %c0_92] : memref<1x32xf32, #tpu.memory_space<vmem>>, vector<1x32xf32>
    %c0_93 = arith.constant 0 : index
    %c0_94 = arith.constant 0 : index
    %233 = vector.load %arg16[%c0_93, %c0_94] : memref<1x32xf32, #tpu.memory_space<vmem>>, vector<1x32xf32>
    %cst_95 = arith.constant dense<0.000000e+00> : vector<8xf32>
    %234 = vector.multi_reduction <add>, %231, %cst_95 [1] : vector<8x32xf32> to vector<8xf32>
    %235 = vector.shape_cast %234 : vector<8xf32> to vector<8x1xf32>
    %cst_96 = arith.constant 3.200000e+01 : f32
    %236 = vector.broadcast %cst_96 : f32 to vector<8x1xf32>
    %237 = arith.divf %235, %236 : vector<8x1xf32>
    %238 = vector.broadcast %237 : vector<8x1xf32> to vector<8x32xf32>
    %239 = arith.subf %231, %238 : vector<8x32xf32>
    %240 = arith.mulf %239, %239 : vector<8x32xf32>
    %cst_97 = arith.constant dense<0.000000e+00> : vector<8xf32>
    %241 = vector.multi_reduction <add>, %240, %cst_97 [1] : vector<8x32xf32> to vector<8xf32>
    %242 = vector.shape_cast %241 : vector<8xf32> to vector<8x1xf32>
    %cst_98 = arith.constant 3.200000e+01 : f32
    %243 = vector.broadcast %cst_98 : f32 to vector<8x1xf32>
    %244 = arith.divf %242, %243 : vector<8x1xf32>
    %245 = vector.broadcast %237 : vector<8x1xf32> to vector<8x32xf32>
    %246 = arith.subf %231, %245 : vector<8x32xf32>
    %cst_99 = arith.constant 9.99999974E-6 : f32
    %247 = vector.broadcast %cst_99 : f32 to vector<8x1xf32>
    %248 = arith.addf %244, %247 : vector<8x1xf32>
    %249 = math.rsqrt %248 : vector<8x1xf32>
    %250 = vector.broadcast %249 : vector<8x1xf32> to vector<8x32xf32>
    %251 = arith.mulf %246, %250 : vector<8x32xf32>
    %252 = vector.broadcast %232 : vector<1x32xf32> to vector<8x32xf32>
    %253 = arith.mulf %251, %252 : vector<8x32xf32>
    %254 = vector.broadcast %233 : vector<1x32xf32> to vector<8x32xf32>
    %255 = arith.addf %253, %254 : vector<8x32xf32>
    %256 = arith.truncf %255 : vector<8x32xf32> to vector<8x32xbf16>
    %c0_100 = arith.constant 0 : index
    %c0_101 = arith.constant 0 : index
    %257 = vector.load %arg17[%c0_100, %c0_101] : memref<32x64xbf16, #tpu.memory_space<vmem>>, vector<32x64xbf16>
    %cst_102 = arith.constant dense<0.000000e+00> : vector<8x64xf32>
    %258 = tpu.matmul %256, %257, %cst_102 {dimension_numbers = #tpu.dot_dimension_numbers<[1], [0], [0], [1], [0, 0, 1, 1], [], []>} : vector<8x32xbf16>, vector<32x64xbf16>, vector<8x64xf32> -> vector<8x64xf32>
    %c0_103 = arith.constant 0 : index
    %c0_104 = arith.constant 0 : index
    %259 = vector.load %arg18[%c0_103, %c0_104] : memref<1x64xf32, #tpu.memory_space<vmem>>, vector<1x64xf32>
    %260 = vector.broadcast %259 : vector<1x64xf32> to vector<8x64xf32>
    %261 = arith.addf %258, %260 : vector<8x64xf32>
    %cst_105 = arith.constant 0.000000e+00 : f32
    %262 = vector.broadcast %cst_105 : f32 to vector<8x64xf32>
    %263 = arith.maximumf %261, %262 : vector<8x64xf32>
    %264 = arith.truncf %263 : vector<8x64xf32> to vector<8x64xbf16>
    %c0_106 = arith.constant 0 : index
    %c0_107 = arith.constant 0 : index
    %265 = vector.load %arg19[%c0_106, %c0_107] : memref<64x32xbf16, #tpu.memory_space<vmem>>, vector<64x32xbf16>
    %cst_108 = arith.constant dense<0.000000e+00> : vector<8x32xf32>
    %266 = tpu.matmul %264, %265, %cst_108 {dimension_numbers = #tpu.dot_dimension_numbers<[1], [0], [0], [1], [0, 0, 1, 1], [], []>} : vector<8x64xbf16>, vector<64x32xbf16>, vector<8x32xf32> -> vector<8x32xf32>
    %c0_109 = arith.constant 0 : index
    %c0_110 = arith.constant 0 : index
    %267 = vector.load %arg20[%c0_109, %c0_110] : memref<1x32xf32, #tpu.memory_space<vmem>>, vector<1x32xf32>
    %268 = vector.broadcast %267 : vector<1x32xf32> to vector<8x32xf32>
    %269 = arith.addf %266, %268 : vector<8x32xf32>
    %270 = arith.addf %269, %255 : vector<8x32xf32>
    %c0_111 = arith.constant 0 : index
    %c0_112 = arith.constant 0 : index
    %271 = vector.load %arg21[%c0_111, %c0_112] : memref<1x32xf32, #tpu.memory_space<vmem>>, vector<1x32xf32>
    %c0_113 = arith.constant 0 : index
    %c0_114 = arith.constant 0 : index
    %272 = vector.load %arg22[%c0_113, %c0_114] : memref<1x32xf32, #tpu.memory_space<vmem>>, vector<1x32xf32>
    %cst_115 = arith.constant dense<0.000000e+00> : vector<8xf32>
    %273 = vector.multi_reduction <add>, %270, %cst_115 [1] : vector<8x32xf32> to vector<8xf32>
    %274 = vector.shape_cast %273 : vector<8xf32> to vector<8x1xf32>
    %cst_116 = arith.constant 3.200000e+01 : f32
    %275 = vector.broadcast %cst_116 : f32 to vector<8x1xf32>
    %276 = arith.divf %274, %275 : vector<8x1xf32>
    %277 = vector.broadcast %276 : vector<8x1xf32> to vector<8x32xf32>
    %278 = arith.subf %270, %277 : vector<8x32xf32>
    %279 = arith.mulf %278, %278 : vector<8x32xf32>
    %cst_117 = arith.constant dense<0.000000e+00> : vector<8xf32>
    %280 = vector.multi_reduction <add>, %279, %cst_117 [1] : vector<8x32xf32> to vector<8xf32>
    %281 = vector.shape_cast %280 : vector<8xf32> to vector<8x1xf32>
    %cst_118 = arith.constant 3.200000e+01 : f32
    %282 = vector.broadcast %cst_118 : f32 to vector<8x1xf32>
    %283 = arith.divf %281, %282 : vector<8x1xf32>
    %284 = vector.broadcast %276 : vector<8x1xf32> to vector<8x32xf32>
    %285 = arith.subf %270, %284 : vector<8x32xf32>
    %cst_119 = arith.constant 9.99999974E-6 : f32
    %286 = vector.broadcast %cst_119 : f32 to vector<8x1xf32>
    %287 = arith.addf %283, %286 : vector<8x1xf32>
    %288 = math.rsqrt %287 : vector<8x1xf32>
    %289 = vector.broadcast %288 : vector<8x1xf32> to vector<8x32xf32>
    %290 = arith.mulf %285, %289 : vector<8x32xf32>
    %291 = vector.broadcast %271 : vector<1x32xf32> to vector<8x32xf32>
    %292 = arith.mulf %290, %291 : vector<8x32xf32>
    %293 = vector.broadcast %272 : vector<1x32xf32> to vector<8x32xf32>
    %294 = arith.addf %292, %293 : vector<8x32xf32>
    %c0_120 = arith.constant 0 : index
    %c0_121 = arith.constant 0 : index
    %c0_122 = arith.constant 0 : index
    %295 = vector.load %arg23[%c0_120, %c0_121, %c0_122] : memref<1x8x32xf32, #tpu.memory_space<vmem>>, vector<1x8x32xf32>
    %296 = vector.shape_cast %295 : vector<1x8x32xf32> to vector<8x32xf32>
    %297 = vector.shape_cast %294 : vector<8x32xf32> to vector<1x8x32xf32>
    tpu.vector_store %arg23[%c0_120, %c0_121, %c0_122], %297 {strides = array<i32>} : memref<1x8x32xf32, #tpu.memory_space<vmem>>, vector<1x8x32xf32>,
    %298 = arith.truncf %230 : vector<8x16xf32> to vector<8x16xbf16>
    %c0_123 = arith.constant 0 : index
    %c0_124 = arith.constant 0 : index
    %c0_125 = arith.constant 0 : index
    %299 = vector.load %arg24[%c0_123, %c0_124, %c0_125] : memref<1x8x16xbf16, #tpu.memory_space<vmem>>, vector<1x8x16xbf16>
    %300 = vector.shape_cast %299 : vector<1x8x16xbf16> to vector<8x16xbf16>
    %301 = vector.shape_cast %298 : vector<8x16xbf16> to vector<1x8x16xbf16>
    tpu.vector_store %arg24[%c0_123, %c0_124, %c0_125], %301 {strides = array<i32>} : memref<1x8x16xbf16, #tpu.memory_space<vmem>>, vector<1x8x16xbf16>,
    return
  }
  func.func @transform_0(%arg0: i32) -> (i32, i32, i32) {
    %c0_i32 = arith.constant 0 : i32
    %c0_i32_0 = arith.constant 0 : i32
    %c0_i32_1 = arith.constant 0 : i32
    return %arg0, %c0_i32, %c0_i32_0 : i32, i32, i32
  }
  func.func @transform_1(%arg0: i32) -> (i32, i32, i32) {
    %c0_i32 = arith.constant 0 : i32
    %c0_i32_0 = arith.constant 0 : i32
    %c0_i32_1 = arith.constant 0 : i32
    return %arg0, %c0_i32, %c0_i32_0 : i32, i32, i32
  }
  func.func @transform_2(%arg0: i32) -> (i32, i32) {
    %c0_i32 = arith.constant 0 : i32
    %c0_i32_0 = arith.constant 0 : i32
    %c0_i32_1 = arith.constant 0 : i32
    return %c0_i32, %c0_i32_0 : i32, i32
  }
  func.func @transform_3(%arg0: i32) -> (i32, i32) {
    %c0_i32 = arith.constant 0 : i32
    %c0_i32_0 = arith.constant 0 : i32
    %c0_i32_1 = arith.constant 0 : i32
    return %c0_i32, %c0_i32_0 : i32, i32
  }
  func.func @transform_4(%arg0: i32) -> (i32, i32) {
    %c0_i32 = arith.constant 0 : i32
    %c0_i32_0 = arith.constant 0 : i32
    %c0_i32_1 = arith.constant 0 : i32
    return %c0_i32, %c0_i32_0 : i32, i32
  }
  func.func @transform_5(%arg0: i32) -> (i32, i32) {
    %c0_i32 = arith.constant 0 : i32
    %c0_i32_0 = arith.constant 0 : i32
    %c0_i32_1 = arith.constant 0 : i32
    return %c0_i32, %c0_i32_0 : i32, i32
  }
  func.func @transform_6(%arg0: i32) -> (i32, i32) {
    %c0_i32 = arith.constant 0 : i32
    %c0_i32_0 = arith.constant 0 : i32
    %c0_i32_1 = arith.constant 0 : i32
    return %c0_i32, %c0_i32_0 : i32, i32
  }
  func.func @transform_7(%arg0: i32) -> (i32, i32) {
    %c0_i32 = arith.constant 0 : i32
    %c0_i32_0 = arith.constant 0 : i32
    %c0_i32_1 = arith.constant 0 : i32
    return %c0_i32, %c0_i32_0 : i32, i32
  }
  func.func @transform_8(%arg0: i32) -> (i32, i32) {
    %c0_i32 = arith.constant 0 : i32
    %c0_i32_0 = arith.constant 0 : i32
    %c0_i32_1 = arith.constant 0 : i32
    return %c0_i32, %c0_i32_0 : i32, i32
  }
  func.func @transform_9(%arg0: i32) -> (i32, i32) {
    %c0_i32 = arith.constant 0 : i32
    %c0_i32_0 = arith.constant 0 : i32
    %c0_i32_1 = arith.constant 0 : i32
    return %c0_i32, %c0_i32_0 : i32, i32
  }
  func.func @transform_10(%arg0: i32) -> (i32, i32) {
    %c0_i32 = arith.constant 0 : i32
    %c0_i32_0 = arith.constant 0 : i32
    %c0_i32_1 = arith.constant 0 : i32
    return %c0_i32, %c0_i32_0 : i32, i32
  }
  func.func @transform_11(%arg0: i32) -> (i32, i32) {
    %c0_i32 = arith.constant 0 : i32
    %c0_i32_0 = arith.constant 0 : i32
    %c0_i32_1 = arith.constant 0 : i32
    return %c0_i32, %c0_i32_0 : i32, i32
  }
  func.func @transform_12(%arg0: i32) -> (i32, i32) {
    %c0_i32 = arith.constant 0 : i32
    %c0_i32_0 = arith.constant 0 : i32
    %c0_i32_1 = arith.constant 0 : i32
    return %c0_i32, %c0_i32_0 : i32, i32
  }
  func.func @transform_13(%arg0: i32) -> (i32, i32) {
    %c0_i32 = arith.constant 0 : i32
    %c0_i32_0 = arith.constant 0 : i32
    %c0_i32_1 = arith.constant 0 : i32
    return %c0_i32, %c0_i32_0 : i32, i32
  }
  func.func @transform_14(%arg0: i32) -> (i32, i32) {
    %c0_i32 = arith.constant 0 : i32
    %c0_i32_0 = arith.constant 0 : i32
    %c0_i32_1 = arith.constant 0 : i32
    return %c0_i32, %c0_i32_0 : i32, i32
  }
  func.func @transform_15(%arg0: i32) -> (i32, i32) {
    %c0_i32 = arith.constant 0 : i32
    %c0_i32_0 = arith.constant 0 : i32
    %c0_i32_1 = arith.constant 0 : i32
    return %c0_i32, %c0_i32_0 : i32, i32
  }
  func.func @transform_16(%arg0: i32) -> (i32, i32) {
    %c0_i32 = arith.constant 0 : i32
    %c0_i32_0 = arith.constant 0 : i32
    %c0_i32_1 = arith.constant 0 : i32
    return %c0_i32, %c0_i32_0 : i32, i32
  }
  func.func @transform_17(%arg0: i32) -> (i32, i32) {
    %c0_i32 = arith.constant 0 : i32
    %c0_i32_0 = arith.constant 0 : i32
    %c0_i32_1 = arith.constant 0 : i32
    return %c0_i32, %c0_i32_0 : i32, i32
  }
  func.func @transform_18(%arg0: i32) -> (i32, i32) {
    %c0_i32 = arith.constant 0 : i32
    %c0_i32_0 = arith.constant 0 : i32
    %c0_i32_1 = arith.constant 0 : i32
    return %c0_i32, %c0_i32_0 : i32, i32
  }
  func.func @transform_19(%arg0: i32) -> (i32, i32) {
    %c0_i32 = arith.constant 0 : i32
    %c0_i32_0 = arith.constant 0 : i32
    %c0_i32_1 = arith.constant 0 : i32
    return %c0_i32, %c0_i32_0 : i32, i32
  }
  func.func @transform_20(%arg0: i32) -> (i32, i32) {
    %c0_i32 = arith.constant 0 : i32
    %c0_i32_0 = arith.constant 0 : i32
    %c0_i32_1 = arith.constant 0 : i32
    return %c0_i32, %c0_i32_0 : i32, i32
  }
  func.func @transform_21(%arg0: i32) -> (i32, i32) {
    %c0_i32 = arith.constant 0 : i32
    %c0_i32_0 = arith.constant 0 : i32
    %c0_i32_1 = arith.constant 0 : i32
    return %c0_i32, %c0_i32_0 : i32, i32
  }
  func.func @transform_22(%arg0: i32) -> (i32, i32, i32) {
    %c0_i32 = arith.constant 0 : i32
    %c0_i32_0 = arith.constant 0 : i32
    %c0_i32_1 = arith.constant 0 : i32
    return %arg0, %c0_i32, %c0_i32_0 : i32, i32, i32
  }
  func.func @transform_23(%arg0: i32) -> (i32, i32, i32) {
    %c0_i32 = arith.constant 0 : i32
    %c0_i32_0 = arith.constant 0 : i32
    %c0_i32_1 = arith.constant 0 : i32
    return %arg0, %c0_i32, %c0_i32_0 : i32, i32, i32
  }
}

module attributes {stable_mosaic.version = 11 : i64} {
  func.func @decoder_layer_kernel(%arg0: i32, %arg1: memref<1x8x32xf32, #tpu.memory_space<vmem>>, %arg2: memref<1x16x32xf32, #tpu.memory_space<vmem>>, %arg3: memref<32x96xbf16, #tpu.memory_space<vmem>>, %arg4: memref<1x96xf32, #tpu.memory_space<vmem>>, %arg5: memref<32x32xbf16, #tpu.memory_space<vmem>>, %arg6: memref<1x32xf32, #tpu.memory_space<vmem>>, %arg7: memref<1x32xf32, #tpu.memory_space<vmem>>, %arg8: memref<1x32xf32, #tpu.memory_space<vmem>>, %arg9: memref<32x32xbf16, #tpu.memory_space<vmem>>, %arg10: memref<1x32xf32, #tpu.memory_space<vmem>>, %arg11: memref<32x64xbf16, #tpu.memory_space<vmem>>, %arg12: memref<1x64xf32, #tpu.memory_space<vmem>>, %arg13: memref<32x32xbf16, #tpu.memory_space<vmem>>, %arg14: memref<1x32xf32, #tpu.memory_space<vmem>>, %arg15: memref<1x32xf32, #tpu.memory_space<vmem>>, %arg16: memref<1x32xf32, #tpu.memory_space<vmem>>, %arg17: memref<32x64xbf16, #tpu.memory_space<vmem>>, %arg18: memref<1x64xf32, #tpu.memory_space<vmem>>, %arg19: memref<64x32xbf16, #tpu.memory_space<vmem>>, %arg20: memref<1x32xf32, #tpu.memory_space<vmem>>, %arg21: memref<1x32xf32, #tpu.memory_space<vmem>>, %arg22: memref<1x32xf32, #tpu.memory_space<vmem>>, %arg23: memref<1x8x32xf32, #tpu.memory_space<vmem>>, %arg24: memref<1x8x16xbf16, #tpu.memory_space<vmem>>, %arg25: memref<8x32xbf16, #tpu.memory_space<vmem>>) attributes {dimension_semantics = [#tpu.dimension_semantics<parallel>], iteration_bounds = array<i64: 2>, scalar_prefetch = 0 : i64, scratch_operands = 1 : i64, tpu.core_type = #tpu.core_type<tc>, window_params = [{transform_indices = @transform_0, window_bounds = array<i64: 1, 8, 32>}, {transform_indices = @transform_1, window_bounds = array<i64: 1, 16, 32>}, {pipeline_mode = #tpu.pipeline_mode<synchronous>, transform_indices = @transform_2, window_bounds = array<i64: 32, 96>}, {pipeline_mode = #tpu.pipeline_mode<synchronous>, transform_indices = @transform_3, window_bounds = array<i64: 1, 96>}, {pipeline_mode = #tpu.pipeline_mode<synchronous>, transform_indices = @transform_4, window_bounds = array<i64: 32, 32>}, {pipeline_mode = #tpu.pipeline_mode<synchronous>, transform_indices = @transform_5, window_bounds = array<i64: 1, 32>}, {pipeline_mode = #tpu.pipeline_mode<synchronous>, transform_indices = @transform_6, window_bounds = array<i64: 1, 32>}, {pipeline_mode = #tpu.pipeline_mode<synchronous>, transform_indices = @transform_7, window_bounds = array<i64: 1, 32>}, {pipeline_mode = #tpu.pipeline_mode<synchronous>, transform_indices = @transform_8, window_bounds = array<i64: 32, 32>}, {pipeline_mode = #tpu.pipeline_mode<synchronous>, transform_indices = @transform_9, window_bounds = array<i64: 1, 32>}, {pipeline_mode = #tpu.pipeline_mode<synchronous>, transform_indices = @transform_10, window_bounds = array<i64: 32, 64>}, {pipeline_mode = #tpu.pipeline_mode<synchronous>, transform_indices = @transform_11, window_bounds = array<i64: 1, 64>}, {pipeline_mode = #tpu.pipeline_mode<synchronous>, transform_indices = @transform_12, window_bounds = array<i64: 32, 32>}, {pipeline_mode = #tpu.pipeline_mode<synchronous>, transform_indices = @transform_13, window_bounds = array<i64: 1, 32>}, {pipeline_mode = #tpu.pipeline_mode<synchronous>, transform_indices = @transform_14, window_bounds = array<i64: 1, 32>}, {pipeline_mode = #tpu.pipeline_mode<synchronous>, transform_indices = @transform_15, window_bounds = array<i64: 1, 32>}, {pipeline_mode = #tpu.pipeline_mode<synchronous>, transform_indices = @transform_16, window_bounds = array<i64: 32, 64>}, {pipeline_mode = #tpu.pipeline_mode<synchronous>, transform_indices = @transform_17, window_bounds = array<i64: 1, 64>}, {pipeline_mode = #tpu.pipeline_mode<synchronous>, transform_indices = @transform_18, window_bounds = array<i64: 64, 32>}, {pipeline_mode = #tpu.pipeline_mode<synchronous>, transform_indices = @transform_19, window_bounds = array<i64: 1, 32>}, {pipeline_mode = #tpu.pipeline_mode<synchronous>, transform_indices = @transform_20, window_bounds = array<i64: 1, 32>}, {pipeline_mode = #tpu.pipeline_mode<synchronous>, transform_indices = @transform_21, window_bounds = array<i64: 1, 32>}, {transform_indices = @transform_22, window_bounds = array<i64: 1, 8, 32>}, {transform_indices = @transform_23, window_bounds = array<i64: 1, 8, 16>}]} {
    %c0 = arith.constant 0 : index
    %c0_0 = arith.constant 0 : index
    %c0_1 = arith.constant 0 : index
    %0 = vector.load %arg1[%c0, %c0_0, %c0_1] : memref<1x8x32xf32, #tpu.memory_space<vmem>>, vector<1x8x32xf32>
    %1 = vector.shape_cast %0 : vector<1x8x32xf32> to vector<8x32xf32>
    %c0_2 = arith.constant 0 : index
    %c0_3 = arith.constant 0 : index
    %c0_4 = arith.constant 0 : index
    %2 = vector.load %arg2[%c0_2, %c0_3, %c0_4] : memref<1x16x32xf32, #tpu.memory_space<vmem>>, vector<1x16x32xf32>
    %3 = vector.shape_cast %2 : vector<1x16x32xf32> to vector<16x32xf32>
    %4 = arith.truncf %3 : vector<16x32xf32> to vector<16x32xbf16>
    %5 = arith.truncf %1 : vector<8x32xf32> to vector<8x32xbf16>
    %c0_5 = arith.constant 0 : index
    %c0_6 = arith.constant 0 : index
    %6 = vector.load %arg3[%c0_5, %c0_6] : memref<32x96xbf16, #tpu.memory_space<vmem>>, vector<32x96xbf16>
    %cst = arith.constant dense<0.000000e+00> : vector<8x96xf32>
    %7 = tpu.matmul %5, %6, %cst {dimension_numbers = #tpu.dot_dimension_numbers<[1], [0], [0], [1], [0, 0, 1, 1], [], []>} : vector<8x32xbf16>, vector<32x96xbf16>, vector<8x96xf32> -> vector<8x96xf32>
    %c0_7 = arith.constant 0 : index
    %c0_8 = arith.constant 0 : index
    %8 = vector.load %arg4[%c0_7, %c0_8] : memref<1x96xf32, #tpu.memory_space<vmem>>, vector<1x96xf32>
    %9 = vector.broadcast %8 : vector<1x96xf32> to vector<8x96xf32>
    %10 = arith.addf %7, %9 : vector<8x96xf32>
    %11 = vector.extract_strided_slice %10 {offsets = [0, 0], sizes = [8, 32], strides = [1, 1]} : vector<8x96xf32> to vector<8x32xf32>
    %12 = vector.extract_strided_slice %10 {offsets = [0, 32], sizes = [8, 32], strides = [1, 1]} : vector<8x96xf32> to vector<8x32xf32>
    %13 = vector.extract_strided_slice %10 {offsets = [0, 64], sizes = [8, 32], strides = [1, 1]} : vector<8x96xf32> to vector<8x32xf32>
    %14 = arith.truncf %11 : vector<8x32xf32> to vector<8x32xbf16>
    %15 = arith.truncf %12 : vector<8x32xf32> to vector<8x32xbf16>
    %16 = arith.truncf %13 : vector<8x32xf32> to vector<8x32xbf16>
    %17 = tpu.iota {dimensions = array<i32: 0>} : vector<8x8xi32>
    %18 = tpu.iota {dimensions = array<i32: 1>} : vector<8x8xi32>
    %19 = arith.cmpi sgt, %18, %17 : vector<8x8xi32>
    %cst_9 = arith.constant -1.000000e+30 : f32
    %cst_10 = arith.constant 0.000000e+00 : f32
    %20 = vector.broadcast %cst_9 : f32 to vector<8x8xf32>
    %21 = vector.broadcast %cst_10 : f32 to vector<8x8xf32>
    %22 = arith.select %19, %20, %21 : vector<8x8xi1>, vector<8x8xf32>
    %23 = vector.extract_strided_slice %14 {offsets = [0, 0], sizes = [8, 8], strides = [1, 1]} : vector<8x32xbf16> to vector<8x8xbf16>
    %24 = vector.extract_strided_slice %15 {offsets = [0, 0], sizes = [8, 8], strides = [1, 1]} : vector<8x32xbf16> to vector<8x8xbf16>
    %cst_11 = arith.constant dense<0.000000e+00> : vector<8x8xf32>
    %25 = tpu.matmul %23, %24, %cst_11 {dimension_numbers = #tpu.dot_dimension_numbers<[1], [1], [0], [0], [0, 0, 1, 0], [], []>} : vector<8x8xbf16>, vector<8x8xbf16>, vector<8x8xf32> -> vector<8x8xf32>
    %26 = arith.addf %25, %22 : vector<8x8xf32>
    %cst_12 = arith.constant dense<0xFF800000> : vector<8xf32>
    %27 = vector.multi_reduction <maximumf>, %26, %cst_12 [1] : vector<8x8xf32> to vector<8xf32>
    %28 = vector.shape_cast %27 : vector<8xf32> to vector<8x1xf32>
    %29 = vector.broadcast %28 : vector<8x1xf32> to vector<8x8xf32>
    %30 = arith.subf %26, %29 : vector<8x8xf32>
    %31 = math.exp %30 : vector<8x8xf32>
    %cst_13 = arith.constant dense<0.000000e+00> : vector<8xf32>
    %32 = vector.multi_reduction <add>, %31, %cst_13 [1] : vector<8x8xf32> to vector<8xf32>
    %33 = vector.shape_cast %32 : vector<8xf32> to vector<8x1xf32>
    %34 = tpu.reciprocal %33 {approx = true} : vector<8x1xf32> -> vector<8x1xf32>
    %35 = vector.broadcast %34 : vector<8x1xf32> to vector<8x8xf32>
    %36 = arith.mulf %31, %35 : vector<8x8xf32>
    %37 = arith.truncf %36 : vector<8x8xf32> to vector<8x8xbf16>
    %38 = vector.extract_strided_slice %16 {offsets = [0, 0], sizes = [8, 8], strides = [1, 1]} : vector<8x32xbf16> to vector<8x8xbf16>
    %cst_14 = arith.constant dense<0.000000e+00> : vector<8x8xf32>
    %39 = tpu.matmul %37, %38, %cst_14 {dimension_numbers = #tpu.dot_dimension_numbers<[1], [0], [0], [1], [0, 0, 1, 1], [], []>} : vector<8x8xbf16>, vector<8x8xbf16>, vector<8x8xf32> -> vector<8x8xf32>
    %40 = arith.truncf %39 : vector<8x8xf32> to vector<8x8xbf16>
    %c0_15 = arith.constant 0 : index
    %c0_16 = arith.constant 0 : index
    %41 = vector.load %arg25[%c0_15, %c0_16] : memref<8x32xbf16, #tpu.memory_space<vmem>>, vector<8x8xbf16>
    tpu.vector_store %arg25[%c0_15, %c0_16], %40 {strides = array<i32>} : memref<8x32xbf16, #tpu.memory_space<vmem>>, vector<8x8xbf16>,
    %42 = vector.extract_strided_slice %14 {offsets = [0, 8], sizes = [8, 8], strides = [1, 1]} : vector<8x32xbf16> to vector<8x8xbf16>
    %43 = vector.extract_strided_slice %15 {offsets = [0, 8], sizes = [8, 8], strides = [1, 1]} : vector<8x32xbf16> to vector<8x8xbf16>
    %cst_17 = arith.constant dense<0.000000e+00> : vector<8x8xf32>
    %44 = tpu.matmul %42, %43, %cst_17 {dimension_numbers = #tpu.dot_dimension_numbers<[1], [1], [0], [0], [0, 0, 1, 0], [], []>} : vector<8x8xbf16>, vector<8x8xbf16>, vector<8x8xf32> -> vector<8x8xf32>
    %45 = arith.addf %44, %22 : vector<8x8xf32>
    %cst_18 = arith.constant dense<0xFF800000> : vector<8xf32>
    %46 = vector.multi_reduction <maximumf>, %45, %cst_18 [1] : vector<8x8xf32> to vector<8xf32>
    %47 = vector.shape_cast %46 : vector<8xf32> to vector<8x1xf32>
    %48 = vector.broadcast %47 : vector<8x1xf32> to vector<8x8xf32>
    %49 = arith.subf %45, %48 : vector<8x8xf32>
    %50 = math.exp %49 : vector<8x8xf32>
    %cst_19 = arith.constant dense<0.000000e+00> : vector<8xf32>
    %51 = vector.multi_reduction <add>, %50, %cst_19 [1] : vector<8x8xf32> to vector<8xf32>
    %52 = vector.shape_cast %51 : vector<8xf32> to vector<8x1xf32>
    %53 = tpu.reciprocal %52 {approx = true} : vector<8x1xf32> -> vector<8x1xf32>
    %54 = vector.broadcast %53 : vector<8x1xf32> to vector<8x8xf32>
    %55 = arith.mulf %50, %54 : vector<8x8xf32>
    %56 = arith.truncf %55 : vector<8x8xf32> to vector<8x8xbf16>
    %57 = vector.extract_strided_slice %16 {offsets = [0, 8], sizes = [8, 8], strides = [1, 1]} : vector<8x32xbf16> to vector<8x8xbf16>
    %cst_20 = arith.constant dense<0.000000e+00> : vector<8x8xf32>
    %58 = tpu.matmul %56, %57, %cst_20 {dimension_numbers = #tpu.dot_dimension_numbers<[1], [0], [0], [1], [0, 0, 1, 1], [], []>} : vector<8x8xbf16>, vector<8x8xbf16>, vector<8x8xf32> -> vector<8x8xf32>
    %59 = arith.truncf %58 : vector<8x8xf32> to vector<8x8xbf16>
    %c0_21 = arith.constant 0 : index
    %c8 = arith.constant 8 : index
    %60 = vector.load %arg25[%c0_21, %c8] : memref<8x32xbf16, #tpu.memory_space<vmem>>, vector<8x8xbf16>
    tpu.vector_store %arg25[%c0_21, %c8], %59 {strides = array<i32>} : memref<8x32xbf16, #tpu.memory_space<vmem>>, vector<8x8xbf16>,
    %61 = vector.extract_strided_slice %14 {offsets = [0, 16], sizes = [8, 8], strides = [1, 1]} : vector<8x32xbf16> to vector<8x8xbf16>
    %62 = vector.extract_strided_slice %15 {offsets = [0, 16], sizes = [8, 8], strides = [1, 1]} : vector<8x32xbf16> to vector<8x8xbf16>
    %cst_22 = arith.constant dense<0.000000e+00> : vector<8x8xf32>
    %63 = tpu.matmul %61, %62, %cst_22 {dimension_numbers = #tpu.dot_dimension_numbers<[1], [1], [0], [0], [0, 0, 1, 0], [], []>} : vector<8x8xbf16>, vector<8x8xbf16>, vector<8x8xf32> -> vector<8x8xf32>
    %64 = arith.addf %63, %22 : vector<8x8xf32>
    %cst_23 = arith.constant dense<0xFF800000> : vector<8xf32>
    %65 = vector.multi_reduction <maximumf>, %64, %cst_23 [1] : vector<8x8xf32> to vector<8xf32>
    %66 = vector.shape_cast %65 : vector<8xf32> to vector<8x1xf32>
    %67 = vector.broadcast %66 : vector<8x1xf32> to vector<8x8xf32>
    %68 = arith.subf %64, %67 : vector<8x8xf32>
    %69 = math.exp %68 : vector<8x8xf32>
    %cst_24 = arith.constant dense<0.000000e+00> : vector<8xf32>
    %70 = vector.multi_reduction <add>, %69, %cst_24 [1] : vector<8x8xf32> to vector<8xf32>
    %71 = vector.shape_cast %70 : vector<8xf32> to vector<8x1xf32>
    %72 = tpu.reciprocal %71 {approx = true} : vector<8x1xf32> -> vector<8x1xf32>
    %73 = vector.broadcast %72 : vector<8x1xf32> to vector<8x8xf32>
    %74 = arith.mulf %69, %73 : vector<8x8xf32>
    %75 = arith.truncf %74 : vector<8x8xf32> to vector<8x8xbf16>
    %76 = vector.extract_strided_slice %16 {offsets = [0, 16], sizes = [8, 8], strides = [1, 1]} : vector<8x32xbf16> to vector<8x8xbf16>
    %cst_25 = arith.constant dense<0.000000e+00> : vector<8x8xf32>
    %77 = tpu.matmul %75, %76, %cst_25 {dimension_numbers = #tpu.dot_dimension_numbers<[1], [0], [0], [1], [0, 0, 1, 1], [], []>} : vector<8x8xbf16>, vector<8x8xbf16>, vector<8x8xf32> -> vector<8x8xf32>
    %78 = arith.truncf %77 : vector<8x8xf32> to vector<8x8xbf16>
    %c0_26 = arith.constant 0 : index
    %c16 = arith.constant 16 : index
    %79 = vector.load %arg25[%c0_26, %c16] : memref<8x32xbf16, #tpu.memory_space<vmem>>, vector<8x8xbf16>
    tpu.vector_store %arg25[%c0_26, %c16], %78 {strides = array<i32>} : memref<8x32xbf16, #tpu.memory_space<vmem>>, vector<8x8xbf16>,
    %80 = vector.extract_strided_slice %14 {offsets = [0, 24], sizes = [8, 8], strides = [1, 1]} : vector<8x32xbf16> to vector<8x8xbf16>
    %81 = vector.extract_strided_slice %15 {offsets = [0, 24], sizes = [8, 8], strides = [1, 1]} : vector<8x32xbf16> to vector<8x8xbf16>
    %cst_27 = arith.constant dense<0.000000e+00> : vector<8x8xf32>
    %82 = tpu.matmul %80, %81, %cst_27 {dimension_numbers = #tpu.dot_dimension_numbers<[1], [1], [0], [0], [0, 0, 1, 0], [], []>} : vector<8x8xbf16>, vector<8x8xbf16>, vector<8x8xf32> -> vector<8x8xf32>
    %83 = arith.addf %82, %22 : vector<8x8xf32>
    %cst_28 = arith.constant dense<0xFF800000> : vector<8xf32>
    %84 = vector.multi_reduction <maximumf>, %83, %cst_28 [1] : vector<8x8xf32> to vector<8xf32>
    %85 = vector.shape_cast %84 : vector<8xf32> to vector<8x1xf32>
    %86 = vector.broadcast %85 : vector<8x1xf32> to vector<8x8xf32>
    %87 = arith.subf %83, %86 : vector<8x8xf32>
    %88 = math.exp %87 : vector<8x8xf32>
    %cst_29 = arith.constant dense<0.000000e+00> : vector<8xf32>
    %89 = vector.multi_reduction <add>, %88, %cst_29 [1] : vector<8x8xf32> to vector<8xf32>
    %90 = vector.shape_cast %89 : vector<8xf32> to vector<8x1xf32>
    %91 = tpu.reciprocal %90 {approx = true} : vector<8x1xf32> -> vector<8x1xf32>
    %92 = vector.broadcast %91 : vector<8x1xf32> to vector<8x8xf32>
    %93 = arith.mulf %88, %92 : vector<8x8xf32>
    %94 = arith.truncf %93 : vector<8x8xf32> to vector<8x8xbf16>
    %95 = vector.extract_strided_slice %16 {offsets = [0, 24], sizes = [8, 8], strides = [1, 1]} : vector<8x32xbf16> to vector<8x8xbf16>
    %cst_30 = arith.constant dense<0.000000e+00> : vector<8x8xf32>
    %96 = tpu.matmul %94, %95, %cst_30 {dimension_numbers = #tpu.dot_dimension_numbers<[1], [0], [0], [1], [0, 0, 1, 1], [], []>} : vector<8x8xbf16>, vector<8x8xbf16>, vector<8x8xf32> -> vector<8x8xf32>
    %97 = arith.truncf %96 : vector<8x8xf32> to vector<8x8xbf16>
    %c0_31 = arith.constant 0 : index
    %c24 = arith.constant 24 : index
    %98 = vector.load %arg25[%c0_31, %c24] : memref<8x32xbf16, #tpu.memory_space<vmem>>, vector<8x8xbf16>
    tpu.vector_store %arg25[%c0_31, %c24], %97 {strides = array<i32>} : memref<8x32xbf16, #tpu.memory_space<vmem>>, vector<8x8xbf16>,
    %c0_32 = arith.constant 0 : index
    %c0_33 = arith.constant 0 : index
    %99 = vector.load %arg25[%c0_32, %c0_33] : memref<8x32xbf16, #tpu.memory_space<vmem>>, vector<8x32xbf16>
    %c0_34 = arith.constant 0 : index
    %c0_35 = arith.constant 0 : index
    %100 = vector.load %arg5[%c0_34, %c0_35] : memref<32x32xbf16, #tpu.memory_space<vmem>>, vector<32x32xbf16>
    %cst_36 = arith.constant dense<0.000000e+00> : vector<8x32xf32>
    %101 = tpu.matmul %99, %100, %cst_36 {dimension_numbers = #tpu.dot_dimension_numbers<[1], [0], [0], [1], [0, 0, 1, 1], [], []>} : vector<8x32xbf16>, vector<32x32xbf16>, vector<8x32xf32> -> vector<8x32xf32>
    %c0_37 = arith.constant 0 : index
    %c0_38 = arith.constant 0 : index
    %102 = vector.load %arg6[%c0_37, %c0_38] : memref<1x32xf32, #tpu.memory_space<vmem>>, vector<1x32xf32>
    %103 = vector.broadcast %102 : vector<1x32xf32> to vector<8x32xf32>
    %104 = arith.addf %101, %103 : vector<8x32xf32>
    %105 = arith.addf %104, %1 : vector<8x32xf32>
    %c0_39 = arith.constant 0 : index
    %c0_40 = arith.constant 0 : index
    %106 = vector.load %arg7[%c0_39, %c0_40] : memref<1x32xf32, #tpu.memory_space<vmem>>, vector<1x32xf32>
    %c0_41 = arith.constant 0 : index
    %c0_42 = arith.constant 0 : index
    %107 = vector.load %arg8[%c0_41, %c0_42] : memref<1x32xf32, #tpu.memory_space<vmem>>, vector<1x32xf32>
    %cst_43 = arith.constant dense<0.000000e+00> : vector<8xf32>
    %108 = vector.multi_reduction <add>, %105, %cst_43 [1] : vector<8x32xf32> to vector<8xf32>
    %109 = vector.shape_cast %108 : vector<8xf32> to vector<8x1xf32>
    %cst_44 = arith.constant 3.200000e+01 : f32
    %110 = vector.broadcast %cst_44 : f32 to vector<8x1xf32>
    %111 = arith.divf %109, %110 : vector<8x1xf32>
    %112 = vector.broadcast %111 : vector<8x1xf32> to vector<8x32xf32>
    %113 = arith.subf %105, %112 : vector<8x32xf32>
    %114 = arith.mulf %113, %113 : vector<8x32xf32>
    %cst_45 = arith.constant dense<0.000000e+00> : vector<8xf32>
    %115 = vector.multi_reduction <add>, %114, %cst_45 [1] : vector<8x32xf32> to vector<8xf32>
    %116 = vector.shape_cast %115 : vector<8xf32> to vector<8x1xf32>
    %cst_46 = arith.constant 3.200000e+01 : f32
    %117 = vector.broadcast %cst_46 : f32 to vector<8x1xf32>
    %118 = arith.divf %116, %117 : vector<8x1xf32>
    %119 = vector.broadcast %111 : vector<8x1xf32> to vector<8x32xf32>
    %120 = arith.subf %105, %119 : vector<8x32xf32>
    %cst_47 = arith.constant 9.99999974E-6 : f32
    %121 = vector.broadcast %cst_47 : f32 to vector<8x1xf32>
    %122 = arith.addf %118, %121 : vector<8x1xf32>
    %123 = math.rsqrt %122 : vector<8x1xf32>
    %124 = vector.broadcast %123 : vector<8x1xf32> to vector<8x32xf32>
    %125 = arith.mulf %120, %124 : vector<8x32xf32>
    %126 = vector.broadcast %106 : vector<1x32xf32> to vector<8x32xf32>
    %127 = arith.mulf %125, %126 : vector<8x32xf32>
    %128 = vector.broadcast %107 : vector<1x32xf32> to vector<8x32xf32>
    %129 = arith.addf %127, %128 : vector<8x32xf32>
    %130 = arith.truncf %129 : vector<8x32xf32> to vector<8x32xbf16>
    %c0_48 = arith.constant 0 : index
    %c0_49 = arith.constant 0 : index
    %131 = vector.load %arg9[%c0_48, %c0_49] : memref<32x32xbf16, #tpu.memory_space<vmem>>, vector<32x32xbf16>
    %cst_50 = arith.constant dense<0.000000e+00> : vector<8x32xf32>
    %132 = tpu.matmul %130, %131, %cst_50 {dimension_numbers = #tpu.dot_dimension_numbers<[1], [0], [0], [1], [0, 0, 1, 1], [], []>} : vector<8x32xbf16>, vector<32x32xbf16>, vector<8x32xf32> -> vector<8x32xf32>
    %c0_51 = arith.constant 0 : index
    %c0_52 = arith.constant 0 : index
    %133 = vector.load %arg10[%c0_51, %c0_52] : memref<1x32xf32, #tpu.memory_space<vmem>>, vector<1x32xf32>
    %134 = vector.broadcast %133 : vector<1x32xf32> to vector<8x32xf32>
    %135 = arith.addf %132, %134 : vector<8x32xf32>
    %c0_53 = arith.constant 0 : index
    %c0_54 = arith.constant 0 : index
    %136 = vector.load %arg11[%c0_53, %c0_54] : memref<32x64xbf16, #tpu.memory_space<vmem>>, vector<32x64xbf16>
    %cst_55 = arith.constant dense<0.000000e+00> : vector<16x64xf32>
    %137 = tpu.matmul %4, %136, %cst_55 {dimension_numbers = #tpu.dot_dimension_numbers<[1], [0], [0], [1], [0, 0, 1, 1], [], []>} : vector<16x32xbf16>, vector<32x64xbf16>, vector<16x64xf32> -> vector<16x64xf32>
    %c0_56 = arith.constant 0 : index
    %c0_57 = arith.constant 0 : index
    %138 = vector.load %arg12[%c0_56, %c0_57] : memref<1x64xf32, #tpu.memory_space<vmem>>, vector<1x64xf32>
    %139 = vector.broadcast %138 : vector<1x64xf32> to vector<16x64xf32>
    %140 = arith.addf %137, %139 : vector<16x64xf32>
    %141 = vector.extract_strided_slice %140 {offsets = [0, 0], sizes = [16, 32], strides = [1, 1]} : vector<16x64xf32> to vector<16x32xf32>
    %142 = vector.extract_strided_slice %140 {offsets = [0, 32], sizes = [16, 32], strides = [1, 1]} : vector<16x64xf32> to vector<16x32xf32>
    %143 = arith.truncf %135 : vector<8x32xf32> to vector<8x32xbf16>
    %144 = arith.truncf %141 : vector<16x32xf32> to vector<16x32xbf16>
    %145 = arith.truncf %142 : vector<16x32xf32> to vector<16x32xbf16>
    %cst_58 = arith.constant 0.000000e+00 : f32
    %146 = vector.broadcast %cst_58 : f32 to vector<8x16xf32>
    %147 = vector.extract_strided_slice %143 {offsets = [0, 0], sizes = [8, 8], strides = [1, 1]} : vector<8x32xbf16> to vector<8x8xbf16>
    %148 = vector.extract_strided_slice %144 {offsets = [0, 0], sizes = [16, 8], strides = [1, 1]} : vector<16x32xbf16> to vector<16x8xbf16>
    %cst_59 = arith.constant dense<0.000000e+00> : vector<8x16xf32>
    %149 = tpu.matmul %147, %148, %cst_59 {dimension_numbers = #tpu.dot_dimension_numbers<[1], [1], [0], [0], [0, 0, 1, 0], [], []>} : vector<8x8xbf16>, vector<16x8xbf16>, vector<8x16xf32> -> vector<8x16xf32>
    %cst_60 = arith.constant dense<0xFF800000> : vector<8xf32>
    %150 = vector.multi_reduction <maximumf>, %149, %cst_60 [1] : vector<8x16xf32> to vector<8xf32>
    %151 = vector.shape_cast %150 : vector<8xf32> to vector<8x1xf32>
    %152 = vector.broadcast %151 : vector<8x1xf32> to vector<8x16xf32>
    %153 = arith.subf %149, %152 : vector<8x16xf32>
    %154 = math.exp %153 : vector<8x16xf32>
    %cst_61 = arith.constant dense<0.000000e+00> : vector<8xf32>
    %155 = vector.multi_reduction <add>, %154, %cst_61 [1] : vector<8x16xf32> to vector<8xf32>
    %156 = vector.shape_cast %155 : vector<8xf32> to vector<8x1xf32>
    %157 = tpu.reciprocal %156 {approx = true} : vector<8x1xf32> -> vector<8x1xf32>
    %158 = vector.broadcast %157 : vector<8x1xf32> to vector<8x16xf32>
    %159 = arith.mulf %154, %158 : vector<8x16xf32>
    %160 = arith.addf %146, %159 : vector<8x16xf32>
    %161 = arith.truncf %159 : vector<8x16xf32> to vector<8x16xbf16>
    %162 = vector.extract_strided_slice %145 {offsets = [0, 0], sizes = [16, 8], strides = [1, 1]} : vector<16x32xbf16> to vector<16x8xbf16>
    %cst_62 = arith.constant dense<0.000000e+00> : vector<8x8xf32>
    %163 = tpu.matmul %161, %162, %cst_62 {dimension_numbers = #tpu.dot_dimension_numbers<[1], [0], [0], [1], [0, 0, 1, 1], [], []>} : vector<8x16xbf16>, vector<16x8xbf16>, vector<8x8xf32> -> vector<8x8xf32>
    %164 = arith.truncf %163 : vector<8x8xf32> to vector<8x8xbf16>
    %c0_63 = arith.constant 0 : index
    %c0_64 = arith.constant 0 : index
    %165 = vector.load %arg25[%c0_63, %c0_64] : memref<8x32xbf16, #tpu.memory_space<vmem>>, vector<8x8xbf16>
    tpu.vector_store %arg25[%c0_63, %c0_64], %164 {strides = array<i32>} : memref<8x32xbf16, #tpu.memory_space<vmem>>, vector<8x8xbf16>,
    %166 = vector.extract_strided_slice %143 {offsets = [0, 8], sizes = [8, 8], strides = [1, 1]} : vector<8x32xbf16> to vector<8x8xbf16>
    %167 = vector.extract_strided_slice %144 {offsets = [0, 8], sizes = [16, 8], strides = [1, 1]} : vector<16x32xbf16> to vector<16x8xbf16>
    %cst_65 = arith.constant dense<0.000000e+00> : vector<8x16xf32>
    %168 = tpu.matmul %166, %167, %cst_65 {dimension_numbers = #tpu.dot_dimension_numbers<[1], [1], [0], [0], [0, 0, 1, 0], [], []>} : vector<8x8xbf16>, vector<16x8xbf16>, vector<8x16xf32> -> vector<8x16xf32>
    %cst_66 = arith.constant dense<0xFF800000> : vector<8xf32>
    %169 = vector.multi_reduction <maximumf>, %168, %cst_66 [1] : vector<8x16xf32> to vector<8xf32>
    %170 = vector.shape_cast %169 : vector<8xf32> to vector<8x1xf32>
    %171 = vector.broadcast %170 : vector<8x1xf32> to vector<8x16xf32>
    %172 = arith.subf %168, %171 : vector<8x16xf32>
    %173 = math.exp %172 : vector<8x16xf32>
    %cst_67 = arith.constant dense<0.000000e+00> : vector<8xf32>
    %174 = vector.multi_reduction <add>, %173, %cst_67 [1] : vector<8x16xf32> to vector<8xf32>
    %175 = vector.shape_cast %174 : vector<8xf32> to vector<8x1xf32>
    %176 = tpu.reciprocal %175 {approx = true} : vector<8x1xf32> -> vector<8x1xf32>
    %177 = vector.broadcast %176 : vector<8x1xf32> to vector<8x16xf32>
    %178 = arith.mulf %173, %177 : vector<8x16xf32>
    %179 = arith.addf %160, %178 : vector<8x16xf32>
    %180 = arith.truncf %178 : vector<8x16xf32> to vector<8x16xbf16>
    %181 = vector.extract_strided_slice %145 {offsets = [0, 8], sizes = [16, 8], strides = [1, 1]} : vector<16x32xbf16> to vector<16x8xbf16>
    %cst_68 = arith.constant dense<0.000000e+00> : vector<8x8xf32>
    %182 = tpu.matmul %180, %181, %cst_68 {dimension_numbers = #tpu.dot_dimension_numbers<[1], [0], [0], [1], [0, 0, 1, 1], [], []>} : vector<8x16xbf16>, vector<16x8xbf16>, vector<8x8xf32> -> vector<8x8xf32>
    %183 = arith.truncf %182 : vector<8x8xf32> to vector<8x8xbf16>
    %c0_69 = arith.constant 0 : index
    %c8_70 = arith.constant 8 : index
    %184 = vector.load %arg25[%c0_69, %c8_70] : memref<8x32xbf16, #tpu.memory_space<vmem>>, vector<8x8xbf16>
    tpu.vector_store %arg25[%c0_69, %c8_70], %183 {strides = array<i32>} : memref<8x32xbf16, #tpu.memory_space<vmem>>, vector<8x8xbf16>,
    %185 = vector.extract_strided_slice %143 {offsets = [0, 16], sizes = [8, 8], strides = [1, 1]} : vector<8x32xbf16> to vector<8x8xbf16>
    %186 = vector.extract_strided_slice %144 {offsets = [0, 16], sizes = [16, 8], strides = [1, 1]} : vector<16x32xbf16> to vector<16x8xbf16>
    %cst_71 = arith.constant dense<0.000000e+00> : vector<8x16xf32>
    %187 = tpu.matmul %185, %186, %cst_71 {dimension_numbers = #tpu.dot_dimension_numbers<[1], [1], [0], [0], [0, 0, 1, 0], [], []>} : vector<8x8xbf16>, vector<16x8xbf16>, vector<8x16xf32> -> vector<8x16xf32>
    %cst_72 = arith.constant dense<0xFF800000> : vector<8xf32>
    %188 = vector.multi_reduction <maximumf>, %187, %cst_72 [1] : vector<8x16xf32> to vector<8xf32>
    %189 = vector.shape_cast %188 : vector<8xf32> to vector<8x1xf32>
    %190 = vector.broadcast %189 : vector<8x1xf32> to vector<8x16xf32>
    %191 = arith.subf %187, %190 : vector<8x16xf32>
    %192 = math.exp %191 : vector<8x16xf32>
    %cst_73 = arith.constant dense<0.000000e+00> : vector<8xf32>
    %193 = vector.multi_reduction <add>, %192, %cst_73 [1] : vector<8x16xf32> to vector<8xf32>
    %194 = vector.shape_cast %193 : vector<8xf32> to vector<8x1xf32>
    %195 = tpu.reciprocal %194 {approx = true} : vector<8x1xf32> -> vector<8x1xf32>
    %196 = vector.broadcast %195 : vector<8x1xf32> to vector<8x16xf32>
    %197 = arith.mulf %192, %196 : vector<8x16xf32>
    %198 = arith.addf %179, %197 : vector<8x16xf32>
    %199 = arith.truncf %197 : vector<8x16xf32> to vector<8x16xbf16>
    %200 = vector.extract_strided_slice %145 {offsets = [0, 16], sizes = [16, 8], strides = [1, 1]} : vector<16x32xbf16> to vector<16x8xbf16>
    %cst_74 = arith.constant dense<0.000000e+00> : vector<8x8xf32>
    %201 = tpu.matmul %199, %200, %cst_74 {dimension_numbers = #tpu.dot_dimension_numbers<[1], [0], [0], [1], [0, 0, 1, 1], [], []>} : vector<8x16xbf16>, vector<16x8xbf16>, vector<8x8xf32> -> vector<8x8xf32>
    %202 = arith.truncf %201 : vector<8x8xf32> to vector<8x8xbf16>
    %c0_75 = arith.constant 0 : index
    %c16_76 = arith.constant 16 : index
    %203 = vector.load %arg25[%c0_75, %c16_76] : memref<8x32xbf16, #tpu.memory_space<vmem>>, vector<8x8xbf16>
    tpu.vector_store %arg25[%c0_75, %c16_76], %202 {strides = array<i32>} : memref<8x32xbf16, #tpu.memory_space<vmem>>, vector<8x8xbf16>,
    %204 = vector.extract_strided_slice %143 {offsets = [0, 24], sizes = [8, 8], strides = [1, 1]} : vector<8x32xbf16> to vector<8x8xbf16>
    %205 = vector.extract_strided_slice %144 {offsets = [0, 24], sizes = [16, 8], strides = [1, 1]} : vector<16x32xbf16> to vector<16x8xbf16>
    %cst_77 = arith.constant dense<0.000000e+00> : vector<8x16xf32>
    %206 = tpu.matmul %204, %205, %cst_77 {dimension_numbers = #tpu.dot_dimension_numbers<[1], [1], [0], [0], [0, 0, 1, 0], [], []>} : vector<8x8xbf16>, vector<16x8xbf16>, vector<8x16xf32> -> vector<8x16xf32>
    %cst_78 = arith.constant dense<0xFF800000> : vector<8xf32>
    %207 = vector.multi_reduction <maximumf>, %206, %cst_78 [1] : vector<8x16xf32> to vector<8xf32>
    %208 = vector.shape_cast %207 : vector<8xf32> to vector<8x1xf32>
    %209 = vector.broadcast %208 : vector<8x1xf32> to vector<8x16xf32>
    %210 = arith.subf %206, %209 : vector<8x16xf32>
    %211 = math.exp %210 : vector<8x16xf32>
    %cst_79 = arith.constant dense<0.000000e+00> : vector<8xf32>
    %212 = vector.multi_reduction <add>, %211, %cst_79 [1] : vector<8x16xf32> to vector<8xf32>
    %213 = vector.shape_cast %212 : vector<8xf32> to vector<8x1xf32>
    %214 = tpu.reciprocal %213 {approx = true} : vector<8x1xf32> -> vector<8x1xf32>
    %215 = vector.broadcast %214 : vector<8x1xf32> to vector<8x16xf32>
    %216 = arith.mulf %211, %215 : vector<8x16xf32>
    %217 = arith.addf %198, %216 : vector<8x16xf32>
    %218 = arith.truncf %216 : vector<8x16xf32> to vector<8x16xbf16>
    %219 = vector.extract_strided_slice %145 {offsets = [0, 24], sizes = [16, 8], strides = [1, 1]} : vector<16x32xbf16> to vector<16x8xbf16>
    %cst_80 = arith.constant dense<0.000000e+00> : vector<8x8xf32>
    %220 = tpu.matmul %218, %219, %cst_80 {dimension_numbers = #tpu.dot_dimension_numbers<[1], [0], [0], [1], [0, 0, 1, 1], [], []>} : vector<8x16xbf16>, vector<16x8xbf16>, vector<8x8xf32> -> vector<8x8xf32>
    %221 = arith.truncf %220 : vector<8x8xf32> to vector<8x8xbf16>
    %c0_81 = arith.constant 0 : index
    %c24_82 = arith.constant 24 : index
    %222 = vector.load %arg25[%c0_81, %c24_82] : memref<8x32xbf16, #tpu.memory_space<vmem>>, vector<8x8xbf16>
    tpu.vector_store %arg25[%c0_81, %c24_82], %221 {strides = array<i32>} : memref<8x32xbf16, #tpu.memory_space<vmem>>, vector<8x8xbf16>,
    %c0_83 = arith.constant 0 : index
    %c0_84 = arith.constant 0 : index
    %223 = vector.load %arg25[%c0_83, %c0_84] : memref<8x32xbf16, #tpu.memory_space<vmem>>, vector<8x32xbf16>
    %c0_85 = arith.constant 0 : index
    %c0_86 = arith.constant 0 : index
    %224 = vector.load %arg13[%c0_85, %c0_86] : memref<32x32xbf16, #tpu.memory_space<vmem>>, vector<32x32xbf16>
    %cst_87 = arith.constant dense<0.000000e+00> : vector<8x32xf32>
    %225 = tpu.matmul %223, %224, %cst_87 {dimension_numbers = #tpu.dot_dimension_numbers<[1], [0], [0], [1], [0, 0, 1, 1], [], []>} : vector<8x32xbf16>, vector<32x32xbf16>, vector<8x32xf32> -> vector<8x32xf32>
    %c0_88 = arith.constant 0 : index
    %c0_89 = arith.constant 0 : index
    %226 = vector.load %arg14[%c0_88, %c0_89] : memref<1x32xf32, #tpu.memory_space<vmem>>, vector<1x32xf32>
    %227 = vector.broadcast %226 : vector<1x32xf32> to vector<8x32xf32>
    %228 = arith.addf %225, %227 : vector<8x32xf32>
    %cst_90 = arith.constant 2.500000e-01 : f32
    %229 = vector.broadcast %cst_90 : f32 to vector<8x16xf32>
    %230 = arith.mulf %217, %229 : vector<8x16xf32>
    %231 = arith.addf %228, %129 : vector<8x32xf32>
    %c0_91 = arith.constant 0 : index
    %c0_92 = arith.constant 0 : index
    %232 = vector.load %arg15[%c0_91, %c0_92] : memref<1x32xf32, #tpu.memory_space<vmem>>, vector<1x32xf32>
    %c0_93 = arith.constant 0 : index
    %c0_94 = arith.constant 0 : index
    %233 = vector.load %arg16[%c0_93, %c0_94] : memref<1x32xf32, #tpu.memory_space<vmem>>, vector<1x32xf32>
    %cst_95 = arith.constant dense<0.000000e+00> : vector<8xf32>
    %234 = vector.multi_reduction <add>, %231, %cst_95 [1] : vector<8x32xf32> to vector<8xf32>
    %235 = vector.shape_cast %234 : vector<8xf32> to vector<8x1xf32>
    %cst_96 = arith.constant 3.200000e+01 : f32
    %236 = vector.broadcast %cst_96 : f32 to vector<8x1xf32>
    %237 = arith.divf %235, %236 : vector<8x1xf32>
    %238 = vector.broadcast %237 : vector<8x1xf32> to vector<8x32xf32>
    %239 = arith.subf %231, %238 : vector<8x32xf32>
    %240 = arith.mulf %239, %239 : vector<8x32xf32>
    %cst_97 = arith.constant dense<0.000000e+00> : vector<8xf32>
    %241 = vector.multi_reduction <add>, %240, %cst_97 [1] : vector<8x32xf32> to vector<8xf32>
    %242 = vector.shape_cast %241 : vector<8xf32> to vector<8x1xf32>
    %cst_98 = arith.constant 3.200000e+01 : f32
    %243 = vector.broadcast %cst_98 : f32 to vector<8x1xf32>
    %244 = arith.divf %242, %243 : vector<8x1xf32>
    %245 = vector.broadcast %237 : vector<8x1xf32> to vector<8x32xf32>
    %246 = arith.subf %231, %245 : vector<8x32xf32>
    %cst_99 = arith.constant 9.99999974E-6 : f32
    %247 = vector.broadcast %cst_99 : f32 to vector<8x1xf32>
    %248 = arith.addf %244, %247 : vector<8x1xf32>
    %249 = math.rsqrt %248 : vector<8x1xf32>
    %250 = vector.broadcast %249 : vector<8x1xf32> to vector<8x32xf32>
    %251 = arith.mulf %246, %250 : vector<8x32xf32>
    %252 = vector.broadcast %232 : vector<1x32xf32> to vector<8x32xf32>
    %253 = arith.mulf %251, %252 : vector<8x32xf32>
    %254 = vector.broadcast %233 : vector<1x32xf32> to vector<8x32xf32>
    %255 = arith.addf %253, %254 : vector<8x32xf32>
    %256 = arith.truncf %255 : vector<8x32xf32> to vector<8x32xbf16>
    %c0_100 = arith.constant 0 : index
    %c0_101 = arith.constant 0 : index
    %257 = vector.load %arg17[%c0_100, %c0_101] : memref<32x64xbf16, #tpu.memory_space<vmem>>, vector<32x64xbf16>
    %cst_102 = arith.constant dense<0.000000e+00> : vector<8x64xf32>
    %258 = tpu.matmul %256, %257, %cst_102 {dimension_numbers = #tpu.dot_dimension_numbers<[1], [0], [0], [1], [0, 0, 1, 1], [], []>} : vector<8x32xbf16>, vector<32x64xbf16>, vector<8x64xf32> -> vector<8x64xf32>
    %c0_103 = arith.constant 0 : index
    %c0_104 = arith.constant 0 : index
    %259 = vector.load %arg18[%c0_103, %c0_104] : memref<1x64xf32, #tpu.memory_space<vmem>>, vector<1x64xf32>
    %260 = vector.broadcast %259 : vector<1x64xf32> to vector<8x64xf32>
    %261 = arith.addf %258, %260 : vector<8x64xf32>
    %cst_105 = arith.constant 0.000000e+00 : f32
    %262 = vector.broadcast %cst_105 : f32 to vector<8x64xf32>
    %263 = arith.maximumf %261, %262 : vector<8x64xf32>
    %264 = arith.truncf %263 : vector<8x64xf32> to vector<8x64xbf16>
    %c0_106 = arith.constant 0 : index
    %c0_107 = arith.constant 0 : index
    %265 = vector.load %arg19[%c0_106, %c0_107] : memref<64x32xbf16, #tpu.memory_space<vmem>>, vector<64x32xbf16>
    %cst_108 = arith.constant dense<0.000000e+00> : vector<8x32xf32>
    %266 = tpu.matmul %264, %265, %cst_108 {dimension_numbers = #tpu.dot_dimension_numbers<[1], [0], [0], [1], [0, 0, 1, 1], [], []>} : vector<8x64xbf16>, vector<64x32xbf16>, vector<8x32xf32> -> vector<8x32xf32>
    %c0_109 = arith.constant 0 : index
    %c0_110 = arith.constant 0 : index
    %267 = vector.load %arg20[%c0_109, %c0_110] : memref<1x32xf32, #tpu.memory_space<vmem>>, vector<1x32xf32>
    %268 = vector.broadcast %267 : vector<1x32xf32> to vector<8x32xf32>
    %269 = arith.addf %266, %268 : vector<8x32xf32>
    %270 = arith.addf %269, %255 : vector<8x32xf32>
    %c0_111 = arith.constant 0 : index
    %c0_112 = arith.constant 0 : index
    %271 = vector.load %arg21[%c0_111, %c0_112] : memref<1x32xf32, #tpu.memory_space<vmem>>, vector<1x32xf32>
    %c0_113 = arith.constant 0 : index
    %c0_114 = arith.constant 0 : index
    %272 = vector.load %arg22[%c0_113, %c0_114] : memref<1x32xf32, #tpu.memory_space<vmem>>, vector<1x32xf32>
    %cst_115 = arith.constant dense<0.000000e+00> : vector<8xf32>
    %273 = vector.multi_reduction <add>, %270, %cst_115 [1] : vector<8x32xf32> to vector<8xf32>
    %274 = vector.shape_cast %273 : vector<8xf32> to vector<8x1xf32>
    %cst_116 = arith.constant 3.200000e+01 : f32
    %275 = vector.broadcast %cst_116 : f32 to vector<8x1xf32>
    %276 = arith.divf %274, %275 : vector<8x1xf32>
    %277 = vector.broadcast %276 : vector<8x1xf32> to vector<8x32xf32>
    %278 = arith.subf %270, %277 : vector<8x32xf32>
    %279 = arith.mulf %278, %278 : vector<8x32xf32>
    %cst_117 = arith.constant dense<0.000000e+00> : vector<8xf32>
    %280 = vector.multi_reduction <add>, %279, %cst_117 [1] : vector<8x32xf32> to vector<8xf32>
    %281 = vector.shape_cast %280 : vector<8xf32> to vector<8x1xf32>
    %cst_118 = arith.constant 3.200000e+01 : f32
    %282 = vector.broadcast %cst_118 : f32 to vector<8x1xf32>
    %283 = arith.divf %281, %282 : vector<8x1xf32>
    %284 = vector.broadcast %276 : vector<8x1xf32> to vector<8x32xf32>
    %285 = arith.subf %270, %284 : vector<8x32xf32>
    %cst_119 = arith.constant 9.99999974E-6 : f32
    %286 = vector.broadcast %cst_119 : f32 to vector<8x1xf32>
    %287 = arith.addf %283, %286 : vector<8x1xf32>
    %288 = math.rsqrt %287 : vector<8x1xf32>
    %289 = vector.broadcast %288 : vector<8x1xf32> to vector<8x32xf32>
    %290 = arith.mulf %285, %289 : vector<8x32xf32>
    %291 = vector.broadcast %271 : vector<1x32xf32> to vector<8x32xf32>
    %292 = arith.mulf %290, %291 : vector<8x32xf32>
    %293 = vector.broadcast %272 : vector<1x32xf32> to vector<8x32xf32>
    %294 = arith.addf %292, %293 : vector<8x32xf32>
    %c0_120 = arith.constant 0 : index
    %c0_121 = arith.constant 0 : index
    %c0_122 = arith.constant 0 : index
    %295 = vector.load %arg23[%c0_120, %c0_121, %c0_122] : memref<1x8x32xf32, #tpu.memory_space<vmem>>, vector<1x8x32xf32>
    %296 = vector.shape_cast %295 : vector<1x8x32xf32> to vector<8x32xf32>
    %297 = vector.shape_cast %294 : vector<8x32xf32> to vector<1x8x32xf32>
    tpu.vector_store %arg23[%c0_120, %c0_121, %c0_122], %297 {strides = array<i32>} : memref<1x8x32xf32, #tpu.memory_space<vmem>>, vector<1x8x32xf32>,
    %298 = arith.truncf %230 : vector<8x16xf32> to vector<8x16xbf16>
    %c0_123 = arith.constant 0 : index
    %c0_124 = arith.constant 0 : index
    %c0_125 = arith.constant 0 : index
    %299 = vector.load %arg24[%c0_123, %c0_124, %c0_125] : memref<1x8x16xbf16, #tpu.memory_space<vmem>>, vector<1x8x16xbf16>
    %300 = vector.shape_cast %299 : vector<1x8x16xbf16> to vector<8x16xbf16>
    %301 = vector.shape_cast %298 : vector<8x16xbf16> to vector<1x8x16xbf16>
    tpu.vector_store %arg24[%c0_123, %c0_124, %c0_125], %301 {strides = array<i32>} : memref<1x8x16xbf16, #tpu.memory_space<vmem>>, vector<1x8x16xbf16>,
    return
  }
  func.func @transform_0(%arg0: i32) -> (i32, i32, i32) {
    %c0_i32 = arith.constant 0 : i32
    %c0_i32_0 = arith.constant 0 : i32
    %c0_i32_1 = arith.constant 0 : i32
    return %arg0, %c0_i32, %c0_i32_0 : i32, i32, i32
  }
  func.func @transform_1(%arg0: i32) -> (i32, i32, i32) {
    %c0_i32 = arith.constant 0 : i32
    %c0_i32_0 = arith.constant 0 : i32
    %c0_i32_1 = arith.constant 0 : i32
    return %arg0, %c0_i32, %c0_i32_0 : i32, i32, i32
  }
  func.func @transform_2(%arg0: i32) -> (i32, i32) {
    %c0_i32 = arith.constant 0 : i32
    %c0_i32_0 = arith.constant 0 : i32
    %c0_i32_1 = arith.constant 0 : i32
    return %c0_i32, %c0_i32_0 : i32, i32
  }
  func.func @transform_3(%arg0: i32) -> (i32, i32) {
    %c0_i32 = arith.constant 0 : i32
    %c0_i32_0 = arith.constant 0 : i32
    %c0_i32_1 = arith.constant 0 : i32
    return %c0_i32, %c0_i32_0 : i32, i32
  }
  func.func @transform_4(%arg0: i32) -> (i32, i32) {
    %c0_i32 = arith.constant 0 : i32
    %c0_i32_0 = arith.constant 0 : i32
    %c0_i32_1 = arith.constant 0 : i32
    return %c0_i32, %c0_i32_0 : i32, i32
  }
  func.func @transform_5(%arg0: i32) -> (i32, i32) {
    %c0_i32 = arith.constant 0 : i32
    %c0_i32_0 = arith.constant 0 : i32
    %c0_i32_1 = arith.constant 0 : i32
    return %c0_i32, %c0_i32_0 : i32, i32
  }
  func.func @transform_6(%arg0: i32) -> (i32, i32) {
    %c0_i32 = arith.constant 0 : i32
    %c0_i32_0 = arith.constant 0 : i32
    %c0_i32_1 = arith.constant 0 : i32
    return %c0_i32, %c0_i32_0 : i32, i32
  }
  func.func @transform_7(%arg0: i32) -> (i32, i32) {
    %c0_i32 = arith.constant 0 : i32
    %c0_i32_0 = arith.constant 0 : i32
    %c0_i32_1 = arith.constant 0 : i32
    return %c0_i32, %c0_i32_0 : i32, i32
  }
  func.func @transform_8(%arg0: i32) -> (i32, i32) {
    %c0_i32 = arith.constant 0 : i32
    %c0_i32_0 = arith.constant 0 : i32
    %c0_i32_1 = arith.constant 0 : i32
    return %c0_i32, %c0_i32_0 : i32, i32
  }
  func.func @transform_9(%arg0: i32) -> (i32, i32) {
    %c0_i32 = arith.constant 0 : i32
    %c0_i32_0 = arith.constant 0 : i32
    %c0_i32_1 = arith.constant 0 : i32
    return %c0_i32, %c0_i32_0 : i32, i32
  }
  func.func @transform_10(%arg0: i32) -> (i32, i32) {
    %c0_i32 = arith.constant 0 : i32
    %c0_i32_0 = arith.constant 0 : i32
    %c0_i32_1 = arith.constant 0 : i32
    return %c0_i32, %c0_i32_0 : i32, i32
  }
  func.func @transform_11(%arg0: i32) -> (i32, i32) {
    %c0_i32 = arith.constant 0 : i32
    %c0_i32_0 = arith.constant 0 : i32
    %c0_i32_1 = arith.constant 0 : i32
    return %c0_i32, %c0_i32_0 : i32, i32
  }
  func.func @transform_12(%arg0: i32) -> (i32, i32) {
    %c0_i32 = arith.constant 0 : i32
    %c0_i32_0 = arith.constant 0 : i32
    %c0_i32_1 = arith.constant 0 : i32
    return %c0_i32, %c0_i32_0 : i32, i32
  }
  func.func @transform_13(%arg0: i32) -> (i32, i32) {
    %c0_i32 = arith.constant 0 : i32
    %c0_i32_0 = arith.constant 0 : i32
    %c0_i32_1 = arith.constant 0 : i32
    return %c0_i32, %c0_i32_0 : i32, i32
  }
  func.func @transform_14(%arg0: i32) -> (i32, i32) {
    %c0_i32 = arith.constant 0 : i32
    %c0_i32_0 = arith.constant 0 : i32
    %c0_i32_1 = arith.constant 0 : i32
    return %c0_i32, %c0_i32_0 : i32, i32
  }
  func.func @transform_15(%arg0: i32) -> (i32, i32) {
    %c0_i32 = arith.constant 0 : i32
    %c0_i32_0 = arith.constant 0 : i32
    %c0_i32_1 = arith.constant 0 : i32
    return %c0_i32, %c0_i32_0 : i32, i32
  }
  func.func @transform_16(%arg0: i32) -> (i32, i32) {
    %c0_i32 = arith.constant 0 : i32
    %c0_i32_0 = arith.constant 0 : i32
    %c0_i32_1 = arith.constant 0 : i32
    return %c0_i32, %c0_i32_0 : i32, i32
  }
  func.func @transform_17(%arg0: i32) -> (i32, i32) {
    %c0_i32 = arith.constant 0 : i32
    %c0_i32_0 = arith.constant 0 : i32
    %c0_i32_1 = arith.constant 0 : i32
    return %c0_i32, %c0_i32_0 : i32, i32
  }
  func.func @transform_18(%arg0: i32) -> (i32, i32) {
    %c0_i32 = arith.constant 0 : i32
    %c0_i32_0 = arith.constant 0 : i32
    %c0_i32_1 = arith.constant 0 : i32
    return %c0_i32, %c0_i32_0 : i32, i32
  }
  func.func @transform_19(%arg0: i32) -> (i32, i32) {
    %c0_i32 = arith.constant 0 : i32
    %c0_i32_0 = arith.constant 0 : i32
    %c0_i32_1 = arith.constant 0 : i32
    return %c0_i32, %c0_i32_0 : i32, i32
  }
  func.func @transform_20(%arg0: i32) -> (i32, i32) {
    %c0_i32 = arith.constant 0 : i32
    %c0_i32_0 = arith.constant 0 : i32
    %c0_i32_1 = arith.constant 0 : i32
    return %c0_i32, %c0_i32_0 : i32, i32
  }
  func.func @transform_21(%arg0: i32) -> (i32, i32) {
    %c0_i32 = arith.constant 0 : i32
    %c0_i32_0 = arith.constant 0 : i32
    %c0_i32_1 = arith.constant 0 : i32
    return %c0_i32, %c0_i32_0 : i32, i32
  }
  func.func @transform_22(%arg0: i32) -> (i32, i32, i32) {
    %c0_i32 = arith.constant 0 : i32
    %c0_i32_0 = arith.constant 0 : i32
    %c0_i32_1 = arith.constant 0 : i32
    return %arg0, %c0_i32, %c0_i32_0 : i32, i32, i32
  }
  func.func @transform_23(%arg0: i32) -> (i32, i32, i32) {
    %c0_i32 = arith.constant 0 : i32
    %c0_i32_0 = arith.constant 0 : i32
    %c0_i32_1 = arith.constant 0 : i32
    return %arg0, %c0_i32, %c0_i32_0 : i32, i32, i32
  }
}

</mosaic_0001>

<llo_original>
// kernel: tpu_custom_call.1
$region0: #{tpu_custom_call.1}
  #allocation0 [shape = 'u32[]', space=smem, size = 0x4, offset = 0x4, fixed_abs, tag = 'smem constant byte address 0x4 - core index']
  #allocation1 [shape = 'u32[144,128]{1,0:T(1,128)}', space=vmem, size = 0x12000, scoped, tag = 'internal scratch']
  #allocation2 [shape = 'bf16[8,32]{1,0:T(8,128)(2,1)}', space=vmem, size = 0x800, scoped, tag = 'scratch operand']
  %s0 = inlined_call_operand.vmem [shape: f32[2,8,32], index: 0, kind: input, shape index: {}]
  %s1 = inlined_call_operand.vmem [shape: f32[2,16,32], index: 1, kind: input, shape index: {}]
  %s2 = inlined_call_operand.hbm [shape: bf16[32,96], index: 2, kind: input, shape index: {}]
  %s3 = inlined_call_operand.hbm [shape: f32[1,96], index: 3, kind: input, shape index: {}]
  %s4 = inlined_call_operand.hbm [shape: bf16[32,32], index: 4, kind: input, shape index: {}]
  %s5 = inlined_call_operand.hbm [shape: f32[1,32], index: 5, kind: input, shape index: {}]
  %s6 = inlined_call_operand.hbm [shape: f32[1,32], index: 6, kind: input, shape index: {}]
  %s7 = inlined_call_operand.hbm [shape: f32[1,32], index: 7, kind: input, shape index: {}]
  %s8 = inlined_call_operand.hbm [shape: bf16[32,32], index: 8, kind: input, shape index: {}]
  %s9 = inlined_call_operand.hbm [shape: f32[1,32], index: 9, kind: input, shape index: {}]
  %s10 = inlined_call_operand.vmem [shape: bf16[32,64], index: 10, kind: input, shape index: {}]
  %s11 = inlined_call_operand.hbm [shape: f32[1,64], index: 11, kind: input, shape index: {}]
  %s12 = inlined_call_operand.hbm [shape: bf16[32,32], index: 12, kind: input, shape index: {}]
  %s13 = inlined_call_operand.hbm [shape: f32[1,32], index: 13, kind: input, shape index: {}]
  %s14 = inlined_call_operand.hbm [shape: f32[1,32], index: 14, kind: input, shape index: {}]
  %s15 = inlined_call_operand.hbm [shape: f32[1,32], index: 15, kind: input, shape index: {}]
  %s16 = inlined_call_operand.hbm [shape: bf16[32,64], index: 16, kind: input, shape index: {}]
  %s17 = inlined_call_operand.hbm [shape: f32[1,64], index: 17, kind: input, shape index: {}]
  %s18 = inlined_call_operand.vmem [shape: bf16[64,32], index: 18, kind: input, shape index: {}]
  %s19 = inlined_call_operand.vmem [shape: f32[1,32], index: 19, kind: input, shape index: {}]
  %s20 = inlined_call_operand.vmem [shape: f32[1,32], index: 20, kind: input, shape index: {}]
  %s21 = inlined_call_operand.vmem [shape: f32[1,32], index: 21, kind: input, shape index: {}]
  %s22 = inlined_call_operand.hbm [shape: f32[2,8,32], index: 22, kind: output, shape index: {0}]
  %s23 = inlined_call_operand.hbm [shape: bf16[2,8,16], index: 23, kind: output, shape index: {1}]
  %24 = xla_tuple %s22, %s23
  %s25 = sld [smem:[#allocation0]]
  $region189: #{tpu_custom_call.1} parent=0
    _
  %s27 = ssub.s32 1, %s25
  %s28 = scalar_select 0, %s27, %s25
  $region1: #{tpu_custom_call.1} parent=0
    #allocation3 [shape = 'u8[8192]{0}', space=vmem, size = 0x2000, scoped, tag = 'input window, operand 2, single buffered']
    #allocation4 [shape = 's32[2]{0}', space=sflag, size = 0x8, scoped, tag = 'scoped memory for tpu_custom_call.1']
    #allocation5 [shape = 's32[2]{0}', space=sflag, size = 0x8, scoped, tag = 'scoped memory for tpu_custom_call.1']
    #allocation6 [shape = 'u8[512]{0}', space=vmem, size = 0x400, scoped, tag = 'input window, operand 3, single buffered']
    #allocation7 [shape = 's32[1]{0}', space=sflag, size = 0x4, scoped, tag = 'scoped memory for tpu_custom_call.1']
    #allocation8 [shape = 'u8[8192]{0}', space=vmem, size = 0x2000, scoped, tag = 'input window, operand 4, single buffered']
    #allocation9 [shape = 'u8[512]{0}', space=vmem, size = 0x400, scoped, tag = 'input window, operand 5, single buffered']
    #allocation10 [shape = 's32[1]{0}', space=sflag, size = 0x4, scoped, tag = 'scoped memory for tpu_custom_call.1']
    #allocation11 [shape = 'u8[512]{0}', space=vmem, size = 0x400, scoped, tag = 'input window, operand 6, single buffered']
    #allocation12 [shape = 'u8[512]{0}', space=vmem, size = 0x400, scoped, tag = 'input window, operand 7, single buffered']
    #allocation13 [shape = 's32[1]{0}', space=sflag, size = 0x4, scoped, tag = 'scoped memory for tpu_custom_call.1']
    #allocation14 [shape = 'u8[8192]{0}', space=vmem, size = 0x2000, scoped, tag = 'input window, operand 8, single buffered']
    #allocation15 [shape = 'u8[512]{0}', space=vmem, size = 0x400, scoped, tag = 'input window, operand 9, single buffered']
    #allocation16 [shape = 's32[1]{0}', space=sflag, size = 0x4, scoped, tag = 'scoped memory for tpu_custom_call.1']
    #allocation17 [shape = 'u8[512]{0}', space=vmem, size = 0x400, scoped, tag = 'input window, operand 11, single buffered']
    #allocation18 [shape = 'u8[8192]{0}', space=vmem, size = 0x2000, scoped, tag = 'input window, operand 12, single buffered']
    #allocation19 [shape = 's32[1]{0}', space=sflag, size = 0x4, scoped, tag = 'scoped memory for tpu_custom_call.1']
    #allocation20 [shape = 'u8[512]{0}', space=vmem, size = 0x400, scoped, tag = 'input window, operand 13, single buffered']
    #allocation21 [shape = 'u8[512]{0}', space=vmem, size = 0x400, scoped, tag = 'input window, operand 14, single buffered']
    #allocation22 [shape = 's32[1]{0}', space=sflag, size = 0x4, scoped, tag = 'scoped memory for tpu_custom_call.1']
    #allocation23 [shape = 'u8[512]{0}', space=vmem, size = 0x400, scoped, tag = 'input window, operand 15, single buffered']
    #allocation24 [shape = 'u8[8192]{0}', space=vmem, size = 0x2000, scoped, tag = 'input window, operand 16, single buffered']
    #allocation25 [shape = 's32[1]{0}', space=sflag, size = 0x4, scoped, tag = 'scoped memory for tpu_custom_call.1']
    #allocation26 [shape = 'u8[512]{0}', space=vmem, size = 0x400, scoped, tag = 'input window, operand 17, single buffered']
    #allocation27 [shape = 'u8[8192]{0}', space=vmem, size = 0x2000, scoped, tag = 'output window, operand 0']
    #allocation28 [shape = 'u8[4096]{0}', space=vmem, size = 0x1000, scoped, tag = 'output window, operand 1']
    #allocation29 [shape = 's32[2]{0}', space=sflag, size = 0x8, scoped, tag = 'scoped memory for tpu_custom_call.1']
    %29 = vsyncpa [#allocation4], 0
    %30 = vsyncpa [#allocation7], 0
    %31 = vsyncpa [#allocation10], 0
    %32 = vsyncpa [#allocation13], 0
    %33 = vsyncpa [#allocation16], 0
    %34 = vsyncpa [#allocation19], 0
    %35 = vsyncpa [#allocation22], 0
    %36 = vsyncpa [#allocation25], 0
    %37 = vsyncpa [#allocation5], 0
    %s38 = scalar_lea.sflag [#allocation5], 1
    %39 = vsyncpa %s38, 0
    %40 = vsyncpa [#allocation29], 0
    %s41 = scalar_lea.sflag [#allocation29], 1
    %42 = vsyncpa %s41, 0
    loop: start=0, step=1, limit=4
    $region2: #{tpu_custom_call.1} parent=1 // loop_pre_header
      _
    $region3: #{tpu_custom_call.1} parent=1 // loop_header
      %s44 = sphi 0, %s48
      %p45 = scmp.ge.s32.totalorder %s44, 4
      %s54 = sphi 0, %s56
      %s57 = sphi 0, %s54
      %s58 = sphi 0, %s57
      %s74 = sphi 0, %s58
      %s80 = sphi 0, %s82
      %s83 = sphi 0, %s80
      %s84 = sphi 0, %s83
      %s100 = sphi 0, %s84
      %s104 = sphi 0, %s104
      %s106 = sphi 0, %s104
      %s107 = sphi 0, %s106
      %s121 = sphi 0, %s107
      %s125 = sphi 0, %s125
      %s127 = sphi 0, %s125
      %s128 = sphi 0, %s127
      %s142 = sphi 0, %s128
      %s146 = sphi 0, %s146
      %s148 = sphi 0, %s146
      %s149 = sphi 0, %s148
      %s163 = sphi 0, %s149
      %s167 = sphi 0, %s167
      %s169 = sphi 0, %s167
      %s170 = sphi 0, %s169
      %s184 = sphi 0, %s170
      %s188 = sphi 0, %s188
      %s190 = sphi 0, %s188
      %s191 = sphi 0, %s190
      %s205 = sphi 0, %s191
      %s209 = sphi 0, %s209
      %s211 = sphi 0, %s209
      %s212 = sphi 0, %s211
      %s226 = sphi 0, %s212
      %s230 = sphi 0, %s230
      %s232 = sphi 0, %s230
      %s233 = sphi 0, %s232
      %s247 = sphi 0, %s233
      %s251 = sphi 0, %s251
      %s253 = sphi 0, %s251
      %s254 = sphi 0, %s253
      %s268 = sphi 0, %s254
      %s272 = sphi 0, %s272
      %s274 = sphi 0, %s272
      %s275 = sphi 0, %s274
      %s289 = sphi 0, %s275
      %s293 = sphi 0, %s293
      %s295 = sphi 0, %s293
      %s296 = sphi 0, %s295
      %s310 = sphi 0, %s296
      %s314 = sphi 0, %s314
      %s316 = sphi 0, %s314
      %s317 = sphi 0, %s316
      %s331 = sphi 0, %s317
      %s335 = sphi 0, %s335
      %s337 = sphi 0, %s335
      %s338 = sphi 0, %s337
      %s352 = sphi 0, %s338
      %s356 = sphi 0, %s356
      %s358 = sphi 0, %s356
      %s359 = sphi 0, %s358
      %s373 = sphi 0, %s359
      %s377 = sphi 0, %s377
      %s379 = sphi 0, %s377
      %s380 = sphi 0, %s379
      %s394 = sphi 0, %s380
      %s398 = sphi 0, %s398
      %s400 = sphi 0, %s398
      %s401 = sphi 0, %s400
      %s415 = sphi 0, %s401
      %s419 = sphi 0, %s419
      %s421 = sphi 0, %s419
      %s422 = sphi 0, %s421
      %s436 = sphi 0, %s422
      %s440 = sphi 0, %s440
      %s442 = sphi 0, %s440
      %s443 = sphi 0, %s442
      %s457 = sphi 0, %s443
      %s461 = sphi 0, %s461
      %s463 = sphi 0, %s461
      %s464 = sphi 0, %s463
      %s478 = sphi 0, %s464
      %s482 = sphi 0, %s482
      %s484 = sphi 0, %s482
      %s485 = sphi 0, %s484
      %s499 = sphi 0, %s485
      %s503 = sphi 0, %s503
      %s505 = sphi 0, %s503
      %s506 = sphi 0, %s505
      %s520 = sphi 0, %s506
      %s526 = sphi 0, %s528
      %s529 = sphi 0, %s526
      %s530 = sphi 0, %s529
      %s546 = sphi 0, %s530
      %s552 = sphi 0, %s554
      %s555 = sphi 0, %s552
      %s556 = sphi 0, %s555
      %s572 = sphi 0, %s556
    $region4: #{tpu_custom_call.1} parent=1 // loop_header_branch
      %47 = sbr.rel (%p45) target = $region8
    $region5: #{tpu_custom_call.1} parent=1 // loop_body
      %s49 = ssub.s32 %s44, 1
      %s50 = ssub.s32 %s44, 2
      %s51 = sadd.s32 %s44, 1
      %s52 = ssub.s32 %s44, %s51
      %p53 = scmp.eq.s32.totalorder %s52, 0
      %s55 = sadd.s32 %s54, 1
      %s56 = scalar_select %p53, %s54, %s55
      %p59 = pneg %p53
      %p60 = scmp.eq.s32.totalorder %s44, 1
      %p61 = por %p59, %p60
      %p62 = scmp.ne.s32.totalorder %s54, %s57
      %p63 = scmp.eq.s32.totalorder %s44, 0
      %p64 = por %p62, %p63
      %p65 = scmp.ne.s32.totalorder %s54, %s57
      %p66 = scmp.eq.s32.totalorder %s49, 1
      %p67 = por %p65, %p66
      %p68 = scmp.ne.s32.totalorder %s57, %s58
      %p69 = scmp.eq.s32.totalorder %s49, 0
      %p70 = por %p68, %p69
      %p71 = scmp.ne.s32.totalorder %s57, %s58
      %p72 = scmp.eq.s32.totalorder %s50, 1
      %p73 = por %p71, %p72
      %p75 = scmp.ne.s32.totalorder %s58, %s74
      %p76 = scmp.eq.s32.totalorder %s50, 0
      %p77 = por %p75, %p76
      %s78 = ssub.s32 %s44, %s51
      %p79 = scmp.eq.s32.totalorder %s78, 0
      %s81 = sadd.s32 %s80, 1
      %s82 = scalar_select %p79, %s80, %s81
      %p85 = pneg %p79
      %p86 = scmp.eq.s32.totalorder %s44, 1
      %p87 = por %p85, %p86
      %p88 = scmp.ne.s32.totalorder %s80, %s83
      %p89 = scmp.eq.s32.totalorder %s44, 0
      %p90 = por %p88, %p89
      %p91 = scmp.ne.s32.totalorder %s80, %s83
      %p92 = scmp.eq.s32.totalorder %s49, 1
      %p93 = por %p91, %p92
      %p94 = scmp.ne.s32.totalorder %s83, %s84
      %p95 = scmp.eq.s32.totalorder %s49, 0
      %p96 = por %p94, %p95
      %p97 = scmp.ne.s32.totalorder %s83, %s84
      %p98 = scmp.eq.s32.totalorder %s50, 1
      %p99 = por %p97, %p98
      %p101 = scmp.ne.s32.totalorder %s84, %s100
      %p102 = scmp.eq.s32.totalorder %s50, 0
      %p103 = por %p101, %p102
      %s105 = sadd.s32 %s104, 1
      %p108 = scmp.eq.s32.totalorder %s44, 1
      %p109 = scmp.ne.s32.totalorder %s104, %s106
      %p110 = scmp.eq.s32.totalorder %s44, 0
      %p111 = por %p109, %p110
      %p112 = scmp.ne.s32.totalorder %s104, %s106
      %p113 = scmp.eq.s32.totalorder %s49, 1
      %p114 = por %p112, %p113
      %p115 = scmp.ne.s32.totalorder %s106, %s107
      %p116 = scmp.eq.s32.totalorder %s49, 0
      %p117 = por %p115, %p116
      %p118 = scmp.ne.s32.totalorder %s106, %s107
      %p119 = scmp.eq.s32.totalorder %s50, 1
      %p120 = por %p118, %p119
      %p122 = scmp.ne.s32.totalorder %s107, %s121
      %p123 = scmp.eq.s32.totalorder %s50, 0
      %p124 = por %p122, %p123
      %s126 = sadd.s32 %s125, 1
      %p129 = scmp.eq.s32.totalorder %s44, 1
      %p130 = scmp.ne.s32.totalorder %s125, %s127
      %p131 = scmp.eq.s32.totalorder %s44, 0
      %p132 = por %p130, %p131
      %p133 = scmp.ne.s32.totalorder %s125, %s127
      %p134 = scmp.eq.s32.totalorder %s49, 1
      %p135 = por %p133, %p134
      %p136 = scmp.ne.s32.totalorder %s127, %s128
      %p137 = scmp.eq.s32.totalorder %s49, 0
      %p138 = por %p136, %p137
      %p139 = scmp.ne.s32.totalorder %s127, %s128
      %p140 = scmp.eq.s32.totalorder %s50, 1
      %p141 = por %p139, %p140
      %p143 = scmp.ne.s32.totalorder %s128, %s142
      %p144 = scmp.eq.s32.totalorder %s50, 0
      %p145 = por %p143, %p144
      %s147 = sadd.s32 %s146, 1
      %p150 = scmp.eq.s32.totalorder %s44, 1
      %p151 = scmp.ne.s32.totalorder %s146, %s148
      %p152 = scmp.eq.s32.totalorder %s44, 0
      %p153 = por %p151, %p152
      %p154 = scmp.ne.s32.totalorder %s146, %s148
      %p155 = scmp.eq.s32.totalorder %s49, 1
      %p156 = por %p154, %p155
      %p157 = scmp.ne.s32.totalorder %s148, %s149
      %p158 = scmp.eq.s32.totalorder %s49, 0
      %p159 = por %p157, %p158
      %p160 = scmp.ne.s32.totalorder %s148, %s149
      %p161 = scmp.eq.s32.totalorder %s50, 1
      %p162 = por %p160, %p161
      %p164 = scmp.ne.s32.totalorder %s149, %s163
      %p165 = scmp.eq.s32.totalorder %s50, 0
      %p166 = por %p164, %p165
      %s168 = sadd.s32 %s167, 1
      %p171 = scmp.eq.s32.totalorder %s44, 1
      %p172 = scmp.ne.s32.totalorder %s167, %s169
      %p173 = scmp.eq.s32.totalorder %s44, 0
      %p174 = por %p172, %p173
      %p175 = scmp.ne.s32.totalorder %s167, %s169
      %p176 = scmp.eq.s32.totalorder %s49, 1
      %p177 = por %p175, %p176
      %p178 = scmp.ne.s32.totalorder %s169, %s170
      %p179 = scmp.eq.s32.totalorder %s49, 0
      %p180 = por %p178, %p179
      %p181 = scmp.ne.s32.totalorder %s169, %s170
      %p182 = scmp.eq.s32.totalorder %s50, 1
      %p183 = por %p181, %p182
      %p185 = scmp.ne.s32.totalorder %s170, %s184
      %p186 = scmp.eq.s32.totalorder %s50, 0
      %p187 = por %p185, %p186
      %s189 = sadd.s32 %s188, 1
      %p192 = scmp.eq.s32.totalorder %s44, 1
      %p193 = scmp.ne.s32.totalorder %s188, %s190
      %p194 = scmp.eq.s32.totalorder %s44, 0
      %p195 = por %p193, %p194
      %p196 = scmp.ne.s32.totalorder %s188, %s190
      %p197 = scmp.eq.s32.totalorder %s49, 1
      %p198 = por %p196, %p197
      %p199 = scmp.ne.s32.totalorder %s190, %s191
      %p200 = scmp.eq.s32.totalorder %s49, 0
      %p201 = por %p199, %p200
      %p202 = scmp.ne.s32.totalorder %s190, %s191
      %p203 = scmp.eq.s32.totalorder %s50, 1
      %p204 = por %p202, %p203
      %p206 = scmp.ne.s32.totalorder %s191, %s205
      %p207 = scmp.eq.s32.totalorder %s50, 0
      %p208 = por %p206, %p207
      %s210 = sadd.s32 %s209, 1
      %p213 = scmp.eq.s32.totalorder %s44, 1
      %p214 = scmp.ne.s32.totalorder %s209, %s211
      %p215 = scmp.eq.s32.totalorder %s44, 0
      %p216 = por %p214, %p215
      %p217 = scmp.ne.s32.totalorder %s209, %s211
      %p218 = scmp.eq.s32.totalorder %s49, 1
      %p219 = por %p217, %p218
      %p220 = scmp.ne.s32.totalorder %s211, %s212
      %p221 = scmp.eq.s32.totalorder %s49, 0
      %p222 = por %p220, %p221
      %p223 = scmp.ne.s32.totalorder %s211, %s212
      %p224 = scmp.eq.s32.totalorder %s50, 1
      %p225 = por %p223, %p224
      %p227 = scmp.ne.s32.totalorder %s212, %s226
      %p228 = scmp.eq.s32.totalorder %s50, 0
      %p229 = por %p227, %p228
      %s231 = sadd.s32 %s230, 1
      %p234 = scmp.eq.s32.totalorder %s44, 1
      %p235 = scmp.ne.s32.totalorder %s230, %s232
      %p236 = scmp.eq.s32.totalorder %s44, 0
      %p237 = por %p235, %p236
      %p238 = scmp.ne.s32.totalorder %s230, %s232
      %p239 = scmp.eq.s32.totalorder %s49, 1
      %p240 = por %p238, %p239
      %p241 = scmp.ne.s32.totalorder %s232, %s233
      %p242 = scmp.eq.s32.totalorder %s49, 0
      %p243 = por %p241, %p242
      %p244 = scmp.ne.s32.totalorder %s232, %s233
      %p245 = scmp.eq.s32.totalorder %s50, 1
      %p246 = por %p244, %p245
      %p248 = scmp.ne.s32.totalorder %s233, %s247
      %p249 = scmp.eq.s32.totalorder %s50, 0
      %p250 = por %p248, %p249
      %s252 = sadd.s32 %s251, 1
      %p255 = scmp.eq.s32.totalorder %s44, 1
      %p256 = scmp.ne.s32.totalorder %s251, %s253
      %p257 = scmp.eq.s32.totalorder %s44, 0
      %p258 = por %p256, %p257
      %p259 = scmp.ne.s32.totalorder %s251, %s253
      %p260 = scmp.eq.s32.totalorder %s49, 1
      %p261 = por %p259, %p260
      %p262 = scmp.ne.s32.totalorder %s253, %s254
      %p263 = scmp.eq.s32.totalorder %s49, 0
      %p264 = por %p262, %p263
      %p265 = scmp.ne.s32.totalorder %s253, %s254
      %p266 = scmp.eq.s32.totalorder %s50, 1
      %p267 = por %p265, %p266
      %p269 = scmp.ne.s32.totalorder %s254, %s268
      %p270 = scmp.eq.s32.totalorder %s50, 0
      %p271 = por %p269, %p270
      %s273 = sadd.s32 %s272, 1
      %p276 = scmp.eq.s32.totalorder %s44, 1
      %p277 = scmp.ne.s32.totalorder %s272, %s274
      %p278 = scmp.eq.s32.totalorder %s44, 0
      %p279 = por %p277, %p278
      %p280 = scmp.ne.s32.totalorder %s272, %s274
      %p281 = scmp.eq.s32.totalorder %s49, 1
      %p282 = por %p280, %p281
      %p283 = scmp.ne.s32.totalorder %s274, %s275
      %p284 = scmp.eq.s32.totalorder %s49, 0
      %p285 = por %p283, %p284
      %p286 = scmp.ne.s32.totalorder %s274, %s275
      %p287 = scmp.eq.s32.totalorder %s50, 1
      %p288 = por %p286, %p287
      %p290 = scmp.ne.s32.totalorder %s275, %s289
      %p291 = scmp.eq.s32.totalorder %s50, 0
      %p292 = por %p290, %p291
      %s294 = sadd.s32 %s293, 1
      %p297 = scmp.eq.s32.totalorder %s44, 1
      %p298 = scmp.ne.s32.totalorder %s293, %s295
      %p299 = scmp.eq.s32.totalorder %s44, 0
      %p300 = por %p298, %p299
      %p301 = scmp.ne.s32.totalorder %s293, %s295
      %p302 = scmp.eq.s32.totalorder %s49, 1
      %p303 = por %p301, %p302
      %p304 = scmp.ne.s32.totalorder %s295, %s296
      %p305 = scmp.eq.s32.totalorder %s49, 0
      %p306 = por %p304, %p305
      %p307 = scmp.ne.s32.totalorder %s295, %s296
      %p308 = scmp.eq.s32.totalorder %s50, 1
      %p309 = por %p307, %p308
      %p311 = scmp.ne.s32.totalorder %s296, %s310
      %p312 = scmp.eq.s32.totalorder %s50, 0
      %p313 = por %p311, %p312
      %s315 = sadd.s32 %s314, 1
      %p318 = scmp.eq.s32.totalorder %s44, 1
      %p319 = scmp.ne.s32.totalorder %s314, %s316
      %p320 = scmp.eq.s32.totalorder %s44, 0
      %p321 = por %p319, %p320
      %p322 = scmp.ne.s32.totalorder %s314, %s316
      %p323 = scmp.eq.s32.totalorder %s49, 1
      %p324 = por %p322, %p323
      %p325 = scmp.ne.s32.totalorder %s316, %s317
      %p326 = scmp.eq.s32.totalorder %s49, 0
      %p327 = por %p325, %p326
      %p328 = scmp.ne.s32.totalorder %s316, %s317
      %p329 = scmp.eq.s32.totalorder %s50, 1
      %p330 = por %p328, %p329
      %p332 = scmp.ne.s32.totalorder %s317, %s331
      %p333 = scmp.eq.s32.totalorder %s50, 0
      %p334 = por %p332, %p333
      %s336 = sadd.s32 %s335, 1
      %p339 = scmp.eq.s32.totalorder %s44, 1
      %p340 = scmp.ne.s32.totalorder %s335, %s337
      %p341 = scmp.eq.s32.totalorder %s44, 0
      %p342 = por %p340, %p341
      %p343 = scmp.ne.s32.totalorder %s335, %s337
      %p344 = scmp.eq.s32.totalorder %s49, 1
      %p345 = por %p343, %p344
      %p346 = scmp.ne.s32.totalorder %s337, %s338
      %p347 = scmp.eq.s32.totalorder %s49, 0
      %p348 = por %p346, %p347
      %p349 = scmp.ne.s32.totalorder %s337, %s338
      %p350 = scmp.eq.s32.totalorder %s50, 1
      %p351 = por %p349, %p350
      %p353 = scmp.ne.s32.totalorder %s338, %s352
      %p354 = scmp.eq.s32.totalorder %s50, 0
      %p355 = por %p353, %p354
      %s357 = sadd.s32 %s356, 1
      %p360 = scmp.eq.s32.totalorder %s44, 1
      %p361 = scmp.ne.s32.totalorder %s356, %s358
      %p362 = scmp.eq.s32.totalorder %s44, 0
      %p363 = por %p361, %p362
      %p364 = scmp.ne.s32.totalorder %s356, %s358
      %p365 = scmp.eq.s32.totalorder %s49, 1
      %p366 = por %p364, %p365
      %p367 = scmp.ne.s32.totalorder %s358, %s359
      %p368 = scmp.eq.s32.totalorder %s49, 0
      %p369 = por %p367, %p368
      %p370 = scmp.ne.s32.totalorder %s358, %s359
      %p371 = scmp.eq.s32.totalorder %s50, 1
      %p372 = por %p370, %p371
      %p374 = scmp.ne.s32.totalorder %s359, %s373
      %p375 = scmp.eq.s32.totalorder %s50, 0
      %p376 = por %p374, %p375
      %s378 = sadd.s32 %s377, 1
      %p381 = scmp.eq.s32.totalorder %s44, 1
      %p382 = scmp.ne.s32.totalorder %s377, %s379
      %p383 = scmp.eq.s32.totalorder %s44, 0
      %p384 = por %p382, %p383
      %p385 = scmp.ne.s32.totalorder %s377, %s379
      %p386 = scmp.eq.s32.totalorder %s49, 1
      %p387 = por %p385, %p386
      %p388 = scmp.ne.s32.totalorder %s379, %s380
      %p389 = scmp.eq.s32.totalorder %s49, 0
      %p390 = por %p388, %p389
      %p391 = scmp.ne.s32.totalorder %s379, %s380
      %p392 = scmp.eq.s32.totalorder %s50, 1
      %p393 = por %p391, %p392
      %p395 = scmp.ne.s32.totalorder %s380, %s394
      %p396 = scmp.eq.s32.totalorder %s50, 0
      %p397 = por %p395, %p396
      %s399 = sadd.s32 %s398, 1
      %p402 = scmp.eq.s32.totalorder %s44, 1
      %p403 = scmp.ne.s32.totalorder %s398, %s400
      %p404 = scmp.eq.s32.totalorder %s44, 0
      %p405 = por %p403, %p404
      %p406 = scmp.ne.s32.totalorder %s398, %s400
      %p407 = scmp.eq.s32.totalorder %s49, 1
      %p408 = por %p406, %p407
      %p409 = scmp.ne.s32.totalorder %s400, %s401
      %p410 = scmp.eq.s32.totalorder %s49, 0
      %p411 = por %p409, %p410
      %p412 = scmp.ne.s32.totalorder %s400, %s401
      %p413 = scmp.eq.s32.totalorder %s50, 1
      %p414 = por %p412, %p413
      %p416 = scmp.ne.s32.totalorder %s401, %s415
      %p417 = scmp.eq.s32.totalorder %s50, 0
      %p418 = por %p416, %p417
      %s420 = sadd.s32 %s419, 1
      %p423 = scmp.eq.s32.totalorder %s44, 1
      %p424 = scmp.ne.s32.totalorder %s419, %s421
      %p425 = scmp.eq.s32.totalorder %s44, 0
      %p426 = por %p424, %p425
      %p427 = scmp.ne.s32.totalorder %s419, %s421
      %p428 = scmp.eq.s32.totalorder %s49, 1
      %p429 = por %p427, %p428
      %p430 = scmp.ne.s32.totalorder %s421, %s422
      %p431 = scmp.eq.s32.totalorder %s49, 0
      %p432 = por %p430, %p431
      %p433 = scmp.ne.s32.totalorder %s421, %s422
      %p434 = scmp.eq.s32.totalorder %s50, 1
      %p435 = por %p433, %p434
      %p437 = scmp.ne.s32.totalorder %s422, %s436
      %p438 = scmp.eq.s32.totalorder %s50, 0
      %p439 = por %p437, %p438
      %s441 = sadd.s32 %s440, 1
      %p444 = scmp.eq.s32.totalorder %s44, 1
      %p445 = scmp.ne.s32.totalorder %s440, %s442
      %p446 = scmp.eq.s32.totalorder %s44, 0
      %p447 = por %p445, %p446
      %p448 = scmp.ne.s32.totalorder %s440, %s442
      %p449 = scmp.eq.s32.totalorder %s49, 1
      %p450 = por %p448, %p449
      %p451 = scmp.ne.s32.totalorder %s442, %s443
      %p452 = scmp.eq.s32.totalorder %s49, 0
      %p453 = por %p451, %p452
      %p454 = scmp.ne.s32.totalorder %s442, %s443
      %p455 = scmp.eq.s32.totalorder %s50, 1
      %p456 = por %p454, %p455
      %p458 = scmp.ne.s32.totalorder %s443, %s457
      %p459 = scmp.eq.s32.totalorder %s50, 0
      %p460 = por %p458, %p459
      %s462 = sadd.s32 %s461, 1
      %p465 = scmp.eq.s32.totalorder %s44, 1
      %p466 = scmp.ne.s32.totalorder %s461, %s463
      %p467 = scmp.eq.s32.totalorder %s44, 0
      %p468 = por %p466, %p467
      %p469 = scmp.ne.s32.totalorder %s461, %s463
      %p470 = scmp.eq.s32.totalorder %s49, 1
      %p471 = por %p469, %p470
      %p472 = scmp.ne.s32.totalorder %s463, %s464
      %p473 = scmp.eq.s32.totalorder %s49, 0
      %p474 = por %p472, %p473
      %p475 = scmp.ne.s32.totalorder %s463, %s464
      %p476 = scmp.eq.s32.totalorder %s50, 1
      %p477 = por %p475, %p476
      %p479 = scmp.ne.s32.totalorder %s464, %s478
      %p480 = scmp.eq.s32.totalorder %s50, 0
      %p481 = por %p479, %p480
      %s483 = sadd.s32 %s482, 1
      %p486 = scmp.eq.s32.totalorder %s44, 1
      %p487 = scmp.ne.s32.totalorder %s482, %s484
      %p488 = scmp.eq.s32.totalorder %s44, 0
      %p489 = por %p487, %p488
      %p490 = scmp.ne.s32.totalorder %s482, %s484
      %p491 = scmp.eq.s32.totalorder %s49, 1
      %p492 = por %p490, %p491
      %p493 = scmp.ne.s32.totalorder %s484, %s485
      %p494 = scmp.eq.s32.totalorder %s49, 0
      %p495 = por %p493, %p494
      %p496 = scmp.ne.s32.totalorder %s484, %s485
      %p497 = scmp.eq.s32.totalorder %s50, 1
      %p498 = por %p496, %p497
      %p500 = scmp.ne.s32.totalorder %s485, %s499
      %p501 = scmp.eq.s32.totalorder %s50, 0
      %p502 = por %p500, %p501
      %s504 = sadd.s32 %s503, 1
      %p507 = scmp.eq.s32.totalorder %s44, 1
      %p508 = scmp.ne.s32.totalorder %s503, %s505
      %p509 = scmp.eq.s32.totalorder %s44, 0
      %p510 = por %p508, %p509
      %p511 = scmp.ne.s32.totalorder %s503, %s505
      %p512 = scmp.eq.s32.totalorder %s49, 1
      %p513 = por %p511, %p512
      %p514 = scmp.ne.s32.totalorder %s505, %s506
      %p515 = scmp.eq.s32.totalorder %s49, 0
      %p516 = por %p514, %p515
      %p517 = scmp.ne.s32.totalorder %s505, %s506
      %p518 = scmp.eq.s32.totalorder %s50, 1
      %p519 = por %p517, %p518
      %p521 = scmp.ne.s32.totalorder %s506, %s520
      %p522 = scmp.eq.s32.totalorder %s50, 0
      %p523 = por %p521, %p522
      %s524 = ssub.s32 %s44, %s51
      %p525 = scmp.eq.s32.totalorder %s524, 0
      %s527 = sadd.s32 %s526, 1
      %s528 = scalar_select %p525, %s526, %s527
      %p531 = pneg %p525
      %p532 = scmp.eq.s32.totalorder %s44, 1
      %p533 = por %p531, %p532
      %p534 = scmp.ne.s32.totalorder %s526, %s529
      %p535 = scmp.eq.s32.totalorder %s44, 0
      %p536 = por %p534, %p535
      %p537 = scmp.ne.s32.totalorder %s526, %s529
      %p538 = scmp.eq.s32.totalorder %s49, 1
      %p539 = por %p537, %p538
      %p540 = scmp.ne.s32.totalorder %s529, %s530
      %p541 = scmp.eq.s32.totalorder %s49, 0
      %p542 = por %p540, %p541
      %p543 = scmp.ne.s32.totalorder %s529, %s530
      %p544 = scmp.eq.s32.totalorder %s50, 1
      %p545 = por %p543, %p544
      %p547 = scmp.ne.s32.totalorder %s530, %s546
      %p548 = scmp.eq.s32.totalorder %s50, 0
      %p549 = por %p547, %p548
      %s550 = ssub.s32 %s44, %s51
      %p551 = scmp.eq.s32.totalorder %s550, 0
      %s553 = sadd.s32 %s552, 1
      %s554 = scalar_select %p551, %s552, %s553
      %p557 = pneg %p551
      %p558 = scmp.eq.s32.totalorder %s44, 1
      %p559 = por %p557, %p558
      %p560 = scmp.ne.s32.totalorder %s552, %s555
      %p561 = scmp.eq.s32.totalorder %s44, 0
      %p562 = por %p560, %p561
      %p563 = scmp.ne.s32.totalorder %s552, %s555
      %p564 = scmp.eq.s32.totalorder %s49, 1
      %p565 = por %p563, %p564
      %p566 = scmp.ne.s32.totalorder %s555, %s556
      %p567 = scmp.eq.s32.totalorder %s49, 0
      %p568 = por %p566, %p567
      %p569 = scmp.ne.s32.totalorder %s555, %s556
      %p570 = scmp.eq.s32.totalorder %s50, 1
      %p571 = por %p569, %p570
      %p573 = scmp.ne.s32.totalorder %s556, %s572
      %p574 = scmp.eq.s32.totalorder %s50, 0
      %p575 = por %p573, %p574
      %p576 = scmp.le.s32.totalorder 1, %s44
      %p577 = scmp.lt.s32.totalorder %s44, 3
      %p578 = pnand %p576, %p577
      %p579 = pneg %p578
      // Predicated region
      $region9: #{tpu_custom_call.1} parent=5 // pred_check
        _
      $region10: #{tpu_custom_call.1} parent=5 // pred_check_branch
        %581 = sbr.rel (%p578) target = $region12
      $region11: #{tpu_custom_call.1} parent=5 // pred_region
        %s582 = ssub.s32 %s44, 1
        // Predicated region
        $region13: #{tpu_custom_call.1} parent=11 // pred_check
          %p583 = pneg %p117
        $region14: #{tpu_custom_call.1} parent=11 // pred_check_branch
          %585 = sbr.rel (%p583) target = $region16
        $region15: #{tpu_custom_call.1} parent=11 // pred_region
          %s587 = ssub.s32 256, 256
          %588 = vsyncadd [#allocation4], %s587
          %s589 = sshll.u32 [#allocation3], 4
          %s590 = int_to_ptr.vmem [resolvable:$true] %s589
          %595 = dma.hbm_to_vmem [thread:$0]  %s2, 256, %s590, [#allocation4], 64, 64, 4
        $region16: #{tpu_custom_call.1} parent=11 // pred_fallthru
          _
        // Predicated region
        $region17: #{tpu_custom_call.1} parent=11 // pred_check
          %p596 = pneg %p138
        $region18: #{tpu_custom_call.1} parent=11 // pred_check_branch
          %598 = sbr.rel (%p596) target = $region20
        $region19: #{tpu_custom_call.1} parent=11 // pred_region
          %s600 = ssub.s32 16, 16
          %601 = vsyncadd [#allocation7], %s600
          %s603 = sshll.u32 [#allocation6], 4
          %s604 = int_to_ptr.vmem [resolvable:$true] %s603
          %606 = dma.hbm_to_vmem [thread:$0]  %s3, 16, %s604, [#allocation7]
        $region20: #{tpu_custom_call.1} parent=11 // pred_fallthru
          _
        // Predicated region
        $region21: #{tpu_custom_call.1} parent=11 // pred_check
          %p607 = pneg %p159
        $region22: #{tpu_custom_call.1} parent=11 // pred_check_branch
          %609 = sbr.rel (%p607) target = $region24
        $region23: #{tpu_custom_call.1} parent=11 // pred_region
          %s611 = ssub.s32 256, 256
          %612 = vsyncadd [#allocation7], %s611
          %s613 = sshll.u32 [#allocation8], 4
          %s614 = int_to_ptr.vmem [resolvable:$true] %s613
          %619 = dma.hbm_to_vmem [thread:$0]  %s4, 256, %s614, [#allocation7], 64, 64, 4
        $region24: #{tpu_custom_call.1} parent=11 // pred_fallthru
          _
        // Predicated region
        $region25: #{tpu_custom_call.1} parent=11 // pred_check
          %p620 = pneg %p180
        $region26: #{tpu_custom_call.1} parent=11 // pred_check_branch
          %622 = sbr.rel (%p620) target = $region28
        $region27: #{tpu_custom_call.1} parent=11 // pred_region
          %s624 = ssub.s32 16, 16
          %625 = vsyncadd [#allocation10], %s624
          %s627 = sshll.u32 [#allocation9], 4
          %s628 = int_to_ptr.vmem [resolvable:$true] %s627
          %630 = dma.hbm_to_vmem [thread:$0]  %s5, 16, %s628, [#allocation10]
        $region28: #{tpu_custom_call.1} parent=11 // pred_fallthru
          _
        // Predicated region
        $region29: #{tpu_custom_call.1} parent=11 // pred_check
          %p631 = pneg %p201
        $region30: #{tpu_custom_call.1} parent=11 // pred_check_branch
          %633 = sbr.rel (%p631) target = $region32
        $region31: #{tpu_custom_call.1} parent=11 // pred_region
          %s635 = ssub.s32 16, 16
          %636 = vsyncadd [#allocation10], %s635
          %s638 = sshll.u32 [#allocation11], 4
          %s639 = int_to_ptr.vmem [resolvable:$true] %s638
          %641 = dma.hbm_to_vmem [thread:$0]  %s6, 16, %s639, [#allocation10]
        $region32: #{tpu_custom_call.1} parent=11 // pred_fallthru
          _
        // Predicated region
        $region33: #{tpu_custom_call.1} parent=11 // pred_check
          %p642 = pneg %p222
        $region34: #{tpu_custom_call.1} parent=11 // pred_check_branch
          %644 = sbr.rel (%p642) target = $region36
        $region35: #{tpu_custom_call.1} parent=11 // pred_region
          %s646 = ssub.s32 16, 16
          %647 = vsyncadd [#allocation13], %s646
          %s649 = sshll.u32 [#allocation12], 4
          %s650 = int_to_ptr.vmem [resolvable:$true] %s649
          %652 = dma.hbm_to_vmem [thread:$0]  %s7, 16, %s650, [#allocation13]
        $region36: #{tpu_custom_call.1} parent=11 // pred_fallthru
          _
        // Predicated region
        $region37: #{tpu_custom_call.1} parent=11 // pred_check
          %p653 = pneg %p243
        $region38: #{tpu_custom_call.1} parent=11 // pred_check_branch
          %655 = sbr.rel (%p653) target = $region40
        $region39: #{tpu_custom_call.1} parent=11 // pred_region
          %s657 = ssub.s32 256, 256
          %658 = vsyncadd [#allocation13], %s657
          %s659 = sshll.u32 [#allocation14], 4
          %s660 = int_to_ptr.vmem [resolvable:$true] %s659
          %665 = dma.hbm_to_vmem [thread:$0]  %s8, 256, %s660, [#allocation13], 64, 64, 4
        $region40: #{tpu_custom_call.1} parent=11 // pred_fallthru
          _
        // Predicated region
        $region41: #{tpu_custom_call.1} parent=11 // pred_check
          %p666 = pneg %p264
        $region42: #{tpu_custom_call.1} parent=11 // pred_check_branch
          %668 = sbr.rel (%p666) target = $region44
        $region43: #{tpu_custom_call.1} parent=11 // pred_region
          %s670 = ssub.s32 16, 16
          %671 = vsyncadd [#allocation16], %s670
          %s673 = sshll.u32 [#allocation15], 4
          %s674 = int_to_ptr.vmem [resolvable:$true] %s673
          %676 = dma.hbm_to_vmem [thread:$0]  %s9, 16, %s674, [#allocation16]
        $region44: #{tpu_custom_call.1} parent=11 // pred_fallthru
          _
        // Predicated region
        $region45: #{tpu_custom_call.1} parent=11 // pred_check
          %p677 = pneg %p285
        $region46: #{tpu_custom_call.1} parent=11 // pred_check_branch
          %679 = sbr.rel (%p677) target = $region48
        $region47: #{tpu_custom_call.1} parent=11 // pred_region
          _
        $region48: #{tpu_custom_call.1} parent=11 // pred_fallthru
          _
        // Predicated region
        $region49: #{tpu_custom_call.1} parent=11 // pred_check
          %p680 = pneg %p306
        $region50: #{tpu_custom_call.1} parent=11 // pred_check_branch
          %682 = sbr.rel (%p680) target = $region52
        $region51: #{tpu_custom_call.1} parent=11 // pred_region
          %s684 = ssub.s32 16, 16
          %685 = vsyncadd [#allocation16], %s684
          %s687 = sshll.u32 [#allocation17], 4
          %s688 = int_to_ptr.vmem [resolvable:$true] %s687
          %690 = dma.hbm_to_vmem [thread:$0]  %s11, 16, %s688, [#allocation16]
        $region52: #{tpu_custom_call.1} parent=11 // pred_fallthru
          _
        // Predicated region
        $region53: #{tpu_custom_call.1} parent=11 // pred_check
          %p691 = pneg %p327
        $region54: #{tpu_custom_call.1} parent=11 // pred_check_branch
          %693 = sbr.rel (%p691) target = $region56
        $region55: #{tpu_custom_call.1} parent=11 // pred_region
          %s695 = ssub.s32 256, 256
          %696 = vsyncadd [#allocation19], %s695
          %s697 = sshll.u32 [#allocation18], 4
          %s698 = int_to_ptr.vmem [resolvable:$true] %s697
          %703 = dma.hbm_to_vmem [thread:$0]  %s12, 256, %s698, [#allocation19], 64, 64, 4
        $region56: #{tpu_custom_call.1} parent=11 // pred_fallthru
          _
        // Predicated region
        $region57: #{tpu_custom_call.1} parent=11 // pred_check
          %p704 = pneg %p348
        $region58: #{tpu_custom_call.1} parent=11 // pred_check_branch
          %706 = sbr.rel (%p704) target = $region60
        $region59: #{tpu_custom_call.1} parent=11 // pred_region
          %s708 = ssub.s32 16, 16
          %709 = vsyncadd [#allocation19], %s708
          %s711 = sshll.u32 [#allocation20], 4
          %s712 = int_to_ptr.vmem [resolvable:$true] %s711
          %714 = dma.hbm_to_vmem [thread:$0]  %s13, 16, %s712, [#allocation19]
        $region60: #{tpu_custom_call.1} parent=11 // pred_fallthru
          _
        // Predicated region
        $region61: #{tpu_custom_call.1} parent=11 // pred_check
          %p715 = pneg %p369
        $region62: #{tpu_custom_call.1} parent=11 // pred_check_branch
          %717 = sbr.rel (%p715) target = $region64
        $region63: #{tpu_custom_call.1} parent=11 // pred_region
          %s719 = ssub.s32 16, 16
          %720 = vsyncadd [#allocation22], %s719
          %s722 = sshll.u32 [#allocation21], 4
          %s723 = int_to_ptr.vmem [resolvable:$true] %s722
          %725 = dma.hbm_to_vmem [thread:$0]  %s14, 16, %s723, [#allocation22]
        $region64: #{tpu_custom_call.1} parent=11 // pred_fallthru
          _
        // Predicated region
        $region65: #{tpu_custom_call.1} parent=11 // pred_check
          %p726 = pneg %p390
        $region66: #{tpu_custom_call.1} parent=11 // pred_check_branch
          %728 = sbr.rel (%p726) target = $region68
        $region67: #{tpu_custom_call.1} parent=11 // pred_region
          %s730 = ssub.s32 16, 16
          %731 = vsyncadd [#allocation22], %s730
          %s733 = sshll.u32 [#allocation23], 4
          %s734 = int_to_ptr.vmem [resolvable:$true] %s733
          %736 = dma.hbm_to_vmem [thread:$0]  %s15, 16, %s734, [#allocation22]
        $region68: #{tpu_custom_call.1} parent=11 // pred_fallthru
          _
        // Predicated region
        $region69: #{tpu_custom_call.1} parent=11 // pred_check
          %p737 = pneg %p411
        $region70: #{tpu_custom_call.1} parent=11 // pred_check_branch
          %739 = sbr.rel (%p737) target = $region72
        $region71: #{tpu_custom_call.1} parent=11 // pred_region
          %s741 = ssub.s32 256, 256
          %742 = vsyncadd [#allocation25], %s741
          %s743 = sshll.u32 [#allocation24], 4
          %s744 = int_to_ptr.vmem [resolvable:$true] %s743
          %749 = dma.hbm_to_vmem [thread:$0]  %s16, 256, %s744, [#allocation25], 64, 64, 4
        $region72: #{tpu_custom_call.1} parent=11 // pred_fallthru
          _
        // Predicated region
        $region73: #{tpu_custom_call.1} parent=11 // pred_check
          %p750 = pneg %p432
        $region74: #{tpu_custom_call.1} parent=11 // pred_check_branch
          %752 = sbr.rel (%p750) target = $region76
        $region75: #{tpu_custom_call.1} parent=11 // pred_region
          %s754 = ssub.s32 16, 16
          %755 = vsyncadd [#allocation25], %s754
          %s757 = sshll.u32 [#allocation26], 4
          %s758 = int_to_ptr.vmem [resolvable:$true] %s757
          %760 = dma.hbm_to_vmem [thread:$0]  %s17, 16, %s758, [#allocation25]
        $region76: #{tpu_custom_call.1} parent=11 // pred_fallthru
          _
        // Predicated region
        $region77: #{tpu_custom_call.1} parent=11 // pred_check
          %p761 = pneg %p453
        $region78: #{tpu_custom_call.1} parent=11 // pred_check_branch
          %763 = sbr.rel (%p761) target = $region80
        $region79: #{tpu_custom_call.1} parent=11 // pred_region
          _
        $region80: #{tpu_custom_call.1} parent=11 // pred_fallthru
          _
        // Predicated region
        $region81: #{tpu_custom_call.1} parent=11 // pred_check
          %p764 = pneg %p474
        $region82: #{tpu_custom_call.1} parent=11 // pred_check_branch
          %766 = sbr.rel (%p764) target = $region84
        $region83: #{tpu_custom_call.1} parent=11 // pred_region
          _
        $region84: #{tpu_custom_call.1} parent=11 // pred_fallthru
          _
        // Predicated region
        $region85: #{tpu_custom_call.1} parent=11 // pred_check
          %p767 = pneg %p495
        $region86: #{tpu_custom_call.1} parent=11 // pred_check_branch
          %769 = sbr.rel (%p767) target = $region88
        $region87: #{tpu_custom_call.1} parent=11 // pred_region
          _
        $region88: #{tpu_custom_call.1} parent=11 // pred_fallthru
          _
        // Predicated region
        $region89: #{tpu_custom_call.1} parent=11 // pred_check
          %p770 = pneg %p516
        $region90: #{tpu_custom_call.1} parent=11 // pred_check_branch
          %772 = sbr.rel (%p770) target = $region92
        $region91: #{tpu_custom_call.1} parent=11 // pred_region
          _
        $region92: #{tpu_custom_call.1} parent=11 // pred_fallthru
          _
      $region12: #{tpu_custom_call.1} parent=5 // pred_fallthru
        _
      %p773 = scmp.lt.s32.totalorder %s44, 2
      // Predicated region
      $region93: #{tpu_custom_call.1} parent=5 // pred_check
        %p774 = pneg %p773
      $region94: #{tpu_custom_call.1} parent=5 // pred_check_branch
        %776 = sbr.rel (%p774) target = $region96
      $region95: #{tpu_custom_call.1} parent=5 // pred_region
        // Predicated region
        $region97: #{tpu_custom_call.1} parent=95 // pred_check
          %p777 = pneg %p64
        $region98: #{tpu_custom_call.1} parent=95 // pred_check_branch
          %779 = sbr.rel (%p777) target = $region100
        $region99: #{tpu_custom_call.1} parent=95 // pred_region
          %p780 = scmp.lt.s32.totalorder %s44, 1
          %s781 = scalar_select %p780, %s44, 1
          %s782 = smul.addr %s781, 8
          %s783 = scalar_lea.vmem %s0, %s782
        $region100: #{tpu_custom_call.1} parent=95 // pred_fallthru
          _
        // Predicated region
        $region101: #{tpu_custom_call.1} parent=95 // pred_check
          %p784 = pneg %p90
        $region102: #{tpu_custom_call.1} parent=95 // pred_check_branch
          %786 = sbr.rel (%p784) target = $region104
        $region103: #{tpu_custom_call.1} parent=95 // pred_region
          %p787 = scmp.lt.s32.totalorder %s44, 1
          %s788 = scalar_select %p787, %s44, 1
          %s789 = smul.addr %s788, 2
          %s790 = smul.addr %s789, 8
          %s791 = scalar_lea.vmem %s1, %s790
        $region104: #{tpu_custom_call.1} parent=95 // pred_fallthru
          _
      $region96: #{tpu_custom_call.1} parent=5 // pred_fallthru
        _
      %p792 = scmp.le.s32.totalorder 1, %s44
      %p793 = scmp.lt.s32.totalorder %s44, 3
      %p794 = pnand %p792, %p793
      %p795 = pneg %p794
      // Predicated region
      $region105: #{tpu_custom_call.1} parent=5 // pred_check
        _
      $region106: #{tpu_custom_call.1} parent=5 // pred_check_branch
        %797 = sbr.rel (%p794) target = $region108
      $region107: #{tpu_custom_call.1} parent=5 // pred_region
        %s798 = ssub.s32 %s44, 1
        // Predicated region
        $region109: #{tpu_custom_call.1} parent=107 // pred_check
          %p799 = pneg %p117
        $region110: #{tpu_custom_call.1} parent=107 // pred_check_branch
          %801 = sbr.rel (%p799) target = $region112
        $region111: #{tpu_custom_call.1} parent=107 // pred_region
          %802 = dma.done [#allocation4], 256
        $region112: #{tpu_custom_call.1} parent=107 // pred_fallthru
          _
        // Predicated region
        $region113: #{tpu_custom_call.1} parent=107 // pred_check
          %p803 = pneg %p138
        $region114: #{tpu_custom_call.1} parent=107 // pred_check_branch
          %805 = sbr.rel (%p803) target = $region116
        $region115: #{tpu_custom_call.1} parent=107 // pred_region
          %806 = dma.done [#allocation7], 16
        $region116: #{tpu_custom_call.1} parent=107 // pred_fallthru
          _
        // Predicated region
        $region117: #{tpu_custom_call.1} parent=107 // pred_check
          %p807 = pneg %p159
        $region118: #{tpu_custom_call.1} parent=107 // pred_check_branch
          %809 = sbr.rel (%p807) target = $region120
        $region119: #{tpu_custom_call.1} parent=107 // pred_region
          %810 = dma.done [#allocation7], 256
        $region120: #{tpu_custom_call.1} parent=107 // pred_fallthru
          _
        // Predicated region
        $region121: #{tpu_custom_call.1} parent=107 // pred_check
          %p811 = pneg %p180
        $region122: #{tpu_custom_call.1} parent=107 // pred_check_branch
          %813 = sbr.rel (%p811) target = $region124
        $region123: #{tpu_custom_call.1} parent=107 // pred_region
          %814 = dma.done [#allocation10], 16
        $region124: #{tpu_custom_call.1} parent=107 // pred_fallthru
          _
        // Predicated region
        $region125: #{tpu_custom_call.1} parent=107 // pred_check
          %p815 = pneg %p201
        $region126: #{tpu_custom_call.1} parent=107 // pred_check_branch
          %817 = sbr.rel (%p815) target = $region128
        $region127: #{tpu_custom_call.1} parent=107 // pred_region
          %818 = dma.done [#allocation10], 16
        $region128: #{tpu_custom_call.1} parent=107 // pred_fallthru
          _
        // Predicated region
        $region129: #{tpu_custom_call.1} parent=107 // pred_check
          %p819 = pneg %p222
        $region130: #{tpu_custom_call.1} parent=107 // pred_check_branch
          %821 = sbr.rel (%p819) target = $region132
        $region131: #{tpu_custom_call.1} parent=107 // pred_region
          %822 = dma.done [#allocation13], 16
        $region132: #{tpu_custom_call.1} parent=107 // pred_fallthru
          _
        // Predicated region
        $region133: #{tpu_custom_call.1} parent=107 // pred_check
          %p823 = pneg %p243
        $region134: #{tpu_custom_call.1} parent=107 // pred_check_branch
          %825 = sbr.rel (%p823) target = $region136
        $region135: #{tpu_custom_call.1} parent=107 // pred_region
          %826 = dma.done [#allocation13], 256
        $region136: #{tpu_custom_call.1} parent=107 // pred_fallthru
          _
        // Predicated region
        $region137: #{tpu_custom_call.1} parent=107 // pred_check
          %p827 = pneg %p264
        $region138: #{tpu_custom_call.1} parent=107 // pred_check_branch
          %829 = sbr.rel (%p827) target = $region140
        $region139: #{tpu_custom_call.1} parent=107 // pred_region
          %830 = dma.done [#allocation16], 16
        $region140: #{tpu_custom_call.1} parent=107 // pred_fallthru
          _
        // Predicated region
        $region141: #{tpu_custom_call.1} parent=107 // pred_check
          %p831 = pneg %p306
        $region142: #{tpu_custom_call.1} parent=107 // pred_check_branch
          %833 = sbr.rel (%p831) target = $region144
        $region143: #{tpu_custom_call.1} parent=107 // pred_region
          %834 = dma.done [#allocation16], 16
        $region144: #{tpu_custom_call.1} parent=107 // pred_fallthru
          _
        // Predicated region
        $region145: #{tpu_custom_call.1} parent=107 // pred_check
          %p835 = pneg %p327
        $region146: #{tpu_custom_call.1} parent=107 // pred_check_branch
          %837 = sbr.rel (%p835) target = $region148
        $region147: #{tpu_custom_call.1} parent=107 // pred_region
          %838 = dma.done [#allocation19], 256
        $region148: #{tpu_custom_call.1} parent=107 // pred_fallthru
          _
        // Predicated region
        $region149: #{tpu_custom_call.1} parent=107 // pred_check
          %p839 = pneg %p348
        $region150: #{tpu_custom_call.1} parent=107 // pred_check_branch
          %841 = sbr.rel (%p839) target = $region152
        $region151: #{tpu_custom_call.1} parent=107 // pred_region
          %842 = dma.done [#allocation19], 16
        $region152: #{tpu_custom_call.1} parent=107 // pred_fallthru
          _
        // Predicated region
        $region153: #{tpu_custom_call.1} parent=107 // pred_check
          %p843 = pneg %p369
        $region154: #{tpu_custom_call.1} parent=107 // pred_check_branch
          %845 = sbr.rel (%p843) target = $region156
        $region155: #{tpu_custom_call.1} parent=107 // pred_region
          %846 = dma.done [#allocation22], 16
        $region156: #{tpu_custom_call.1} parent=107 // pred_fallthru
          _
        // Predicated region
        $region157: #{tpu_custom_call.1} parent=107 // pred_check
          %p847 = pneg %p390
        $region158: #{tpu_custom_call.1} parent=107 // pred_check_branch
          %849 = sbr.rel (%p847) target = $region160
        $region159: #{tpu_custom_call.1} parent=107 // pred_region
          %850 = dma.done [#allocation22], 16
        $region160: #{tpu_custom_call.1} parent=107 // pred_fallthru
          _
        // Predicated region
        $region161: #{tpu_custom_call.1} parent=107 // pred_check
          %p851 = pneg %p411
        $region162: #{tpu_custom_call.1} parent=107 // pred_check_branch
          %853 = sbr.rel (%p851) target = $region164
        $region163: #{tpu_custom_call.1} parent=107 // pred_region
          %854 = dma.done [#allocation25], 256
        $region164: #{tpu_custom_call.1} parent=107 // pred_fallthru
          _
        // Predicated region
        $region165: #{tpu_custom_call.1} parent=107 // pred_check
          %p855 = pneg %p432
        $region166: #{tpu_custom_call.1} parent=107 // pred_check_branch
          %857 = sbr.rel (%p855) target = $region168
        $region167: #{tpu_custom_call.1} parent=107 // pred_region
          %858 = dma.done [#allocation25], 16
        $region168: #{tpu_custom_call.1} parent=107 // pred_fallthru
          _
        %p859 = scmp.lt.s32.totalorder %s49, 1
        %s860 = scalar_select %p859, %s49, 1
        %s861 = smul.addr %s860, 8
        %s862 = scalar_lea.vmem %s0, %s861
        %p863 = pneg %p70
        %p864 = pneg %p67
        %p865 = scmp.lt.s32.totalorder %s49, 1
        %s866 = scalar_select %p865, %s49, 1
        %s867 = smul.addr %s866, 2
        %s868 = smul.addr %s867, 8
        %s869 = scalar_lea.vmem %s1, %s868
        %p870 = pneg %p96
        %p871 = pneg %p93
        %p872 = pneg %p117
        %p873 = pneg %p114
        %p874 = pneg %p138
        %p875 = pneg %p135
        %p876 = pneg %p159
        %p877 = pneg %p156
        %p878 = pneg %p180
        %p879 = pneg %p177
        %p880 = pneg %p201
        %p881 = pneg %p198
        %p882 = pneg %p222
        %p883 = pneg %p219
        %p884 = pneg %p243
        %p885 = pneg %p240
        %p886 = pneg %p264
        %p887 = pneg %p261
        %p888 = pneg %p285
        %p889 = pneg %p282
        %p890 = pneg %p306
        %p891 = pneg %p303
        %p892 = pneg %p327
        %p893 = pneg %p324
        %p894 = pneg %p348
        %p895 = pneg %p345
        %p896 = pneg %p369
        %p897 = pneg %p366
        %p898 = pneg %p390
        %p899 = pneg %p387
        %p900 = pneg %p411
        %p901 = pneg %p408
        %p902 = pneg %p432
        %p903 = pneg %p429
        %p904 = pneg %p453
        %p905 = pneg %p450
        %p906 = pneg %p474
        %p907 = pneg %p471
        %p908 = pneg %p495
        %p909 = pneg %p492
        %p910 = pneg %p516
        %p911 = pneg %p513
        %p912 = pneg %p542
        %p913 = pneg %p539
        %s914 = sand.u32 %s529, 1
        %s915 = scalar_lea.sflag [#allocation5], %s914
        %s916 = sand.u32 %s529, 1
        %s917 = smul.addr %s916, 8
        %s918 = scalar_lea.vmem [#allocation27], %s917
        %p919 = pneg %p568
        %p920 = pneg %p565
        %s921 = sand.u32 %s555, 1
        %s922 = scalar_lea.sflag [#allocation29], %s921
        %s923 = sand.u32 %s555, 1
        %s924 = smul.addr %s923, 4
        %s925 = scalar_lea.vmem [#allocation28], %s924
        %p926 = scmp.lt.s32.totalorder %s49, 1
        %s927 = scalar_select %p926, %s49, 1
        %s928 = smul.addr %s927, 8
        %s929 = scalar_lea.vmem %s0, %s928
        %p930 = scmp.lt.s32.totalorder %s49, 1
        %s931 = scalar_select %p930, %s49, 1
        %s932 = smul.addr %s931, 2
        %s933 = smul.addr %s932, 8
        %s934 = scalar_lea.vmem %s1, %s933
        %v936 = vld [vmem:[%s929] sm:$0xff]
        %v937 = vld [vmem:[%s934] sm:$0xff]
        %v938 = vld [vmem:[%s934 + $0x8] sm:$0xff]
        %v939 = vpack.c.bf16 %v938, %v937
        %v940 = vpack.c.bf16 %v936, %v936
        %v941 = vld [vmem:[#allocation3] sm:$0xf]
        %v942 = vld [vmem:[#allocation3 + $0x4] sm:$0xf]
        %v943 = vld [vmem:[#allocation3 + $0x8] sm:$0xf]
        %v944 = vld [vmem:[#allocation3 + $0xc] sm:$0xf]
        %v945 = vld [vmem:[#allocation6] sm:$0x1]
        %v947 = vlaneseq
        %v948 = vshrl.u32 %v947, 7
        %v949 = vsub.s32 0, %v948
        %v950 = vrot.slane %v945, %v949
        %v956 = vunpack.c.l.b16 %v941
        %v957 = vunpack.c.l.b16 %v942
        %v958 = vunpack.c.l.b16 %v943
        %v959 = vunpack.c.l.b16 %v944
        %v960 = vpack.c.b16 %v957, %v956
        %v961 = vpack.c.b16 %v959, %v958
        %vm964 = vcmask 261120
        %v966 = vsel %vm964, %v940, 0
        %968 = vmatprep.subr.bf16.mxu0 0
        %969 = vmatpush1.bf16.msra.mxu0 0
        %970 = vmatprep.subr.bf16.mxu0 0
        %971 = vmatpush1.bf16.msra.mxu0 0
        %972 = vmatprep.subr.bf16.mxu0 0
        %973 = vmatpush1.bf16.msra.mxu0 0
        %974 = vmatprep.subr.bf16.mxu0 0
        %975 = vmatpush1.bf16.msra.mxu0 0
        %976 = vmatprep.subr.bf16.mxu0 0
        %977 = vmatpush1.bf16.msra.mxu0 0
        %978 = vmatprep.subr.bf16.mxu0 0
        %979 = vmatpush1.bf16.msra.mxu0 0
        %980 = vmatprep.subr.bf16.mxu0 0
        %981 = vmatpush1.bf16.msra.mxu0 %v961
        %982 = vmatprep.subr.bf16.mxu0 0
        %983 = vmatpush1.bf16.msra.mxu0 %v960
        %984 = vmatprep.subr.bf16.mxu0 0
        %985 = vmatpush2.bf16.msra.mxu0 0
        %986 = vmatprep.subr.bf16.mxu0 0
        %987 = vmatpush2.bf16.msra.mxu0 0
        %988 = vmatprep.subr.bf16.mxu0 0
        %989 = vmatpush2.bf16.msra.mxu0 0
        %990 = vmatprep.subr.bf16.mxu0 0
        %991 = vmatpush2.bf16.msra.mxu0 0
        %992 = vmatprep.subr.bf16.mxu0 0
        %993 = vmatpush2.bf16.msra.mxu0 0
        %994 = vmatprep.subr.bf16.mxu0 0
        %995 = vmatpush2.bf16.msra.mxu0 0
        %996 = vmatprep.subr.bf16.mxu0 0
        %997 = vmatpush2.bf16.msra.mxu0 0
        %998 = vmatprep.subr.bf16.mxu0 0
        %999 = vmatpush2.bf16.msra.mxu0 0
        %1000 = vmatprep.mubr.bf16.mxu0 0
        %1001 = vmatmul.mubr.bf16.gmra.mxu0 %v966
        %v1002 = vpop.f32.mrf.mxu0
        %v1003 = vadd.f32 %v950, %v1002
        %v1004 = vpop.f32.mrf.mxu0
        %v1005 = vpop.f32.mrf.mxu0
        %v1006 = vpop.f32.mrf.mxu0
        %1007 = vdwg.mxu0
        %v1008 = vpack.c.bf16 %v1003, %v1003
        %v1009 = vlaneseq
        %v1010 = vshrl.u32 %v1009, 7
        %v1011 = vlaneseq
        %v1012 = vand.u32 %v1011, 127
        %vm1013 = vcmp.gt.s32.totalorder %v1012, %v1010
        %v1014 = vsel %vm1013, -1e+30, 0.0
        %1016 = vrot.lane.b32.xlu0 %v1008, 96
        %v1017 = vpop.permute.xlu0 %1016
        %vm1018 = vcmask 64512
        %v1020 = vsel %vm1018, %v1008, 0
        %v1023 = vsel %vm1018, %v1017, 0
        %1025 = vmatprep.subr.bf16.mxu0 0
        %1026 = vmatpush1.bf16.xpose.msra.mxu0 0
        %1027 = vmatprep.subr.bf16.mxu0 0
        %1028 = vmatpush1.bf16.xpose.msra.mxu0 0
        %1029 = vmatprep.subr.bf16.mxu0 0
        %1030 = vmatpush1.bf16.xpose.msra.mxu0 0
        %1031 = vmatprep.subr.bf16.mxu0 0
        %1032 = vmatpush1.bf16.xpose.msra.mxu0 0
        %1033 = vmatprep.subr.bf16.mxu0 0
        %1034 = vmatpush1.bf16.xpose.msra.mxu0 0
        %1035 = vmatprep.subr.bf16.mxu0 0
        %1036 = vmatpush1.bf16.xpose.msra.mxu0 0
        %1037 = vmatprep.subr.bf16.mxu0 0
        %1038 = vmatpush1.bf16.xpose.msra.mxu0 0
        %1039 = vmatprep.subr.bf16.mxu0 0
        %1040 = vmatpush1.bf16.xpose.msra.mxu0 %v1023
        %1041 = vmatprep.subr.bf16.mxu0 0
        %1042 = vmatpush2.bf16.xpose.msra.mxu0 0
        %1043 = vmatprep.subr.bf16.mxu0 0
        %1044 = vmatpush2.bf16.xpose.msra.mxu0 0
        %1045 = vmatprep.subr.bf16.mxu0 0
        %1046 = vmatpush2.bf16.xpose.msra.mxu0 0
        %1047 = vmatprep.subr.bf16.mxu0 0
        %1048 = vmatpush2.bf16.xpose.msra.mxu0 0
        %1049 = vmatprep.subr.bf16.mxu0 0
        %1050 = vmatpush2.bf16.xpose.msra.mxu0 0
        %1051 = vmatprep.subr.bf16.mxu0 0
        %1052 = vmatpush2.bf16.xpose.msra.mxu0 0
        %1053 = vmatprep.subr.bf16.mxu0 0
        %1054 = vmatpush2.bf16.xpose.msra.mxu0 0
        %1055 = vmatprep.subr.bf16.mxu0 0
        %1056 = vmatpush2.bf16.xpose.msra.mxu0 0
        %1057 = vmatprep.mubr.bf16.mxu0 0
        %1058 = vmatmul.mubr.bf16.gmra.mxu0 %v1020
        %v1059 = vpop.f32.mrf.mxu0
        %v1060 = vadd.f32 %v1014, %v1059
        %v1061 = vpop.f32.mrf.mxu0
        %v1062 = vpop.f32.mrf.mxu0
        %v1063 = vpop.f32.mrf.mxu0
        %1064 = vdwg.mxu0
        %v1065 = vsel %vm1018, %v1060, -inf
        %1066 = vmax.xlane.f32.xlu0 %v1065
        %v1067 = vpop.xlane.xlu0 %1066
        %v1068 = vsub.f32 %v1060, %v1067
        %v1069 = vmul.f32 %v1068, 1.442695
        %v1070 = vpow.pop %v1069
        %v1071 = vsel %vm1018, %v1070, 0.0
        %1072 = vadd.xlane.f32.xlu0 %v1071
        %v1073 = vpop.xlane.xlu0 %1072
        %v1074 = vrcp.pop %v1073
        %v1075 = vmul.f32 %v1070, %v1074
        %v1076 = vpack.c.bf16 %v1075, %v1075
        %1077 = vrot.lane.b32.xlu0 %v1008, 64
        %v1078 = vpop.permute.xlu0 %1077
        %v1080 = vsel %vm1018, %v1076, 0
        %vm1082 = vcmask 1043456
        %v1084 = vsel %vm1082, %v1078, 0
        %1086 = vmatprep.subr.bf16.mxu0 0
        %1087 = vmatpush1.bf16.msra.mxu0 0
        %1088 = vmatprep.subr.bf16.mxu0 0
        %1089 = vmatpush1.bf16.msra.mxu0 0
        %1090 = vmatprep.subr.bf16.mxu0 0
        %1091 = vmatpush1.bf16.msra.mxu0 0
        %1092 = vmatprep.subr.bf16.mxu0 0
        %1093 = vmatpush1.bf16.msra.mxu0 0
        %1094 = vmatprep.subr.bf16.mxu0 0
        %1095 = vmatpush1.bf16.msra.mxu0 0
        %1096 = vmatprep.subr.bf16.mxu0 0
        %1097 = vmatpush1.bf16.msra.mxu0 0
        %1098 = vmatprep.subr.bf16.mxu0 0
        %1099 = vmatpush1.bf16.msra.mxu0 0
        %1100 = vmatprep.subr.bf16.mxu0 0
        %1101 = vmatpush1.bf16.msra.mxu0 %v1084
        %1102 = vmatprep.subr.bf16.mxu0 0
        %1103 = vmatpush2.bf16.msra.mxu0 0
        %1104 = vmatprep.subr.bf16.mxu0 0
        %1105 = vmatpush2.bf16.msra.mxu0 0
        %1106 = vmatprep.subr.bf16.mxu0 0
        %1107 = vmatpush2.bf16.msra.mxu0 0
        %1108 = vmatprep.subr.bf16.mxu0 0
        %1109 = vmatpush2.bf16.msra.mxu0 0
        %1110 = vmatprep.subr.bf16.mxu0 0
        %1111 = vmatpush2.bf16.msra.mxu0 0
        %1112 = vmatprep.subr.bf16.mxu0 0
        %1113 = vmatpush2.bf16.msra.mxu0 0
        %1114 = vmatprep.subr.bf16.mxu0 0
        %1115 = vmatpush2.bf16.msra.mxu0 0
        %1116 = vmatprep.subr.bf16.mxu0 0
        %1117 = vmatpush2.bf16.msra.mxu0 0
        %1118 = vmatprep.mubr.bf16.mxu0 0
        %1119 = vmatmul.mubr.bf16.gmra.mxu0 %v1080
        %v1120 = vpop.f32.mrf.mxu0
        %v1121 = vadd.f32 0.0, %v1120
        %v1122 = vpop.f32.mrf.mxu0
        %v1123 = vpop.f32.mrf.mxu0
        %v1124 = vpop.f32.mrf.mxu0
        %1125 = vdwg.mxu0
        %v1126 = vpack.c.bf16 %v1121, %v1121
        %vm1127 = vcmask 60416
        %1128 = vst.msk [vmem:[#allocation2] sm:$0xf] %vm1127, %v1126
        %1129 = vrot.lane.b32.xlu0 %v1008, 120
        %v1130 = vpop.permute.xlu0 %1129
        %1131 = vrot.lane.b32.xlu0 %v1008, 88
        %v1132 = vpop.permute.xlu0 %1131
        %v1134 = vsel %vm1018, %v1130, 0
        %v1137 = vsel %vm1018, %v1132, 0
        %1139 = vmatprep.subr.bf16.mxu0 0
        %1140 = vmatpush1.bf16.xpose.msra.mxu0 0
        %1141 = vmatprep.subr.bf16.mxu0 0
        %1142 = vmatpush1.bf16.xpose.msra.mxu0 0
        %1143 = vmatprep.subr.bf16.mxu0 0
        %1144 = vmatpush1.bf16.xpose.msra.mxu0 0
        %1145 = vmatprep.subr.bf16.mxu0 0
        %1146 = vmatpush1.bf16.xpose.msra.mxu0 0
        %1147 = vmatprep.subr.bf16.mxu0 0
        %1148 = vmatpush1.bf16.xpose.msra.mxu0 0
        %1149 = vmatprep.subr.bf16.mxu0 0
        %1150 = vmatpush1.bf16.xpose.msra.mxu0 0
        %1151 = vmatprep.subr.bf16.mxu0 0
        %1152 = vmatpush1.bf16.xpose.msra.mxu0 0
        %1153 = vmatprep.subr.bf16.mxu0 0
        %1154 = vmatpush1.bf16.xpose.msra.mxu0 %v1137
        %1155 = vmatprep.subr.bf16.mxu0 0
        %1156 = vmatpush2.bf16.xpose.msra.mxu0 0
        %1157 = vmatprep.subr.bf16.mxu0 0
        %1158 = vmatpush2.bf16.xpose.msra.mxu0 0
        %1159 = vmatprep.subr.bf16.mxu0 0
        %1160 = vmatpush2.bf16.xpose.msra.mxu0 0
        %1161 = vmatprep.subr.bf16.mxu0 0
        %1162 = vmatpush2.bf16.xpose.msra.mxu0 0
        %1163 = vmatprep.subr.bf16.mxu0 0
        %1164 = vmatpush2.bf16.xpose.msra.mxu0 0
        %1165 = vmatprep.subr.bf16.mxu0 0
        %1166 = vmatpush2.bf16.xpose.msra.mxu0 0
        %1167 = vmatprep.subr.bf16.mxu0 0
        %1168 = vmatpush2.bf16.xpose.msra.mxu0 0
        %1169 = vmatprep.subr.bf16.mxu0 0
        %1170 = vmatpush2.bf16.xpose.msra.mxu0 0
        %1171 = vmatprep.mubr.bf16.mxu0 0
        %1172 = vmatmul.mubr.bf16.gmra.mxu0 %v1134
        %v1173 = vpop.f32.mrf.mxu0
        %v1174 = vadd.f32 %v1014, %v1173
        %v1175 = vpop.f32.mrf.mxu0
        %v1176 = vpop.f32.mrf.mxu0
        %v1177 = vpop.f32.mrf.mxu0
        %1178 = vdwg.mxu0
        %v1179 = vsel %vm1018, %v1174, -inf
        %1180 = vmax.xlane.f32.xlu0 %v1179
        %v1181 = vpop.xlane.xlu0 %1180
        %v1182 = vsub.f32 %v1174, %v1181
        %v1183 = vmul.f32 %v1182, 1.442695
        %v1184 = vpow.pop %v1183
        %v1185 = vsel %vm1018, %v1184, 0.0
        %1186 = vadd.xlane.f32.xlu0 %v1185
        %v1187 = vpop.xlane.xlu0 %1186
        %v1188 = vrcp.pop %v1187
        %v1189 = vmul.f32 %v1184, %v1188
        %v1190 = vpack.c.bf16 %v1189, %v1189
        %1191 = vrot.lane.b32.xlu0 %v1008, 56
        %v1192 = vpop.permute.xlu0 %1191
        %v1194 = vsel %vm1018, %v1190, 0
        %v1197 = vsel %vm1082, %v1192, 0
        %1199 = vmatprep.subr.bf16.mxu0 0
        %1200 = vmatpush1.bf16.msra.mxu0 0
        %1201 = vmatprep.subr.bf16.mxu0 0
        %1202 = vmatpush1.bf16.msra.mxu0 0
        %1203 = vmatprep.subr.bf16.mxu0 0
        %1204 = vmatpush1.bf16.msra.mxu0 0
        %1205 = vmatprep.subr.bf16.mxu0 0
        %1206 = vmatpush1.bf16.msra.mxu0 0
        %1207 = vmatprep.subr.bf16.mxu0 0
        %1208 = vmatpush1.bf16.msra.mxu0 0
        %1209 = vmatprep.subr.bf16.mxu0 0
        %1210 = vmatpush1.bf16.msra.mxu0 0
        %1211 = vmatprep.subr.bf16.mxu0 0
        %1212 = vmatpush1.bf16.msra.mxu0 0
        %1213 = vmatprep.subr.bf16.mxu0 0
        %1214 = vmatpush1.bf16.msra.mxu0 %v1197
        %1215 = vmatprep.subr.bf16.mxu0 0
        %1216 = vmatpush2.bf16.msra.mxu0 0
        %1217 = vmatprep.subr.bf16.mxu0 0
        %1218 = vmatpush2.bf16.msra.mxu0 0
        %1219 = vmatprep.subr.bf16.mxu0 0
        %1220 = vmatpush2.bf16.msra.mxu0 0
        %1221 = vmatprep.subr.bf16.mxu0 0
        %1222 = vmatpush2.bf16.msra.mxu0 0
        %1223 = vmatprep.subr.bf16.mxu0 0
        %1224 = vmatpush2.bf16.msra.mxu0 0
        %1225 = vmatprep.subr.bf16.mxu0 0
        %1226 = vmatpush2.bf16.msra.mxu0 0
        %1227 = vmatprep.subr.bf16.mxu0 0
        %1228 = vmatpush2.bf16.msra.mxu0 0
        %1229 = vmatprep.subr.bf16.mxu0 0
        %1230 = vmatpush2.bf16.msra.mxu0 0
        %1231 = vmatprep.mubr.bf16.mxu0 0
        %1232 = vmatmul.mubr.bf16.gmra.mxu0 %v1194
        %v1233 = vpop.f32.mrf.mxu0
        %v1234 = vadd.f32 0.0, %v1233
        %v1235 = vpop.f32.mrf.mxu0
        %v1236 = vpop.f32.mrf.mxu0
        %v1237 = vpop.f32.mrf.mxu0
        %1238 = vdwg.mxu0
        %v1239 = vpack.c.bf16 %v1234, %v1234
        %v1241 = vunpack.c.l.b16 %v1239
        %v1242 = vpack.c.b16 %v1241, %v1241
        %1243 = vrot.lane.b32.xlu0 %v1242, 8
        %v1244 = vpop.permute.xlu0 %1243
        %vm1246 = vcmask 126016
        %1247 = vst.msk [vmem:[#allocation2] sm:$0xf] %vm1246, %v1244
        %1248 = vrot.lane.b32.xlu0 %v1008, 112
        %v1249 = vpop.permute.xlu0 %1248
        %1250 = vrot.lane.b32.xlu0 %v1008, 80
        %v1251 = vpop.permute.xlu0 %1250
        %v1253 = vsel %vm1018, %v1249, 0
        %v1256 = vsel %vm1018, %v1251, 0
        %1258 = vmatprep.subr.bf16.mxu0 0
        %1259 = vmatpush1.bf16.xpose.msra.mxu0 0
        %1260 = vmatprep.subr.bf16.mxu0 0
        %1261 = vmatpush1.bf16.xpose.msra.mxu0 0
        %1262 = vmatprep.subr.bf16.mxu0 0
        %1263 = vmatpush1.bf16.xpose.msra.mxu0 0
        %1264 = vmatprep.subr.bf16.mxu0 0
        %1265 = vmatpush1.bf16.xpose.msra.mxu0 0
        %1266 = vmatprep.subr.bf16.mxu0 0
        %1267 = vmatpush1.bf16.xpose.msra.mxu0 0
        %1268 = vmatprep.subr.bf16.mxu0 0
        %1269 = vmatpush1.bf16.xpose.msra.mxu0 0
        %1270 = vmatprep.subr.bf16.mxu0 0
        %1271 = vmatpush1.bf16.xpose.msra.mxu0 0
        %1272 = vmatprep.subr.bf16.mxu0 0
        %1273 = vmatpush1.bf16.xpose.msra.mxu0 %v1256
        %1274 = vmatprep.subr.bf16.mxu0 0
        %1275 = vmatpush2.bf16.xpose.msra.mxu0 0
        %1276 = vmatprep.subr.bf16.mxu0 0
        %1277 = vmatpush2.bf16.xpose.msra.mxu0 0
        %1278 = vmatprep.subr.bf16.mxu0 0
        %1279 = vmatpush2.bf16.xpose.msra.mxu0 0
        %1280 = vmatprep.subr.bf16.mxu0 0
        %1281 = vmatpush2.bf16.xpose.msra.mxu0 0
        %1282 = vmatprep.subr.bf16.mxu0 0
        %1283 = vmatpush2.bf16.xpose.msra.mxu0 0
        %1284 = vmatprep.subr.bf16.mxu0 0
        %1285 = vmatpush2.bf16.xpose.msra.mxu0 0
        %1286 = vmatprep.subr.bf16.mxu0 0
        %1287 = vmatpush2.bf16.xpose.msra.mxu0 0
        %1288 = vmatprep.subr.bf16.mxu0 0
        %1289 = vmatpush2.bf16.xpose.msra.mxu0 0
        %1290 = vmatprep.mubr.bf16.mxu0 0
        %1291 = vmatmul.mubr.bf16.gmra.mxu0 %v1253
        %v1292 = vpop.f32.mrf.mxu0
        %v1293 = vadd.f32 %v1014, %v1292
        %v1294 = vpop.f32.mrf.mxu0
        %v1295 = vpop.f32.mrf.mxu0
        %v1296 = vpop.f32.mrf.mxu0
        %1297 = vdwg.mxu0
        %v1298 = vsel %vm1018, %v1293, -inf
        %1299 = vmax.xlane.f32.xlu0 %v1298
        %v1300 = vpop.xlane.xlu0 %1299
        %v1301 = vsub.f32 %v1293, %v1300
        %v1302 = vmul.f32 %v1301, 1.442695
        %v1303 = vpow.pop %v1302
        %v1304 = vsel %vm1018, %v1303, 0.0
        %1305 = vadd.xlane.f32.xlu0 %v1304
        %v1306 = vpop.xlane.xlu0 %1305
        %v1307 = vrcp.pop %v1306
        %v1308 = vmul.f32 %v1303, %v1307
        %v1309 = vpack.c.bf16 %v1308, %v1308
        %1310 = vrot.lane.b32.xlu0 %v1008, 48
        %v1311 = vpop.permute.xlu0 %1310
        %v1313 = vsel %vm1018, %v1309, 0
        %v1316 = vsel %vm1082, %v1311, 0
        %1318 = vmatprep.subr.bf16.mxu0 0
        %1319 = vmatpush1.bf16.msra.mxu0 0
        %1320 = vmatprep.subr.bf16.mxu0 0
        %1321 = vmatpush1.bf16.msra.mxu0 0
        %1322 = vmatprep.subr.bf16.mxu0 0
        %1323 = vmatpush1.bf16.msra.mxu0 0
        %1324 = vmatprep.subr.bf16.mxu0 0
        %1325 = vmatpush1.bf16.msra.mxu0 0
        %1326 = vmatprep.subr.bf16.mxu0 0
        %1327 = vmatpush1.bf16.msra.mxu0 0
        %1328 = vmatprep.subr.bf16.mxu0 0
        %1329 = vmatpush1.bf16.msra.mxu0 0
        %1330 = vmatprep.subr.bf16.mxu0 0
        %1331 = vmatpush1.bf16.msra.mxu0 0
        %1332 = vmatprep.subr.bf16.mxu0 0
        %1333 = vmatpush1.bf16.msra.mxu0 %v1316
        %1334 = vmatprep.subr.bf16.mxu0 0
        %1335 = vmatpush2.bf16.msra.mxu0 0
        %1336 = vmatprep.subr.bf16.mxu0 0
        %1337 = vmatpush2.bf16.msra.mxu0 0
        %1338 = vmatprep.subr.bf16.mxu0 0
        %1339 = vmatpush2.bf16.msra.mxu0 0
        %1340 = vmatprep.subr.bf16.mxu0 0
        %1341 = vmatpush2.bf16.msra.mxu0 0
        %1342 = vmatprep.subr.bf16.mxu0 0
        %1343 = vmatpush2.bf16.msra.mxu0 0
        %1344 = vmatprep.subr.bf16.mxu0 0
        %1345 = vmatpush2.bf16.msra.mxu0 0
        %1346 = vmatprep.subr.bf16.mxu0 0
        %1347 = vmatpush2.bf16.msra.mxu0 0
        %1348 = vmatprep.subr.bf16.mxu0 0
        %1349 = vmatpush2.bf16.msra.mxu0 0
        %1350 = vmatprep.mubr.bf16.mxu0 0
        %1351 = vmatmul.mubr.bf16.gmra.mxu0 %v1313
        %v1352 = vpop.f32.mrf.mxu0
        %v1353 = vadd.f32 0.0, %v1352
        %v1354 = vpop.f32.mrf.mxu0
        %v1355 = vpop.f32.mrf.mxu0
        %v1356 = vpop.f32.mrf.mxu0
        %1357 = vdwg.mxu0
        %v1358 = vpack.c.bf16 %v1353, %v1353
        %v1360 = vunpack.c.l.b16 %v1358
        %v1361 = vpack.c.b16 %v1360, %v1360
        %1362 = vrot.lane.b32.xlu0 %v1361, 16
        %v1363 = vpop.permute.xlu0 %1362
        %vm1365 = vcmask 191616
        %1366 = vst.msk [vmem:[#allocation2] sm:$0xf] %vm1365, %v1363
        %1367 = vrot.lane.b32.xlu0 %v1008, 104
        %v1368 = vpop.permute.xlu0 %1367
        %1369 = vrot.lane.b32.xlu0 %v1008, 72
        %v1370 = vpop.permute.xlu0 %1369
        %v1372 = vsel %vm1018, %v1368, 0
        %v1375 = vsel %vm1018, %v1370, 0
        %1377 = vmatprep.subr.bf16.mxu0 0
        %1378 = vmatpush1.bf16.xpose.msra.mxu0 0
        %1379 = vmatprep.subr.bf16.mxu0 0
        %1380 = vmatpush1.bf16.xpose.msra.mxu0 0
        %1381 = vmatprep.subr.bf16.mxu0 0
        %1382 = vmatpush1.bf16.xpose.msra.mxu0 0
        %1383 = vmatprep.subr.bf16.mxu0 0
        %1384 = vmatpush1.bf16.xpose.msra.mxu0 0
        %1385 = vmatprep.subr.bf16.mxu0 0
        %1386 = vmatpush1.bf16.xpose.msra.mxu0 0
        %1387 = vmatprep.subr.bf16.mxu0 0
        %1388 = vmatpush1.bf16.xpose.msra.mxu0 0
        %1389 = vmatprep.subr.bf16.mxu0 0
        %1390 = vmatpush1.bf16.xpose.msra.mxu0 0
        %1391 = vmatprep.subr.bf16.mxu0 0
        %1392 = vmatpush1.bf16.xpose.msra.mxu0 %v1375
        %1393 = vmatprep.subr.bf16.mxu0 0
        %1394 = vmatpush2.bf16.xpose.msra.mxu0 0
        %1395 = vmatprep.subr.bf16.mxu0 0
        %1396 = vmatpush2.bf16.xpose.msra.mxu0 0
        %1397 = vmatprep.subr.bf16.mxu0 0
        %1398 = vmatpush2.bf16.xpose.msra.mxu0 0
        %1399 = vmatprep.subr.bf16.mxu0 0
        %1400 = vmatpush2.bf16.xpose.msra.mxu0 0
        %1401 = vmatprep.subr.bf16.mxu0 0
        %1402 = vmatpush2.bf16.xpose.msra.mxu0 0
        %1403 = vmatprep.subr.bf16.mxu0 0
        %1404 = vmatpush2.bf16.xpose.msra.mxu0 0
        %1405 = vmatprep.subr.bf16.mxu0 0
        %1406 = vmatpush2.bf16.xpose.msra.mxu0 0
        %1407 = vmatprep.subr.bf16.mxu0 0
        %1408 = vmatpush2.bf16.xpose.msra.mxu0 0
        %1409 = vmatprep.mubr.bf16.mxu0 0
        %1410 = vmatmul.mubr.bf16.gmra.mxu0 %v1372
        %v1411 = vpop.f32.mrf.mxu0
        %v1412 = vadd.f32 %v1014, %v1411
        %v1413 = vpop.f32.mrf.mxu0
        %v1414 = vpop.f32.mrf.mxu0
        %v1415 = vpop.f32.mrf.mxu0
        %1416 = vdwg.mxu0
        %v1417 = vsel %vm1018, %v1412, -inf
        %1418 = vmax.xlane.f32.xlu0 %v1417
        %v1419 = vpop.xlane.xlu0 %1418
        %v1420 = vsub.f32 %v1412, %v1419
        %v1421 = vmul.f32 %v1420, 1.442695
        %v1422 = vpow.pop %v1421
        %v1423 = vsel %vm1018, %v1422, 0.0
        %1424 = vadd.xlane.f32.xlu0 %v1423
        %v1425 = vpop.xlane.xlu0 %1424
        %v1426 = vrcp.pop %v1425
        %v1427 = vmul.f32 %v1422, %v1426
        %v1428 = vpack.c.bf16 %v1427, %v1427
        %1429 = vrot.lane.b32.xlu0 %v1008, 40
        %v1430 = vpop.permute.xlu0 %1429
        %v1432 = vsel %vm1018, %v1428, 0
        %v1435 = vsel %vm1082, %v1430, 0
        %1437 = vmatprep.subr.bf16.mxu0 0
        %1438 = vmatpush1.bf16.msra.mxu0 0
        %1439 = vmatprep.subr.bf16.mxu0 0
        %1440 = vmatpush1.bf16.msra.mxu0 0
        %1441 = vmatprep.subr.bf16.mxu0 0
        %1442 = vmatpush1.bf16.msra.mxu0 0
        %1443 = vmatprep.subr.bf16.mxu0 0
        %1444 = vmatpush1.bf16.msra.mxu0 0
        %1445 = vmatprep.subr.bf16.mxu0 0
        %1446 = vmatpush1.bf16.msra.mxu0 0
        %1447 = vmatprep.subr.bf16.mxu0 0
        %1448 = vmatpush1.bf16.msra.mxu0 0
        %1449 = vmatprep.subr.bf16.mxu0 0
        %1450 = vmatpush1.bf16.msra.mxu0 0
        %1451 = vmatprep.subr.bf16.mxu0 0
        %1452 = vmatpush1.bf16.msra.mxu0 %v1435
        %1453 = vmatprep.subr.bf16.mxu0 0
        %1454 = vmatpush2.bf16.msra.mxu0 0
        %1455 = vmatprep.subr.bf16.mxu0 0
        %1456 = vmatpush2.bf16.msra.mxu0 0
        %1457 = vmatprep.subr.bf16.mxu0 0
        %1458 = vmatpush2.bf16.msra.mxu0 0
        %1459 = vmatprep.subr.bf16.mxu0 0
        %1460 = vmatpush2.bf16.msra.mxu0 0
        %1461 = vmatprep.subr.bf16.mxu0 0
        %1462 = vmatpush2.bf16.msra.mxu0 0
        %1463 = vmatprep.subr.bf16.mxu0 0
        %1464 = vmatpush2.bf16.msra.mxu0 0
        %1465 = vmatprep.subr.bf16.mxu0 0
        %1466 = vmatpush2.bf16.msra.mxu0 0
        %1467 = vmatprep.subr.bf16.mxu0 0
        %1468 = vmatpush2.bf16.msra.mxu0 0
        %1469 = vmatprep.mubr.bf16.mxu0 0
        %1470 = vmatmul.mubr.bf16.gmra.mxu0 %v1432
        %v1471 = vpop.f32.mrf.mxu0
        %v1472 = vadd.f32 0.0, %v1471
        %v1473 = vpop.f32.mrf.mxu0
        %v1474 = vpop.f32.mrf.mxu0
        %v1475 = vpop.f32.mrf.mxu0
        %1476 = vdwg.mxu0
        %v1477 = vpack.c.bf16 %v1472, %v1472
        %v1479 = vunpack.c.l.b16 %v1477
        %v1480 = vpack.c.b16 %v1479, %v1479
        %1481 = vrot.lane.b32.xlu0 %v1480, 24
        %v1482 = vpop.permute.xlu0 %1481
        %vm1484 = vcmask 257216
        %1485 = vst.msk [vmem:[#allocation2] sm:$0xf] %vm1484, %v1482
        %v1486 = vld [vmem:[#allocation2] sm:$0xf]
        %v1487 = vld [vmem:[#allocation8] sm:$0xf]
        %v1488 = vld [vmem:[#allocation8 + $0x4] sm:$0xf]
        %v1489 = vld [vmem:[#allocation8 + $0x8] sm:$0xf]
        %v1490 = vld [vmem:[#allocation8 + $0xc] sm:$0xf]
        %v1491 = vld [vmem:[#allocation9] sm:$0x1]
        %v1493 = vlaneseq
        %v1494 = vshrl.u32 %v1493, 7
        %v1495 = vsub.s32 0, %v1494
        %v1496 = vrot.slane %v1491, %v1495
        %v1502 = vunpack.c.l.b16 %v1487
        %v1503 = vunpack.c.l.b16 %v1488
        %v1504 = vunpack.c.l.b16 %v1489
        %v1505 = vunpack.c.l.b16 %v1490
        %v1506 = vpack.c.b16 %v1503, %v1502
        %v1507 = vpack.c.b16 %v1505, %v1504
        %v1511 = vsel %vm964, %v1486, 0
        %1513 = vmatprep.subr.bf16.mxu0 0
        %1514 = vmatpush1.bf16.msra.mxu0 0
        %1515 = vmatprep.subr.bf16.mxu0 0
        %1516 = vmatpush1.bf16.msra.mxu0 0
        %1517 = vmatprep.subr.bf16.mxu0 0
        %1518 = vmatpush1.bf16.msra.mxu0 0
        %1519 = vmatprep.subr.bf16.mxu0 0
        %1520 = vmatpush1.bf16.msra.mxu0 0
        %1521 = vmatprep.subr.bf16.mxu0 0
        %1522 = vmatpush1.bf16.msra.mxu0 0
        %1523 = vmatprep.subr.bf16.mxu0 0
        %1524 = vmatpush1.bf16.msra.mxu0 0
        %1525 = vmatprep.subr.bf16.mxu0 0
        %1526 = vmatpush1.bf16.msra.mxu0 %v1507
        %1527 = vmatprep.subr.bf16.mxu0 0
        %1528 = vmatpush1.bf16.msra.mxu0 %v1506
        %1529 = vmatprep.subr.bf16.mxu0 0
        %1530 = vmatpush2.bf16.msra.mxu0 0
        %1531 = vmatprep.subr.bf16.mxu0 0
        %1532 = vmatpush2.bf16.msra.mxu0 0
        %1533 = vmatprep.subr.bf16.mxu0 0
        %1534 = vmatpush2.bf16.msra.mxu0 0
        %1535 = vmatprep.subr.bf16.mxu0 0
        %1536 = vmatpush2.bf16.msra.mxu0 0
        %1537 = vmatprep.subr.bf16.mxu0 0
        %1538 = vmatpush2.bf16.msra.mxu0 0
        %1539 = vmatprep.subr.bf16.mxu0 0
        %1540 = vmatpush2.bf16.msra.mxu0 0
        %1541 = vmatprep.subr.bf16.mxu0 0
        %1542 = vmatpush2.bf16.msra.mxu0 0
        %1543 = vmatprep.subr.bf16.mxu0 0
        %1544 = vmatpush2.bf16.msra.mxu0 0
        %1545 = vmatprep.mubr.bf16.mxu0 0
        %1546 = vmatmul.mubr.bf16.gmra.mxu0 %v1511
        %v1547 = vpop.f32.mrf.mxu0
        %v1548 = vadd.f32 %v1496, %v1547
        %v1549 = vpop.f32.mrf.mxu0
        %v1550 = vpop.f32.mrf.mxu0
        %v1551 = vpop.f32.mrf.mxu0
        %1552 = vdwg.mxu0
        %v1553 = vadd.f32 %v1548, %v936
        %v1554 = vld [vmem:[#allocation11] sm:$0x1]
        %v1555 = vld [vmem:[#allocation12] sm:$0x1]
        %v1556 = vsel %vm964, %v1553, 0.0
        %1557 = vadd.xlane.f32.xlu0 %v1556
        %v1558 = vpop.xlane.xlu0 %1557
        %v1559 = vrcp.pop 32.0
        %v1560 = vmul.f32 %v1558, %v1559
        %v1561 = vsub.f32 %v1553, %v1560
        %v1562 = vmul.f32 %v1561, %v1561
        %v1563 = vsel %vm964, %v1562, 0.0
        %1564 = vadd.xlane.f32.xlu0 %v1563
        %v1565 = vpop.xlane.xlu0 %1564
        %v1566 = vmul.f32 %v1565, %v1559
        %v1567 = vadd.f32 %v1566, 1e-05
        %v1568 = vrsqrt.pop %v1567
        %v1569 = vmul.f32 %v1561, %v1568
        %v1571 = vlaneseq
        %v1572 = vshrl.u32 %v1571, 7
        %v1573 = vsub.s32 0, %v1572
        %v1574 = vrot.slane %v1554, %v1573
        %v1576 = vmul.f32 %v1569, %v1574
        %v1578 = vlaneseq
        %v1579 = vshrl.u32 %v1578, 7
        %v1580 = vsub.s32 0, %v1579
        %v1581 = vrot.slane %v1555, %v1580
        %v1583 = vadd.f32 %v1576, %v1581
        %v1584 = vpack.c.bf16 %v1583, %v1583
        %v1585 = vld [vmem:[#allocation14] sm:$0xf]
        %v1586 = vld [vmem:[#allocation14 + $0x4] sm:$0xf]
        %v1587 = vld [vmem:[#allocation14 + $0x8] sm:$0xf]
        %v1588 = vld [vmem:[#allocation14 + $0xc] sm:$0xf]
        %v1589 = vld [vmem:[#allocation15] sm:$0x1]
        %v1591 = vlaneseq
        %v1592 = vshrl.u32 %v1591, 7
        %v1593 = vsub.s32 0, %v1592
        %v1594 = vrot.slane %v1589, %v1593
        %v1600 = vunpack.c.l.b16 %v1585
        %v1601 = vunpack.c.l.b16 %v1586
        %v1602 = vunpack.c.l.b16 %v1587
        %v1603 = vunpack.c.l.b16 %v1588
        %v1604 = vpack.c.b16 %v1601, %v1600
        %v1605 = vpack.c.b16 %v1603, %v1602
        %v1609 = vsel %vm964, %v1584, 0
        %1611 = vmatprep.subr.bf16.mxu0 0
        %1612 = vmatpush1.bf16.msra.mxu0 0
        %1613 = vmatprep.subr.bf16.mxu0 0
        %1614 = vmatpush1.bf16.msra.mxu0 0
        %1615 = vmatprep.subr.bf16.mxu0 0
        %1616 = vmatpush1.bf16.msra.mxu0 0
        %1617 = vmatprep.subr.bf16.mxu0 0
        %1618 = vmatpush1.bf16.msra.mxu0 0
        %1619 = vmatprep.subr.bf16.mxu0 0
        %1620 = vmatpush1.bf16.msra.mxu0 0
        %1621 = vmatprep.subr.bf16.mxu0 0
        %1622 = vmatpush1.bf16.msra.mxu0 0
        %1623 = vmatprep.subr.bf16.mxu0 0
        %1624 = vmatpush1.bf16.msra.mxu0 %v1605
        %1625 = vmatprep.subr.bf16.mxu0 0
        %1626 = vmatpush1.bf16.msra.mxu0 %v1604
        %1627 = vmatprep.subr.bf16.mxu0 0
        %1628 = vmatpush2.bf16.msra.mxu0 0
        %1629 = vmatprep.subr.bf16.mxu0 0
        %1630 = vmatpush2.bf16.msra.mxu0 0
        %1631 = vmatprep.subr.bf16.mxu0 0
        %1632 = vmatpush2.bf16.msra.mxu0 0
        %1633 = vmatprep.subr.bf16.mxu0 0
        %1634 = vmatpush2.bf16.msra.mxu0 0
        %1635 = vmatprep.subr.bf16.mxu0 0
        %1636 = vmatpush2.bf16.msra.mxu0 0
        %1637 = vmatprep.subr.bf16.mxu0 0
        %1638 = vmatpush2.bf16.msra.mxu0 0
        %1639 = vmatprep.subr.bf16.mxu0 0
        %1640 = vmatpush2.bf16.msra.mxu0 0
        %1641 = vmatprep.subr.bf16.mxu0 0
        %1642 = vmatpush2.bf16.msra.mxu0 0
        %1643 = vmatprep.mubr.bf16.mxu0 0
        %1644 = vmatmul.mubr.bf16.gmra.mxu0 %v1609
        %v1645 = vpop.f32.mrf.mxu0
        %v1646 = vadd.f32 %v1594, %v1645
        %v1647 = vpop.f32.mrf.mxu0
        %v1648 = vpop.f32.mrf.mxu0
        %v1649 = vpop.f32.mrf.mxu0
        %1650 = vdwg.mxu0
        %v1651 = vld [vmem:[%s10] sm:$0xf]
        %v1652 = vld [vmem:[%s10 + $0x4] sm:$0xf]
        %v1653 = vld [vmem:[%s10 + $0x8] sm:$0xf]
        %v1654 = vld [vmem:[%s10 + $0xc] sm:$0xf]
        %v1655 = vld [vmem:[#allocation17] sm:$0x1]
        %v1657 = vlaneseq
        %v1658 = vshrl.u32 %v1657, 7
        %v1659 = vsub.s32 0, %v1658
        %v1660 = vrot.slane %v1655, %v1659
        %v1666 = vunpack.c.l.b16 %v1651
        %v1667 = vunpack.c.l.b16 %v1652
        %v1668 = vunpack.c.l.b16 %v1653
        %v1669 = vunpack.c.l.b16 %v1654
        %v1670 = vpack.c.b16 %v1667, %v1666
        %v1671 = vpack.c.b16 %v1669, %v1668
        %v1675 = vsel %vm964, %v939, 0
        %1677 = vmatprep.subr.bf16.mxu0 0
        %1678 = vmatpush1.bf16.msra.mxu0 0
        %1679 = vmatprep.subr.bf16.mxu0 0
        %1680 = vmatpush1.bf16.msra.mxu0 0
        %1681 = vmatprep.subr.bf16.mxu0 0
        %1682 = vmatpush1.bf16.msra.mxu0 0
        %1683 = vmatprep.subr.bf16.mxu0 0
        %1684 = vmatpush1.bf16.msra.mxu0 0
        %1685 = vmatprep.subr.bf16.mxu0 0
        %1686 = vmatpush1.bf16.msra.mxu0 0
        %1687 = vmatprep.subr.bf16.mxu0 0
        %1688 = vmatpush1.bf16.msra.mxu0 0
        %1689 = vmatprep.subr.bf16.mxu0 0
        %1690 = vmatpush1.bf16.msra.mxu0 %v1671
        %1691 = vmatprep.subr.bf16.mxu0 0
        %1692 = vmatpush1.bf16.msra.mxu0 %v1670
        %1693 = vmatprep.subr.bf16.mxu0 0
        %1694 = vmatpush2.bf16.msra.mxu0 0
        %1695 = vmatprep.subr.bf16.mxu0 0
        %1696 = vmatpush2.bf16.msra.mxu0 0
        %1697 = vmatprep.subr.bf16.mxu0 0
        %1698 = vmatpush2.bf16.msra.mxu0 0
        %1699 = vmatprep.subr.bf16.mxu0 0
        %1700 = vmatpush2.bf16.msra.mxu0 0
        %1701 = vmatprep.subr.bf16.mxu0 0
        %1702 = vmatpush2.bf16.msra.mxu0 0
        %1703 = vmatprep.subr.bf16.mxu0 0
        %1704 = vmatpush2.bf16.msra.mxu0 0
        %1705 = vmatprep.subr.bf16.mxu0 0
        %1706 = vmatpush2.bf16.msra.mxu0 0
        %1707 = vmatprep.subr.bf16.mxu0 0
        %1708 = vmatpush2.bf16.msra.mxu0 0
        %1709 = vmatprep.mubr.bf16.mxu0 0
        %1710 = vmatmul.mubr.bf16.gmra.mxu0 %v1675
        %v1711 = vpop.f32.mrf.mxu0
        %v1712 = vadd.f32 %v1660, %v1711
        %v1713 = vpop.f32.mrf.mxu0
        %v1714 = vpop.f32.mrf.mxu0
        %v1715 = vadd.f32 %v1660, %v1714
        %v1716 = vpop.f32.mrf.mxu0
        %1717 = vdwg.mxu0
        %v1718 = vpack.c.bf16 %v1646, %v1646
        %v1719 = vpack.c.bf16 %v1715, %v1712
        %v1721 = vsel %vm1018, %v1718, 0
        %v1724 = vsel %vm1018, %v1719, 0
        %1726 = vmatprep.subr.bf16.mxu0 0
        %1727 = vmatpush1.bf16.xpose.msra.mxu0 0
        %1728 = vmatprep.subr.bf16.mxu0 0
        %1729 = vmatpush1.bf16.xpose.msra.mxu0 0
        %1730 = vmatprep.subr.bf16.mxu0 0
        %1731 = vmatpush1.bf16.xpose.msra.mxu0 0
        %1732 = vmatprep.subr.bf16.mxu0 0
        %1733 = vmatpush1.bf16.xpose.msra.mxu0 0
        %1734 = vmatprep.subr.bf16.mxu0 0
        %1735 = vmatpush1.bf16.xpose.msra.mxu0 0
        %1736 = vmatprep.subr.bf16.mxu0 0
        %1737 = vmatpush1.bf16.xpose.msra.mxu0 0
        %1738 = vmatprep.subr.bf16.mxu0 0
        %1739 = vmatpush1.bf16.xpose.msra.mxu0 0
        %1740 = vmatprep.subr.bf16.mxu0 0
        %1741 = vmatpush1.bf16.xpose.msra.mxu0 %v1724
        %1742 = vmatprep.subr.bf16.mxu0 0
        %1743 = vmatpush2.bf16.xpose.msra.mxu0 0
        %1744 = vmatprep.subr.bf16.mxu0 0
        %1745 = vmatpush2.bf16.xpose.msra.mxu0 0
        %1746 = vmatprep.subr.bf16.mxu0 0
        %1747 = vmatpush2.bf16.xpose.msra.mxu0 0
        %1748 = vmatprep.subr.bf16.mxu0 0
        %1749 = vmatpush2.bf16.xpose.msra.mxu0 0
        %1750 = vmatprep.subr.bf16.mxu0 0
        %1751 = vmatpush2.bf16.xpose.msra.mxu0 0
        %1752 = vmatprep.subr.bf16.mxu0 0
        %1753 = vmatpush2.bf16.xpose.msra.mxu0 0
        %1754 = vmatprep.subr.bf16.mxu0 0
        %1755 = vmatpush2.bf16.xpose.msra.mxu0 0
        %1756 = vmatprep.subr.bf16.mxu0 0
        %1757 = vmatpush2.bf16.xpose.msra.mxu0 0
        %1758 = vmatprep.mubr.bf16.mxu0 0
        %1759 = vmatmul.mubr.bf16.gmra.mxu0 %v1721
        %v1760 = vpop.f32.mrf.mxu0
        %v1761 = vadd.f32 0.0, %v1760
        %v1762 = vpop.f32.mrf.mxu0
        %v1763 = vpop.f32.mrf.mxu0
        %v1764 = vpop.f32.mrf.mxu0
        %1765 = vdwg.mxu0
        %vm1766 = vcmask 130048
        %v1767 = vsel %vm1766, %v1761, -inf
        %1768 = vmax.xlane.f32.xlu0 %v1767
        %v1769 = vpop.xlane.xlu0 %1768
        %v1770 = vsub.f32 %v1761, %v1769
        %v1771 = vmul.f32 %v1770, 1.442695
        %v1772 = vpow.pop %v1771
        %v1773 = vsel %vm1766, %v1772, 0.0
        %1774 = vadd.xlane.f32.xlu0 %v1773
        %v1775 = vpop.xlane.xlu0 %1774
        %v1776 = vrcp.pop %v1775
        %v1777 = vmul.f32 %v1772, %v1776
        %v1778 = vadd.f32 %v1777, 0.0
        %v1779 = vpack.c.bf16 %v1777, %v1777
        %1781 = vrot.lane.b32.xlu0 %v1719, 96
        %v1782 = vpop.permute.xlu0 %1781
        %v1785 = vsel %vm1766, %v1779, 0
        %1787 = vmatprep.subr.bf16.mxu0 0
        %1788 = vmatpush1.bf16.msra.mxu0 0
        %1789 = vmatprep.subr.bf16.mxu0 0
        %1790 = vmatpush1.bf16.msra.mxu0 0
        %1791 = vmatprep.subr.bf16.mxu0 0
        %1792 = vmatpush1.bf16.msra.mxu0 0
        %1793 = vmatprep.subr.bf16.mxu0 0
        %1794 = vmatpush1.bf16.msra.mxu0 0
        %1795 = vmatprep.subr.bf16.mxu0 0
        %1796 = vmatpush1.bf16.msra.mxu0 0
        %1797 = vmatprep.subr.bf16.mxu0 0
        %1798 = vmatpush1.bf16.msra.mxu0 0
        %1799 = vmatprep.subr.bf16.mxu0 0
        %1800 = vmatpush1.bf16.msra.mxu0 0
        %1801 = vmatprep.subr.bf16.mxu0 0
        %1802 = vmatpush1.bf16.msra.mxu0 %v1782
        %1803 = vmatprep.subr.bf16.mxu0 0
        %1804 = vmatpush2.bf16.msra.mxu0 0
        %1805 = vmatprep.subr.bf16.mxu0 0
        %1806 = vmatpush2.bf16.msra.mxu0 0
        %1807 = vmatprep.subr.bf16.mxu0 0
        %1808 = vmatpush2.bf16.msra.mxu0 0
        %1809 = vmatprep.subr.bf16.mxu0 0
        %1810 = vmatpush2.bf16.msra.mxu0 0
        %1811 = vmatprep.subr.bf16.mxu0 0
        %1812 = vmatpush2.bf16.msra.mxu0 0
        %1813 = vmatprep.subr.bf16.mxu0 0
        %1814 = vmatpush2.bf16.msra.mxu0 0
        %1815 = vmatprep.subr.bf16.mxu0 0
        %1816 = vmatpush2.bf16.msra.mxu0 0
        %1817 = vmatprep.subr.bf16.mxu0 0
        %1818 = vmatpush2.bf16.msra.mxu0 0
        %1819 = vmatprep.mubr.bf16.mxu0 0
        %1820 = vmatmul.mubr.bf16.gmra.mxu0 %v1785
        %v1821 = vpop.f32.mrf.mxu0
        %v1822 = vadd.f32 0.0, %v1821
        %v1823 = vpop.f32.mrf.mxu0
        %v1824 = vpop.f32.mrf.mxu0
        %v1825 = vpop.f32.mrf.mxu0
        %1826 = vdwg.mxu0
        %v1827 = vpack.c.bf16 %v1822, %v1822
        %1828 = vst.msk [vmem:[#allocation2] sm:$0xf] %vm1127, %v1827
        %1830 = vrot.lane.b32.xlu0 %v1718, 120
        %v1831 = vpop.permute.xlu0 %1830
        %1832 = vrot.lane.b32.xlu0 %v1719, 120
        %v1833 = vpop.permute.xlu0 %1832
        %v1835 = vsel %vm1018, %v1831, 0
        %v1838 = vsel %vm1018, %v1833, 0
        %1840 = vmatprep.subr.bf16.mxu0 0
        %1841 = vmatpush1.bf16.xpose.msra.mxu0 0
        %1842 = vmatprep.subr.bf16.mxu0 0
        %1843 = vmatpush1.bf16.xpose.msra.mxu0 0
        %1844 = vmatprep.subr.bf16.mxu0 0
        %1845 = vmatpush1.bf16.xpose.msra.mxu0 0
        %1846 = vmatprep.subr.bf16.mxu0 0
        %1847 = vmatpush1.bf16.xpose.msra.mxu0 0
        %1848 = vmatprep.subr.bf16.mxu0 0
        %1849 = vmatpush1.bf16.xpose.msra.mxu0 0
        %1850 = vmatprep.subr.bf16.mxu0 0
        %1851 = vmatpush1.bf16.xpose.msra.mxu0 0
        %1852 = vmatprep.subr.bf16.mxu0 0
        %1853 = vmatpush1.bf16.xpose.msra.mxu0 0
        %1854 = vmatprep.subr.bf16.mxu0 0
        %1855 = vmatpush1.bf16.xpose.msra.mxu0 %v1838
        %1856 = vmatprep.subr.bf16.mxu0 0
        %1857 = vmatpush2.bf16.xpose.msra.mxu0 0
        %1858 = vmatprep.subr.bf16.mxu0 0
        %1859 = vmatpush2.bf16.xpose.msra.mxu0 0
        %1860 = vmatprep.subr.bf16.mxu0 0
        %1861 = vmatpush2.bf16.xpose.msra.mxu0 0
        %1862 = vmatprep.subr.bf16.mxu0 0
        %1863 = vmatpush2.bf16.xpose.msra.mxu0 0
        %1864 = vmatprep.subr.bf16.mxu0 0
        %1865 = vmatpush2.bf16.xpose.msra.mxu0 0
        %1866 = vmatprep.subr.bf16.mxu0 0
        %1867 = vmatpush2.bf16.xpose.msra.mxu0 0
        %1868 = vmatprep.subr.bf16.mxu0 0
        %1869 = vmatpush2.bf16.xpose.msra.mxu0 0
        %1870 = vmatprep.subr.bf16.mxu0 0
        %1871 = vmatpush2.bf16.xpose.msra.mxu0 0
        %1872 = vmatprep.mubr.bf16.mxu0 0
        %1873 = vmatmul.mubr.bf16.gmra.mxu0 %v1835
        %v1874 = vpop.f32.mrf.mxu0
        %v1875 = vadd.f32 0.0, %v1874
        %v1876 = vpop.f32.mrf.mxu0
        %v1877 = vpop.f32.mrf.mxu0
        %v1878 = vpop.f32.mrf.mxu0
        %1879 = vdwg.mxu0
        %v1880 = vsel %vm1766, %v1875, -inf
        %1881 = vmax.xlane.f32.xlu0 %v1880
        %v1882 = vpop.xlane.xlu0 %1881
        %v1883 = vsub.f32 %v1875, %v1882
        %v1884 = vmul.f32 %v1883, 1.442695
        %v1885 = vpow.pop %v1884
        %v1886 = vsel %vm1766, %v1885, 0.0
        %1887 = vadd.xlane.f32.xlu0 %v1886
        %v1888 = vpop.xlane.xlu0 %1887
        %v1889 = vrcp.pop %v1888
        %v1890 = vmul.f32 %v1885, %v1889
        %v1891 = vadd.f32 %v1778, %v1890
        %v1892 = vpack.c.bf16 %v1890, %v1890
        %1893 = vrot.lane.b32.xlu0 %v1719, 88
        %v1894 = vpop.permute.xlu0 %1893
        %v1897 = vsel %vm1766, %v1892, 0
        %1899 = vmatprep.subr.bf16.mxu0 0
        %1900 = vmatpush1.bf16.msra.mxu0 0
        %1901 = vmatprep.subr.bf16.mxu0 0
        %1902 = vmatpush1.bf16.msra.mxu0 0
        %1903 = vmatprep.subr.bf16.mxu0 0
        %1904 = vmatpush1.bf16.msra.mxu0 0
        %1905 = vmatprep.subr.bf16.mxu0 0
        %1906 = vmatpush1.bf16.msra.mxu0 0
        %1907 = vmatprep.subr.bf16.mxu0 0
        %1908 = vmatpush1.bf16.msra.mxu0 0
        %1909 = vmatprep.subr.bf16.mxu0 0
        %1910 = vmatpush1.bf16.msra.mxu0 0
        %1911 = vmatprep.subr.bf16.mxu0 0
        %1912 = vmatpush1.bf16.msra.mxu0 0
        %1913 = vmatprep.subr.bf16.mxu0 0
        %1914 = vmatpush1.bf16.msra.mxu0 %v1894
        %1915 = vmatprep.subr.bf16.mxu0 0
        %1916 = vmatpush2.bf16.msra.mxu0 0
        %1917 = vmatprep.subr.bf16.mxu0 0
        %1918 = vmatpush2.bf16.msra.mxu0 0
        %1919 = vmatprep.subr.bf16.mxu0 0
        %1920 = vmatpush2.bf16.msra.mxu0 0
        %1921 = vmatprep.subr.bf16.mxu0 0
        %1922 = vmatpush2.bf16.msra.mxu0 0
        %1923 = vmatprep.subr.bf16.mxu0 0
        %1924 = vmatpush2.bf16.msra.mxu0 0
        %1925 = vmatprep.subr.bf16.mxu0 0
        %1926 = vmatpush2.bf16.msra.mxu0 0
        %1927 = vmatprep.subr.bf16.mxu0 0
        %1928 = vmatpush2.bf16.msra.mxu0 0
        %1929 = vmatprep.subr.bf16.mxu0 0
        %1930 = vmatpush2.bf16.msra.mxu0 0
        %1931 = vmatprep.mubr.bf16.mxu0 0
        %1932 = vmatmul.mubr.bf16.gmra.mxu0 %v1897
        %v1933 = vpop.f32.mrf.mxu0
        %v1934 = vadd.f32 0.0, %v1933
        %v1935 = vpop.f32.mrf.mxu0
        %v1936 = vpop.f32.mrf.mxu0
        %v1937 = vpop.f32.mrf.mxu0
        %1938 = vdwg.mxu0
        %v1939 = vpack.c.bf16 %v1934, %v1934
        %v1941 = vunpack.c.l.b16 %v1939
        %v1942 = vpack.c.b16 %v1941, %v1941
        %1943 = vrot.lane.b32.xlu0 %v1942, 8
        %v1944 = vpop.permute.xlu0 %1943
        %1946 = vst.msk [vmem:[#allocation2] sm:$0xf] %vm1246, %v1944
        %1947 = vrot.lane.b32.xlu0 %v1718, 112
        %v1948 = vpop.permute.xlu0 %1947
        %1949 = vrot.lane.b32.xlu0 %v1719, 112
        %v1950 = vpop.permute.xlu0 %1949
        %v1952 = vsel %vm1018, %v1948, 0
        %v1955 = vsel %vm1018, %v1950, 0
        %1957 = vmatprep.subr.bf16.mxu0 0
        %1958 = vmatpush1.bf16.xpose.msra.mxu0 0
        %1959 = vmatprep.subr.bf16.mxu0 0
        %1960 = vmatpush1.bf16.xpose.msra.mxu0 0
        %1961 = vmatprep.subr.bf16.mxu0 0
        %1962 = vmatpush1.bf16.xpose.msra.mxu0 0
        %1963 = vmatprep.subr.bf16.mxu0 0
        %1964 = vmatpush1.bf16.xpose.msra.mxu0 0
        %1965 = vmatprep.subr.bf16.mxu0 0
        %1966 = vmatpush1.bf16.xpose.msra.mxu0 0
        %1967 = vmatprep.subr.bf16.mxu0 0
        %1968 = vmatpush1.bf16.xpose.msra.mxu0 0
        %1969 = vmatprep.subr.bf16.mxu0 0
        %1970 = vmatpush1.bf16.xpose.msra.mxu0 0
        %1971 = vmatprep.subr.bf16.mxu0 0
        %1972 = vmatpush1.bf16.xpose.msra.mxu0 %v1955
        %1973 = vmatprep.subr.bf16.mxu0 0
        %1974 = vmatpush2.bf16.xpose.msra.mxu0 0
        %1975 = vmatprep.subr.bf16.mxu0 0
        %1976 = vmatpush2.bf16.xpose.msra.mxu0 0
        %1977 = vmatprep.subr.bf16.mxu0 0
        %1978 = vmatpush2.bf16.xpose.msra.mxu0 0
        %1979 = vmatprep.subr.bf16.mxu0 0
        %1980 = vmatpush2.bf16.xpose.msra.mxu0 0
        %1981 = vmatprep.subr.bf16.mxu0 0
        %1982 = vmatpush2.bf16.xpose.msra.mxu0 0
        %1983 = vmatprep.subr.bf16.mxu0 0
        %1984 = vmatpush2.bf16.xpose.msra.mxu0 0
        %1985 = vmatprep.subr.bf16.mxu0 0
        %1986 = vmatpush2.bf16.xpose.msra.mxu0 0
        %1987 = vmatprep.subr.bf16.mxu0 0
        %1988 = vmatpush2.bf16.xpose.msra.mxu0 0
        %1989 = vmatprep.mubr.bf16.mxu0 0
        %1990 = vmatmul.mubr.bf16.gmra.mxu0 %v1952
        %v1991 = vpop.f32.mrf.mxu0
        %v1992 = vadd.f32 0.0, %v1991
        %v1993 = vpop.f32.mrf.mxu0
        %v1994 = vpop.f32.mrf.mxu0
        %v1995 = vpop.f32.mrf.mxu0
        %1996 = vdwg.mxu0
        %v1997 = vsel %vm1766, %v1992, -inf
        %1998 = vmax.xlane.f32.xlu0 %v1997
        %v1999 = vpop.xlane.xlu0 %1998
        %v2000 = vsub.f32 %v1992, %v1999
        %v2001 = vmul.f32 %v2000, 1.442695
        %v2002 = vpow.pop %v2001
        %v2003 = vsel %vm1766, %v2002, 0.0
        %2004 = vadd.xlane.f32.xlu0 %v2003
        %v2005 = vpop.xlane.xlu0 %2004
        %v2006 = vrcp.pop %v2005
        %v2007 = vmul.f32 %v2002, %v2006
        %v2008 = vadd.f32 %v1891, %v2007
        %v2009 = vpack.c.bf16 %v2007, %v2007
        %2010 = vrot.lane.b32.xlu0 %v1719, 80
        %v2011 = vpop.permute.xlu0 %2010
        %v2014 = vsel %vm1766, %v2009, 0
        %2016 = vmatprep.subr.bf16.mxu0 0
        %2017 = vmatpush1.bf16.msra.mxu0 0
        %2018 = vmatprep.subr.bf16.mxu0 0
        %2019 = vmatpush1.bf16.msra.mxu0 0
        %2020 = vmatprep.subr.bf16.mxu0 0
        %2021 = vmatpush1.bf16.msra.mxu0 0
        %2022 = vmatprep.subr.bf16.mxu0 0
        %2023 = vmatpush1.bf16.msra.mxu0 0
        %2024 = vmatprep.subr.bf16.mxu0 0
        %2025 = vmatpush1.bf16.msra.mxu0 0
        %2026 = vmatprep.subr.bf16.mxu0 0
        %2027 = vmatpush1.bf16.msra.mxu0 0
        %2028 = vmatprep.subr.bf16.mxu0 0
        %2029 = vmatpush1.bf16.msra.mxu0 0
        %2030 = vmatprep.subr.bf16.mxu0 0
        %2031 = vmatpush1.bf16.msra.mxu0 %v2011
        %2032 = vmatprep.subr.bf16.mxu0 0
        %2033 = vmatpush2.bf16.msra.mxu0 0
        %2034 = vmatprep.subr.bf16.mxu0 0
        %2035 = vmatpush2.bf16.msra.mxu0 0
        %2036 = vmatprep.subr.bf16.mxu0 0
        %2037 = vmatpush2.bf16.msra.mxu0 0
        %2038 = vmatprep.subr.bf16.mxu0 0
        %2039 = vmatpush2.bf16.msra.mxu0 0
        %2040 = vmatprep.subr.bf16.mxu0 0
        %2041 = vmatpush2.bf16.msra.mxu0 0
        %2042 = vmatprep.subr.bf16.mxu0 0
        %2043 = vmatpush2.bf16.msra.mxu0 0
        %2044 = vmatprep.subr.bf16.mxu0 0
        %2045 = vmatpush2.bf16.msra.mxu0 0
        %2046 = vmatprep.subr.bf16.mxu0 0
        %2047 = vmatpush2.bf16.msra.mxu0 0
        %2048 = vmatprep.mubr.bf16.mxu0 0
        %2049 = vmatmul.mubr.bf16.gmra.mxu0 %v2014
        %v2050 = vpop.f32.mrf.mxu0
        %v2051 = vadd.f32 0.0, %v2050
        %v2052 = vpop.f32.mrf.mxu0
        %v2053 = vpop.f32.mrf.mxu0
        %v2054 = vpop.f32.mrf.mxu0
        %2055 = vdwg.mxu0
        %v2056 = vpack.c.bf16 %v2051, %v2051
        %v2058 = vunpack.c.l.b16 %v2056
        %v2059 = vpack.c.b16 %v2058, %v2058
        %2060 = vrot.lane.b32.xlu0 %v2059, 16
        %v2061 = vpop.permute.xlu0 %2060
        %2063 = vst.msk [vmem:[#allocation2] sm:$0xf] %vm1365, %v2061
        %2064 = vrot.lane.b32.xlu0 %v1718, 104
        %v2065 = vpop.permute.xlu0 %2064
        %2066 = vrot.lane.b32.xlu0 %v1719, 104
        %v2067 = vpop.permute.xlu0 %2066
        %v2069 = vsel %vm1018, %v2065, 0
        %v2072 = vsel %vm1018, %v2067, 0
        %2074 = vmatprep.subr.bf16.mxu0 0
        %2075 = vmatpush1.bf16.xpose.msra.mxu0 0
        %2076 = vmatprep.subr.bf16.mxu0 0
        %2077 = vmatpush1.bf16.xpose.msra.mxu0 0
        %2078 = vmatprep.subr.bf16.mxu0 0
        %2079 = vmatpush1.bf16.xpose.msra.mxu0 0
        %2080 = vmatprep.subr.bf16.mxu0 0
        %2081 = vmatpush1.bf16.xpose.msra.mxu0 0
        %2082 = vmatprep.subr.bf16.mxu0 0
        %2083 = vmatpush1.bf16.xpose.msra.mxu0 0
        %2084 = vmatprep.subr.bf16.mxu0 0
        %2085 = vmatpush1.bf16.xpose.msra.mxu0 0
        %2086 = vmatprep.subr.bf16.mxu0 0
        %2087 = vmatpush1.bf16.xpose.msra.mxu0 0
        %2088 = vmatprep.subr.bf16.mxu0 0
        %2089 = vmatpush1.bf16.xpose.msra.mxu0 %v2072
        %2090 = vmatprep.subr.bf16.mxu0 0
        %2091 = vmatpush2.bf16.xpose.msra.mxu0 0
        %2092 = vmatprep.subr.bf16.mxu0 0
        %2093 = vmatpush2.bf16.xpose.msra.mxu0 0
        %2094 = vmatprep.subr.bf16.mxu0 0
        %2095 = vmatpush2.bf16.xpose.msra.mxu0 0
        %2096 = vmatprep.subr.bf16.mxu0 0
        %2097 = vmatpush2.bf16.xpose.msra.mxu0 0
        %2098 = vmatprep.subr.bf16.mxu0 0
        %2099 = vmatpush2.bf16.xpose.msra.mxu0 0
        %2100 = vmatprep.subr.bf16.mxu0 0
        %2101 = vmatpush2.bf16.xpose.msra.mxu0 0
        %2102 = vmatprep.subr.bf16.mxu0 0
        %2103 = vmatpush2.bf16.xpose.msra.mxu0 0
        %2104 = vmatprep.subr.bf16.mxu0 0
        %2105 = vmatpush2.bf16.xpose.msra.mxu0 0
        %2106 = vmatprep.mubr.bf16.mxu0 0
        %2107 = vmatmul.mubr.bf16.gmra.mxu0 %v2069
        %v2108 = vpop.f32.mrf.mxu0
        %v2109 = vadd.f32 0.0, %v2108
        %v2110 = vpop.f32.mrf.mxu0
        %v2111 = vpop.f32.mrf.mxu0
        %v2112 = vpop.f32.mrf.mxu0
        %2113 = vdwg.mxu0
        %v2114 = vsel %vm1766, %v2109, -inf
        %2115 = vmax.xlane.f32.xlu0 %v2114
        %v2116 = vpop.xlane.xlu0 %2115
        %v2117 = vsub.f32 %v2109, %v2116
        %v2118 = vmul.f32 %v2117, 1.442695
        %v2119 = vpow.pop %v2118
        %v2120 = vsel %vm1766, %v2119, 0.0
        %2121 = vadd.xlane.f32.xlu0 %v2120
        %v2122 = vpop.xlane.xlu0 %2121
        %v2123 = vrcp.pop %v2122
        %v2124 = vmul.f32 %v2119, %v2123
        %v2125 = vadd.f32 %v2008, %v2124
        %v2126 = vpack.c.bf16 %v2124, %v2124
        %2127 = vrot.lane.b32.xlu0 %v1719, 72
        %v2128 = vpop.permute.xlu0 %2127
        %v2131 = vsel %vm1766, %v2126, 0
        %2133 = vmatprep.subr.bf16.mxu0 0
        %2134 = vmatpush1.bf16.msra.mxu0 0
        %2135 = vmatprep.subr.bf16.mxu0 0
        %2136 = vmatpush1.bf16.msra.mxu0 0
        %2137 = vmatprep.subr.bf16.mxu0 0
        %2138 = vmatpush1.bf16.msra.mxu0 0
        %2139 = vmatprep.subr.bf16.mxu0 0
        %2140 = vmatpush1.bf16.msra.mxu0 0
        %2141 = vmatprep.subr.bf16.mxu0 0
        %2142 = vmatpush1.bf16.msra.mxu0 0
        %2143 = vmatprep.subr.bf16.mxu0 0
        %2144 = vmatpush1.bf16.msra.mxu0 0
        %2145 = vmatprep.subr.bf16.mxu0 0
        %2146 = vmatpush1.bf16.msra.mxu0 0
        %2147 = vmatprep.subr.bf16.mxu0 0
        %2148 = vmatpush1.bf16.msra.mxu0 %v2128
        %2149 = vmatprep.subr.bf16.mxu0 0
        %2150 = vmatpush2.bf16.msra.mxu0 0
        %2151 = vmatprep.subr.bf16.mxu0 0
        %2152 = vmatpush2.bf16.msra.mxu0 0
        %2153 = vmatprep.subr.bf16.mxu0 0
        %2154 = vmatpush2.bf16.msra.mxu0 0
        %2155 = vmatprep.subr.bf16.mxu0 0
        %2156 = vmatpush2.bf16.msra.mxu0 0
        %2157 = vmatprep.subr.bf16.mxu0 0
        %2158 = vmatpush2.bf16.msra.mxu0 0
        %2159 = vmatprep.subr.bf16.mxu0 0
        %2160 = vmatpush2.bf16.msra.mxu0 0
        %2161 = vmatprep.subr.bf16.mxu0 0
        %2162 = vmatpush2.bf16.msra.mxu0 0
        %2163 = vmatprep.subr.bf16.mxu0 0
        %2164 = vmatpush2.bf16.msra.mxu0 0
        %2165 = vmatprep.mubr.bf16.mxu0 0
        %2166 = vmatmul.mubr.bf16.gmra.mxu0 %v2131
        %v2167 = vpop.f32.mrf.mxu0
        %v2168 = vadd.f32 0.0, %v2167
        %v2169 = vpop.f32.mrf.mxu0
        %v2170 = vpop.f32.mrf.mxu0
        %v2171 = vpop.f32.mrf.mxu0
        %2172 = vdwg.mxu0
        %v2173 = vpack.c.bf16 %v2168, %v2168
        %v2175 = vunpack.c.l.b16 %v2173
        %v2176 = vpack.c.b16 %v2175, %v2175
        %2177 = vrot.lane.b32.xlu0 %v2176, 24
        %v2178 = vpop.permute.xlu0 %2177
        %2180 = vst.msk [vmem:[#allocation2] sm:$0xf] %vm1484, %v2178
        %v2181 = vld [vmem:[#allocation2] sm:$0xf]
        %v2182 = vld [vmem:[#allocation18] sm:$0xf]
        %v2183 = vld [vmem:[#allocation18 + $0x4] sm:$0xf]
        %v2184 = vld [vmem:[#allocation18 + $0x8] sm:$0xf]
        %v2185 = vld [vmem:[#allocation18 + $0xc] sm:$0xf]
        %v2186 = vld [vmem:[#allocation20] sm:$0x1]
        %v2188 = vlaneseq
        %v2189 = vshrl.u32 %v2188, 7
        %v2190 = vsub.s32 0, %v2189
        %v2191 = vrot.slane %v2186, %v2190
        %v2197 = vunpack.c.l.b16 %v2182
        %v2198 = vunpack.c.l.b16 %v2183
        %v2199 = vunpack.c.l.b16 %v2184
        %v2200 = vunpack.c.l.b16 %v2185
        %v2201 = vpack.c.b16 %v2198, %v2197
        %v2202 = vpack.c.b16 %v2200, %v2199
        %v2206 = vsel %vm964, %v2181, 0
        %2208 = vmatprep.subr.bf16.mxu0 0
        %2209 = vmatpush1.bf16.msra.mxu0 0
        %2210 = vmatprep.subr.bf16.mxu0 0
        %2211 = vmatpush1.bf16.msra.mxu0 0
        %2212 = vmatprep.subr.bf16.mxu0 0
        %2213 = vmatpush1.bf16.msra.mxu0 0
        %2214 = vmatprep.subr.bf16.mxu0 0
        %2215 = vmatpush1.bf16.msra.mxu0 0
        %2216 = vmatprep.subr.bf16.mxu0 0
        %2217 = vmatpush1.bf16.msra.mxu0 0
        %2218 = vmatprep.subr.bf16.mxu0 0
        %2219 = vmatpush1.bf16.msra.mxu0 0
        %2220 = vmatprep.subr.bf16.mxu0 0
        %2221 = vmatpush1.bf16.msra.mxu0 %v2202
        %2222 = vmatprep.subr.bf16.mxu0 0
        %2223 = vmatpush1.bf16.msra.mxu0 %v2201
        %2224 = vmatprep.subr.bf16.mxu0 0
        %2225 = vmatpush2.bf16.msra.mxu0 0
        %2226 = vmatprep.subr.bf16.mxu0 0
        %2227 = vmatpush2.bf16.msra.mxu0 0
        %2228 = vmatprep.subr.bf16.mxu0 0
        %2229 = vmatpush2.bf16.msra.mxu0 0
        %2230 = vmatprep.subr.bf16.mxu0 0
        %2231 = vmatpush2.bf16.msra.mxu0 0
        %2232 = vmatprep.subr.bf16.mxu0 0
        %2233 = vmatpush2.bf16.msra.mxu0 0
        %2234 = vmatprep.subr.bf16.mxu0 0
        %2235 = vmatpush2.bf16.msra.mxu0 0
        %2236 = vmatprep.subr.bf16.mxu0 0
        %2237 = vmatpush2.bf16.msra.mxu0 0
        %2238 = vmatprep.subr.bf16.mxu0 0
        %2239 = vmatpush2.bf16.msra.mxu0 0
        %2240 = vmatprep.mubr.bf16.mxu0 0
        %2241 = vmatmul.mubr.bf16.gmra.mxu0 %v2206
        %v2242 = vpop.f32.mrf.mxu0
        %v2243 = vadd.f32 %v2191, %v2242
        %v2244 = vpop.f32.mrf.mxu0
        %v2245 = vpop.f32.mrf.mxu0
        %v2246 = vpop.f32.mrf.mxu0
        %2247 = vdwg.mxu0
        %v2248 = vmul.f32 %v2125, 0.25
        %v2249 = vadd.f32 %v2243, %v1583
        %v2250 = vld [vmem:[#allocation21] sm:$0x1]
        %v2251 = vld [vmem:[#allocation23] sm:$0x1]
        %v2252 = vsel %vm964, %v2249, 0.0
        %2253 = vadd.xlane.f32.xlu0 %v2252
        %v2254 = vpop.xlane.xlu0 %2253
        %v2255 = vmul.f32 %v2254, %v1559
        %v2256 = vsub.f32 %v2249, %v2255
        %v2257 = vmul.f32 %v2256, %v2256
        %v2258 = vsel %vm964, %v2257, 0.0
        %2259 = vadd.xlane.f32.xlu0 %v2258
        %v2260 = vpop.xlane.xlu0 %2259
        %v2261 = vmul.f32 %v2260, %v1559
        %v2262 = vadd.f32 %v2261, 1e-05
        %v2263 = vrsqrt.pop %v2262
        %v2264 = vmul.f32 %v2256, %v2263
        %v2266 = vlaneseq
        %v2267 = vshrl.u32 %v2266, 7
        %v2268 = vsub.s32 0, %v2267
        %v2269 = vrot.slane %v2250, %v2268
        %v2271 = vmul.f32 %v2264, %v2269
        %v2273 = vlaneseq
        %v2274 = vshrl.u32 %v2273, 7
        %v2275 = vsub.s32 0, %v2274
        %v2276 = vrot.slane %v2251, %v2275
        %v2278 = vadd.f32 %v2271, %v2276
        %v2279 = vpack.c.bf16 %v2278, %v2278
        %v2280 = vld [vmem:[#allocation24] sm:$0xf]
        %v2281 = vld [vmem:[#allocation24 + $0x4] sm:$0xf]
        %v2282 = vld [vmem:[#allocation24 + $0x8] sm:$0xf]
        %v2283 = vld [vmem:[#allocation24 + $0xc] sm:$0xf]
        %v2284 = vld [vmem:[#allocation26] sm:$0x1]
        %v2286 = vlaneseq
        %v2287 = vshrl.u32 %v2286, 7
        %v2288 = vsub.s32 0, %v2287
        %v2289 = vrot.slane %v2284, %v2288
        %v2295 = vunpack.c.l.b16 %v2280
        %v2296 = vunpack.c.l.b16 %v2281
        %v2297 = vunpack.c.l.b16 %v2282
        %v2298 = vunpack.c.l.b16 %v2283
        %v2299 = vpack.c.b16 %v2296, %v2295
        %v2300 = vpack.c.b16 %v2298, %v2297
        %v2304 = vsel %vm964, %v2279, 0
        %2306 = vmatprep.subr.bf16.mxu0 0
        %2307 = vmatpush1.bf16.msra.mxu0 0
        %2308 = vmatprep.subr.bf16.mxu0 0
        %2309 = vmatpush1.bf16.msra.mxu0 0
        %2310 = vmatprep.subr.bf16.mxu0 0
        %2311 = vmatpush1.bf16.msra.mxu0 0
        %2312 = vmatprep.subr.bf16.mxu0 0
        %2313 = vmatpush1.bf16.msra.mxu0 0
        %2314 = vmatprep.subr.bf16.mxu0 0
        %2315 = vmatpush1.bf16.msra.mxu0 0
        %2316 = vmatprep.subr.bf16.mxu0 0
        %2317 = vmatpush1.bf16.msra.mxu0 0
        %2318 = vmatprep.subr.bf16.mxu0 0
        %2319 = vmatpush1.bf16.msra.mxu0 %v2300
        %2320 = vmatprep.subr.bf16.mxu0 0
        %2321 = vmatpush1.bf16.msra.mxu0 %v2299
        %2322 = vmatprep.subr.bf16.mxu0 0
        %2323 = vmatpush2.bf16.msra.mxu0 0
        %2324 = vmatprep.subr.bf16.mxu0 0
        %2325 = vmatpush2.bf16.msra.mxu0 0
        %2326 = vmatprep.subr.bf16.mxu0 0
        %2327 = vmatpush2.bf16.msra.mxu0 0
        %2328 = vmatprep.subr.bf16.mxu0 0
        %2329 = vmatpush2.bf16.msra.mxu0 0
        %2330 = vmatprep.subr.bf16.mxu0 0
        %2331 = vmatpush2.bf16.msra.mxu0 0
        %2332 = vmatprep.subr.bf16.mxu0 0
        %2333 = vmatpush2.bf16.msra.mxu0 0
        %2334 = vmatprep.subr.bf16.mxu0 0
        %2335 = vmatpush2.bf16.msra.mxu0 0
        %2336 = vmatprep.subr.bf16.mxu0 0
        %2337 = vmatpush2.bf16.msra.mxu0 0
        %2338 = vmatprep.mubr.bf16.mxu0 0
        %2339 = vmatmul.mubr.bf16.gmra.mxu0 %v2304
        %v2340 = vpop.f32.mrf.mxu0
        %v2341 = vadd.f32 %v2289, %v2340
        %v2342 = vpop.f32.mrf.mxu0
        %v2343 = vpop.f32.mrf.mxu0
        %v2344 = vpop.f32.mrf.mxu0
        %2345 = vdwg.mxu0
        %v2346 = vmax.f32 %v2341, 0.0
        %v2347 = vpack.c.bf16 %v2346, %v2346
        %v2348 = vld [vmem:[%s18] sm:$0xf]
        %v2349 = vld [vmem:[%s18 + $0x4] sm:$0xf]
        %v2350 = vld [vmem:[%s18 + $0x8] sm:$0xf]
        %v2351 = vld [vmem:[%s18 + $0xc] sm:$0xf]
        %v2352 = vld [vmem:[%s18 + $0x10] sm:$0xf]
        %v2353 = vld [vmem:[%s18 + $0x14] sm:$0xf]
        %v2354 = vld [vmem:[%s18 + $0x18] sm:$0xf]
        %v2355 = vld [vmem:[%s18 + $0x1c] sm:$0xf]
        %v2356 = vld [vmem:[%s19] sm:$0x1]
        %v2358 = vlaneseq
        %v2359 = vshrl.u32 %v2358, 7
        %v2360 = vsub.s32 0, %v2359
        %v2361 = vrot.slane %v2356, %v2360
        %v2371 = vunpack.c.l.b16 %v2348
        %v2372 = vunpack.c.l.b16 %v2349
        %v2373 = vunpack.c.l.b16 %v2350
        %v2374 = vunpack.c.l.b16 %v2351
        %v2375 = vunpack.c.l.b16 %v2352
        %v2376 = vunpack.c.l.b16 %v2353
        %v2377 = vunpack.c.l.b16 %v2354
        %v2378 = vunpack.c.l.b16 %v2355
        %v2379 = vpack.c.b16 %v2372, %v2371
        %v2380 = vpack.c.b16 %v2374, %v2373
        %v2381 = vpack.c.b16 %v2376, %v2375
        %v2382 = vpack.c.b16 %v2378, %v2377
        %vm2387 = vcmask 523264
        %v2389 = vsel %vm2387, %v2347, 0
        %2391 = vmatprep.subr.bf16.mxu0 0
        %2392 = vmatpush1.bf16.msra.mxu0 0
        %2393 = vmatprep.subr.bf16.mxu0 0
        %2394 = vmatpush1.bf16.msra.mxu0 0
        %2395 = vmatprep.subr.bf16.mxu0 0
        %2396 = vmatpush1.bf16.msra.mxu0 0
        %2397 = vmatprep.subr.bf16.mxu0 0
        %2398 = vmatpush1.bf16.msra.mxu0 0
        %2399 = vmatprep.subr.bf16.mxu0 0
        %2400 = vmatpush1.bf16.msra.mxu0 %v2382
        %2401 = vmatprep.subr.bf16.mxu0 0
        %2402 = vmatpush1.bf16.msra.mxu0 %v2381
        %2403 = vmatprep.subr.bf16.mxu0 0
        %2404 = vmatpush1.bf16.msra.mxu0 %v2380
        %2405 = vmatprep.subr.bf16.mxu0 0
        %2406 = vmatpush1.bf16.msra.mxu0 %v2379
        %2407 = vmatprep.subr.bf16.mxu0 0
        %2408 = vmatpush2.bf16.msra.mxu0 0
        %2409 = vmatprep.subr.bf16.mxu0 0
        %2410 = vmatpush2.bf16.msra.mxu0 0
        %2411 = vmatprep.subr.bf16.mxu0 0
        %2412 = vmatpush2.bf16.msra.mxu0 0
        %2413 = vmatprep.subr.bf16.mxu0 0
        %2414 = vmatpush2.bf16.msra.mxu0 0
        %2415 = vmatprep.subr.bf16.mxu0 0
        %2416 = vmatpush2.bf16.msra.mxu0 0
        %2417 = vmatprep.subr.bf16.mxu0 0
        %2418 = vmatpush2.bf16.msra.mxu0 0
        %2419 = vmatprep.subr.bf16.mxu0 0
        %2420 = vmatpush2.bf16.msra.mxu0 0
        %2421 = vmatprep.subr.bf16.mxu0 0
        %2422 = vmatpush2.bf16.msra.mxu0 0
        %2423 = vmatprep.mubr.bf16.mxu0 0
        %2424 = vmatmul.mubr.bf16.gmra.mxu0 %v2389
        %v2425 = vpop.f32.mrf.mxu0
        %v2426 = vadd.f32 %v2361, %v2425
        %v2427 = vpop.f32.mrf.mxu0
        %v2428 = vpop.f32.mrf.mxu0
        %v2429 = vpop.f32.mrf.mxu0
        %2430 = vdwg.mxu0
        %v2431 = vadd.f32 %v2426, %v2278
        %v2432 = vld [vmem:[%s20] sm:$0x1]
        %v2433 = vld [vmem:[%s21] sm:$0x1]
        %v2434 = vsel %vm964, %v2431, 0.0
        %2435 = vadd.xlane.f32.xlu0 %v2434
        %v2436 = vpop.xlane.xlu0 %2435
        %v2437 = vmul.f32 %v2436, %v1559
        %v2438 = vsub.f32 %v2431, %v2437
        %v2439 = vmul.f32 %v2438, %v2438
        %v2440 = vsel %vm964, %v2439, 0.0
        %2441 = vadd.xlane.f32.xlu0 %v2440
        %v2442 = vpop.xlane.xlu0 %2441
        %v2443 = vmul.f32 %v2442, %v1559
        %v2444 = vadd.f32 %v2443, 1e-05
        %v2445 = vrsqrt.pop %v2444
        %v2446 = vmul.f32 %v2438, %v2445
        %v2448 = vlaneseq
        %v2449 = vshrl.u32 %v2448, 7
        %v2450 = vsub.s32 0, %v2449
        %v2451 = vrot.slane %v2432, %v2450
        %v2453 = vmul.f32 %v2446, %v2451
        %v2455 = vlaneseq
        %v2456 = vshrl.u32 %v2455, 7
        %v2457 = vsub.s32 0, %v2456
        %v2458 = vrot.slane %v2433, %v2457
        %v2460 = vadd.f32 %v2453, %v2458
        %2461 = vst.msk [vmem:[%s918] sm:$0xff] %vm964, %v2460
        %v2462 = vpack.c.bf16 %v2248, %v2248
        %vm2463 = vcmask 125952
        %2464 = vst.msk [vmem:[%s925] sm:$0xf] %vm2463, %v2462
        %s2465 = sand.u32 %s529, 1
        %s2466 = scalar_lea.sflag [#allocation5], %s2465
        %s2467 = sand.u32 %s529, 1
        %s2468 = smul.addr %s2467, 8
        %s2469 = scalar_lea.vmem [#allocation27], %s2468
        %s2470 = sand.u32 %s555, 1
        %s2471 = scalar_lea.sflag [#allocation29], %s2470
        %s2472 = sand.u32 %s555, 1
        %s2473 = smul.addr %s2472, 4
        %s2474 = scalar_lea.vmem [#allocation28], %s2473
        // Predicated region
        $region169: #{tpu_custom_call.1} parent=107 // pred_check
          %p2475 = pneg %p539
        $region170: #{tpu_custom_call.1} parent=107 // pred_check_branch
          %2477 = sbr.rel (%p2475) target = $region172
        $region171: #{tpu_custom_call.1} parent=107 // pred_region
          %s2479 = ssub.s32 128, 128
          %2480 = vsyncadd %s2466, %s2479
          %s2481 = smul.addr %s49, 128
          %s2482 = scalar_lea.hbm %s22, %s2481
          %s2484 = sshll.u32 %s2469, 4
          %s2485 = int_to_ptr.vmem [resolvable:$true] %s2484
          %2487 = dma.vmem_to_hbm [thread:$0]  %s2485, 128, %s2482, %s2466
        $region172: #{tpu_custom_call.1} parent=107 // pred_fallthru
          _
        // Predicated region
        $region173: #{tpu_custom_call.1} parent=107 // pred_check
          %p2488 = pneg %p565
        $region174: #{tpu_custom_call.1} parent=107 // pred_check_branch
          %2490 = sbr.rel (%p2488) target = $region176
        $region175: #{tpu_custom_call.1} parent=107 // pred_region
          %s2492 = ssub.s32 64, 64
          %2493 = vsyncadd %s2471, %s2492
          %s2494 = smul.addr %s49, 64
          %s2495 = scalar_lea.hbm %s23, %s2494
          %s2497 = sshll.u32 %s2474, 4
          %s2498 = int_to_ptr.vmem [resolvable:$true] %s2497
          %2500 = dma.vmem_to_hbm [thread:$0]  %s2498, 64, %s2495, %s2471
        $region176: #{tpu_custom_call.1} parent=107 // pred_fallthru
          _
      $region108: #{tpu_custom_call.1} parent=5 // pred_fallthru
        _
      %p2501 = scmp.le.s32.totalorder 2, %s44
      // Predicated region
      $region177: #{tpu_custom_call.1} parent=5 // pred_check
        %p2502 = pneg %p2501
      $region178: #{tpu_custom_call.1} parent=5 // pred_check_branch
        %2504 = sbr.rel (%p2502) target = $region180
      $region179: #{tpu_custom_call.1} parent=5 // pred_region
        %s2505 = ssub.s32 %s44, 2
        // Predicated region
        $region181: #{tpu_custom_call.1} parent=179 // pred_check
          %p2506 = pneg %p545
        $region182: #{tpu_custom_call.1} parent=179 // pred_check_branch
          %2508 = sbr.rel (%p2506) target = $region184
        $region183: #{tpu_custom_call.1} parent=179 // pred_region
          %s2509 = sand.u32 %s530, 1
          %s2510 = scalar_lea.sflag [#allocation5], %s2509
          %s2511 = sand.u32 %s530, 1
          %s2512 = smul.addr %s2511, 8
          %s2513 = scalar_lea.vmem [#allocation27], %s2512
          %2514 = dma.done %s2510, 128
        $region184: #{tpu_custom_call.1} parent=179 // pred_fallthru
          _
        // Predicated region
        $region185: #{tpu_custom_call.1} parent=179 // pred_check
          %p2515 = pneg %p571
        $region186: #{tpu_custom_call.1} parent=179 // pred_check_branch
          %2517 = sbr.rel (%p2515) target = $region188
        $region187: #{tpu_custom_call.1} parent=179 // pred_region
          %s2518 = sand.u32 %s556, 1
          %s2519 = scalar_lea.sflag [#allocation29], %s2518
          %s2520 = sand.u32 %s556, 1
          %s2521 = smul.addr %s2520, 4
          %s2522 = scalar_lea.vmem [#allocation28], %s2521
          %2523 = dma.done %s2519, 64
        $region188: #{tpu_custom_call.1} parent=179 // pred_fallthru
          _
      $region180: #{tpu_custom_call.1} parent=5 // pred_fallthru
        _
    $region6: #{tpu_custom_call.1} parent=1 // loop_footer
      %s48 = sadd.s32 1, %s44
    $region7: #{tpu_custom_call.1} parent=1 // loop_footer_branch
      %43 = sbr.rel target = $region3
    $region8: #{tpu_custom_call.1} parent=1 // loop_exit
      _
    %2524 = vsyncpa [#allocation4], 1
    %s2525 = scalar_lea.sflag [#allocation4], 1
    %2526 = vsyncpa %s2525, 1
    %2527 = vsyncpa [#allocation7], 1
    %2528 = vsyncpa [#allocation10], 1
    %2529 = vsyncpa [#allocation13], 1
    %2530 = vsyncpa [#allocation16], 1
    %2531 = vsyncpa [#allocation19], 1
    %2532 = vsyncpa [#allocation22], 1
    %2533 = vsyncpa [#allocation25], 1
    %2534 = vsyncpa [#allocation5], 1
    %s2535 = scalar_lea.sflag [#allocation5], 1
    %2536 = vsyncpa %s2535, 1
    %2537 = vsyncpa [#allocation29], 1
    %s2538 = scalar_lea.sflag [#allocation29], 1
    %2539 = vsyncpa %s2538, 1

// kernel: tpu_custom_call.1
$region0: #{tpu_custom_call.1}
  #allocation0 [shape = 'u32[]', space=smem, size = 0x4, offset = 0x4, fixed_abs, tag = 'smem constant byte address 0x4 - core index']
  #allocation1 [shape = 'u32[144,128]{1,0:T(1,128)}', space=vmem, size = 0x12000, scoped, tag = 'internal scratch']
  #allocation2 [shape = 'bf16[8,32]{1,0:T(8,128)(2,1)}', space=vmem, size = 0x800, scoped, tag = 'scratch operand']
  %s0 = inlined_call_operand.vmem [shape: f32[2,8,32], index: 0, kind: input, shape index: {}]
  %s1 = inlined_call_operand.vmem [shape: f32[2,16,32], index: 1, kind: input, shape index: {}]
  %s2 = inlined_call_operand.hbm [shape: bf16[32,96], index: 2, kind: input, shape index: {}]
  %s3 = inlined_call_operand.hbm [shape: f32[1,96], index: 3, kind: input, shape index: {}]
  %s4 = inlined_call_operand.hbm [shape: bf16[32,32], index: 4, kind: input, shape index: {}]
  %s5 = inlined_call_operand.hbm [shape: f32[1,32], index: 5, kind: input, shape index: {}]
  %s6 = inlined_call_operand.hbm [shape: f32[1,32], index: 6, kind: input, shape index: {}]
  %s7 = inlined_call_operand.hbm [shape: f32[1,32], index: 7, kind: input, shape index: {}]
  %s8 = inlined_call_operand.hbm [shape: bf16[32,32], index: 8, kind: input, shape index: {}]
  %s9 = inlined_call_operand.hbm [shape: f32[1,32], index: 9, kind: input, shape index: {}]
  %s10 = inlined_call_operand.vmem [shape: bf16[32,64], index: 10, kind: input, shape index: {}]
  %s11 = inlined_call_operand.hbm [shape: f32[1,64], index: 11, kind: input, shape index: {}]
  %s12 = inlined_call_operand.hbm [shape: bf16[32,32], index: 12, kind: input, shape index: {}]
  %s13 = inlined_call_operand.hbm [shape: f32[1,32], index: 13, kind: input, shape index: {}]
  %s14 = inlined_call_operand.hbm [shape: f32[1,32], index: 14, kind: input, shape index: {}]
  %s15 = inlined_call_operand.hbm [shape: f32[1,32], index: 15, kind: input, shape index: {}]
  %s16 = inlined_call_operand.hbm [shape: bf16[32,64], index: 16, kind: input, shape index: {}]
  %s17 = inlined_call_operand.hbm [shape: f32[1,64], index: 17, kind: input, shape index: {}]
  %s18 = inlined_call_operand.vmem [shape: bf16[64,32], index: 18, kind: input, shape index: {}]
  %s19 = inlined_call_operand.vmem [shape: f32[1,32], index: 19, kind: input, shape index: {}]
  %s20 = inlined_call_operand.vmem [shape: f32[1,32], index: 20, kind: input, shape index: {}]
  %s21 = inlined_call_operand.vmem [shape: f32[1,32], index: 21, kind: input, shape index: {}]
  %s22 = inlined_call_operand.hbm [shape: f32[2,8,32], index: 22, kind: output, shape index: {0}]
  %s23 = inlined_call_operand.hbm [shape: bf16[2,8,16], index: 23, kind: output, shape index: {1}]
  %24 = xla_tuple %s22, %s23
  %s25 = sld [smem:[#allocation0]]
  $region189: #{tpu_custom_call.1} parent=0
    _
  %s27 = ssub.s32 1, %s25
  %s28 = scalar_select 0, %s27, %s25
  $region1: #{tpu_custom_call.1} parent=0
    #allocation3 [shape = 'u8[8192]{0}', space=vmem, size = 0x2000, scoped, tag = 'input window, operand 2, single buffered']
    #allocation4 [shape = 's32[2]{0}', space=sflag, size = 0x8, scoped, tag = 'scoped memory for tpu_custom_call.1']
    #allocation5 [shape = 's32[2]{0}', space=sflag, size = 0x8, scoped, tag = 'scoped memory for tpu_custom_call.1']
    #allocation6 [shape = 'u8[512]{0}', space=vmem, size = 0x400, scoped, tag = 'input window, operand 3, single buffered']
    #allocation7 [shape = 's32[1]{0}', space=sflag, size = 0x4, scoped, tag = 'scoped memory for tpu_custom_call.1']
    #allocation8 [shape = 'u8[8192]{0}', space=vmem, size = 0x2000, scoped, tag = 'input window, operand 4, single buffered']
    #allocation9 [shape = 'u8[512]{0}', space=vmem, size = 0x400, scoped, tag = 'input window, operand 5, single buffered']
    #allocation10 [shape = 's32[1]{0}', space=sflag, size = 0x4, scoped, tag = 'scoped memory for tpu_custom_call.1']
    #allocation11 [shape = 'u8[512]{0}', space=vmem, size = 0x400, scoped, tag = 'input window, operand 6, single buffered']
    #allocation12 [shape = 'u8[512]{0}', space=vmem, size = 0x400, scoped, tag = 'input window, operand 7, single buffered']
    #allocation13 [shape = 's32[1]{0}', space=sflag, size = 0x4, scoped, tag = 'scoped memory for tpu_custom_call.1']
    #allocation14 [shape = 'u8[8192]{0}', space=vmem, size = 0x2000, scoped, tag = 'input window, operand 8, single buffered']
    #allocation15 [shape = 'u8[512]{0}', space=vmem, size = 0x400, scoped, tag = 'input window, operand 9, single buffered']
    #allocation16 [shape = 's32[1]{0}', space=sflag, size = 0x4, scoped, tag = 'scoped memory for tpu_custom_call.1']
    #allocation17 [shape = 'u8[512]{0}', space=vmem, size = 0x400, scoped, tag = 'input window, operand 11, single buffered']
    #allocation18 [shape = 'u8[8192]{0}', space=vmem, size = 0x2000, scoped, tag = 'input window, operand 12, single buffered']
    #allocation19 [shape = 's32[1]{0}', space=sflag, size = 0x4, scoped, tag = 'scoped memory for tpu_custom_call.1']
    #allocation20 [shape = 'u8[512]{0}', space=vmem, size = 0x400, scoped, tag = 'input window, operand 13, single buffered']
    #allocation21 [shape = 'u8[512]{0}', space=vmem, size = 0x400, scoped, tag = 'input window, operand 14, single buffered']
    #allocation22 [shape = 's32[1]{0}', space=sflag, size = 0x4, scoped, tag = 'scoped memory for tpu_custom_call.1']
    #allocation23 [shape = 'u8[512]{0}', space=vmem, size = 0x400, scoped, tag = 'input window, operand 15, single buffered']
    #allocation24 [shape = 'u8[8192]{0}', space=vmem, size = 0x2000, scoped, tag = 'input window, operand 16, single buffered']
    #allocation25 [shape = 's32[1]{0}', space=sflag, size = 0x4, scoped, tag = 'scoped memory for tpu_custom_call.1']
    #allocation26 [shape = 'u8[512]{0}', space=vmem, size = 0x400, scoped, tag = 'input window, operand 17, single buffered']
    #allocation27 [shape = 'u8[8192]{0}', space=vmem, size = 0x2000, scoped, tag = 'output window, operand 0']
    #allocation28 [shape = 'u8[4096]{0}', space=vmem, size = 0x1000, scoped, tag = 'output window, operand 1']
    #allocation29 [shape = 's32[2]{0}', space=sflag, size = 0x8, scoped, tag = 'scoped memory for tpu_custom_call.1']
    %29 = vsyncpa [#allocation4], 0
    %30 = vsyncpa [#allocation7], 0
    %31 = vsyncpa [#allocation10], 0
    %32 = vsyncpa [#allocation13], 0
    %33 = vsyncpa [#allocation16], 0
    %34 = vsyncpa [#allocation19], 0
    %35 = vsyncpa [#allocation22], 0
    %36 = vsyncpa [#allocation25], 0
    %37 = vsyncpa [#allocation5], 0
    %s38 = scalar_lea.sflag [#allocation5], 1
    %39 = vsyncpa %s38, 0
    %40 = vsyncpa [#allocation29], 0
    %s41 = scalar_lea.sflag [#allocation29], 1
    %42 = vsyncpa %s41, 0
    loop: start=0, step=1, limit=4
    $region2: #{tpu_custom_call.1} parent=1 // loop_pre_header
      _
    $region3: #{tpu_custom_call.1} parent=1 // loop_header
      %s44 = sphi 0, %s48
      %p45 = scmp.ge.s32.totalorder %s44, 4
      %s54 = sphi 0, %s56
      %s57 = sphi 0, %s54
      %s58 = sphi 0, %s57
      %s74 = sphi 0, %s58
      %s80 = sphi 0, %s82
      %s83 = sphi 0, %s80
      %s84 = sphi 0, %s83
      %s100 = sphi 0, %s84
      %s104 = sphi 0, %s104
      %s106 = sphi 0, %s104
      %s107 = sphi 0, %s106
      %s121 = sphi 0, %s107
      %s125 = sphi 0, %s125
      %s127 = sphi 0, %s125
      %s128 = sphi 0, %s127
      %s142 = sphi 0, %s128
      %s146 = sphi 0, %s146
      %s148 = sphi 0, %s146
      %s149 = sphi 0, %s148
      %s163 = sphi 0, %s149
      %s167 = sphi 0, %s167
      %s169 = sphi 0, %s167
      %s170 = sphi 0, %s169
      %s184 = sphi 0, %s170
      %s188 = sphi 0, %s188
      %s190 = sphi 0, %s188
      %s191 = sphi 0, %s190
      %s205 = sphi 0, %s191
      %s209 = sphi 0, %s209
      %s211 = sphi 0, %s209
      %s212 = sphi 0, %s211
      %s226 = sphi 0, %s212
      %s230 = sphi 0, %s230
      %s232 = sphi 0, %s230
      %s233 = sphi 0, %s232
      %s247 = sphi 0, %s233
      %s251 = sphi 0, %s251
      %s253 = sphi 0, %s251
      %s254 = sphi 0, %s253
      %s268 = sphi 0, %s254
      %s272 = sphi 0, %s272
      %s274 = sphi 0, %s272
      %s275 = sphi 0, %s274
      %s289 = sphi 0, %s275
      %s293 = sphi 0, %s293
      %s295 = sphi 0, %s293
      %s296 = sphi 0, %s295
      %s310 = sphi 0, %s296
      %s314 = sphi 0, %s314
      %s316 = sphi 0, %s314
      %s317 = sphi 0, %s316
      %s331 = sphi 0, %s317
      %s335 = sphi 0, %s335
      %s337 = sphi 0, %s335
      %s338 = sphi 0, %s337
      %s352 = sphi 0, %s338
      %s356 = sphi 0, %s356
      %s358 = sphi 0, %s356
      %s359 = sphi 0, %s358
      %s373 = sphi 0, %s359
      %s377 = sphi 0, %s377
      %s379 = sphi 0, %s377
      %s380 = sphi 0, %s379
      %s394 = sphi 0, %s380
      %s398 = sphi 0, %s398
      %s400 = sphi 0, %s398
      %s401 = sphi 0, %s400
      %s415 = sphi 0, %s401
      %s419 = sphi 0, %s419
      %s421 = sphi 0, %s419
      %s422 = sphi 0, %s421
      %s436 = sphi 0, %s422
      %s440 = sphi 0, %s440
      %s442 = sphi 0, %s440
      %s443 = sphi 0, %s442
      %s457 = sphi 0, %s443
      %s461 = sphi 0, %s461
      %s463 = sphi 0, %s461
      %s464 = sphi 0, %s463
      %s478 = sphi 0, %s464
      %s482 = sphi 0, %s482
      %s484 = sphi 0, %s482
      %s485 = sphi 0, %s484
      %s499 = sphi 0, %s485
      %s503 = sphi 0, %s503
      %s505 = sphi 0, %s503
      %s506 = sphi 0, %s505
      %s520 = sphi 0, %s506
      %s526 = sphi 0, %s528
      %s529 = sphi 0, %s526
      %s530 = sphi 0, %s529
      %s546 = sphi 0, %s530
      %s552 = sphi 0, %s554
      %s555 = sphi 0, %s552
      %s556 = sphi 0, %s555
      %s572 = sphi 0, %s556
    $region4: #{tpu_custom_call.1} parent=1 // loop_header_branch
      %47 = sbr.rel (%p45) target = $region8
    $region5: #{tpu_custom_call.1} parent=1 // loop_body
      %s49 = ssub.s32 %s44, 1
      %s50 = ssub.s32 %s44, 2
      %s51 = sadd.s32 %s44, 1
      %s52 = ssub.s32 %s44, %s51
      %p53 = scmp.eq.s32.totalorder %s52, 0
      %s55 = sadd.s32 %s54, 1
      %s56 = scalar_select %p53, %s54, %s55
      %p59 = pneg %p53
      %p60 = scmp.eq.s32.totalorder %s44, 1
      %p61 = por %p59, %p60
      %p62 = scmp.ne.s32.totalorder %s54, %s57
      %p63 = scmp.eq.s32.totalorder %s44, 0
      %p64 = por %p62, %p63
      %p65 = scmp.ne.s32.totalorder %s54, %s57
      %p66 = scmp.eq.s32.totalorder %s49, 1
      %p67 = por %p65, %p66
      %p68 = scmp.ne.s32.totalorder %s57, %s58
      %p69 = scmp.eq.s32.totalorder %s49, 0
      %p70 = por %p68, %p69
      %p71 = scmp.ne.s32.totalorder %s57, %s58
      %p72 = scmp.eq.s32.totalorder %s50, 1
      %p73 = por %p71, %p72
      %p75 = scmp.ne.s32.totalorder %s58, %s74
      %p76 = scmp.eq.s32.totalorder %s50, 0
      %p77 = por %p75, %p76
      %s78 = ssub.s32 %s44, %s51
      %p79 = scmp.eq.s32.totalorder %s78, 0
      %s81 = sadd.s32 %s80, 1
      %s82 = scalar_select %p79, %s80, %s81
      %p85 = pneg %p79
      %p86 = scmp.eq.s32.totalorder %s44, 1
      %p87 = por %p85, %p86
      %p88 = scmp.ne.s32.totalorder %s80, %s83
      %p89 = scmp.eq.s32.totalorder %s44, 0
      %p90 = por %p88, %p89
      %p91 = scmp.ne.s32.totalorder %s80, %s83
      %p92 = scmp.eq.s32.totalorder %s49, 1
      %p93 = por %p91, %p92
      %p94 = scmp.ne.s32.totalorder %s83, %s84
      %p95 = scmp.eq.s32.totalorder %s49, 0
      %p96 = por %p94, %p95
      %p97 = scmp.ne.s32.totalorder %s83, %s84
      %p98 = scmp.eq.s32.totalorder %s50, 1
      %p99 = por %p97, %p98
      %p101 = scmp.ne.s32.totalorder %s84, %s100
      %p102 = scmp.eq.s32.totalorder %s50, 0
      %p103 = por %p101, %p102
      %s105 = sadd.s32 %s104, 1
      %p108 = scmp.eq.s32.totalorder %s44, 1
      %p109 = scmp.ne.s32.totalorder %s104, %s106
      %p110 = scmp.eq.s32.totalorder %s44, 0
      %p111 = por %p109, %p110
      %p112 = scmp.ne.s32.totalorder %s104, %s106
      %p113 = scmp.eq.s32.totalorder %s49, 1
      %p114 = por %p112, %p113
      %p115 = scmp.ne.s32.totalorder %s106, %s107
      %p116 = scmp.eq.s32.totalorder %s49, 0
      %p117 = por %p115, %p116
      %p118 = scmp.ne.s32.totalorder %s106, %s107
      %p119 = scmp.eq.s32.totalorder %s50, 1
      %p120 = por %p118, %p119
      %p122 = scmp.ne.s32.totalorder %s107, %s121
      %p123 = scmp.eq.s32.totalorder %s50, 0
      %p124 = por %p122, %p123
      %s126 = sadd.s32 %s125, 1
      %p129 = scmp.eq.s32.totalorder %s44, 1
      %p130 = scmp.ne.s32.totalorder %s125, %s127
      %p131 = scmp.eq.s32.totalorder %s44, 0
      %p132 = por %p130, %p131
      %p133 = scmp.ne.s32.totalorder %s125, %s127
      %p134 = scmp.eq.s32.totalorder %s49, 1
      %p135 = por %p133, %p134
      %p136 = scmp.ne.s32.totalorder %s127, %s128
      %p137 = scmp.eq.s32.totalorder %s49, 0
      %p138 = por %p136, %p137
      %p139 = scmp.ne.s32.totalorder %s127, %s128
      %p140 = scmp.eq.s32.totalorder %s50, 1
      %p141 = por %p139, %p140
      %p143 = scmp.ne.s32.totalorder %s128, %s142
      %p144 = scmp.eq.s32.totalorder %s50, 0
      %p145 = por %p143, %p144
      %s147 = sadd.s32 %s146, 1
      %p150 = scmp.eq.s32.totalorder %s44, 1
      %p151 = scmp.ne.s32.totalorder %s146, %s148
      %p152 = scmp.eq.s32.totalorder %s44, 0
      %p153 = por %p151, %p152
      %p154 = scmp.ne.s32.totalorder %s146, %s148
      %p155 = scmp.eq.s32.totalorder %s49, 1
      %p156 = por %p154, %p155
      %p157 = scmp.ne.s32.totalorder %s148, %s149
      %p158 = scmp.eq.s32.totalorder %s49, 0
      %p159 = por %p157, %p158
      %p160 = scmp.ne.s32.totalorder %s148, %s149
      %p161 = scmp.eq.s32.totalorder %s50, 1
      %p162 = por %p160, %p161
      %p164 = scmp.ne.s32.totalorder %s149, %s163
      %p165 = scmp.eq.s32.totalorder %s50, 0
      %p166 = por %p164, %p165
      %s168 = sadd.s32 %s167, 1
      %p171 = scmp.eq.s32.totalorder %s44, 1
      %p172 = scmp.ne.s32.totalorder %s167, %s169
      %p173 = scmp.eq.s32.totalorder %s44, 0
      %p174 = por %p172, %p173
      %p175 = scmp.ne.s32.totalorder %s167, %s169
      %p176 = scmp.eq.s32.totalorder %s49, 1
      %p177 = por %p175, %p176
      %p178 = scmp.ne.s32.totalorder %s169, %s170
      %p179 = scmp.eq.s32.totalorder %s49, 0
      %p180 = por %p178, %p179
      %p181 = scmp.ne.s32.totalorder %s169, %s170
      %p182 = scmp.eq.s32.totalorder %s50, 1
      %p183 = por %p181, %p182
      %p185 = scmp.ne.s32.totalorder %s170, %s184
      %p186 = scmp.eq.s32.totalorder %s50, 0
      %p187 = por %p185, %p186
      %s189 = sadd.s32 %s188, 1
      %p192 = scmp.eq.s32.totalorder %s44, 1
      %p193 = scmp.ne.s32.totalorder %s188, %s190
      %p194 = scmp.eq.s32.totalorder %s44, 0
      %p195 = por %p193, %p194
      %p196 = scmp.ne.s32.totalorder %s188, %s190
      %p197 = scmp.eq.s32.totalorder %s49, 1
      %p198 = por %p196, %p197
      %p199 = scmp.ne.s32.totalorder %s190, %s191
      %p200 = scmp.eq.s32.totalorder %s49, 0
      %p201 = por %p199, %p200
      %p202 = scmp.ne.s32.totalorder %s190, %s191
      %p203 = scmp.eq.s32.totalorder %s50, 1
      %p204 = por %p202, %p203
      %p206 = scmp.ne.s32.totalorder %s191, %s205
      %p207 = scmp.eq.s32.totalorder %s50, 0
      %p208 = por %p206, %p207
      %s210 = sadd.s32 %s209, 1
      %p213 = scmp.eq.s32.totalorder %s44, 1
      %p214 = scmp.ne.s32.totalorder %s209, %s211
      %p215 = scmp.eq.s32.totalorder %s44, 0
      %p216 = por %p214, %p215
      %p217 = scmp.ne.s32.totalorder %s209, %s211
      %p218 = scmp.eq.s32.totalorder %s49, 1
      %p219 = por %p217, %p218
      %p220 = scmp.ne.s32.totalorder %s211, %s212
      %p221 = scmp.eq.s32.totalorder %s49, 0
      %p222 = por %p220, %p221
      %p223 = scmp.ne.s32.totalorder %s211, %s212
      %p224 = scmp.eq.s32.totalorder %s50, 1
      %p225 = por %p223, %p224
      %p227 = scmp.ne.s32.totalorder %s212, %s226
      %p228 = scmp.eq.s32.totalorder %s50, 0
      %p229 = por %p227, %p228
      %s231 = sadd.s32 %s230, 1
      %p234 = scmp.eq.s32.totalorder %s44, 1
      %p235 = scmp.ne.s32.totalorder %s230, %s232
      %p236 = scmp.eq.s32.totalorder %s44, 0
      %p237 = por %p235, %p236
      %p238 = scmp.ne.s32.totalorder %s230, %s232
      %p239 = scmp.eq.s32.totalorder %s49, 1
      %p240 = por %p238, %p239
      %p241 = scmp.ne.s32.totalorder %s232, %s233
      %p242 = scmp.eq.s32.totalorder %s49, 0
      %p243 = por %p241, %p242
      %p244 = scmp.ne.s32.totalorder %s232, %s233
      %p245 = scmp.eq.s32.totalorder %s50, 1
      %p246 = por %p244, %p245
      %p248 = scmp.ne.s32.totalorder %s233, %s247
      %p249 = scmp.eq.s32.totalorder %s50, 0
      %p250 = por %p248, %p249
      %s252 = sadd.s32 %s251, 1
      %p255 = scmp.eq.s32.totalorder %s44, 1
      %p256 = scmp.ne.s32.totalorder %s251, %s253
      %p257 = scmp.eq.s32.totalorder %s44, 0
      %p258 = por %p256, %p257
      %p259 = scmp.ne.s32.totalorder %s251, %s253
      %p260 = scmp.eq.s32.totalorder %s49, 1
      %p261 = por %p259, %p260
      %p262 = scmp.ne.s32.totalorder %s253, %s254
      %p263 = scmp.eq.s32.totalorder %s49, 0
      %p264 = por %p262, %p263
      %p265 = scmp.ne.s32.totalorder %s253, %s254
      %p266 = scmp.eq.s32.totalorder %s50, 1
      %p267 = por %p265, %p266
      %p269 = scmp.ne.s32.totalorder %s254, %s268
      %p270 = scmp.eq.s32.totalorder %s50, 0
      %p271 = por %p269, %p270
      %s273 = sadd.s32 %s272, 1
      %p276 = scmp.eq.s32.totalorder %s44, 1
      %p277 = scmp.ne.s32.totalorder %s272, %s274
      %p278 = scmp.eq.s32.totalorder %s44, 0
      %p279 = por %p277, %p278
      %p280 = scmp.ne.s32.totalorder %s272, %s274
      %p281 = scmp.eq.s32.totalorder %s49, 1
      %p282 = por %p280, %p281
      %p283 = scmp.ne.s32.totalorder %s274, %s275
      %p284 = scmp.eq.s32.totalorder %s49, 0
      %p285 = por %p283, %p284
      %p286 = scmp.ne.s32.totalorder %s274, %s275
      %p287 = scmp.eq.s32.totalorder %s50, 1
      %p288 = por %p286, %p287
      %p290 = scmp.ne.s32.totalorder %s275, %s289
      %p291 = scmp.eq.s32.totalorder %s50, 0
      %p292 = por %p290, %p291
      %s294 = sadd.s32 %s293, 1
      %p297 = scmp.eq.s32.totalorder %s44, 1
      %p298 = scmp.ne.s32.totalorder %s293, %s295
      %p299 = scmp.eq.s32.totalorder %s44, 0
      %p300 = por %p298, %p299
      %p301 = scmp.ne.s32.totalorder %s293, %s295
      %p302 = scmp.eq.s32.totalorder %s49, 1
      %p303 = por %p301, %p302
      %p304 = scmp.ne.s32.totalorder %s295, %s296
      %p305 = scmp.eq.s32.totalorder %s49, 0
      %p306 = por %p304, %p305
      %p307 = scmp.ne.s32.totalorder %s295, %s296
      %p308 = scmp.eq.s32.totalorder %s50, 1
      %p309 = por %p307, %p308
      %p311 = scmp.ne.s32.totalorder %s296, %s310
      %p312 = scmp.eq.s32.totalorder %s50, 0
      %p313 = por %p311, %p312
      %s315 = sadd.s32 %s314, 1
      %p318 = scmp.eq.s32.totalorder %s44, 1
      %p319 = scmp.ne.s32.totalorder %s314, %s316
      %p320 = scmp.eq.s32.totalorder %s44, 0
      %p321 = por %p319, %p320
      %p322 = scmp.ne.s32.totalorder %s314, %s316
      %p323 = scmp.eq.s32.totalorder %s49, 1
      %p324 = por %p322, %p323
      %p325 = scmp.ne.s32.totalorder %s316, %s317
      %p326 = scmp.eq.s32.totalorder %s49, 0
      %p327 = por %p325, %p326
      %p328 = scmp.ne.s32.totalorder %s316, %s317
      %p329 = scmp.eq.s32.totalorder %s50, 1
      %p330 = por %p328, %p329
      %p332 = scmp.ne.s32.totalorder %s317, %s331
      %p333 = scmp.eq.s32.totalorder %s50, 0
      %p334 = por %p332, %p333
      %s336 = sadd.s32 %s335, 1
      %p339 = scmp.eq.s32.totalorder %s44, 1
      %p340 = scmp.ne.s32.totalorder %s335, %s337
      %p341 = scmp.eq.s32.totalorder %s44, 0
      %p342 = por %p340, %p341
      %p343 = scmp.ne.s32.totalorder %s335, %s337
      %p344 = scmp.eq.s32.totalorder %s49, 1
      %p345 = por %p343, %p344
      %p346 = scmp.ne.s32.totalorder %s337, %s338
      %p347 = scmp.eq.s32.totalorder %s49, 0
      %p348 = por %p346, %p347
      %p349 = scmp.ne.s32.totalorder %s337, %s338
      %p350 = scmp.eq.s32.totalorder %s50, 1
      %p351 = por %p349, %p350
      %p353 = scmp.ne.s32.totalorder %s338, %s352
      %p354 = scmp.eq.s32.totalorder %s50, 0
      %p355 = por %p353, %p354
      %s357 = sadd.s32 %s356, 1
      %p360 = scmp.eq.s32.totalorder %s44, 1
      %p361 = scmp.ne.s32.totalorder %s356, %s358
      %p362 = scmp.eq.s32.totalorder %s44, 0
      %p363 = por %p361, %p362
      %p364 = scmp.ne.s32.totalorder %s356, %s358
      %p365 = scmp.eq.s32.totalorder %s49, 1
      %p366 = por %p364, %p365
      %p367 = scmp.ne.s32.totalorder %s358, %s359
      %p368 = scmp.eq.s32.totalorder %s49, 0
      %p369 = por %p367, %p368
      %p370 = scmp.ne.s32.totalorder %s358, %s359
      %p371 = scmp.eq.s32.totalorder %s50, 1
      %p372 = por %p370, %p371
      %p374 = scmp.ne.s32.totalorder %s359, %s373
      %p375 = scmp.eq.s32.totalorder %s50, 0
      %p376 = por %p374, %p375
      %s378 = sadd.s32 %s377, 1
      %p381 = scmp.eq.s32.totalorder %s44, 1
      %p382 = scmp.ne.s32.totalorder %s377, %s379
      %p383 = scmp.eq.s32.totalorder %s44, 0
      %p384 = por %p382, %p383
      %p385 = scmp.ne.s32.totalorder %s377, %s379
      %p386 = scmp.eq.s32.totalorder %s49, 1
      %p387 = por %p385, %p386
      %p388 = scmp.ne.s32.totalorder %s379, %s380
      %p389 = scmp.eq.s32.totalorder %s49, 0
      %p390 = por %p388, %p389
      %p391 = scmp.ne.s32.totalorder %s379, %s380
      %p392 = scmp.eq.s32.totalorder %s50, 1
      %p393 = por %p391, %p392
      %p395 = scmp.ne.s32.totalorder %s380, %s394
      %p396 = scmp.eq.s32.totalorder %s50, 0
      %p397 = por %p395, %p396
      %s399 = sadd.s32 %s398, 1
      %p402 = scmp.eq.s32.totalorder %s44, 1
      %p403 = scmp.ne.s32.totalorder %s398, %s400
      %p404 = scmp.eq.s32.totalorder %s44, 0
      %p405 = por %p403, %p404
      %p406 = scmp.ne.s32.totalorder %s398, %s400
      %p407 = scmp.eq.s32.totalorder %s49, 1
      %p408 = por %p406, %p407
      %p409 = scmp.ne.s32.totalorder %s400, %s401
      %p410 = scmp.eq.s32.totalorder %s49, 0
      %p411 = por %p409, %p410
      %p412 = scmp.ne.s32.totalorder %s400, %s401
      %p413 = scmp.eq.s32.totalorder %s50, 1
      %p414 = por %p412, %p413
      %p416 = scmp.ne.s32.totalorder %s401, %s415
      %p417 = scmp.eq.s32.totalorder %s50, 0
      %p418 = por %p416, %p417
      %s420 = sadd.s32 %s419, 1
      %p423 = scmp.eq.s32.totalorder %s44, 1
      %p424 = scmp.ne.s32.totalorder %s419, %s421
      %p425 = scmp.eq.s32.totalorder %s44, 0
      %p426 = por %p424, %p425
      %p427 = scmp.ne.s32.totalorder %s419, %s421
      %p428 = scmp.eq.s32.totalorder %s49, 1
      %p429 = por %p427, %p428
      %p430 = scmp.ne.s32.totalorder %s421, %s422
      %p431 = scmp.eq.s32.totalorder %s49, 0
      %p432 = por %p430, %p431
      %p433 = scmp.ne.s32.totalorder %s421, %s422
      %p434 = scmp.eq.s32.totalorder %s50, 1
      %p435 = por %p433, %p434
      %p437 = scmp.ne.s32.totalorder %s422, %s436
      %p438 = scmp.eq.s32.totalorder %s50, 0
      %p439 = por %p437, %p438
      %s441 = sadd.s32 %s440, 1
      %p444 = scmp.eq.s32.totalorder %s44, 1
      %p445 = scmp.ne.s32.totalorder %s440, %s442
      %p446 = scmp.eq.s32.totalorder %s44, 0
      %p447 = por %p445, %p446
      %p448 = scmp.ne.s32.totalorder %s440, %s442
      %p449 = scmp.eq.s32.totalorder %s49, 1
      %p450 = por %p448, %p449
      %p451 = scmp.ne.s32.totalorder %s442, %s443
      %p452 = scmp.eq.s32.totalorder %s49, 0
      %p453 = por %p451, %p452
      %p454 = scmp.ne.s32.totalorder %s442, %s443
      %p455 = scmp.eq.s32.totalorder %s50, 1
      %p456 = por %p454, %p455
      %p458 = scmp.ne.s32.totalorder %s443, %s457
      %p459 = scmp.eq.s32.totalorder %s50, 0
      %p460 = por %p458, %p459
      %s462 = sadd.s32 %s461, 1
      %p465 = scmp.eq.s32.totalorder %s44, 1
      %p466 = scmp.ne.s32.totalorder %s461, %s463
      %p467 = scmp.eq.s32.totalorder %s44, 0
      %p468 = por %p466, %p467
      %p469 = scmp.ne.s32.totalorder %s461, %s463
      %p470 = scmp.eq.s32.totalorder %s49, 1
      %p471 = por %p469, %p470
      %p472 = scmp.ne.s32.totalorder %s463, %s464
      %p473 = scmp.eq.s32.totalorder %s49, 0
      %p474 = por %p472, %p473
      %p475 = scmp.ne.s32.totalorder %s463, %s464
      %p476 = scmp.eq.s32.totalorder %s50, 1
      %p477 = por %p475, %p476
      %p479 = scmp.ne.s32.totalorder %s464, %s478
      %p480 = scmp.eq.s32.totalorder %s50, 0
      %p481 = por %p479, %p480
      %s483 = sadd.s32 %s482, 1
      %p486 = scmp.eq.s32.totalorder %s44, 1
      %p487 = scmp.ne.s32.totalorder %s482, %s484
      %p488 = scmp.eq.s32.totalorder %s44, 0
      %p489 = por %p487, %p488
      %p490 = scmp.ne.s32.totalorder %s482, %s484
      %p491 = scmp.eq.s32.totalorder %s49, 1
      %p492 = por %p490, %p491
      %p493 = scmp.ne.s32.totalorder %s484, %s485
      %p494 = scmp.eq.s32.totalorder %s49, 0
      %p495 = por %p493, %p494
      %p496 = scmp.ne.s32.totalorder %s484, %s485
      %p497 = scmp.eq.s32.totalorder %s50, 1
      %p498 = por %p496, %p497
      %p500 = scmp.ne.s32.totalorder %s485, %s499
      %p501 = scmp.eq.s32.totalorder %s50, 0
      %p502 = por %p500, %p501
      %s504 = sadd.s32 %s503, 1
      %p507 = scmp.eq.s32.totalorder %s44, 1
      %p508 = scmp.ne.s32.totalorder %s503, %s505
      %p509 = scmp.eq.s32.totalorder %s44, 0
      %p510 = por %p508, %p509
      %p511 = scmp.ne.s32.totalorder %s503, %s505
      %p512 = scmp.eq.s32.totalorder %s49, 1
      %p513 = por %p511, %p512
      %p514 = scmp.ne.s32.totalorder %s505, %s506
      %p515 = scmp.eq.s32.totalorder %s49, 0
      %p516 = por %p514, %p515
      %p517 = scmp.ne.s32.totalorder %s505, %s506
      %p518 = scmp.eq.s32.totalorder %s50, 1
      %p519 = por %p517, %p518
      %p521 = scmp.ne.s32.totalorder %s506, %s520
      %p522 = scmp.eq.s32.totalorder %s50, 0
      %p523 = por %p521, %p522
      %s524 = ssub.s32 %s44, %s51
      %p525 = scmp.eq.s32.totalorder %s524, 0
      %s527 = sadd.s32 %s526, 1
      %s528 = scalar_select %p525, %s526, %s527
      %p531 = pneg %p525
      %p532 = scmp.eq.s32.totalorder %s44, 1
      %p533 = por %p531, %p532
      %p534 = scmp.ne.s32.totalorder %s526, %s529
      %p535 = scmp.eq.s32.totalorder %s44, 0
      %p536 = por %p534, %p535
      %p537 = scmp.ne.s32.totalorder %s526, %s529
      %p538 = scmp.eq.s32.totalorder %s49, 1
      %p539 = por %p537, %p538
      %p540 = scmp.ne.s32.totalorder %s529, %s530
      %p541 = scmp.eq.s32.totalorder %s49, 0
      %p542 = por %p540, %p541
      %p543 = scmp.ne.s32.totalorder %s529, %s530
      %p544 = scmp.eq.s32.totalorder %s50, 1
      %p545 = por %p543, %p544
      %p547 = scmp.ne.s32.totalorder %s530, %s546
      %p548 = scmp.eq.s32.totalorder %s50, 0
      %p549 = por %p547, %p548
      %s550 = ssub.s32 %s44, %s51
      %p551 = scmp.eq.s32.totalorder %s550, 0
      %s553 = sadd.s32 %s552, 1
      %s554 = scalar_select %p551, %s552, %s553
      %p557 = pneg %p551
      %p558 = scmp.eq.s32.totalorder %s44, 1
      %p559 = por %p557, %p558
      %p560 = scmp.ne.s32.totalorder %s552, %s555
      %p561 = scmp.eq.s32.totalorder %s44, 0
      %p562 = por %p560, %p561
      %p563 = scmp.ne.s32.totalorder %s552, %s555
      %p564 = scmp.eq.s32.totalorder %s49, 1
      %p565 = por %p563, %p564
      %p566 = scmp.ne.s32.totalorder %s555, %s556
      %p567 = scmp.eq.s32.totalorder %s49, 0
      %p568 = por %p566, %p567
      %p569 = scmp.ne.s32.totalorder %s555, %s556
      %p570 = scmp.eq.s32.totalorder %s50, 1
      %p571 = por %p569, %p570
      %p573 = scmp.ne.s32.totalorder %s556, %s572
      %p574 = scmp.eq.s32.totalorder %s50, 0
      %p575 = por %p573, %p574
      %p576 = scmp.le.s32.totalorder 1, %s44
      %p577 = scmp.lt.s32.totalorder %s44, 3
      %p578 = pnand %p576, %p577
      %p579 = pneg %p578
      // Predicated region
      $region9: #{tpu_custom_call.1} parent=5 // pred_check
        _
      $region10: #{tpu_custom_call.1} parent=5 // pred_check_branch
        %581 = sbr.rel (%p578) target = $region12
      $region11: #{tpu_custom_call.1} parent=5 // pred_region
        %s582 = ssub.s32 %s44, 1
        // Predicated region
        $region13: #{tpu_custom_call.1} parent=11 // pred_check
          %p583 = pneg %p117
        $region14: #{tpu_custom_call.1} parent=11 // pred_check_branch
          %585 = sbr.rel (%p583) target = $region16
        $region15: #{tpu_custom_call.1} parent=11 // pred_region
          %s587 = ssub.s32 256, 256
          %588 = vsyncadd [#allocation4], %s587
          %s589 = sshll.u32 [#allocation3], 4
          %s590 = int_to_ptr.vmem [resolvable:$true] %s589
          %595 = dma.hbm_to_vmem [thread:$0]  %s2, 256, %s590, [#allocation4], 64, 64, 4
        $region16: #{tpu_custom_call.1} parent=11 // pred_fallthru
          _
        // Predicated region
        $region17: #{tpu_custom_call.1} parent=11 // pred_check
          %p596 = pneg %p138
        $region18: #{tpu_custom_call.1} parent=11 // pred_check_branch
          %598 = sbr.rel (%p596) target = $region20
        $region19: #{tpu_custom_call.1} parent=11 // pred_region
          %s600 = ssub.s32 16, 16
          %601 = vsyncadd [#allocation7], %s600
          %s603 = sshll.u32 [#allocation6], 4
          %s604 = int_to_ptr.vmem [resolvable:$true] %s603
          %606 = dma.hbm_to_vmem [thread:$0]  %s3, 16, %s604, [#allocation7]
        $region20: #{tpu_custom_call.1} parent=11 // pred_fallthru
          _
        // Predicated region
        $region21: #{tpu_custom_call.1} parent=11 // pred_check
          %p607 = pneg %p159
        $region22: #{tpu_custom_call.1} parent=11 // pred_check_branch
          %609 = sbr.rel (%p607) target = $region24
        $region23: #{tpu_custom_call.1} parent=11 // pred_region
          %s611 = ssub.s32 256, 256
          %612 = vsyncadd [#allocation7], %s611
          %s613 = sshll.u32 [#allocation8], 4
          %s614 = int_to_ptr.vmem [resolvable:$true] %s613
          %619 = dma.hbm_to_vmem [thread:$0]  %s4, 256, %s614, [#allocation7], 64, 64, 4
        $region24: #{tpu_custom_call.1} parent=11 // pred_fallthru
          _
        // Predicated region
        $region25: #{tpu_custom_call.1} parent=11 // pred_check
          %p620 = pneg %p180
        $region26: #{tpu_custom_call.1} parent=11 // pred_check_branch
          %622 = sbr.rel (%p620) target = $region28
        $region27: #{tpu_custom_call.1} parent=11 // pred_region
          %s624 = ssub.s32 16, 16
          %625 = vsyncadd [#allocation10], %s624
          %s627 = sshll.u32 [#allocation9], 4
          %s628 = int_to_ptr.vmem [resolvable:$true] %s627
          %630 = dma.hbm_to_vmem [thread:$0]  %s5, 16, %s628, [#allocation10]
        $region28: #{tpu_custom_call.1} parent=11 // pred_fallthru
          _
        // Predicated region
        $region29: #{tpu_custom_call.1} parent=11 // pred_check
          %p631 = pneg %p201
        $region30: #{tpu_custom_call.1} parent=11 // pred_check_branch
          %633 = sbr.rel (%p631) target = $region32
        $region31: #{tpu_custom_call.1} parent=11 // pred_region
          %s635 = ssub.s32 16, 16
          %636 = vsyncadd [#allocation10], %s635
          %s638 = sshll.u32 [#allocation11], 4
          %s639 = int_to_ptr.vmem [resolvable:$true] %s638
          %641 = dma.hbm_to_vmem [thread:$0]  %s6, 16, %s639, [#allocation10]
        $region32: #{tpu_custom_call.1} parent=11 // pred_fallthru
          _
        // Predicated region
        $region33: #{tpu_custom_call.1} parent=11 // pred_check
          %p642 = pneg %p222
        $region34: #{tpu_custom_call.1} parent=11 // pred_check_branch
          %644 = sbr.rel (%p642) target = $region36
        $region35: #{tpu_custom_call.1} parent=11 // pred_region
          %s646 = ssub.s32 16, 16
          %647 = vsyncadd [#allocation13], %s646
          %s649 = sshll.u32 [#allocation12], 4
          %s650 = int_to_ptr.vmem [resolvable:$true] %s649
          %652 = dma.hbm_to_vmem [thread:$0]  %s7, 16, %s650, [#allocation13]
        $region36: #{tpu_custom_call.1} parent=11 // pred_fallthru
          _
        // Predicated region
        $region37: #{tpu_custom_call.1} parent=11 // pred_check
          %p653 = pneg %p243
        $region38: #{tpu_custom_call.1} parent=11 // pred_check_branch
          %655 = sbr.rel (%p653) target = $region40
        $region39: #{tpu_custom_call.1} parent=11 // pred_region
          %s657 = ssub.s32 256, 256
          %658 = vsyncadd [#allocation13], %s657
          %s659 = sshll.u32 [#allocation14], 4
          %s660 = int_to_ptr.vmem [resolvable:$true] %s659
          %665 = dma.hbm_to_vmem [thread:$0]  %s8, 256, %s660, [#allocation13], 64, 64, 4
        $region40: #{tpu_custom_call.1} parent=11 // pred_fallthru
          _
        // Predicated region
        $region41: #{tpu_custom_call.1} parent=11 // pred_check
          %p666 = pneg %p264
        $region42: #{tpu_custom_call.1} parent=11 // pred_check_branch
          %668 = sbr.rel (%p666) target = $region44
        $region43: #{tpu_custom_call.1} parent=11 // pred_region
          %s670 = ssub.s32 16, 16
          %671 = vsyncadd [#allocation16], %s670
          %s673 = sshll.u32 [#allocation15], 4
          %s674 = int_to_ptr.vmem [resolvable:$true] %s673
          %676 = dma.hbm_to_vmem [thread:$0]  %s9, 16, %s674, [#allocation16]
        $region44: #{tpu_custom_call.1} parent=11 // pred_fallthru
          _
        // Predicated region
        $region45: #{tpu_custom_call.1} parent=11 // pred_check
          %p677 = pneg %p285
        $region46: #{tpu_custom_call.1} parent=11 // pred_check_branch
          %679 = sbr.rel (%p677) target = $region48
        $region47: #{tpu_custom_call.1} parent=11 // pred_region
          _
        $region48: #{tpu_custom_call.1} parent=11 // pred_fallthru
          _
        // Predicated region
        $region49: #{tpu_custom_call.1} parent=11 // pred_check
          %p680 = pneg %p306
        $region50: #{tpu_custom_call.1} parent=11 // pred_check_branch
          %682 = sbr.rel (%p680) target = $region52
        $region51: #{tpu_custom_call.1} parent=11 // pred_region
          %s684 = ssub.s32 16, 16
          %685 = vsyncadd [#allocation16], %s684
          %s687 = sshll.u32 [#allocation17], 4
          %s688 = int_to_ptr.vmem [resolvable:$true] %s687
          %690 = dma.hbm_to_vmem [thread:$0]  %s11, 16, %s688, [#allocation16]
        $region52: #{tpu_custom_call.1} parent=11 // pred_fallthru
          _
        // Predicated region
        $region53: #{tpu_custom_call.1} parent=11 // pred_check
          %p691 = pneg %p327
        $region54: #{tpu_custom_call.1} parent=11 // pred_check_branch
          %693 = sbr.rel (%p691) target = $region56
        $region55: #{tpu_custom_call.1} parent=11 // pred_region
          %s695 = ssub.s32 256, 256
          %696 = vsyncadd [#allocation19], %s695
          %s697 = sshll.u32 [#allocation18], 4
          %s698 = int_to_ptr.vmem [resolvable:$true] %s697
          %703 = dma.hbm_to_vmem [thread:$0]  %s12, 256, %s698, [#allocation19], 64, 64, 4
        $region56: #{tpu_custom_call.1} parent=11 // pred_fallthru
          _
        // Predicated region
        $region57: #{tpu_custom_call.1} parent=11 // pred_check
          %p704 = pneg %p348
        $region58: #{tpu_custom_call.1} parent=11 // pred_check_branch
          %706 = sbr.rel (%p704) target = $region60
        $region59: #{tpu_custom_call.1} parent=11 // pred_region
          %s708 = ssub.s32 16, 16
          %709 = vsyncadd [#allocation19], %s708
          %s711 = sshll.u32 [#allocation20], 4
          %s712 = int_to_ptr.vmem [resolvable:$true] %s711
          %714 = dma.hbm_to_vmem [thread:$0]  %s13, 16, %s712, [#allocation19]
        $region60: #{tpu_custom_call.1} parent=11 // pred_fallthru
          _
        // Predicated region
        $region61: #{tpu_custom_call.1} parent=11 // pred_check
          %p715 = pneg %p369
        $region62: #{tpu_custom_call.1} parent=11 // pred_check_branch
          %717 = sbr.rel (%p715) target = $region64
        $region63: #{tpu_custom_call.1} parent=11 // pred_region
          %s719 = ssub.s32 16, 16
          %720 = vsyncadd [#allocation22], %s719
          %s722 = sshll.u32 [#allocation21], 4
          %s723 = int_to_ptr.vmem [resolvable:$true] %s722
          %725 = dma.hbm_to_vmem [thread:$0]  %s14, 16, %s723, [#allocation22]
        $region64: #{tpu_custom_call.1} parent=11 // pred_fallthru
          _
        // Predicated region
        $region65: #{tpu_custom_call.1} parent=11 // pred_check
          %p726 = pneg %p390
        $region66: #{tpu_custom_call.1} parent=11 // pred_check_branch
          %728 = sbr.rel (%p726) target = $region68
        $region67: #{tpu_custom_call.1} parent=11 // pred_region
          %s730 = ssub.s32 16, 16
          %731 = vsyncadd [#allocation22], %s730
          %s733 = sshll.u32 [#allocation23], 4
          %s734 = int_to_ptr.vmem [resolvable:$true] %s733
          %736 = dma.hbm_to_vmem [thread:$0]  %s15, 16, %s734, [#allocation22]
        $region68: #{tpu_custom_call.1} parent=11 // pred_fallthru
          _
        // Predicated region
        $region69: #{tpu_custom_call.1} parent=11 // pred_check
          %p737 = pneg %p411
        $region70: #{tpu_custom_call.1} parent=11 // pred_check_branch
          %739 = sbr.rel (%p737) target = $region72
        $region71: #{tpu_custom_call.1} parent=11 // pred_region
          %s741 = ssub.s32 256, 256
          %742 = vsyncadd [#allocation25], %s741
          %s743 = sshll.u32 [#allocation24], 4
          %s744 = int_to_ptr.vmem [resolvable:$true] %s743
          %749 = dma.hbm_to_vmem [thread:$0]  %s16, 256, %s744, [#allocation25], 64, 64, 4
        $region72: #{tpu_custom_call.1} parent=11 // pred_fallthru
          _
        // Predicated region
        $region73: #{tpu_custom_call.1} parent=11 // pred_check
          %p750 = pneg %p432
        $region74: #{tpu_custom_call.1} parent=11 // pred_check_branch
          %752 = sbr.rel (%p750) target = $region76
        $region75: #{tpu_custom_call.1} parent=11 // pred_region
          %s754 = ssub.s32 16, 16
          %755 = vsyncadd [#allocation25], %s754
          %s757 = sshll.u32 [#allocation26], 4
          %s758 = int_to_ptr.vmem [resolvable:$true] %s757
          %760 = dma.hbm_to_vmem [thread:$0]  %s17, 16, %s758, [#allocation25]
        $region76: #{tpu_custom_call.1} parent=11 // pred_fallthru
          _
        // Predicated region
        $region77: #{tpu_custom_call.1} parent=11 // pred_check
          %p761 = pneg %p453
        $region78: #{tpu_custom_call.1} parent=11 // pred_check_branch
          %763 = sbr.rel (%p761) target = $region80
        $region79: #{tpu_custom_call.1} parent=11 // pred_region
          _
        $region80: #{tpu_custom_call.1} parent=11 // pred_fallthru
          _
        // Predicated region
        $region81: #{tpu_custom_call.1} parent=11 // pred_check
          %p764 = pneg %p474
        $region82: #{tpu_custom_call.1} parent=11 // pred_check_branch
          %766 = sbr.rel (%p764) target = $region84
        $region83: #{tpu_custom_call.1} parent=11 // pred_region
          _
        $region84: #{tpu_custom_call.1} parent=11 // pred_fallthru
          _
        // Predicated region
        $region85: #{tpu_custom_call.1} parent=11 // pred_check
          %p767 = pneg %p495
        $region86: #{tpu_custom_call.1} parent=11 // pred_check_branch
          %769 = sbr.rel (%p767) target = $region88
        $region87: #{tpu_custom_call.1} parent=11 // pred_region
          _
        $region88: #{tpu_custom_call.1} parent=11 // pred_fallthru
          _
        // Predicated region
        $region89: #{tpu_custom_call.1} parent=11 // pred_check
          %p770 = pneg %p516
        $region90: #{tpu_custom_call.1} parent=11 // pred_check_branch
          %772 = sbr.rel (%p770) target = $region92
        $region91: #{tpu_custom_call.1} parent=11 // pred_region
          _
        $region92: #{tpu_custom_call.1} parent=11 // pred_fallthru
          _
      $region12: #{tpu_custom_call.1} parent=5 // pred_fallthru
        _
      %p773 = scmp.lt.s32.totalorder %s44, 2
      // Predicated region
      $region93: #{tpu_custom_call.1} parent=5 // pred_check
        %p774 = pneg %p773
      $region94: #{tpu_custom_call.1} parent=5 // pred_check_branch
        %776 = sbr.rel (%p774) target = $region96
      $region95: #{tpu_custom_call.1} parent=5 // pred_region
        // Predicated region
        $region97: #{tpu_custom_call.1} parent=95 // pred_check
          %p777 = pneg %p64
        $region98: #{tpu_custom_call.1} parent=95 // pred_check_branch
          %779 = sbr.rel (%p777) target = $region100
        $region99: #{tpu_custom_call.1} parent=95 // pred_region
          %p780 = scmp.lt.s32.totalorder %s44, 1
          %s781 = scalar_select %p780, %s44, 1
          %s782 = smul.addr %s781, 8
          %s783 = scalar_lea.vmem %s0, %s782
        $region100: #{tpu_custom_call.1} parent=95 // pred_fallthru
          _
        // Predicated region
        $region101: #{tpu_custom_call.1} parent=95 // pred_check
          %p784 = pneg %p90
        $region102: #{tpu_custom_call.1} parent=95 // pred_check_branch
          %786 = sbr.rel (%p784) target = $region104
        $region103: #{tpu_custom_call.1} parent=95 // pred_region
          %p787 = scmp.lt.s32.totalorder %s44, 1
          %s788 = scalar_select %p787, %s44, 1
          %s789 = smul.addr %s788, 2
          %s790 = smul.addr %s789, 8
          %s791 = scalar_lea.vmem %s1, %s790
        $region104: #{tpu_custom_call.1} parent=95 // pred_fallthru
          _
      $region96: #{tpu_custom_call.1} parent=5 // pred_fallthru
        _
      %p792 = scmp.le.s32.totalorder 1, %s44
      %p793 = scmp.lt.s32.totalorder %s44, 3
      %p794 = pnand %p792, %p793
      %p795 = pneg %p794
      // Predicated region
      $region105: #{tpu_custom_call.1} parent=5 // pred_check
        _
      $region106: #{tpu_custom_call.1} parent=5 // pred_check_branch
        %797 = sbr.rel (%p794) target = $region108
      $region107: #{tpu_custom_call.1} parent=5 // pred_region
        %s798 = ssub.s32 %s44, 1
        // Predicated region
        $region109: #{tpu_custom_call.1} parent=107 // pred_check
          %p799 = pneg %p117
        $region110: #{tpu_custom_call.1} parent=107 // pred_check_branch
          %801 = sbr.rel (%p799) target = $region112
        $region111: #{tpu_custom_call.1} parent=107 // pred_region
          %802 = dma.done [#allocation4], 256
        $region112: #{tpu_custom_call.1} parent=107 // pred_fallthru
          _
        // Predicated region
        $region113: #{tpu_custom_call.1} parent=107 // pred_check
          %p803 = pneg %p138
        $region114: #{tpu_custom_call.1} parent=107 // pred_check_branch
          %805 = sbr.rel (%p803) target = $region116
        $region115: #{tpu_custom_call.1} parent=107 // pred_region
          %806 = dma.done [#allocation7], 16
        $region116: #{tpu_custom_call.1} parent=107 // pred_fallthru
          _
        // Predicated region
        $region117: #{tpu_custom_call.1} parent=107 // pred_check
          %p807 = pneg %p159
        $region118: #{tpu_custom_call.1} parent=107 // pred_check_branch
          %809 = sbr.rel (%p807) target = $region120
        $region119: #{tpu_custom_call.1} parent=107 // pred_region
          %810 = dma.done [#allocation7], 256
        $region120: #{tpu_custom_call.1} parent=107 // pred_fallthru
          _
        // Predicated region
        $region121: #{tpu_custom_call.1} parent=107 // pred_check
          %p811 = pneg %p180
        $region122: #{tpu_custom_call.1} parent=107 // pred_check_branch
          %813 = sbr.rel (%p811) target = $region124
        $region123: #{tpu_custom_call.1} parent=107 // pred_region
          %814 = dma.done [#allocation10], 16
        $region124: #{tpu_custom_call.1} parent=107 // pred_fallthru
          _
        // Predicated region
        $region125: #{tpu_custom_call.1} parent=107 // pred_check
          %p815 = pneg %p201
        $region126: #{tpu_custom_call.1} parent=107 // pred_check_branch
          %817 = sbr.rel (%p815) target = $region128
        $region127: #{tpu_custom_call.1} parent=107 // pred_region
          %818 = dma.done [#allocation10], 16
        $region128: #{tpu_custom_call.1} parent=107 // pred_fallthru
          _
        // Predicated region
        $region129: #{tpu_custom_call.1} parent=107 // pred_check
          %p819 = pneg %p222
        $region130: #{tpu_custom_call.1} parent=107 // pred_check_branch
          %821 = sbr.rel (%p819) target = $region132
        $region131: #{tpu_custom_call.1} parent=107 // pred_region
          %822 = dma.done [#allocation13], 16
        $region132: #{tpu_custom_call.1} parent=107 // pred_fallthru
          _
        // Predicated region
        $region133: #{tpu_custom_call.1} parent=107 // pred_check
          %p823 = pneg %p243
        $region134: #{tpu_custom_call.1} parent=107 // pred_check_branch
          %825 = sbr.rel (%p823) target = $region136
        $region135: #{tpu_custom_call.1} parent=107 // pred_region
          %826 = dma.done [#allocation13], 256
        $region136: #{tpu_custom_call.1} parent=107 // pred_fallthru
          _
        // Predicated region
        $region137: #{tpu_custom_call.1} parent=107 // pred_check
          %p827 = pneg %p264
        $region138: #{tpu_custom_call.1} parent=107 // pred_check_branch
          %829 = sbr.rel (%p827) target = $region140
        $region139: #{tpu_custom_call.1} parent=107 // pred_region
          %830 = dma.done [#allocation16], 16
        $region140: #{tpu_custom_call.1} parent=107 // pred_fallthru
          _
        // Predicated region
        $region141: #{tpu_custom_call.1} parent=107 // pred_check
          %p831 = pneg %p306
        $region142: #{tpu_custom_call.1} parent=107 // pred_check_branch
          %833 = sbr.rel (%p831) target = $region144
        $region143: #{tpu_custom_call.1} parent=107 // pred_region
          %834 = dma.done [#allocation16], 16
        $region144: #{tpu_custom_call.1} parent=107 // pred_fallthru
          _
        // Predicated region
        $region145: #{tpu_custom_call.1} parent=107 // pred_check
          %p835 = pneg %p327
        $region146: #{tpu_custom_call.1} parent=107 // pred_check_branch
          %837 = sbr.rel (%p835) target = $region148
        $region147: #{tpu_custom_call.1} parent=107 // pred_region
          %838 = dma.done [#allocation19], 256
        $region148: #{tpu_custom_call.1} parent=107 // pred_fallthru
          _
        // Predicated region
        $region149: #{tpu_custom_call.1} parent=107 // pred_check
          %p839 = pneg %p348
        $region150: #{tpu_custom_call.1} parent=107 // pred_check_branch
          %841 = sbr.rel (%p839) target = $region152
        $region151: #{tpu_custom_call.1} parent=107 // pred_region
          %842 = dma.done [#allocation19], 16
        $region152: #{tpu_custom_call.1} parent=107 // pred_fallthru
          _
        // Predicated region
        $region153: #{tpu_custom_call.1} parent=107 // pred_check
          %p843 = pneg %p369
        $region154: #{tpu_custom_call.1} parent=107 // pred_check_branch
          %845 = sbr.rel (%p843) target = $region156
        $region155: #{tpu_custom_call.1} parent=107 // pred_region
          %846 = dma.done [#allocation22], 16
        $region156: #{tpu_custom_call.1} parent=107 // pred_fallthru
          _
        // Predicated region
        $region157: #{tpu_custom_call.1} parent=107 // pred_check
          %p847 = pneg %p390
        $region158: #{tpu_custom_call.1} parent=107 // pred_check_branch
          %849 = sbr.rel (%p847) target = $region160
        $region159: #{tpu_custom_call.1} parent=107 // pred_region
          %850 = dma.done [#allocation22], 16
        $region160: #{tpu_custom_call.1} parent=107 // pred_fallthru
          _
        // Predicated region
        $region161: #{tpu_custom_call.1} parent=107 // pred_check
          %p851 = pneg %p411
        $region162: #{tpu_custom_call.1} parent=107 // pred_check_branch
          %853 = sbr.rel (%p851) target = $region164
        $region163: #{tpu_custom_call.1} parent=107 // pred_region
          %854 = dma.done [#allocation25], 256
        $region164: #{tpu_custom_call.1} parent=107 // pred_fallthru
          _
        // Predicated region
        $region165: #{tpu_custom_call.1} parent=107 // pred_check
          %p855 = pneg %p432
        $region166: #{tpu_custom_call.1} parent=107 // pred_check_branch
          %857 = sbr.rel (%p855) target = $region168
        $region167: #{tpu_custom_call.1} parent=107 // pred_region
          %858 = dma.done [#allocation25], 16
        $region168: #{tpu_custom_call.1} parent=107 // pred_fallthru
          _
        %p859 = scmp.lt.s32.totalorder %s49, 1
        %s860 = scalar_select %p859, %s49, 1
        %s861 = smul.addr %s860, 8
        %s862 = scalar_lea.vmem %s0, %s861
        %p863 = pneg %p70
        %p864 = pneg %p67
        %p865 = scmp.lt.s32.totalorder %s49, 1
        %s866 = scalar_select %p865, %s49, 1
        %s867 = smul.addr %s866, 2
        %s868 = smul.addr %s867, 8
        %s869 = scalar_lea.vmem %s1, %s868
        %p870 = pneg %p96
        %p871 = pneg %p93
        %p872 = pneg %p117
        %p873 = pneg %p114
        %p874 = pneg %p138
        %p875 = pneg %p135
        %p876 = pneg %p159
        %p877 = pneg %p156
        %p878 = pneg %p180
        %p879 = pneg %p177
        %p880 = pneg %p201
        %p881 = pneg %p198
        %p882 = pneg %p222
        %p883 = pneg %p219
        %p884 = pneg %p243
        %p885 = pneg %p240
        %p886 = pneg %p264
        %p887 = pneg %p261
        %p888 = pneg %p285
        %p889 = pneg %p282
        %p890 = pneg %p306
        %p891 = pneg %p303
        %p892 = pneg %p327
        %p893 = pneg %p324
        %p894 = pneg %p348
        %p895 = pneg %p345
        %p896 = pneg %p369
        %p897 = pneg %p366
        %p898 = pneg %p390
        %p899 = pneg %p387
        %p900 = pneg %p411
        %p901 = pneg %p408
        %p902 = pneg %p432
        %p903 = pneg %p429
        %p904 = pneg %p453
        %p905 = pneg %p450
        %p906 = pneg %p474
        %p907 = pneg %p471
        %p908 = pneg %p495
        %p909 = pneg %p492
        %p910 = pneg %p516
        %p911 = pneg %p513
        %p912 = pneg %p542
        %p913 = pneg %p539
        %s914 = sand.u32 %s529, 1
        %s915 = scalar_lea.sflag [#allocation5], %s914
        %s916 = sand.u32 %s529, 1
        %s917 = smul.addr %s916, 8
        %s918 = scalar_lea.vmem [#allocation27], %s917
        %p919 = pneg %p568
        %p920 = pneg %p565
        %s921 = sand.u32 %s555, 1
        %s922 = scalar_lea.sflag [#allocation29], %s921
        %s923 = sand.u32 %s555, 1
        %s924 = smul.addr %s923, 4
        %s925 = scalar_lea.vmem [#allocation28], %s924
        %p926 = scmp.lt.s32.totalorder %s49, 1
        %s927 = scalar_select %p926, %s49, 1
        %s928 = smul.addr %s927, 8
        %s929 = scalar_lea.vmem %s0, %s928
        %p930 = scmp.lt.s32.totalorder %s49, 1
        %s931 = scalar_select %p930, %s49, 1
        %s932 = smul.addr %s931, 2
        %s933 = smul.addr %s932, 8
        %s934 = scalar_lea.vmem %s1, %s933
        %v936 = vld [vmem:[%s929] sm:$0xff]
        %v937 = vld [vmem:[%s934] sm:$0xff]
        %v938 = vld [vmem:[%s934 + $0x8] sm:$0xff]
        %v939 = vpack.c.bf16 %v938, %v937
        %v940 = vpack.c.bf16 %v936, %v936
        %v941 = vld [vmem:[#allocation3] sm:$0xf]
        %v942 = vld [vmem:[#allocation3 + $0x4] sm:$0xf]
        %v943 = vld [vmem:[#allocation3 + $0x8] sm:$0xf]
        %v944 = vld [vmem:[#allocation3 + $0xc] sm:$0xf]
        %v945 = vld [vmem:[#allocation6] sm:$0x1]
        %v947 = vlaneseq
        %v948 = vshrl.u32 %v947, 7
        %v949 = vsub.s32 0, %v948
        %v950 = vrot.slane %v945, %v949
        %v956 = vunpack.c.l.b16 %v941
        %v957 = vunpack.c.l.b16 %v942
        %v958 = vunpack.c.l.b16 %v943
        %v959 = vunpack.c.l.b16 %v944
        %v960 = vpack.c.b16 %v957, %v956
        %v961 = vpack.c.b16 %v959, %v958
        %vm964 = vcmask 261120
        %v966 = vsel %vm964, %v940, 0
        %968 = vmatprep.subr.bf16.mxu0 0
        %969 = vmatpush1.bf16.msra.mxu0 0
        %970 = vmatprep.subr.bf16.mxu0 0
        %971 = vmatpush1.bf16.msra.mxu0 0
        %972 = vmatprep.subr.bf16.mxu0 0
        %973 = vmatpush1.bf16.msra.mxu0 0
        %974 = vmatprep.subr.bf16.mxu0 0
        %975 = vmatpush1.bf16.msra.mxu0 0
        %976 = vmatprep.subr.bf16.mxu0 0
        %977 = vmatpush1.bf16.msra.mxu0 0
        %978 = vmatprep.subr.bf16.mxu0 0
        %979 = vmatpush1.bf16.msra.mxu0 0
        %980 = vmatprep.subr.bf16.mxu0 0
        %981 = vmatpush1.bf16.msra.mxu0 %v961
        %982 = vmatprep.subr.bf16.mxu0 0
        %983 = vmatpush1.bf16.msra.mxu0 %v960
        %984 = vmatprep.subr.bf16.mxu0 0
        %985 = vmatpush2.bf16.msra.mxu0 0
        %986 = vmatprep.subr.bf16.mxu0 0
        %987 = vmatpush2.bf16.msra.mxu0 0
        %988 = vmatprep.subr.bf16.mxu0 0
        %989 = vmatpush2.bf16.msra.mxu0 0
        %990 = vmatprep.subr.bf16.mxu0 0
        %991 = vmatpush2.bf16.msra.mxu0 0
        %992 = vmatprep.subr.bf16.mxu0 0
        %993 = vmatpush2.bf16.msra.mxu0 0
        %994 = vmatprep.subr.bf16.mxu0 0
        %995 = vmatpush2.bf16.msra.mxu0 0
        %996 = vmatprep.subr.bf16.mxu0 0
        %997 = vmatpush2.bf16.msra.mxu0 0
        %998 = vmatprep.subr.bf16.mxu0 0
        %999 = vmatpush2.bf16.msra.mxu0 0
        %1000 = vmatprep.mubr.bf16.mxu0 0
        %1001 = vmatmul.mubr.bf16.gmra.mxu0 %v966
        %v1002 = vpop.f32.mrf.mxu0
        %v1003 = vadd.f32 %v950, %v1002
        %v1004 = vpop.f32.mrf.mxu0
        %v1005 = vpop.f32.mrf.mxu0
        %v1006 = vpop.f32.mrf.mxu0
        %1007 = vdwg.mxu0
        %v1008 = vpack.c.bf16 %v1003, %v1003
        %v1009 = vlaneseq
        %v1010 = vshrl.u32 %v1009, 7
        %v1011 = vlaneseq
        %v1012 = vand.u32 %v1011, 127
        %vm1013 = vcmp.gt.s32.totalorder %v1012, %v1010
        %v1014 = vsel %vm1013, -1e+30, 0.0
        %1016 = vrot.lane.b32.xlu0 %v1008, 96
        %v1017 = vpop.permute.xlu0 %1016
        %vm1018 = vcmask 64512
        %v1020 = vsel %vm1018, %v1008, 0
        %v1023 = vsel %vm1018, %v1017, 0
        %1025 = vmatprep.subr.bf16.mxu0 0
        %1026 = vmatpush1.bf16.xpose.msra.mxu0 0
        %1027 = vmatprep.subr.bf16.mxu0 0
        %1028 = vmatpush1.bf16.xpose.msra.mxu0 0
        %1029 = vmatprep.subr.bf16.mxu0 0
        %1030 = vmatpush1.bf16.xpose.msra.mxu0 0
        %1031 = vmatprep.subr.bf16.mxu0 0
        %1032 = vmatpush1.bf16.xpose.msra.mxu0 0
        %1033 = vmatprep.subr.bf16.mxu0 0
        %1034 = vmatpush1.bf16.xpose.msra.mxu0 0
        %1035 = vmatprep.subr.bf16.mxu0 0
        %1036 = vmatpush1.bf16.xpose.msra.mxu0 0
        %1037 = vmatprep.subr.bf16.mxu0 0
        %1038 = vmatpush1.bf16.xpose.msra.mxu0 0
        %1039 = vmatprep.subr.bf16.mxu0 0
        %1040 = vmatpush1.bf16.xpose.msra.mxu0 %v1023
        %1041 = vmatprep.subr.bf16.mxu0 0
        %1042 = vmatpush2.bf16.xpose.msra.mxu0 0
        %1043 = vmatprep.subr.bf16.mxu0 0
        %1044 = vmatpush2.bf16.xpose.msra.mxu0 0
        %1045 = vmatprep.subr.bf16.mxu0 0
        %1046 = vmatpush2.bf16.xpose.msra.mxu0 0
        %1047 = vmatprep.subr.bf16.mxu0 0
        %1048 = vmatpush2.bf16.xpose.msra.mxu0 0
        %1049 = vmatprep.subr.bf16.mxu0 0
        %1050 = vmatpush2.bf16.xpose.msra.mxu0 0
        %1051 = vmatprep.subr.bf16.mxu0 0
        %1052 = vmatpush2.bf16.xpose.msra.mxu0 0
        %1053 = vmatprep.subr.bf16.mxu0 0
        %1054 = vmatpush2.bf16.xpose.msra.mxu0 0
        %1055 = vmatprep.subr.bf16.mxu0 0
        %1056 = vmatpush2.bf16.xpose.msra.mxu0 0
        %1057 = vmatprep.mubr.bf16.mxu0 0
        %1058 = vmatmul.mubr.bf16.gmra.mxu0 %v1020
        %v1059 = vpop.f32.mrf.mxu0
        %v1060 = vadd.f32 %v1014, %v1059
        %v1061 = vpop.f32.mrf.mxu0
        %v1062 = vpop.f32.mrf.mxu0
        %v1063 = vpop.f32.mrf.mxu0
        %1064 = vdwg.mxu0
        %v1065 = vsel %vm1018, %v1060, -inf
        %1066 = vmax.xlane.f32.xlu0 %v1065
        %v1067 = vpop.xlane.xlu0 %1066
        %v1068 = vsub.f32 %v1060, %v1067
        %v1069 = vmul.f32 %v1068, 1.442695
        %v1070 = vpow.pop %v1069
        %v1071 = vsel %vm1018, %v1070, 0.0
        %1072 = vadd.xlane.f32.xlu0 %v1071
        %v1073 = vpop.xlane.xlu0 %1072
        %v1074 = vrcp.pop %v1073
        %v1075 = vmul.f32 %v1070, %v1074
        %v1076 = vpack.c.bf16 %v1075, %v1075
        %1077 = vrot.lane.b32.xlu0 %v1008, 64
        %v1078 = vpop.permute.xlu0 %1077
        %v1080 = vsel %vm1018, %v1076, 0
        %vm1082 = vcmask 1043456
        %v1084 = vsel %vm1082, %v1078, 0
        %1086 = vmatprep.subr.bf16.mxu0 0
        %1087 = vmatpush1.bf16.msra.mxu0 0
        %1088 = vmatprep.subr.bf16.mxu0 0
        %1089 = vmatpush1.bf16.msra.mxu0 0
        %1090 = vmatprep.subr.bf16.mxu0 0
        %1091 = vmatpush1.bf16.msra.mxu0 0
        %1092 = vmatprep.subr.bf16.mxu0 0
        %1093 = vmatpush1.bf16.msra.mxu0 0
        %1094 = vmatprep.subr.bf16.mxu0 0
        %1095 = vmatpush1.bf16.msra.mxu0 0
        %1096 = vmatprep.subr.bf16.mxu0 0
        %1097 = vmatpush1.bf16.msra.mxu0 0
        %1098 = vmatprep.subr.bf16.mxu0 0
        %1099 = vmatpush1.bf16.msra.mxu0 0
        %1100 = vmatprep.subr.bf16.mxu0 0
        %1101 = vmatpush1.bf16.msra.mxu0 %v1084
        %1102 = vmatprep.subr.bf16.mxu0 0
        %1103 = vmatpush2.bf16.msra.mxu0 0
        %1104 = vmatprep.subr.bf16.mxu0 0
        %1105 = vmatpush2.bf16.msra.mxu0 0
        %1106 = vmatprep.subr.bf16.mxu0 0
        %1107 = vmatpush2.bf16.msra.mxu0 0
        %1108 = vmatprep.subr.bf16.mxu0 0
        %1109 = vmatpush2.bf16.msra.mxu0 0
        %1110 = vmatprep.subr.bf16.mxu0 0
        %1111 = vmatpush2.bf16.msra.mxu0 0
        %1112 = vmatprep.subr.bf16.mxu0 0
        %1113 = vmatpush2.bf16.msra.mxu0 0
        %1114 = vmatprep.subr.bf16.mxu0 0
        %1115 = vmatpush2.bf16.msra.mxu0 0
        %1116 = vmatprep.subr.bf16.mxu0 0
        %1117 = vmatpush2.bf16.msra.mxu0 0
        %1118 = vmatprep.mubr.bf16.mxu0 0
        %1119 = vmatmul.mubr.bf16.gmra.mxu0 %v1080
        %v1120 = vpop.f32.mrf.mxu0
        %v1121 = vadd.f32 0.0, %v1120
        %v1122 = vpop.f32.mrf.mxu0
        %v1123 = vpop.f32.mrf.mxu0
        %v1124 = vpop.f32.mrf.mxu0
        %1125 = vdwg.mxu0
        %v1126 = vpack.c.bf16 %v1121, %v1121
        %vm1127 = vcmask 60416
        %1128 = vst.msk [vmem:[#allocation2] sm:$0xf] %vm1127, %v1126
        %1129 = vrot.lane.b32.xlu0 %v1008, 120
        %v1130 = vpop.permute.xlu0 %1129
        %1131 = vrot.lane.b32.xlu0 %v1008, 88
        %v1132 = vpop.permute.xlu0 %1131
        %v1134 = vsel %vm1018, %v1130, 0
        %v1137 = vsel %vm1018, %v1132, 0
        %1139 = vmatprep.subr.bf16.mxu0 0
        %1140 = vmatpush1.bf16.xpose.msra.mxu0 0
        %1141 = vmatprep.subr.bf16.mxu0 0
        %1142 = vmatpush1.bf16.xpose.msra.mxu0 0
        %1143 = vmatprep.subr.bf16.mxu0 0
        %1144 = vmatpush1.bf16.xpose.msra.mxu0 0
        %1145 = vmatprep.subr.bf16.mxu0 0
        %1146 = vmatpush1.bf16.xpose.msra.mxu0 0
        %1147 = vmatprep.subr.bf16.mxu0 0
        %1148 = vmatpush1.bf16.xpose.msra.mxu0 0
        %1149 = vmatprep.subr.bf16.mxu0 0
        %1150 = vmatpush1.bf16.xpose.msra.mxu0 0
        %1151 = vmatprep.subr.bf16.mxu0 0
        %1152 = vmatpush1.bf16.xpose.msra.mxu0 0
        %1153 = vmatprep.subr.bf16.mxu0 0
        %1154 = vmatpush1.bf16.xpose.msra.mxu0 %v1137
        %1155 = vmatprep.subr.bf16.mxu0 0
        %1156 = vmatpush2.bf16.xpose.msra.mxu0 0
        %1157 = vmatprep.subr.bf16.mxu0 0
        %1158 = vmatpush2.bf16.xpose.msra.mxu0 0
        %1159 = vmatprep.subr.bf16.mxu0 0
        %1160 = vmatpush2.bf16.xpose.msra.mxu0 0
        %1161 = vmatprep.subr.bf16.mxu0 0
        %1162 = vmatpush2.bf16.xpose.msra.mxu0 0
        %1163 = vmatprep.subr.bf16.mxu0 0
        %1164 = vmatpush2.bf16.xpose.msra.mxu0 0
        %1165 = vmatprep.subr.bf16.mxu0 0
        %1166 = vmatpush2.bf16.xpose.msra.mxu0 0
        %1167 = vmatprep.subr.bf16.mxu0 0
        %1168 = vmatpush2.bf16.xpose.msra.mxu0 0
        %1169 = vmatprep.subr.bf16.mxu0 0
        %1170 = vmatpush2.bf16.xpose.msra.mxu0 0
        %1171 = vmatprep.mubr.bf16.mxu0 0
        %1172 = vmatmul.mubr.bf16.gmra.mxu0 %v1134
        %v1173 = vpop.f32.mrf.mxu0
        %v1174 = vadd.f32 %v1014, %v1173
        %v1175 = vpop.f32.mrf.mxu0
        %v1176 = vpop.f32.mrf.mxu0
        %v1177 = vpop.f32.mrf.mxu0
        %1178 = vdwg.mxu0
        %v1179 = vsel %vm1018, %v1174, -inf
        %1180 = vmax.xlane.f32.xlu0 %v1179
        %v1181 = vpop.xlane.xlu0 %1180
        %v1182 = vsub.f32 %v1174, %v1181
        %v1183 = vmul.f32 %v1182, 1.442695
        %v1184 = vpow.pop %v1183
        %v1185 = vsel %vm1018, %v1184, 0.0
        %1186 = vadd.xlane.f32.xlu0 %v1185
        %v1187 = vpop.xlane.xlu0 %1186
        %v1188 = vrcp.pop %v1187
        %v1189 = vmul.f32 %v1184, %v1188
        %v1190 = vpack.c.bf16 %v1189, %v1189
        %1191 = vrot.lane.b32.xlu0 %v1008, 56
        %v1192 = vpop.permute.xlu0 %1191
        %v1194 = vsel %vm1018, %v1190, 0
        %v1197 = vsel %vm1082, %v1192, 0
        %1199 = vmatprep.subr.bf16.mxu0 0
        %1200 = vmatpush1.bf16.msra.mxu0 0
        %1201 = vmatprep.subr.bf16.mxu0 0
        %1202 = vmatpush1.bf16.msra.mxu0 0
        %1203 = vmatprep.subr.bf16.mxu0 0
        %1204 = vmatpush1.bf16.msra.mxu0 0
        %1205 = vmatprep.subr.bf16.mxu0 0
        %1206 = vmatpush1.bf16.msra.mxu0 0
        %1207 = vmatprep.subr.bf16.mxu0 0
        %1208 = vmatpush1.bf16.msra.mxu0 0
        %1209 = vmatprep.subr.bf16.mxu0 0
        %1210 = vmatpush1.bf16.msra.mxu0 0
        %1211 = vmatprep.subr.bf16.mxu0 0
        %1212 = vmatpush1.bf16.msra.mxu0 0
        %1213 = vmatprep.subr.bf16.mxu0 0
        %1214 = vmatpush1.bf16.msra.mxu0 %v1197
        %1215 = vmatprep.subr.bf16.mxu0 0
        %1216 = vmatpush2.bf16.msra.mxu0 0
        %1217 = vmatprep.subr.bf16.mxu0 0
        %1218 = vmatpush2.bf16.msra.mxu0 0
        %1219 = vmatprep.subr.bf16.mxu0 0
        %1220 = vmatpush2.bf16.msra.mxu0 0
        %1221 = vmatprep.subr.bf16.mxu0 0
        %1222 = vmatpush2.bf16.msra.mxu0 0
        %1223 = vmatprep.subr.bf16.mxu0 0
        %1224 = vmatpush2.bf16.msra.mxu0 0
        %1225 = vmatprep.subr.bf16.mxu0 0
        %1226 = vmatpush2.bf16.msra.mxu0 0
        %1227 = vmatprep.subr.bf16.mxu0 0
        %1228 = vmatpush2.bf16.msra.mxu0 0
        %1229 = vmatprep.subr.bf16.mxu0 0
        %1230 = vmatpush2.bf16.msra.mxu0 0
        %1231 = vmatprep.mubr.bf16.mxu0 0
        %1232 = vmatmul.mubr.bf16.gmra.mxu0 %v1194
        %v1233 = vpop.f32.mrf.mxu0
        %v1234 = vadd.f32 0.0, %v1233
        %v1235 = vpop.f32.mrf.mxu0
        %v1236 = vpop.f32.mrf.mxu0
        %v1237 = vpop.f32.mrf.mxu0
        %1238 = vdwg.mxu0
        %v1239 = vpack.c.bf16 %v1234, %v1234
        %v1241 = vunpack.c.l.b16 %v1239
        %v1242 = vpack.c.b16 %v1241, %v1241
        %1243 = vrot.lane.b32.xlu0 %v1242, 8
        %v1244 = vpop.permute.xlu0 %1243
        %vm1246 = vcmask 126016
        %1247 = vst.msk [vmem:[#allocation2] sm:$0xf] %vm1246, %v1244
        %1248 = vrot.lane.b32.xlu0 %v1008, 112
        %v1249 = vpop.permute.xlu0 %1248
        %1250 = vrot.lane.b32.xlu0 %v1008, 80
        %v1251 = vpop.permute.xlu0 %1250
        %v1253 = vsel %vm1018, %v1249, 0
        %v1256 = vsel %vm1018, %v1251, 0
        %1258 = vmatprep.subr.bf16.mxu0 0
        %1259 = vmatpush1.bf16.xpose.msra.mxu0 0
        %1260 = vmatprep.subr.bf16.mxu0 0
        %1261 = vmatpush1.bf16.xpose.msra.mxu0 0
        %1262 = vmatprep.subr.bf16.mxu0 0
        %1263 = vmatpush1.bf16.xpose.msra.mxu0 0
        %1264 = vmatprep.subr.bf16.mxu0 0
        %1265 = vmatpush1.bf16.xpose.msra.mxu0 0
        %1266 = vmatprep.subr.bf16.mxu0 0
        %1267 = vmatpush1.bf16.xpose.msra.mxu0 0
        %1268 = vmatprep.subr.bf16.mxu0 0
        %1269 = vmatpush1.bf16.xpose.msra.mxu0 0
        %1270 = vmatprep.subr.bf16.mxu0 0
        %1271 = vmatpush1.bf16.xpose.msra.mxu0 0
        %1272 = vmatprep.subr.bf16.mxu0 0
        %1273 = vmatpush1.bf16.xpose.msra.mxu0 %v1256
        %1274 = vmatprep.subr.bf16.mxu0 0
        %1275 = vmatpush2.bf16.xpose.msra.mxu0 0
        %1276 = vmatprep.subr.bf16.mxu0 0
        %1277 = vmatpush2.bf16.xpose.msra.mxu0 0
        %1278 = vmatprep.subr.bf16.mxu0 0
        %1279 = vmatpush2.bf16.xpose.msra.mxu0 0
        %1280 = vmatprep.subr.bf16.mxu0 0
        %1281 = vmatpush2.bf16.xpose.msra.mxu0 0
        %1282 = vmatprep.subr.bf16.mxu0 0
        %1283 = vmatpush2.bf16.xpose.msra.mxu0 0
        %1284 = vmatprep.subr.bf16.mxu0 0
        %1285 = vmatpush2.bf16.xpose.msra.mxu0 0
        %1286 = vmatprep.subr.bf16.mxu0 0
        %1287 = vmatpush2.bf16.xpose.msra.mxu0 0
        %1288 = vmatprep.subr.bf16.mxu0 0
        %1289 = vmatpush2.bf16.xpose.msra.mxu0 0
        %1290 = vmatprep.mubr.bf16.mxu0 0
        %1291 = vmatmul.mubr.bf16.gmra.mxu0 %v1253
        %v1292 = vpop.f32.mrf.mxu0
        %v1293 = vadd.f32 %v1014, %v1292
        %v1294 = vpop.f32.mrf.mxu0
        %v1295 = vpop.f32.mrf.mxu0
        %v1296 = vpop.f32.mrf.mxu0
        %1297 = vdwg.mxu0
        %v1298 = vsel %vm1018, %v1293, -inf
        %1299 = vmax.xlane.f32.xlu0 %v1298
        %v1300 = vpop.xlane.xlu0 %1299
        %v1301 = vsub.f32 %v1293, %v1300
        %v1302 = vmul.f32 %v1301, 1.442695
        %v1303 = vpow.pop %v1302
        %v1304 = vsel %vm1018, %v1303, 0.0
        %1305 = vadd.xlane.f32.xlu0 %v1304
        %v1306 = vpop.xlane.xlu0 %1305
        %v1307 = vrcp.pop %v1306
        %v1308 = vmul.f32 %v1303, %v1307
        %v1309 = vpack.c.bf16 %v1308, %v1308
        %1310 = vrot.lane.b32.xlu0 %v1008, 48
        %v1311 = vpop.permute.xlu0 %1310
        %v1313 = vsel %vm1018, %v1309, 0
        %v1316 = vsel %vm1082, %v1311, 0
        %1318 = vmatprep.subr.bf16.mxu0 0
        %1319 = vmatpush1.bf16.msra.mxu0 0
        %1320 = vmatprep.subr.bf16.mxu0 0
        %1321 = vmatpush1.bf16.msra.mxu0 0
        %1322 = vmatprep.subr.bf16.mxu0 0
        %1323 = vmatpush1.bf16.msra.mxu0 0
        %1324 = vmatprep.subr.bf16.mxu0 0
        %1325 = vmatpush1.bf16.msra.mxu0 0
        %1326 = vmatprep.subr.bf16.mxu0 0
        %1327 = vmatpush1.bf16.msra.mxu0 0
        %1328 = vmatprep.subr.bf16.mxu0 0
        %1329 = vmatpush1.bf16.msra.mxu0 0
        %1330 = vmatprep.subr.bf16.mxu0 0
        %1331 = vmatpush1.bf16.msra.mxu0 0
        %1332 = vmatprep.subr.bf16.mxu0 0
        %1333 = vmatpush1.bf16.msra.mxu0 %v1316
        %1334 = vmatprep.subr.bf16.mxu0 0
        %1335 = vmatpush2.bf16.msra.mxu0 0
        %1336 = vmatprep.subr.bf16.mxu0 0
        %1337 = vmatpush2.bf16.msra.mxu0 0
        %1338 = vmatprep.subr.bf16.mxu0 0
        %1339 = vmatpush2.bf16.msra.mxu0 0
        %1340 = vmatprep.subr.bf16.mxu0 0
        %1341 = vmatpush2.bf16.msra.mxu0 0
        %1342 = vmatprep.subr.bf16.mxu0 0
        %1343 = vmatpush2.bf16.msra.mxu0 0
        %1344 = vmatprep.subr.bf16.mxu0 0
        %1345 = vmatpush2.bf16.msra.mxu0 0
        %1346 = vmatprep.subr.bf16.mxu0 0
        %1347 = vmatpush2.bf16.msra.mxu0 0
        %1348 = vmatprep.subr.bf16.mxu0 0
        %1349 = vmatpush2.bf16.msra.mxu0 0
        %1350 = vmatprep.mubr.bf16.mxu0 0
        %1351 = vmatmul.mubr.bf16.gmra.mxu0 %v1313
        %v1352 = vpop.f32.mrf.mxu0
        %v1353 = vadd.f32 0.0, %v1352
        %v1354 = vpop.f32.mrf.mxu0
        %v1355 = vpop.f32.mrf.mxu0
        %v1356 = vpop.f32.mrf.mxu0
        %1357 = vdwg.mxu0
        %v1358 = vpack.c.bf16 %v1353, %v1353
        %v1360 = vunpack.c.l.b16 %v1358
        %v1361 = vpack.c.b16 %v1360, %v1360
        %1362 = vrot.lane.b32.xlu0 %v1361, 16
        %v1363 = vpop.permute.xlu0 %1362
        %vm1365 = vcmask 191616
        %1366 = vst.msk [vmem:[#allocation2] sm:$0xf] %vm1365, %v1363
        %1367 = vrot.lane.b32.xlu0 %v1008, 104
        %v1368 = vpop.permute.xlu0 %1367
        %1369 = vrot.lane.b32.xlu0 %v1008, 72
        %v1370 = vpop.permute.xlu0 %1369
        %v1372 = vsel %vm1018, %v1368, 0
        %v1375 = vsel %vm1018, %v1370, 0
        %1377 = vmatprep.subr.bf16.mxu0 0
        %1378 = vmatpush1.bf16.xpose.msra.mxu0 0
        %1379 = vmatprep.subr.bf16.mxu0 0
        %1380 = vmatpush1.bf16.xpose.msra.mxu0 0
        %1381 = vmatprep.subr.bf16.mxu0 0
        %1382 = vmatpush1.bf16.xpose.msra.mxu0 0
        %1383 = vmatprep.subr.bf16.mxu0 0
        %1384 = vmatpush1.bf16.xpose.msra.mxu0 0
        %1385 = vmatprep.subr.bf16.mxu0 0
        %1386 = vmatpush1.bf16.xpose.msra.mxu0 0
        %1387 = vmatprep.subr.bf16.mxu0 0
        %1388 = vmatpush1.bf16.xpose.msra.mxu0 0
        %1389 = vmatprep.subr.bf16.mxu0 0
        %1390 = vmatpush1.bf16.xpose.msra.mxu0 0
        %1391 = vmatprep.subr.bf16.mxu0 0
        %1392 = vmatpush1.bf16.xpose.msra.mxu0 %v1375
        %1393 = vmatprep.subr.bf16.mxu0 0
        %1394 = vmatpush2.bf16.xpose.msra.mxu0 0
        %1395 = vmatprep.subr.bf16.mxu0 0
        %1396 = vmatpush2.bf16.xpose.msra.mxu0 0
        %1397 = vmatprep.subr.bf16.mxu0 0
        %1398 = vmatpush2.bf16.xpose.msra.mxu0 0
        %1399 = vmatprep.subr.bf16.mxu0 0
        %1400 = vmatpush2.bf16.xpose.msra.mxu0 0
        %1401 = vmatprep.subr.bf16.mxu0 0
        %1402 = vmatpush2.bf16.xpose.msra.mxu0 0
        %1403 = vmatprep.subr.bf16.mxu0 0
        %1404 = vmatpush2.bf16.xpose.msra.mxu0 0
        %1405 = vmatprep.subr.bf16.mxu0 0
        %1406 = vmatpush2.bf16.xpose.msra.mxu0 0
        %1407 = vmatprep.subr.bf16.mxu0 0
        %1408 = vmatpush2.bf16.xpose.msra.mxu0 0
        %1409 = vmatprep.mubr.bf16.mxu0 0
        %1410 = vmatmul.mubr.bf16.gmra.mxu0 %v1372
        %v1411 = vpop.f32.mrf.mxu0
        %v1412 = vadd.f32 %v1014, %v1411
        %v1413 = vpop.f32.mrf.mxu0
        %v1414 = vpop.f32.mrf.mxu0
        %v1415 = vpop.f32.mrf.mxu0
        %1416 = vdwg.mxu0
        %v1417 = vsel %vm1018, %v1412, -inf
        %1418 = vmax.xlane.f32.xlu0 %v1417
        %v1419 = vpop.xlane.xlu0 %1418
        %v1420 = vsub.f32 %v1412, %v1419
        %v1421 = vmul.f32 %v1420, 1.442695
        %v1422 = vpow.pop %v1421
        %v1423 = vsel %vm1018, %v1422, 0.0
        %1424 = vadd.xlane.f32.xlu0 %v1423
        %v1425 = vpop.xlane.xlu0 %1424
        %v1426 = vrcp.pop %v1425
        %v1427 = vmul.f32 %v1422, %v1426
        %v1428 = vpack.c.bf16 %v1427, %v1427
        %1429 = vrot.lane.b32.xlu0 %v1008, 40
        %v1430 = vpop.permute.xlu0 %1429
        %v1432 = vsel %vm1018, %v1428, 0
        %v1435 = vsel %vm1082, %v1430, 0
        %1437 = vmatprep.subr.bf16.mxu0 0
        %1438 = vmatpush1.bf16.msra.mxu0 0
        %1439 = vmatprep.subr.bf16.mxu0 0
        %1440 = vmatpush1.bf16.msra.mxu0 0
        %1441 = vmatprep.subr.bf16.mxu0 0
        %1442 = vmatpush1.bf16.msra.mxu0 0
        %1443 = vmatprep.subr.bf16.mxu0 0
        %1444 = vmatpush1.bf16.msra.mxu0 0
        %1445 = vmatprep.subr.bf16.mxu0 0
        %1446 = vmatpush1.bf16.msra.mxu0 0
        %1447 = vmatprep.subr.bf16.mxu0 0
        %1448 = vmatpush1.bf16.msra.mxu0 0
        %1449 = vmatprep.subr.bf16.mxu0 0
        %1450 = vmatpush1.bf16.msra.mxu0 0
        %1451 = vmatprep.subr.bf16.mxu0 0
        %1452 = vmatpush1.bf16.msra.mxu0 %v1435
        %1453 = vmatprep.subr.bf16.mxu0 0
        %1454 = vmatpush2.bf16.msra.mxu0 0
        %1455 = vmatprep.subr.bf16.mxu0 0
        %1456 = vmatpush2.bf16.msra.mxu0 0
        %1457 = vmatprep.subr.bf16.mxu0 0
        %1458 = vmatpush2.bf16.msra.mxu0 0
        %1459 = vmatprep.subr.bf16.mxu0 0
        %1460 = vmatpush2.bf16.msra.mxu0 0
        %1461 = vmatprep.subr.bf16.mxu0 0
        %1462 = vmatpush2.bf16.msra.mxu0 0
        %1463 = vmatprep.subr.bf16.mxu0 0
        %1464 = vmatpush2.bf16.msra.mxu0 0
        %1465 = vmatprep.subr.bf16.mxu0 0
        %1466 = vmatpush2.bf16.msra.mxu0 0
        %1467 = vmatprep.subr.bf16.mxu0 0
        %1468 = vmatpush2.bf16.msra.mxu0 0
        %1469 = vmatprep.mubr.bf16.mxu0 0
        %1470 = vmatmul.mubr.bf16.gmra.mxu0 %v1432
        %v1471 = vpop.f32.mrf.mxu0
        %v1472 = vadd.f32 0.0, %v1471
        %v1473 = vpop.f32.mrf.mxu0
        %v1474 = vpop.f32.mrf.mxu0
        %v1475 = vpop.f32.mrf.mxu0
        %1476 = vdwg.mxu0
        %v1477 = vpack.c.bf16 %v1472, %v1472
        %v1479 = vunpack.c.l.b16 %v1477
        %v1480 = vpack.c.b16 %v1479, %v1479
        %1481 = vrot.lane.b32.xlu0 %v1480, 24
        %v1482 = vpop.permute.xlu0 %1481
        %vm1484 = vcmask 257216
        %1485 = vst.msk [vmem:[#allocation2] sm:$0xf] %vm1484, %v1482
        %v1486 = vld [vmem:[#allocation2] sm:$0xf]
        %v1487 = vld [vmem:[#allocation8] sm:$0xf]
        %v1488 = vld [vmem:[#allocation8 + $0x4] sm:$0xf]
        %v1489 = vld [vmem:[#allocation8 + $0x8] sm:$0xf]
        %v1490 = vld [vmem:[#allocation8 + $0xc] sm:$0xf]
        %v1491 = vld [vmem:[#allocation9] sm:$0x1]
        %v1493 = vlaneseq
        %v1494 = vshrl.u32 %v1493, 7
        %v1495 = vsub.s32 0, %v1494
        %v1496 = vrot.slane %v1491, %v1495
        %v1502 = vunpack.c.l.b16 %v1487
        %v1503 = vunpack.c.l.b16 %v1488
        %v1504 = vunpack.c.l.b16 %v1489
        %v1505 = vunpack.c.l.b16 %v1490
        %v1506 = vpack.c.b16 %v1503, %v1502
        %v1507 = vpack.c.b16 %v1505, %v1504
        %v1511 = vsel %vm964, %v1486, 0
        %1513 = vmatprep.subr.bf16.mxu0 0
        %1514 = vmatpush1.bf16.msra.mxu0 0
        %1515 = vmatprep.subr.bf16.mxu0 0
        %1516 = vmatpush1.bf16.msra.mxu0 0
        %1517 = vmatprep.subr.bf16.mxu0 0
        %1518 = vmatpush1.bf16.msra.mxu0 0
        %1519 = vmatprep.subr.bf16.mxu0 0
        %1520 = vmatpush1.bf16.msra.mxu0 0
        %1521 = vmatprep.subr.bf16.mxu0 0
        %1522 = vmatpush1.bf16.msra.mxu0 0
        %1523 = vmatprep.subr.bf16.mxu0 0
        %1524 = vmatpush1.bf16.msra.mxu0 0
        %1525 = vmatprep.subr.bf16.mxu0 0
        %1526 = vmatpush1.bf16.msra.mxu0 %v1507
        %1527 = vmatprep.subr.bf16.mxu0 0
        %1528 = vmatpush1.bf16.msra.mxu0 %v1506
        %1529 = vmatprep.subr.bf16.mxu0 0
        %1530 = vmatpush2.bf16.msra.mxu0 0
        %1531 = vmatprep.subr.bf16.mxu0 0
        %1532 = vmatpush2.bf16.msra.mxu0 0
        %1533 = vmatprep.subr.bf16.mxu0 0
        %1534 = vmatpush2.bf16.msra.mxu0 0
        %1535 = vmatprep.subr.bf16.mxu0 0
        %1536 = vmatpush2.bf16.msra.mxu0 0
        %1537 = vmatprep.subr.bf16.mxu0 0
        %1538 = vmatpush2.bf16.msra.mxu0 0
        %1539 = vmatprep.subr.bf16.mxu0 0
        %1540 = vmatpush2.bf16.msra.mxu0 0
        %1541 = vmatprep.subr.bf16.mxu0 0
        %1542 = vmatpush2.bf16.msra.mxu0 0
        %1543 = vmatprep.subr.bf16.mxu0 0
        %1544 = vmatpush2.bf16.msra.mxu0 0
        %1545 = vmatprep.mubr.bf16.mxu0 0
        %1546 = vmatmul.mubr.bf16.gmra.mxu0 %v1511
        %v1547 = vpop.f32.mrf.mxu0
        %v1548 = vadd.f32 %v1496, %v1547
        %v1549 = vpop.f32.mrf.mxu0
        %v1550 = vpop.f32.mrf.mxu0
        %v1551 = vpop.f32.mrf.mxu0
        %1552 = vdwg.mxu0
        %v1553 = vadd.f32 %v1548, %v936
        %v1554 = vld [vmem:[#allocation11] sm:$0x1]
        %v1555 = vld [vmem:[#allocation12] sm:$0x1]
        %v1556 = vsel %vm964, %v1553, 0.0
        %1557 = vadd.xlane.f32.xlu0 %v1556
        %v1558 = vpop.xlane.xlu0 %1557
        %v1559 = vrcp.pop 32.0
        %v1560 = vmul.f32 %v1558, %v1559
        %v1561 = vsub.f32 %v1553, %v1560
        %v1562 = vmul.f32 %v1561, %v1561
        %v1563 = vsel %vm964, %v1562, 0.0
        %1564 = vadd.xlane.f32.xlu0 %v1563
        %v1565 = vpop.xlane.xlu0 %1564
        %v1566 = vmul.f32 %v1565, %v1559
        %v1567 = vadd.f32 %v1566, 1e-05
        %v1568 = vrsqrt.pop %v1567
        %v1569 = vmul.f32 %v1561, %v1568
        %v1571 = vlaneseq
        %v1572 = vshrl.u32 %v1571, 7
        %v1573 = vsub.s32 0, %v1572
        %v1574 = vrot.slane %v1554, %v1573
        %v1576 = vmul.f32 %v1569, %v1574
        %v1578 = vlaneseq
        %v1579 = vshrl.u32 %v1578, 7
        %v1580 = vsub.s32 0, %v1579
        %v1581 = vrot.slane %v1555, %v1580
        %v1583 = vadd.f32 %v1576, %v1581
        %v1584 = vpack.c.bf16 %v1583, %v1583
        %v1585 = vld [vmem:[#allocation14] sm:$0xf]
        %v1586 = vld [vmem:[#allocation14 + $0x4] sm:$0xf]
        %v1587 = vld [vmem:[#allocation14 + $0x8] sm:$0xf]
        %v1588 = vld [vmem:[#allocation14 + $0xc] sm:$0xf]
        %v1589 = vld [vmem:[#allocation15] sm:$0x1]
        %v1591 = vlaneseq
        %v1592 = vshrl.u32 %v1591, 7
        %v1593 = vsub.s32 0, %v1592
        %v1594 = vrot.slane %v1589, %v1593
        %v1600 = vunpack.c.l.b16 %v1585
        %v1601 = vunpack.c.l.b16 %v1586
        %v1602 = vunpack.c.l.b16 %v1587
        %v1603 = vunpack.c.l.b16 %v1588
        %v1604 = vpack.c.b16 %v1601, %v1600
        %v1605 = vpack.c.b16 %v1603, %v1602
        %v1609 = vsel %vm964, %v1584, 0
        %1611 = vmatprep.subr.bf16.mxu0 0
        %1612 = vmatpush1.bf16.msra.mxu0 0
        %1613 = vmatprep.subr.bf16.mxu0 0
        %1614 = vmatpush1.bf16.msra.mxu0 0
        %1615 = vmatprep.subr.bf16.mxu0 0
        %1616 = vmatpush1.bf16.msra.mxu0 0
        %1617 = vmatprep.subr.bf16.mxu0 0
        %1618 = vmatpush1.bf16.msra.mxu0 0
        %1619 = vmatprep.subr.bf16.mxu0 0
        %1620 = vmatpush1.bf16.msra.mxu0 0
        %1621 = vmatprep.subr.bf16.mxu0 0
        %1622 = vmatpush1.bf16.msra.mxu0 0
        %1623 = vmatprep.subr.bf16.mxu0 0
        %1624 = vmatpush1.bf16.msra.mxu0 %v1605
        %1625 = vmatprep.subr.bf16.mxu0 0
        %1626 = vmatpush1.bf16.msra.mxu0 %v1604
        %1627 = vmatprep.subr.bf16.mxu0 0
        %1628 = vmatpush2.bf16.msra.mxu0 0
        %1629 = vmatprep.subr.bf16.mxu0 0
        %1630 = vmatpush2.bf16.msra.mxu0 0
        %1631 = vmatprep.subr.bf16.mxu0 0
        %1632 = vmatpush2.bf16.msra.mxu0 0
        %1633 = vmatprep.subr.bf16.mxu0 0
        %1634 = vmatpush2.bf16.msra.mxu0 0
        %1635 = vmatprep.subr.bf16.mxu0 0
        %1636 = vmatpush2.bf16.msra.mxu0 0
        %1637 = vmatprep.subr.bf16.mxu0 0
        %1638 = vmatpush2.bf16.msra.mxu0 0
        %1639 = vmatprep.subr.bf16.mxu0 0
        %1640 = vmatpush2.bf16.msra.mxu0 0
        %1641 = vmatprep.subr.bf16.mxu0 0
        %1642 = vmatpush2.bf16.msra.mxu0 0
        %1643 = vmatprep.mubr.bf16.mxu0 0
        %1644 = vmatmul.mubr.bf16.gmra.mxu0 %v1609
        %v1645 = vpop.f32.mrf.mxu0
        %v1646 = vadd.f32 %v1594, %v1645
        %v1647 = vpop.f32.mrf.mxu0
        %v1648 = vpop.f32.mrf.mxu0
        %v1649 = vpop.f32.mrf.mxu0
        %1650 = vdwg.mxu0
        %v1651 = vld [vmem:[%s10] sm:$0xf]
        %v1652 = vld [vmem:[%s10 + $0x4] sm:$0xf]
        %v1653 = vld [vmem:[%s10 + $0x8] sm:$0xf]
        %v1654 = vld [vmem:[%s10 + $0xc] sm:$0xf]
        %v1655 = vld [vmem:[#allocation17] sm:$0x1]
        %v1657 = vlaneseq
        %v1658 = vshrl.u32 %v1657, 7
        %v1659 = vsub.s32 0, %v1658
        %v1660 = vrot.slane %v1655, %v1659
        %v1666 = vunpack.c.l.b16 %v1651
        %v1667 = vunpack.c.l.b16 %v1652
        %v1668 = vunpack.c.l.b16 %v1653
        %v1669 = vunpack.c.l.b16 %v1654
        %v1670 = vpack.c.b16 %v1667, %v1666
        %v1671 = vpack.c.b16 %v1669, %v1668
        %v1675 = vsel %vm964, %v939, 0
        %1677 = vmatprep.subr.bf16.mxu0 0
        %1678 = vmatpush1.bf16.msra.mxu0 0
        %1679 = vmatprep.subr.bf16.mxu0 0
        %1680 = vmatpush1.bf16.msra.mxu0 0
        %1681 = vmatprep.subr.bf16.mxu0 0
        %1682 = vmatpush1.bf16.msra.mxu0 0
        %1683 = vmatprep.subr.bf16.mxu0 0
        %1684 = vmatpush1.bf16.msra.mxu0 0
        %1685 = vmatprep.subr.bf16.mxu0 0
        %1686 = vmatpush1.bf16.msra.mxu0 0
        %1687 = vmatprep.subr.bf16.mxu0 0
        %1688 = vmatpush1.bf16.msra.mxu0 0
        %1689 = vmatprep.subr.bf16.mxu0 0
        %1690 = vmatpush1.bf16.msra.mxu0 %v1671
        %1691 = vmatprep.subr.bf16.mxu0 0
        %1692 = vmatpush1.bf16.msra.mxu0 %v1670
        %1693 = vmatprep.subr.bf16.mxu0 0
        %1694 = vmatpush2.bf16.msra.mxu0 0
        %1695 = vmatprep.subr.bf16.mxu0 0
        %1696 = vmatpush2.bf16.msra.mxu0 0
        %1697 = vmatprep.subr.bf16.mxu0 0
        %1698 = vmatpush2.bf16.msra.mxu0 0
        %1699 = vmatprep.subr.bf16.mxu0 0
        %1700 = vmatpush2.bf16.msra.mxu0 0
        %1701 = vmatprep.subr.bf16.mxu0 0
        %1702 = vmatpush2.bf16.msra.mxu0 0
        %1703 = vmatprep.subr.bf16.mxu0 0
        %1704 = vmatpush2.bf16.msra.mxu0 0
        %1705 = vmatprep.subr.bf16.mxu0 0
        %1706 = vmatpush2.bf16.msra.mxu0 0
        %1707 = vmatprep.subr.bf16.mxu0 0
        %1708 = vmatpush2.bf16.msra.mxu0 0
        %1709 = vmatprep.mubr.bf16.mxu0 0
        %1710 = vmatmul.mubr.bf16.gmra.mxu0 %v1675
        %v1711 = vpop.f32.mrf.mxu0
        %v1712 = vadd.f32 %v1660, %v1711
        %v1713 = vpop.f32.mrf.mxu0
        %v1714 = vpop.f32.mrf.mxu0
        %v1715 = vadd.f32 %v1660, %v1714
        %v1716 = vpop.f32.mrf.mxu0
        %1717 = vdwg.mxu0
        %v1718 = vpack.c.bf16 %v1646, %v1646
        %v1719 = vpack.c.bf16 %v1715, %v1712
        %v1721 = vsel %vm1018, %v1718, 0
        %v1724 = vsel %vm1018, %v1719, 0
        %1726 = vmatprep.subr.bf16.mxu0 0
        %1727 = vmatpush1.bf16.xpose.msra.mxu0 0
        %1728 = vmatprep.subr.bf16.mxu0 0
        %1729 = vmatpush1.bf16.xpose.msra.mxu0 0
        %1730 = vmatprep.subr.bf16.mxu0 0
        %1731 = vmatpush1.bf16.xpose.msra.mxu0 0
        %1732 = vmatprep.subr.bf16.mxu0 0
        %1733 = vmatpush1.bf16.xpose.msra.mxu0 0
        %1734 = vmatprep.subr.bf16.mxu0 0
        %1735 = vmatpush1.bf16.xpose.msra.mxu0 0
        %1736 = vmatprep.subr.bf16.mxu0 0
        %1737 = vmatpush1.bf16.xpose.msra.mxu0 0
        %1738 = vmatprep.subr.bf16.mxu0 0
        %1739 = vmatpush1.bf16.xpose.msra.mxu0 0
        %1740 = vmatprep.subr.bf16.mxu0 0
        %1741 = vmatpush1.bf16.xpose.msra.mxu0 %v1724
        %1742 = vmatprep.subr.bf16.mxu0 0
        %1743 = vmatpush2.bf16.xpose.msra.mxu0 0
        %1744 = vmatprep.subr.bf16.mxu0 0
        %1745 = vmatpush2.bf16.xpose.msra.mxu0 0
        %1746 = vmatprep.subr.bf16.mxu0 0
        %1747 = vmatpush2.bf16.xpose.msra.mxu0 0
        %1748 = vmatprep.subr.bf16.mxu0 0
        %1749 = vmatpush2.bf16.xpose.msra.mxu0 0
        %1750 = vmatprep.subr.bf16.mxu0 0
        %1751 = vmatpush2.bf16.xpose.msra.mxu0 0
        %1752 = vmatprep.subr.bf16.mxu0 0
        %1753 = vmatpush2.bf16.xpose.msra.mxu0 0
        %1754 = vmatprep.subr.bf16.mxu0 0
        %1755 = vmatpush2.bf16.xpose.msra.mxu0 0
        %1756 = vmatprep.subr.bf16.mxu0 0
        %1757 = vmatpush2.bf16.xpose.msra.mxu0 0
        %1758 = vmatprep.mubr.bf16.mxu0 0
        %1759 = vmatmul.mubr.bf16.gmra.mxu0 %v1721
        %v1760 = vpop.f32.mrf.mxu0
        %v1761 = vadd.f32 0.0, %v1760
        %v1762 = vpop.f32.mrf.mxu0
        %v1763 = vpop.f32.mrf.mxu0
        %v1764 = vpop.f32.mrf.mxu0
        %1765 = vdwg.mxu0
        %vm1766 = vcmask 130048
        %v1767 = vsel %vm1766, %v1761, -inf
        %1768 = vmax.xlane.f32.xlu0 %v1767
        %v1769 = vpop.xlane.xlu0 %1768
        %v1770 = vsub.f32 %v1761, %v1769
        %v1771 = vmul.f32 %v1770, 1.442695
        %v1772 = vpow.pop %v1771
        %v1773 = vsel %vm1766, %v1772, 0.0
        %1774 = vadd.xlane.f32.xlu0 %v1773
        %v1775 = vpop.xlane.xlu0 %1774
        %v1776 = vrcp.pop %v1775
        %v1777 = vmul.f32 %v1772, %v1776
        %v1778 = vadd.f32 %v1777, 0.0
        %v1779 = vpack.c.bf16 %v1777, %v1777
        %1781 = vrot.lane.b32.xlu0 %v1719, 96
        %v1782 = vpop.permute.xlu0 %1781
        %v1785 = vsel %vm1766, %v1779, 0
        %1787 = vmatprep.subr.bf16.mxu0 0
        %1788 = vmatpush1.bf16.msra.mxu0 0
        %1789 = vmatprep.subr.bf16.mxu0 0
        %1790 = vmatpush1.bf16.msra.mxu0 0
        %1791 = vmatprep.subr.bf16.mxu0 0
        %1792 = vmatpush1.bf16.msra.mxu0 0
        %1793 = vmatprep.subr.bf16.mxu0 0
        %1794 = vmatpush1.bf16.msra.mxu0 0
        %1795 = vmatprep.subr.bf16.mxu0 0
        %1796 = vmatpush1.bf16.msra.mxu0 0
        %1797 = vmatprep.subr.bf16.mxu0 0
        %1798 = vmatpush1.bf16.msra.mxu0 0
        %1799 = vmatprep.subr.bf16.mxu0 0
        %1800 = vmatpush1.bf16.msra.mxu0 0
        %1801 = vmatprep.subr.bf16.mxu0 0
        %1802 = vmatpush1.bf16.msra.mxu0 %v1782
        %1803 = vmatprep.subr.bf16.mxu0 0
        %1804 = vmatpush2.bf16.msra.mxu0 0
        %1805 = vmatprep.subr.bf16.mxu0 0
        %1806 = vmatpush2.bf16.msra.mxu0 0
        %1807 = vmatprep.subr.bf16.mxu0 0
        %1808 = vmatpush2.bf16.msra.mxu0 0
        %1809 = vmatprep.subr.bf16.mxu0 0
        %1810 = vmatpush2.bf16.msra.mxu0 0
        %1811 = vmatprep.subr.bf16.mxu0 0
        %1812 = vmatpush2.bf16.msra.mxu0 0
        %1813 = vmatprep.subr.bf16.mxu0 0
        %1814 = vmatpush2.bf16.msra.mxu0 0
        %1815 = vmatprep.subr.bf16.mxu0 0
        %1816 = vmatpush2.bf16.msra.mxu0 0
        %1817 = vmatprep.subr.bf16.mxu0 0
        %1818 = vmatpush2.bf16.msra.mxu0 0
        %1819 = vmatprep.mubr.bf16.mxu0 0
        %1820 = vmatmul.mubr.bf16.gmra.mxu0 %v1785
        %v1821 = vpop.f32.mrf.mxu0
        %v1822 = vadd.f32 0.0, %v1821
        %v1823 = vpop.f32.mrf.mxu0
        %v1824 = vpop.f32.mrf.mxu0
        %v1825 = vpop.f32.mrf.mxu0
        %1826 = vdwg.mxu0
        %v1827 = vpack.c.bf16 %v1822, %v1822
        %1828 = vst.msk [vmem:[#allocation2] sm:$0xf] %vm1127, %v1827
        %1830 = vrot.lane.b32.xlu0 %v1718, 120
        %v1831 = vpop.permute.xlu0 %1830
        %1832 = vrot.lane.b32.xlu0 %v1719, 120
        %v1833 = vpop.permute.xlu0 %1832
        %v1835 = vsel %vm1018, %v1831, 0
        %v1838 = vsel %vm1018, %v1833, 0
        %1840 = vmatprep.subr.bf16.mxu0 0
        %1841 = vmatpush1.bf16.xpose.msra.mxu0 0
        %1842 = vmatprep.subr.bf16.mxu0 0
        %1843 = vmatpush1.bf16.xpose.msra.mxu0 0
        %1844 = vmatprep.subr.bf16.mxu0 0
        %1845 = vmatpush1.bf16.xpose.msra.mxu0 0
        %1846 = vmatprep.subr.bf16.mxu0 0
        %1847 = vmatpush1.bf16.xpose.msra.mxu0 0
        %1848 = vmatprep.subr.bf16.mxu0 0
        %1849 = vmatpush1.bf16.xpose.msra.mxu0 0
        %1850 = vmatprep.subr.bf16.mxu0 0
        %1851 = vmatpush1.bf16.xpose.msra.mxu0 0
        %1852 = vmatprep.subr.bf16.mxu0 0
        %1853 = vmatpush1.bf16.xpose.msra.mxu0 0
        %1854 = vmatprep.subr.bf16.mxu0 0
        %1855 = vmatpush1.bf16.xpose.msra.mxu0 %v1838
        %1856 = vmatprep.subr.bf16.mxu0 0
        %1857 = vmatpush2.bf16.xpose.msra.mxu0 0
        %1858 = vmatprep.subr.bf16.mxu0 0
        %1859 = vmatpush2.bf16.xpose.msra.mxu0 0
        %1860 = vmatprep.subr.bf16.mxu0 0
        %1861 = vmatpush2.bf16.xpose.msra.mxu0 0
        %1862 = vmatprep.subr.bf16.mxu0 0
        %1863 = vmatpush2.bf16.xpose.msra.mxu0 0
        %1864 = vmatprep.subr.bf16.mxu0 0
        %1865 = vmatpush2.bf16.xpose.msra.mxu0 0
        %1866 = vmatprep.subr.bf16.mxu0 0
        %1867 = vmatpush2.bf16.xpose.msra.mxu0 0
        %1868 = vmatprep.subr.bf16.mxu0 0
        %1869 = vmatpush2.bf16.xpose.msra.mxu0 0
        %1870 = vmatprep.subr.bf16.mxu0 0
        %1871 = vmatpush2.bf16.xpose.msra.mxu0 0
        %1872 = vmatprep.mubr.bf16.mxu0 0
        %1873 = vmatmul.mubr.bf16.gmra.mxu0 %v1835
        %v1874 = vpop.f32.mrf.mxu0
        %v1875 = vadd.f32 0.0, %v1874
        %v1876 = vpop.f32.mrf.mxu0
        %v1877 = vpop.f32.mrf.mxu0
        %v1878 = vpop.f32.mrf.mxu0
        %1879 = vdwg.mxu0
        %v1880 = vsel %vm1766, %v1875, -inf
        %1881 = vmax.xlane.f32.xlu0 %v1880
        %v1882 = vpop.xlane.xlu0 %1881
        %v1883 = vsub.f32 %v1875, %v1882
        %v1884 = vmul.f32 %v1883, 1.442695
        %v1885 = vpow.pop %v1884
        %v1886 = vsel %vm1766, %v1885, 0.0
        %1887 = vadd.xlane.f32.xlu0 %v1886
        %v1888 = vpop.xlane.xlu0 %1887
        %v1889 = vrcp.pop %v1888
        %v1890 = vmul.f32 %v1885, %v1889
        %v1891 = vadd.f32 %v1778, %v1890
        %v1892 = vpack.c.bf16 %v1890, %v1890
        %1893 = vrot.lane.b32.xlu0 %v1719, 88
        %v1894 = vpop.permute.xlu0 %1893
        %v1897 = vsel %vm1766, %v1892, 0
        %1899 = vmatprep.subr.bf16.mxu0 0
        %1900 = vmatpush1.bf16.msra.mxu0 0
        %1901 = vmatprep.subr.bf16.mxu0 0
        %1902 = vmatpush1.bf16.msra.mxu0 0
        %1903 = vmatprep.subr.bf16.mxu0 0
        %1904 = vmatpush1.bf16.msra.mxu0 0
        %1905 = vmatprep.subr.bf16.mxu0 0
        %1906 = vmatpush1.bf16.msra.mxu0 0
        %1907 = vmatprep.subr.bf16.mxu0 0
        %1908 = vmatpush1.bf16.msra.mxu0 0
        %1909 = vmatprep.subr.bf16.mxu0 0
        %1910 = vmatpush1.bf16.msra.mxu0 0
        %1911 = vmatprep.subr.bf16.mxu0 0
        %1912 = vmatpush1.bf16.msra.mxu0 0
        %1913 = vmatprep.subr.bf16.mxu0 0
        %1914 = vmatpush1.bf16.msra.mxu0 %v1894
        %1915 = vmatprep.subr.bf16.mxu0 0
        %1916 = vmatpush2.bf16.msra.mxu0 0
        %1917 = vmatprep.subr.bf16.mxu0 0
        %1918 = vmatpush2.bf16.msra.mxu0 0
        %1919 = vmatprep.subr.bf16.mxu0 0
        %1920 = vmatpush2.bf16.msra.mxu0 0
        %1921 = vmatprep.subr.bf16.mxu0 0
        %1922 = vmatpush2.bf16.msra.mxu0 0
        %1923 = vmatprep.subr.bf16.mxu0 0
        %1924 = vmatpush2.bf16.msra.mxu0 0
        %1925 = vmatprep.subr.bf16.mxu0 0
        %1926 = vmatpush2.bf16.msra.mxu0 0
        %1927 = vmatprep.subr.bf16.mxu0 0
        %1928 = vmatpush2.bf16.msra.mxu0 0
        %1929 = vmatprep.subr.bf16.mxu0 0
        %1930 = vmatpush2.bf16.msra.mxu0 0
        %1931 = vmatprep.mubr.bf16.mxu0 0
        %1932 = vmatmul.mubr.bf16.gmra.mxu0 %v1897
        %v1933 = vpop.f32.mrf.mxu0
        %v1934 = vadd.f32 0.0, %v1933
        %v1935 = vpop.f32.mrf.mxu0
        %v1936 = vpop.f32.mrf.mxu0
        %v1937 = vpop.f32.mrf.mxu0
        %1938 = vdwg.mxu0
        %v1939 = vpack.c.bf16 %v1934, %v1934
        %v1941 = vunpack.c.l.b16 %v1939
        %v1942 = vpack.c.b16 %v1941, %v1941
        %1943 = vrot.lane.b32.xlu0 %v1942, 8
        %v1944 = vpop.permute.xlu0 %1943
        %1946 = vst.msk [vmem:[#allocation2] sm:$0xf] %vm1246, %v1944
        %1947 = vrot.lane.b32.xlu0 %v1718, 112
        %v1948 = vpop.permute.xlu0 %1947
        %1949 = vrot.lane.b32.xlu0 %v1719, 112
        %v1950 = vpop.permute.xlu0 %1949
        %v1952 = vsel %vm1018, %v1948, 0
        %v1955 = vsel %vm1018, %v1950, 0
        %1957 = vmatprep.subr.bf16.mxu0 0
        %1958 = vmatpush1.bf16.xpose.msra.mxu0 0
        %1959 = vmatprep.subr.bf16.mxu0 0
        %1960 = vmatpush1.bf16.xpose.msra.mxu0 0
        %1961 = vmatprep.subr.bf16.mxu0 0
        %1962 = vmatpush1.bf16.xpose.msra.mxu0 0
        %1963 = vmatprep.subr.bf16.mxu0 0
        %1964 = vmatpush1.bf16.xpose.msra.mxu0 0
        %1965 = vmatprep.subr.bf16.mxu0 0
        %1966 = vmatpush1.bf16.xpose.msra.mxu0 0
        %1967 = vmatprep.subr.bf16.mxu0 0
        %1968 = vmatpush1.bf16.xpose.msra.mxu0 0
        %1969 = vmatprep.subr.bf16.mxu0 0
        %1970 = vmatpush1.bf16.xpose.msra.mxu0 0
        %1971 = vmatprep.subr.bf16.mxu0 0
        %1972 = vmatpush1.bf16.xpose.msra.mxu0 %v1955
        %1973 = vmatprep.subr.bf16.mxu0 0
        %1974 = vmatpush2.bf16.xpose.msra.mxu0 0
        %1975 = vmatprep.subr.bf16.mxu0 0
        %1976 = vmatpush2.bf16.xpose.msra.mxu0 0
        %1977 = vmatprep.subr.bf16.mxu0 0
        %1978 = vmatpush2.bf16.xpose.msra.mxu0 0
        %1979 = vmatprep.subr.bf16.mxu0 0
        %1980 = vmatpush2.bf16.xpose.msra.mxu0 0
        %1981 = vmatprep.subr.bf16.mxu0 0
        %1982 = vmatpush2.bf16.xpose.msra.mxu0 0
        %1983 = vmatprep.subr.bf16.mxu0 0
        %1984 = vmatpush2.bf16.xpose.msra.mxu0 0
        %1985 = vmatprep.subr.bf16.mxu0 0
        %1986 = vmatpush2.bf16.xpose.msra.mxu0 0
        %1987 = vmatprep.subr.bf16.mxu0 0
        %1988 = vmatpush2.bf16.xpose.msra.mxu0 0
        %1989 = vmatprep.mubr.bf16.mxu0 0
        %1990 = vmatmul.mubr.bf16.gmra.mxu0 %v1952
        %v1991 = vpop.f32.mrf.mxu0
        %v1992 = vadd.f32 0.0, %v1991
        %v1993 = vpop.f32.mrf.mxu0
        %v1994 = vpop.f32.mrf.mxu0
        %v1995 = vpop.f32.mrf.mxu0
        %1996 = vdwg.mxu0
        %v1997 = vsel %vm1766, %v1992, -inf
        %1998 = vmax.xlane.f32.xlu0 %v1997
        %v1999 = vpop.xlane.xlu0 %1998
        %v2000 = vsub.f32 %v1992, %v1999
        %v2001 = vmul.f32 %v2000, 1.442695
        %v2002 = vpow.pop %v2001
        %v2003 = vsel %vm1766, %v2002, 0.0
        %2004 = vadd.xlane.f32.xlu0 %v2003
        %v2005 = vpop.xlane.xlu0 %2004
        %v2006 = vrcp.pop %v2005
        %v2007 = vmul.f32 %v2002, %v2006
        %v2008 = vadd.f32 %v1891, %v2007
        %v2009 = vpack.c.bf16 %v2007, %v2007
        %2010 = vrot.lane.b32.xlu0 %v1719, 80
        %v2011 = vpop.permute.xlu0 %2010
        %v2014 = vsel %vm1766, %v2009, 0
        %2016 = vmatprep.subr.bf16.mxu0 0
        %2017 = vmatpush1.bf16.msra.mxu0 0
        %2018 = vmatprep.subr.bf16.mxu0 0
        %2019 = vmatpush1.bf16.msra.mxu0 0
        %2020 = vmatprep.subr.bf16.mxu0 0
        %2021 = vmatpush1.bf16.msra.mxu0 0
        %2022 = vmatprep.subr.bf16.mxu0 0
        %2023 = vmatpush1.bf16.msra.mxu0 0
        %2024 = vmatprep.subr.bf16.mxu0 0
        %2025 = vmatpush1.bf16.msra.mxu0 0
        %2026 = vmatprep.subr.bf16.mxu0 0
        %2027 = vmatpush1.bf16.msra.mxu0 0
        %2028 = vmatprep.subr.bf16.mxu0 0
        %2029 = vmatpush1.bf16.msra.mxu0 0
        %2030 = vmatprep.subr.bf16.mxu0 0
        %2031 = vmatpush1.bf16.msra.mxu0 %v2011
        %2032 = vmatprep.subr.bf16.mxu0 0
        %2033 = vmatpush2.bf16.msra.mxu0 0
        %2034 = vmatprep.subr.bf16.mxu0 0
        %2035 = vmatpush2.bf16.msra.mxu0 0
        %2036 = vmatprep.subr.bf16.mxu0 0
        %2037 = vmatpush2.bf16.msra.mxu0 0
        %2038 = vmatprep.subr.bf16.mxu0 0
        %2039 = vmatpush2.bf16.msra.mxu0 0
        %2040 = vmatprep.subr.bf16.mxu0 0
        %2041 = vmatpush2.bf16.msra.mxu0 0
        %2042 = vmatprep.subr.bf16.mxu0 0
        %2043 = vmatpush2.bf16.msra.mxu0 0
        %2044 = vmatprep.subr.bf16.mxu0 0
        %2045 = vmatpush2.bf16.msra.mxu0 0
        %2046 = vmatprep.subr.bf16.mxu0 0
        %2047 = vmatpush2.bf16.msra.mxu0 0
        %2048 = vmatprep.mubr.bf16.mxu0 0
        %2049 = vmatmul.mubr.bf16.gmra.mxu0 %v2014
        %v2050 = vpop.f32.mrf.mxu0
        %v2051 = vadd.f32 0.0, %v2050
        %v2052 = vpop.f32.mrf.mxu0
        %v2053 = vpop.f32.mrf.mxu0
        %v2054 = vpop.f32.mrf.mxu0
        %2055 = vdwg.mxu0
        %v2056 = vpack.c.bf16 %v2051, %v2051
        %v2058 = vunpack.c.l.b16 %v2056
        %v2059 = vpack.c.b16 %v2058, %v2058
        %2060 = vrot.lane.b32.xlu0 %v2059, 16
        %v2061 = vpop.permute.xlu0 %2060
        %2063 = vst.msk [vmem:[#allocation2] sm:$0xf] %vm1365, %v2061
        %2064 = vrot.lane.b32.xlu0 %v1718, 104
        %v2065 = vpop.permute.xlu0 %2064
        %2066 = vrot.lane.b32.xlu0 %v1719, 104
        %v2067 = vpop.permute.xlu0 %2066
        %v2069 = vsel %vm1018, %v2065, 0
        %v2072 = vsel %vm1018, %v2067, 0
        %2074 = vmatprep.subr.bf16.mxu0 0
        %2075 = vmatpush1.bf16.xpose.msra.mxu0 0
        %2076 = vmatprep.subr.bf16.mxu0 0
        %2077 = vmatpush1.bf16.xpose.msra.mxu0 0
        %2078 = vmatprep.subr.bf16.mxu0 0
        %2079 = vmatpush1.bf16.xpose.msra.mxu0 0
        %2080 = vmatprep.subr.bf16.mxu0 0
        %2081 = vmatpush1.bf16.xpose.msra.mxu0 0
        %2082 = vmatprep.subr.bf16.mxu0 0
        %2083 = vmatpush1.bf16.xpose.msra.mxu0 0
        %2084 = vmatprep.subr.bf16.mxu0 0
        %2085 = vmatpush1.bf16.xpose.msra.mxu0 0
        %2086 = vmatprep.subr.bf16.mxu0 0
        %2087 = vmatpush1.bf16.xpose.msra.mxu0 0
        %2088 = vmatprep.subr.bf16.mxu0 0
        %2089 = vmatpush1.bf16.xpose.msra.mxu0 %v2072
        %2090 = vmatprep.subr.bf16.mxu0 0
        %2091 = vmatpush2.bf16.xpose.msra.mxu0 0
        %2092 = vmatprep.subr.bf16.mxu0 0
        %2093 = vmatpush2.bf16.xpose.msra.mxu0 0
        %2094 = vmatprep.subr.bf16.mxu0 0
        %2095 = vmatpush2.bf16.xpose.msra.mxu0 0
        %2096 = vmatprep.subr.bf16.mxu0 0
        %2097 = vmatpush2.bf16.xpose.msra.mxu0 0
        %2098 = vmatprep.subr.bf16.mxu0 0
        %2099 = vmatpush2.bf16.xpose.msra.mxu0 0
        %2100 = vmatprep.subr.bf16.mxu0 0
        %2101 = vmatpush2.bf16.xpose.msra.mxu0 0
        %2102 = vmatprep.subr.bf16.mxu0 0
        %2103 = vmatpush2.bf16.xpose.msra.mxu0 0
        %2104 = vmatprep.subr.bf16.mxu0 0
        %2105 = vmatpush2.bf16.xpose.msra.mxu0 0
        %2106 = vmatprep.mubr.bf16.mxu0 0
        %2107 = vmatmul.mubr.bf16.gmra.mxu0 %v2069
        %v2108 = vpop.f32.mrf.mxu0
        %v2109 = vadd.f32 0.0, %v2108
        %v2110 = vpop.f32.mrf.mxu0
        %v2111 = vpop.f32.mrf.mxu0
        %v2112 = vpop.f32.mrf.mxu0
        %2113 = vdwg.mxu0
        %v2114 = vsel %vm1766, %v2109, -inf
        %2115 = vmax.xlane.f32.xlu0 %v2114
        %v2116 = vpop.xlane.xlu0 %2115
        %v2117 = vsub.f32 %v2109, %v2116
        %v2118 = vmul.f32 %v2117, 1.442695
        %v2119 = vpow.pop %v2118
        %v2120 = vsel %vm1766, %v2119, 0.0
        %2121 = vadd.xlane.f32.xlu0 %v2120
        %v2122 = vpop.xlane.xlu0 %2121
        %v2123 = vrcp.pop %v2122
        %v2124 = vmul.f32 %v2119, %v2123
        %v2125 = vadd.f32 %v2008, %v2124
        %v2126 = vpack.c.bf16 %v2124, %v2124
        %2127 = vrot.lane.b32.xlu0 %v1719, 72
        %v2128 = vpop.permute.xlu0 %2127
        %v2131 = vsel %vm1766, %v2126, 0
        %2133 = vmatprep.subr.bf16.mxu0 0
        %2134 = vmatpush1.bf16.msra.mxu0 0
        %2135 = vmatprep.subr.bf16.mxu0 0
        %2136 = vmatpush1.bf16.msra.mxu0 0
        %2137 = vmatprep.subr.bf16.mxu0 0
        %2138 = vmatpush1.bf16.msra.mxu0 0
        %2139 = vmatprep.subr.bf16.mxu0 0
        %2140 = vmatpush1.bf16.msra.mxu0 0
        %2141 = vmatprep.subr.bf16.mxu0 0
        %2142 = vmatpush1.bf16.msra.mxu0 0
        %2143 = vmatprep.subr.bf16.mxu0 0
        %2144 = vmatpush1.bf16.msra.mxu0 0
        %2145 = vmatprep.subr.bf16.mxu0 0
        %2146 = vmatpush1.bf16.msra.mxu0 0
        %2147 = vmatprep.subr.bf16.mxu0 0
        %2148 = vmatpush1.bf16.msra.mxu0 %v2128
        %2149 = vmatprep.subr.bf16.mxu0 0
        %2150 = vmatpush2.bf16.msra.mxu0 0
        %2151 = vmatprep.subr.bf16.mxu0 0
        %2152 = vmatpush2.bf16.msra.mxu0 0
        %2153 = vmatprep.subr.bf16.mxu0 0
        %2154 = vmatpush2.bf16.msra.mxu0 0
        %2155 = vmatprep.subr.bf16.mxu0 0
        %2156 = vmatpush2.bf16.msra.mxu0 0
        %2157 = vmatprep.subr.bf16.mxu0 0
        %2158 = vmatpush2.bf16.msra.mxu0 0
        %2159 = vmatprep.subr.bf16.mxu0 0
        %2160 = vmatpush2.bf16.msra.mxu0 0
        %2161 = vmatprep.subr.bf16.mxu0 0
        %2162 = vmatpush2.bf16.msra.mxu0 0
        %2163 = vmatprep.subr.bf16.mxu0 0
        %2164 = vmatpush2.bf16.msra.mxu0 0
        %2165 = vmatprep.mubr.bf16.mxu0 0
        %2166 = vmatmul.mubr.bf16.gmra.mxu0 %v2131
        %v2167 = vpop.f32.mrf.mxu0
        %v2168 = vadd.f32 0.0, %v2167
        %v2169 = vpop.f32.mrf.mxu0
        %v2170 = vpop.f32.mrf.mxu0
        %v2171 = vpop.f32.mrf.mxu0
        %2172 = vdwg.mxu0
        %v2173 = vpack.c.bf16 %v2168, %v2168
        %v2175 = vunpack.c.l.b16 %v2173
        %v2176 = vpack.c.b16 %v2175, %v2175
        %2177 = vrot.lane.b32.xlu0 %v2176, 24
        %v2178 = vpop.permute.xlu0 %2177
        %2180 = vst.msk [vmem:[#allocation2] sm:$0xf] %vm1484, %v2178
        %v2181 = vld [vmem:[#allocation2] sm:$0xf]
        %v2182 = vld [vmem:[#allocation18] sm:$0xf]
        %v2183 = vld [vmem:[#allocation18 + $0x4] sm:$0xf]
        %v2184 = vld [vmem:[#allocation18 + $0x8] sm:$0xf]
        %v2185 = vld [vmem:[#allocation18 + $0xc] sm:$0xf]
        %v2186 = vld [vmem:[#allocation20] sm:$0x1]
        %v2188 = vlaneseq
        %v2189 = vshrl.u32 %v2188, 7
        %v2190 = vsub.s32 0, %v2189
        %v2191 = vrot.slane %v2186, %v2190
        %v2197 = vunpack.c.l.b16 %v2182
        %v2198 = vunpack.c.l.b16 %v2183
        %v2199 = vunpack.c.l.b16 %v2184
        %v2200 = vunpack.c.l.b16 %v2185
        %v2201 = vpack.c.b16 %v2198, %v2197
        %v2202 = vpack.c.b16 %v2200, %v2199
        %v2206 = vsel %vm964, %v2181, 0
        %2208 = vmatprep.subr.bf16.mxu0 0
        %2209 = vmatpush1.bf16.msra.mxu0 0
        %2210 = vmatprep.subr.bf16.mxu0 0
        %2211 = vmatpush1.bf16.msra.mxu0 0
        %2212 = vmatprep.subr.bf16.mxu0 0
        %2213 = vmatpush1.bf16.msra.mxu0 0
        %2214 = vmatprep.subr.bf16.mxu0 0
        %2215 = vmatpush1.bf16.msra.mxu0 0
        %2216 = vmatprep.subr.bf16.mxu0 0
        %2217 = vmatpush1.bf16.msra.mxu0 0
        %2218 = vmatprep.subr.bf16.mxu0 0
        %2219 = vmatpush1.bf16.msra.mxu0 0
        %2220 = vmatprep.subr.bf16.mxu0 0
        %2221 = vmatpush1.bf16.msra.mxu0 %v2202
        %2222 = vmatprep.subr.bf16.mxu0 0
        %2223 = vmatpush1.bf16.msra.mxu0 %v2201
        %2224 = vmatprep.subr.bf16.mxu0 0
        %2225 = vmatpush2.bf16.msra.mxu0 0
        %2226 = vmatprep.subr.bf16.mxu0 0
        %2227 = vmatpush2.bf16.msra.mxu0 0
        %2228 = vmatprep.subr.bf16.mxu0 0
        %2229 = vmatpush2.bf16.msra.mxu0 0
        %2230 = vmatprep.subr.bf16.mxu0 0
        %2231 = vmatpush2.bf16.msra.mxu0 0
        %2232 = vmatprep.subr.bf16.mxu0 0
        %2233 = vmatpush2.bf16.msra.mxu0 0
        %2234 = vmatprep.subr.bf16.mxu0 0
        %2235 = vmatpush2.bf16.msra.mxu0 0
        %2236 = vmatprep.subr.bf16.mxu0 0
        %2237 = vmatpush2.bf16.msra.mxu0 0
        %2238 = vmatprep.subr.bf16.mxu0 0
        %2239 = vmatpush2.bf16.msra.mxu0 0
        %2240 = vmatprep.mubr.bf16.mxu0 0
        %2241 = vmatmul.mubr.bf16.gmra.mxu0 %v2206
        %v2242 = vpop.f32.mrf.mxu0
        %v2243 = vadd.f32 %v2191, %v2242
        %v2244 = vpop.f32.mrf.mxu0
        %v2245 = vpop.f32.mrf.mxu0
        %v2246 = vpop.f32.mrf.mxu0
        %2247 = vdwg.mxu0
        %v2248 = vmul.f32 %v2125, 0.25
        %v2249 = vadd.f32 %v2243, %v1583
        %v2250 = vld [vmem:[#allocation21] sm:$0x1]
        %v2251 = vld [vmem:[#allocation23] sm:$0x1]
        %v2252 = vsel %vm964, %v2249, 0.0
        %2253 = vadd.xlane.f32.xlu0 %v2252
        %v2254 = vpop.xlane.xlu0 %2253
        %v2255 = vmul.f32 %v2254, %v1559
        %v2256 = vsub.f32 %v2249, %v2255
        %v2257 = vmul.f32 %v2256, %v2256
        %v2258 = vsel %vm964, %v2257, 0.0
        %2259 = vadd.xlane.f32.xlu0 %v2258
        %v2260 = vpop.xlane.xlu0 %2259
        %v2261 = vmul.f32 %v2260, %v1559
        %v2262 = vadd.f32 %v2261, 1e-05
        %v2263 = vrsqrt.pop %v2262
        %v2264 = vmul.f32 %v2256, %v2263
        %v2266 = vlaneseq
        %v2267 = vshrl.u32 %v2266, 7
        %v2268 = vsub.s32 0, %v2267
        %v2269 = vrot.slane %v2250, %v2268
        %v2271 = vmul.f32 %v2264, %v2269
        %v2273 = vlaneseq
        %v2274 = vshrl.u32 %v2273, 7
        %v2275 = vsub.s32 0, %v2274
        %v2276 = vrot.slane %v2251, %v2275
        %v2278 = vadd.f32 %v2271, %v2276
        %v2279 = vpack.c.bf16 %v2278, %v2278
        %v2280 = vld [vmem:[#allocation24] sm:$0xf]
        %v2281 = vld [vmem:[#allocation24 + $0x4] sm:$0xf]
        %v2282 = vld [vmem:[#allocation24 + $0x8] sm:$0xf]
        %v2283 = vld [vmem:[#allocation24 + $0xc] sm:$0xf]
        %v2284 = vld [vmem:[#allocation26] sm:$0x1]
        %v2286 = vlaneseq
        %v2287 = vshrl.u32 %v2286, 7
        %v2288 = vsub.s32 0, %v2287
        %v2289 = vrot.slane %v2284, %v2288
        %v2295 = vunpack.c.l.b16 %v2280
        %v2296 = vunpack.c.l.b16 %v2281
        %v2297 = vunpack.c.l.b16 %v2282
        %v2298 = vunpack.c.l.b16 %v2283
        %v2299 = vpack.c.b16 %v2296, %v2295
        %v2300 = vpack.c.b16 %v2298, %v2297
        %v2304 = vsel %vm964, %v2279, 0
        %2306 = vmatprep.subr.bf16.mxu0 0
        %2307 = vmatpush1.bf16.msra.mxu0 0
        %2308 = vmatprep.subr.bf16.mxu0 0
        %2309 = vmatpush1.bf16.msra.mxu0 0
        %2310 = vmatprep.subr.bf16.mxu0 0
        %2311 = vmatpush1.bf16.msra.mxu0 0
        %2312 = vmatprep.subr.bf16.mxu0 0
        %2313 = vmatpush1.bf16.msra.mxu0 0
        %2314 = vmatprep.subr.bf16.mxu0 0
        %2315 = vmatpush1.bf16.msra.mxu0 0
        %2316 = vmatprep.subr.bf16.mxu0 0
        %2317 = vmatpush1.bf16.msra.mxu0 0
        %2318 = vmatprep.subr.bf16.mxu0 0
        %2319 = vmatpush1.bf16.msra.mxu0 %v2300
        %2320 = vmatprep.subr.bf16.mxu0 0
        %2321 = vmatpush1.bf16.msra.mxu0 %v2299
        %2322 = vmatprep.subr.bf16.mxu0 0
        %2323 = vmatpush2.bf16.msra.mxu0 0
        %2324 = vmatprep.subr.bf16.mxu0 0
        %2325 = vmatpush2.bf16.msra.mxu0 0
        %2326 = vmatprep.subr.bf16.mxu0 0
        %2327 = vmatpush2.bf16.msra.mxu0 0
        %2328 = vmatprep.subr.bf16.mxu0 0
        %2329 = vmatpush2.bf16.msra.mxu0 0
        %2330 = vmatprep.subr.bf16.mxu0 0
        %2331 = vmatpush2.bf16.msra.mxu0 0
        %2332 = vmatprep.subr.bf16.mxu0 0
        %2333 = vmatpush2.bf16.msra.mxu0 0
        %2334 = vmatprep.subr.bf16.mxu0 0
        %2335 = vmatpush2.bf16.msra.mxu0 0
        %2336 = vmatprep.subr.bf16.mxu0 0
        %2337 = vmatpush2.bf16.msra.mxu0 0
        %2338 = vmatprep.mubr.bf16.mxu0 0
        %2339 = vmatmul.mubr.bf16.gmra.mxu0 %v2304
        %v2340 = vpop.f32.mrf.mxu0
        %v2341 = vadd.f32 %v2289, %v2340
        %v2342 = vpop.f32.mrf.mxu0
        %v2343 = vpop.f32.mrf.mxu0
        %v2344 = vpop.f32.mrf.mxu0
        %2345 = vdwg.mxu0
        %v2346 = vmax.f32 %v2341, 0.0
        %v2347 = vpack.c.bf16 %v2346, %v2346
        %v2348 = vld [vmem:[%s18] sm:$0xf]
        %v2349 = vld [vmem:[%s18 + $0x4] sm:$0xf]
        %v2350 = vld [vmem:[%s18 + $0x8] sm:$0xf]
        %v2351 = vld [vmem:[%s18 + $0xc] sm:$0xf]
        %v2352 = vld [vmem:[%s18 + $0x10] sm:$0xf]
        %v2353 = vld [vmem:[%s18 + $0x14] sm:$0xf]
        %v2354 = vld [vmem:[%s18 + $0x18] sm:$0xf]
        %v2355 = vld [vmem:[%s18 + $0x1c] sm:$0xf]
        %v2356 = vld [vmem:[%s19] sm:$0x1]
        %v2358 = vlaneseq
        %v2359 = vshrl.u32 %v2358, 7
        %v2360 = vsub.s32 0, %v2359
        %v2361 = vrot.slane %v2356, %v2360
        %v2371 = vunpack.c.l.b16 %v2348
        %v2372 = vunpack.c.l.b16 %v2349
        %v2373 = vunpack.c.l.b16 %v2350
        %v2374 = vunpack.c.l.b16 %v2351
        %v2375 = vunpack.c.l.b16 %v2352
        %v2376 = vunpack.c.l.b16 %v2353
        %v2377 = vunpack.c.l.b16 %v2354
        %v2378 = vunpack.c.l.b16 %v2355
        %v2379 = vpack.c.b16 %v2372, %v2371
        %v2380 = vpack.c.b16 %v2374, %v2373
        %v2381 = vpack.c.b16 %v2376, %v2375
        %v2382 = vpack.c.b16 %v2378, %v2377
        %vm2387 = vcmask 523264
        %v2389 = vsel %vm2387, %v2347, 0
        %2391 = vmatprep.subr.bf16.mxu0 0
        %2392 = vmatpush1.bf16.msra.mxu0 0
        %2393 = vmatprep.subr.bf16.mxu0 0
        %2394 = vmatpush1.bf16.msra.mxu0 0
        %2395 = vmatprep.subr.bf16.mxu0 0
        %2396 = vmatpush1.bf16.msra.mxu0 0
        %2397 = vmatprep.subr.bf16.mxu0 0
        %2398 = vmatpush1.bf16.msra.mxu0 0
        %2399 = vmatprep.subr.bf16.mxu0 0
        %2400 = vmatpush1.bf16.msra.mxu0 %v2382
        %2401 = vmatprep.subr.bf16.mxu0 0
        %2402 = vmatpush1.bf16.msra.mxu0 %v2381
        %2403 = vmatprep.subr.bf16.mxu0 0
        %2404 = vmatpush1.bf16.msra.mxu0 %v2380
        %2405 = vmatprep.subr.bf16.mxu0 0
        %2406 = vmatpush1.bf16.msra.mxu0 %v2379
        %2407 = vmatprep.subr.bf16.mxu0 0
        %2408 = vmatpush2.bf16.msra.mxu0 0
        %2409 = vmatprep.subr.bf16.mxu0 0
        %2410 = vmatpush2.bf16.msra.mxu0 0
        %2411 = vmatprep.subr.bf16.mxu0 0
        %2412 = vmatpush2.bf16.msra.mxu0 0
        %2413 = vmatprep.subr.bf16.mxu0 0
        %2414 = vmatpush2.bf16.msra.mxu0 0
        %2415 = vmatprep.subr.bf16.mxu0 0
        %2416 = vmatpush2.bf16.msra.mxu0 0
        %2417 = vmatprep.subr.bf16.mxu0 0
        %2418 = vmatpush2.bf16.msra.mxu0 0
        %2419 = vmatprep.subr.bf16.mxu0 0
        %2420 = vmatpush2.bf16.msra.mxu0 0
        %2421 = vmatprep.subr.bf16.mxu0 0
        %2422 = vmatpush2.bf16.msra.mxu0 0
        %2423 = vmatprep.mubr.bf16.mxu0 0
        %2424 = vmatmul.mubr.bf16.gmra.mxu0 %v2389
        %v2425 = vpop.f32.mrf.mxu0
        %v2426 = vadd.f32 %v2361, %v2425
        %v2427 = vpop.f32.mrf.mxu0
        %v2428 = vpop.f32.mrf.mxu0
        %v2429 = vpop.f32.mrf.mxu0
        %2430 = vdwg.mxu0
        %v2431 = vadd.f32 %v2426, %v2278
        %v2432 = vld [vmem:[%s20] sm:$0x1]
        %v2433 = vld [vmem:[%s21] sm:$0x1]
        %v2434 = vsel %vm964, %v2431, 0.0
        %2435 = vadd.xlane.f32.xlu0 %v2434
        %v2436 = vpop.xlane.xlu0 %2435
        %v2437 = vmul.f32 %v2436, %v1559
        %v2438 = vsub.f32 %v2431, %v2437
        %v2439 = vmul.f32 %v2438, %v2438
        %v2440 = vsel %vm964, %v2439, 0.0
        %2441 = vadd.xlane.f32.xlu0 %v2440
        %v2442 = vpop.xlane.xlu0 %2441
        %v2443 = vmul.f32 %v2442, %v1559
        %v2444 = vadd.f32 %v2443, 1e-05
        %v2445 = vrsqrt.pop %v2444
        %v2446 = vmul.f32 %v2438, %v2445
        %v2448 = vlaneseq
        %v2449 = vshrl.u32 %v2448, 7
        %v2450 = vsub.s32 0, %v2449
        %v2451 = vrot.slane %v2432, %v2450
        %v2453 = vmul.f32 %v2446, %v2451
        %v2455 = vlaneseq
        %v2456 = vshrl.u32 %v2455, 7
        %v2457 = vsub.s32 0, %v2456
        %v2458 = vrot.slane %v2433, %v2457
        %v2460 = vadd.f32 %v2453, %v2458
        %2461 = vst.msk [vmem:[%s918] sm:$0xff] %vm964, %v2460
        %v2462 = vpack.c.bf16 %v2248, %v2248
        %vm2463 = vcmask 125952
        %2464 = vst.msk [vmem:[%s925] sm:$0xf] %vm2463, %v2462
        %s2465 = sand.u32 %s529, 1
        %s2466 = scalar_lea.sflag [#allocation5], %s2465
        %s2467 = sand.u32 %s529, 1
        %s2468 = smul.addr %s2467, 8
        %s2469 = scalar_lea.vmem [#allocation27], %s2468
        %s2470 = sand.u32 %s555, 1
        %s2471 = scalar_lea.sflag [#allocation29], %s2470
        %s2472 = sand.u32 %s555, 1
        %s2473 = smul.addr %s2472, 4
        %s2474 = scalar_lea.vmem [#allocation28], %s2473
        // Predicated region
        $region169: #{tpu_custom_call.1} parent=107 // pred_check
          %p2475 = pneg %p539
        $region170: #{tpu_custom_call.1} parent=107 // pred_check_branch
          %2477 = sbr.rel (%p2475) target = $region172
        $region171: #{tpu_custom_call.1} parent=107 // pred_region
          %s2479 = ssub.s32 128, 128
          %2480 = vsyncadd %s2466, %s2479
          %s2481 = smul.addr %s49, 128
          %s2482 = scalar_lea.hbm %s22, %s2481
          %s2484 = sshll.u32 %s2469, 4
          %s2485 = int_to_ptr.vmem [resolvable:$true] %s2484
          %2487 = dma.vmem_to_hbm [thread:$0]  %s2485, 128, %s2482, %s2466
        $region172: #{tpu_custom_call.1} parent=107 // pred_fallthru
          _
        // Predicated region
        $region173: #{tpu_custom_call.1} parent=107 // pred_check
          %p2488 = pneg %p565
        $region174: #{tpu_custom_call.1} parent=107 // pred_check_branch
          %2490 = sbr.rel (%p2488) target = $region176
        $region175: #{tpu_custom_call.1} parent=107 // pred_region
          %s2492 = ssub.s32 64, 64
          %2493 = vsyncadd %s2471, %s2492
          %s2494 = smul.addr %s49, 64
          %s2495 = scalar_lea.hbm %s23, %s2494
          %s2497 = sshll.u32 %s2474, 4
          %s2498 = int_to_ptr.vmem [resolvable:$true] %s2497
          %2500 = dma.vmem_to_hbm [thread:$0]  %s2498, 64, %s2495, %s2471
        $region176: #{tpu_custom_call.1} parent=107 // pred_fallthru
          _
      $region108: #{tpu_custom_call.1} parent=5 // pred_fallthru
        _
      %p2501 = scmp.le.s32.totalorder 2, %s44
      // Predicated region
      $region177: #{tpu_custom_call.1} parent=5 // pred_check
        %p2502 = pneg %p2501
      $region178: #{tpu_custom_call.1} parent=5 // pred_check_branch
        %2504 = sbr.rel (%p2502) target = $region180
      $region179: #{tpu_custom_call.1} parent=5 // pred_region
        %s2505 = ssub.s32 %s44, 2
        // Predicated region
        $region181: #{tpu_custom_call.1} parent=179 // pred_check
          %p2506 = pneg %p545
        $region182: #{tpu_custom_call.1} parent=179 // pred_check_branch
          %2508 = sbr.rel (%p2506) target = $region184
        $region183: #{tpu_custom_call.1} parent=179 // pred_region
          %s2509 = sand.u32 %s530, 1
          %s2510 = scalar_lea.sflag [#allocation5], %s2509
          %s2511 = sand.u32 %s530, 1
          %s2512 = smul.addr %s2511, 8
          %s2513 = scalar_lea.vmem [#allocation27], %s2512
          %2514 = dma.done %s2510, 128
        $region184: #{tpu_custom_call.1} parent=179 // pred_fallthru
          _
        // Predicated region
        $region185: #{tpu_custom_call.1} parent=179 // pred_check
          %p2515 = pneg %p571
        $region186: #{tpu_custom_call.1} parent=179 // pred_check_branch
          %2517 = sbr.rel (%p2515) target = $region188
        $region187: #{tpu_custom_call.1} parent=179 // pred_region
          %s2518 = sand.u32 %s556, 1
          %s2519 = scalar_lea.sflag [#allocation29], %s2518
          %s2520 = sand.u32 %s556, 1
          %s2521 = smul.addr %s2520, 4
          %s2522 = scalar_lea.vmem [#allocation28], %s2521
          %2523 = dma.done %s2519, 64
        $region188: #{tpu_custom_call.1} parent=179 // pred_fallthru
          _
      $region180: #{tpu_custom_call.1} parent=5 // pred_fallthru
        _
    $region6: #{tpu_custom_call.1} parent=1 // loop_footer
      %s48 = sadd.s32 1, %s44
    $region7: #{tpu_custom_call.1} parent=1 // loop_footer_branch
      %43 = sbr.rel target = $region3
    $region8: #{tpu_custom_call.1} parent=1 // loop_exit
      _
    %2524 = vsyncpa [#allocation4], 1
    %s2525 = scalar_lea.sflag [#allocation4], 1
    %2526 = vsyncpa %s2525, 1
    %2527 = vsyncpa [#allocation7], 1
    %2528 = vsyncpa [#allocation10], 1
    %2529 = vsyncpa [#allocation13], 1
    %2530 = vsyncpa [#allocation16], 1
    %2531 = vsyncpa [#allocation19], 1
    %2532 = vsyncpa [#allocation22], 1
    %2533 = vsyncpa [#allocation25], 1
    %2534 = vsyncpa [#allocation5], 1
    %s2535 = scalar_lea.sflag [#allocation5], 1
    %2536 = vsyncpa %s2535, 1
    %2537 = vsyncpa [#allocation29], 1
    %s2538 = scalar_lea.sflag [#allocation29], 1
    %2539 = vsyncpa %s2538, 1

</llo_original>
